<compile_context>
chip_gen: v7x
topology: tpu7x:2x2x1
jax: 0.10.0
libtpu: 0.0.40
codegen_flags: <defaults>
</compile_context>

<pallas_src>
import jax
import jax.numpy as jnp
from jax import lax
from jax.experimental import pallas as pl
from jax.experimental.pallas import tpu as pltpu

BT = 8  # images per grid step


# ------------------------------ fused kernel -------------------------------


def _net_kernel(x_ref, m1_ref, b1_ref, m2_ref, b2_ref,
                g_ref, bf1_ref, wfc2_ref, bf2_ref, sel_ref, out_ref):
    f32, bf16 = jnp.float32, jnp.bfloat16
    h0 = x_ref.shape[0]          # BT*28 input rows
    h1n = h0 - 4                 # conv1 output rows (valid rows: i*28 + 0..23)
    h2n = h1n - 1                # pool1 row-max rows (valid: i*28 + 2p)
    h3n = h2n - 8                # conv2 output rows  (valid: i*28 + 2*oh)
    h4n = h3n - 2                # pool2 row-max rows (valid: i*28 + 4*P)

    x = x_ref[...]                                                  # (BT*28, 28) f32

    # ---- conv1 + bias + ReLU: 5 row-shifted banded matmuls (MXU) -----------
    acc = jnp.dot(x[0:h1n, :].astype(bf16), m1_ref[0],
                  preferred_element_type=f32)
    for kh in range(1, 5):
        acc += jnp.dot(x[kh:kh + h1n, :].astype(bf16), m1_ref[kh],
                       preferred_element_type=f32)
    h1 = jnp.maximum(acc + b1_ref[...], 0.0)                        # (H1, 512)

    # ---- pool1 (2x2, stride 2): pure VPU max, no selection matmuls ---------
    t1 = jnp.maximum(h1[0:h2n, :], h1[1:h2n + 1, :])                # row max
    u1 = jnp.maximum(t1[:, 0:256], t1[:, 256:512])                  # col max (aligned)

    # ---- conv2 + bias + ReLU: row stride 2 folded into tap offsets ---------
    acc = jnp.dot(u1[0:h3n, :].astype(bf16), m2_ref[0],
                  preferred_element_type=f32)
    for kh in range(1, 5):
        acc += jnp.dot(u1[2 * kh:2 * kh + h3n, :].astype(bf16), m2_ref[kh],
                       preferred_element_type=f32)
    h2 = jnp.maximum(acc + b2_ref[...], 0.0)                        # (H3, 512)

    # ---- pool2 --------------------------------------------------------------
    t2 = jnp.maximum(h2[0:h4n, :], h2[2:h4n + 2, :])
    u2 = jnp.maximum(t2[:, 0:256], t2[:, 256:512]).astype(bf16)     # (H4, 256)

    # ---- fc1 + ReLU: 0/1 selectors gather each image's 4 valid pooled rows;
    #      the torch NCHW flatten order is folded into g. ---------------------
    a1 = bf1_ref[...]                                               # (1, 512)
    for p in range(4):
        rows_p = jnp.dot(sel_ref[p], u2, preferred_element_type=f32)  # (BT, 256)
        a1 = a1 + jnp.dot(rows_p.astype(bf16), g_ref[p],
                          preferred_element_type=f32)
    a1 = jnp.maximum(a1, 0.0).astype(bf16)                          # (BT, 512)

    # ---- fc2 (padded to 128 output lanes -> lane-dense store) ---------------
    out_ref[...] = (jnp.dot(a1, wfc2_ref[...], preferred_element_type=f32)
                    + bf2_ref[...])                                 # (BT, 128)


# -------------------- host-side (one-time) weight re-layout -----------------


def _band_tensor(w_oihw, in_w, out_w):
    """T[kh, ic, v, ow, oc] = w[oc, ic, kh, v - ow] if 0 <= v - ow < KW else 0."""
    oc, ic, kh, kw = w_oihw.shape
    v = jnp.arange(in_w)
    ow = jnp.arange(out_w)
    d = v[:, None] - ow[None, :]                                    # (in_w, out_w)
    mask = ((d >= 0) & (d < kw)).astype(w_oihw.dtype)
    dcl = jnp.clip(d, 0, kw - 1)
    wt = jnp.transpose(w_oihw, (2, 3, 1, 0))                        # (KH, KW, IC, OC)
    t = wt[:, dcl, :, :] * mask[None, :, :, None, None]             # (KH, in_w, out_w, IC, OC)
    return jnp.transpose(t, (0, 3, 1, 2, 4))                        # (KH, IC, in_w, out_w, OC)


def prepare_params(params, bt=BT):
    """One-time re-layout of the PyTorch weights for the fused kernel.

    Output-column lane layout for both convs:  lane = (ow % 2)*256 + (ow//2)*C + oc
    so the 2x2 pool's column max is max(lanes[0:256], lanes[256:512]) and the
    even-column decimation is already folded into the next layer's weight rows.
    """
    f32, bf16 = jnp.float32, jnp.bfloat16
    w1 = params["conv1_w"].astype(f32)   # (20, 1, 5, 5)
    b1 = params["conv1_b"].astype(f32)
    w2 = params["conv2_w"].astype(f32)   # (50, 20, 5, 5)
    b2 = params["conv2_b"].astype(f32)
    fc1_w = params["fc1_w"].astype(f32)  # (500, 800)
    fc1_b = params["fc1_b"].astype(f32)
    fc2_w = params["fc2_w"].astype(f32)  # (10, 500)
    fc2_b = params["fc2_b"].astype(f32)

    # conv1 banded matrices: rows = input column v (0..27), cols = packed lanes.
    t1 = _band_tensor(w1, 28, 24).reshape(5, 28, 24, 20)            # (kh, v, ow, oc)
    t1 = t1.reshape(5, 28, 12, 2, 20)                                # ow = 2Q + par
    t1 = jnp.transpose(t1, (0, 1, 3, 2, 4)).reshape(5, 28, 2, 240)  # (kh, v, par, Q*20+oc)
    m1 = jnp.pad(t1, ((0, 0), (0, 0), (0, 0), (0, 16))).reshape(5, 28, 512)

    half1 = jnp.pad(jnp.tile(b1, 12), (0, 16))                       # lane = q*20 + oc
    b1r = jnp.concatenate([half1, half1]).reshape(1, 512)

    # conv2 banded matrices: rows = pooled lane q*20 + ic (padded to 256).
    t2 = _band_tensor(w2, 12, 8)                                     # (kh, ic, q, ow, oc)
    t2 = jnp.transpose(t2, (0, 2, 1, 3, 4)).reshape(5, 240, 8, 50)   # row = q*20 + ic
    t2 = jnp.pad(t2, ((0, 0), (0, 16), (0, 0), (0, 0)))              # rows 240..255 = 0
    t2 = t2.reshape(5, 256, 4, 2, 50)                                # ow = 2Q + par
    t2 = jnp.transpose(t2, (0, 1, 3, 2, 4)).reshape(5, 256, 2, 200)  # (.., par, Q*50+oc)
    m2 = jnp.pad(t2, ((0, 0), (0, 0), (0, 0), (0, 56))).reshape(5, 256, 512)

    half2 = jnp.pad(jnp.tile(b2, 4), (0, 56))                        # lane = Q*50 + oc
    b2r = jnp.concatenate([half2, half2]).reshape(1, 512)

    # fc1: g[P][Q*50 + oc, j] = fc1_w[j, oc*16 + 4P + Q]   (torch NCHW flatten)
    a = jnp.transpose(fc1_w.reshape(500, 50, 4, 4), (2, 3, 1, 0))    # (P, Q, oc, j)
    a = a.reshape(4, 200, 500)
    g = jnp.pad(a, ((0, 0), (0, 56), (0, 12)))                       # (4, 256, 512)
    bf1 = jnp.pad(fc1_b, (0, 12)).reshape(1, 512)

    # fc2: pad K 500->512 and N 10->128 (lane-dense output store)
    wfc2 = jnp.pad(fc2_w.T, ((0, 12), (0, 118)))                     # (512, 128)
    bf2 = jnp.pad(fc2_b, (0, 118)).reshape(1, 128)

    # per-grid-step row-gather selectors: sel[P, i, 28*i + 4*P] = 1
    h4 = 28 * bt - 15
    img = jnp.arange(bt)
    col = jnp.arange(h4)
    sel = jnp.stack(
        [(col[None, :] == (28 * img + 4 * p)[:, None]) for p in range(4)],
        axis=0)

    return {
        "m1": m1.astype(bf16), "b1": b1r,
        "m2": m2.astype(bf16), "b2": b2r,
        "g": g.astype(bf16), "bf1": bf1,
        "wfc2": wfc2.astype(bf16), "bf2": bf2,
        "sel": sel.astype(bf16),
    }


# ------------------------------ forward pass --------------------------------


def net_forward(x_nchw, prepped):
    """Reproduces PyTorch Net.forward.  x: (B, 1, 28, 28) -> (B, 10)."""
    B = x_nchw.shape[0]
    bt = prepped["sel"].shape[1]
    b_pad = -(-B // bt) * bt
    x = x_nchw.reshape(B, 28, 28).astype(jnp.float32)
    if b_pad != B:
        x = jnp.pad(x, ((0, b_pad - B), (0, 0), (0, 0)))
    x2d = x.reshape(b_pad * 28, 28)
    n_steps = b_pad // bt

    def full_spec(shape):
        n = len(shape)
        return pl.BlockSpec(shape, lambda b, _n=n: (0,) * _n)

    out = pl.pallas_call(
        _net_kernel,
        out_shape=jax.ShapeDtypeStruct((b_pad, 128), jnp.float32),
        grid=(n_steps,),
        in_specs=[
            pl.BlockSpec((bt * 28, 28), lambda b: (b, 0)),
            full_spec(prepped["m1"].shape), full_spec(prepped["b1"].shape),
            full_spec(prepped["m2"].shape), full_spec(prepped["b2"].shape),
            full_spec(prepped["g"].shape), full_spec(prepped["bf1"].shape),
            full_spec(prepped["wfc2"].shape), full_spec(prepped["bf2"].shape),
            full_spec(prepped["sel"].shape),
        ],
        out_specs=pl.BlockSpec((bt, 128), lambda b: (b, 0)),
        compiler_params=pltpu.CompilerParams(
            dimension_semantics=("parallel",),
            vmem_limit_bytes=32 * 1024 * 1024,
        ),
    )(x2d, prepped["m1"], prepped["b1"], prepped["m2"], prepped["b2"],
      prepped["g"], prepped["bf1"], prepped["wfc2"], prepped["bf2"],
      prepped["sel"])
    return out[:B, :10]


# ------------------------------- reference ----------------------------------


def net_reference(x_nchw, params):
    """Plain JAX reference (mirrors torch semantics) for a correctness check."""
    y = lax.conv_general_dilated(
        x_nchw, params["conv1_w"], (1, 1), "VALID",
        dimension_numbers=("NCHW", "OIHW", "NCHW"))
    y = jnp.maximum(y + params["conv1_b"][None, :, None, None], 0.0)
    y = lax.reduce_window(y, -jnp.inf, lax.max, (1, 1, 2, 2), (1, 1, 2, 2), "VALID")
    y = lax.conv_general_dilated(
        y, params["conv2_w"], (1, 1), "VALID",
        dimension_numbers=("NCHW", "OIHW", "NCHW"))
    y = jnp.maximum(y + params["conv2_b"][None, :, None, None], 0.0)
    y = lax.reduce_window(y, -jnp.inf, lax.max, (1, 1, 2, 2), (1, 1, 2, 2), "VALID")
    y = y.reshape(y.shape[0], -1)
    y = jnp.maximum(y @ params["fc1_w"].T + params["fc1_b"], 0.0)
    return y @ params["fc2_w"].T + params["fc2_b"]


def init_params(key):
    ks = jax.random.split(key, 8)

    def n(k, shape, scale):
        return (scale * jax.random.normal(k, shape)).astype(jnp.float32)

    return {
        "conv1_w": n(ks[0], (20, 1, 5, 5), 0.2),
        "conv1_b": n(ks[1], (20,), 0.1),
        "conv2_w": n(ks[2], (50, 20, 5, 5), 0.05),
        "conv2_b": n(ks[3], (50,), 0.1),
        "fc1_w":   n(ks[4], (500, 800), 0.02),
        "fc1_b":   n(ks[5], (500,), 0.1),
        "fc2_w":   n(ks[6], (10, 500), 0.05),
        "fc2_b":   n(ks[7], (10,), 0.1),
    }


if __name__ == "__main__":
    key = jax.random.PRNGKey(0)
    k_x, k_p = jax.random.split(key)
    params = init_params(k_p)
    # MNIST-shaped input (28x28x1 implied by the 50*4*4 flatten); B=16 gives a
    # 2-step grid (both v7x TensorCores busy) with BT=8 images per step.
    B = 16
    x = jax.random.normal(k_x, (B, 1, 28, 28), dtype=jnp.float32)

    prepped = prepare_params(params, bt=BT)   # one-time weight re-layout (not per call)
    fwd = jax.jit(net_forward)
    out = jax.block_until_ready(fwd(x, prepped))
    assert out.shape == (B, 10) and out.dtype == jnp.float32

    ref = jax.block_until_ready(net_reference(x, params))
    err = float(jnp.max(jnp.abs(out - ref)))
    # bf16 matmul operands with f32 accumulation -> a few 1e-3 of error.
    assert jnp.allclose(out, ref, rtol=3e-2, atol=3e-2), f"max abs diff {err}"
    print("KERNEL_OK")
</pallas_src>

<mosaic_0001>
module attributes {stable_mosaic.version = 11 : i64} {
  func.func @_net_kernel(%arg0: i32, %arg1: memref<224x28xf32, #tpu.memory_space<vmem>>, %arg2: memref<5x28x512xbf16, #tpu.memory_space<vmem>>, %arg3: memref<1x512xf32, #tpu.memory_space<vmem>>, %arg4: memref<5x256x512xbf16, #tpu.memory_space<vmem>>, %arg5: memref<1x512xf32, #tpu.memory_space<vmem>>, %arg6: memref<4x256x512xbf16, #tpu.memory_space<vmem>>, %arg7: memref<1x512xf32, #tpu.memory_space<vmem>>, %arg8: memref<512x128xbf16, #tpu.memory_space<vmem>>, %arg9: memref<1x128xf32, #tpu.memory_space<vmem>>, %arg10: memref<4x8x209xbf16, #tpu.memory_space<vmem>>, %arg11: memref<8x128xf32, #tpu.memory_space<vmem>>) attributes {dimension_semantics = [#tpu.dimension_semantics<parallel>], iteration_bounds = array<i64: 2>, scalar_prefetch = 0 : i64, scratch_operands = 0 : i64, tpu.core_type = #tpu.core_type<tc>, window_params = [{transform_indices = @transform_0, window_bounds = array<i64: 224, 28>}, {pipeline_mode = #tpu.pipeline_mode<synchronous>, transform_indices = @transform_1, window_bounds = array<i64: 5, 28, 512>}, {pipeline_mode = #tpu.pipeline_mode<synchronous>, transform_indices = @transform_2, window_bounds = array<i64: 1, 512>}, {pipeline_mode = #tpu.pipeline_mode<synchronous>, transform_indices = @transform_3, window_bounds = array<i64: 5, 256, 512>}, {pipeline_mode = #tpu.pipeline_mode<synchronous>, transform_indices = @transform_4, window_bounds = array<i64: 1, 512>}, {pipeline_mode = #tpu.pipeline_mode<synchronous>, transform_indices = @transform_5, window_bounds = array<i64: 4, 256, 512>}, {pipeline_mode = #tpu.pipeline_mode<synchronous>, transform_indices = @transform_6, window_bounds = array<i64: 1, 512>}, {pipeline_mode = #tpu.pipeline_mode<synchronous>, transform_indices = @transform_7, window_bounds = array<i64: 512, 128>}, {pipeline_mode = #tpu.pipeline_mode<synchronous>, transform_indices = @transform_8, window_bounds = array<i64: 1, 128>}, {pipeline_mode = #tpu.pipeline_mode<synchronous>, transform_indices = @transform_9, window_bounds = array<i64: 4, 8, 209>}, {transform_indices = @transform_10, window_bounds = array<i64: 8, 128>}]} {
    %c0 = arith.constant 0 : index
    %c0_0 = arith.constant 0 : index
    %0 = vector.load %arg1[%c0, %c0_0] : memref<224x28xf32, #tpu.memory_space<vmem>>, vector<224x28xf32>
    %1 = vector.extract_strided_slice %0 {offsets = [0, 0], sizes = [220, 28], strides = [1, 1]} : vector<224x28xf32> to vector<220x28xf32>
    %2 = arith.truncf %1 : vector<220x28xf32> to vector<220x28xbf16>
    %c0_1 = arith.constant 0 : index
    %c0_2 = arith.constant 0 : index
    %c0_3 = arith.constant 0 : index
    %3 = vector.load %arg2[%c0_1, %c0_2, %c0_3] : memref<5x28x512xbf16, #tpu.memory_space<vmem>>, vector<1x28x512xbf16>
    %4 = vector.shape_cast %3 : vector<1x28x512xbf16> to vector<28x512xbf16>
    %cst = arith.constant dense<0.000000e+00> : vector<220x512xf32>
    %5 = tpu.matmul %2, %4, %cst {dimension_numbers = #tpu.dot_dimension_numbers<[1], [0], [0], [1], [0, 0, 1, 1], [], []>} : vector<220x28xbf16>, vector<28x512xbf16>, vector<220x512xf32> -> vector<220x512xf32>
    %6 = vector.extract_strided_slice %0 {offsets = [1, 0], sizes = [220, 28], strides = [1, 1]} : vector<224x28xf32> to vector<220x28xf32>
    %7 = arith.truncf %6 : vector<220x28xf32> to vector<220x28xbf16>
    %c1 = arith.constant 1 : index
    %c0_4 = arith.constant 0 : index
    %c0_5 = arith.constant 0 : index
    %8 = vector.load %arg2[%c1, %c0_4, %c0_5] : memref<5x28x512xbf16, #tpu.memory_space<vmem>>, vector<1x28x512xbf16>
    %9 = vector.shape_cast %8 : vector<1x28x512xbf16> to vector<28x512xbf16>
    %cst_6 = arith.constant dense<0.000000e+00> : vector<220x512xf32>
    %10 = tpu.matmul %7, %9, %cst_6 {dimension_numbers = #tpu.dot_dimension_numbers<[1], [0], [0], [1], [0, 0, 1, 1], [], []>} : vector<220x28xbf16>, vector<28x512xbf16>, vector<220x512xf32> -> vector<220x512xf32>
    %11 = arith.addf %5, %10 : vector<220x512xf32>
    %12 = vector.extract_strided_slice %0 {offsets = [2, 0], sizes = [220, 28], strides = [1, 1]} : vector<224x28xf32> to vector<220x28xf32>
    %13 = arith.truncf %12 : vector<220x28xf32> to vector<220x28xbf16>
    %c2 = arith.constant 2 : index
    %c0_7 = arith.constant 0 : index
    %c0_8 = arith.constant 0 : index
    %14 = vector.load %arg2[%c2, %c0_7, %c0_8] : memref<5x28x512xbf16, #tpu.memory_space<vmem>>, vector<1x28x512xbf16>
    %15 = vector.shape_cast %14 : vector<1x28x512xbf16> to vector<28x512xbf16>
    %cst_9 = arith.constant dense<0.000000e+00> : vector<220x512xf32>
    %16 = tpu.matmul %13, %15, %cst_9 {dimension_numbers = #tpu.dot_dimension_numbers<[1], [0], [0], [1], [0, 0, 1, 1], [], []>} : vector<220x28xbf16>, vector<28x512xbf16>, vector<220x512xf32> -> vector<220x512xf32>
    %17 = arith.addf %11, %16 : vector<220x512xf32>
    %18 = vector.extract_strided_slice %0 {offsets = [3, 0], sizes = [220, 28], strides = [1, 1]} : vector<224x28xf32> to vector<220x28xf32>
    %19 = arith.truncf %18 : vector<220x28xf32> to vector<220x28xbf16>
    %c3 = arith.constant 3 : index
    %c0_10 = arith.constant 0 : index
    %c0_11 = arith.constant 0 : index
    %20 = vector.load %arg2[%c3, %c0_10, %c0_11] : memref<5x28x512xbf16, #tpu.memory_space<vmem>>, vector<1x28x512xbf16>
    %21 = vector.shape_cast %20 : vector<1x28x512xbf16> to vector<28x512xbf16>
    %cst_12 = arith.constant dense<0.000000e+00> : vector<220x512xf32>
    %22 = tpu.matmul %19, %21, %cst_12 {dimension_numbers = #tpu.dot_dimension_numbers<[1], [0], [0], [1], [0, 0, 1, 1], [], []>} : vector<220x28xbf16>, vector<28x512xbf16>, vector<220x512xf32> -> vector<220x512xf32>
    %23 = arith.addf %17, %22 : vector<220x512xf32>
    %24 = vector.extract_strided_slice %0 {offsets = [4, 0], sizes = [220, 28], strides = [1, 1]} : vector<224x28xf32> to vector<220x28xf32>
    %25 = arith.truncf %24 : vector<220x28xf32> to vector<220x28xbf16>
    %c4 = arith.constant 4 : index
    %c0_13 = arith.constant 0 : index
    %c0_14 = arith.constant 0 : index
    %26 = vector.load %arg2[%c4, %c0_13, %c0_14] : memref<5x28x512xbf16, #tpu.memory_space<vmem>>, vector<1x28x512xbf16>
    %27 = vector.shape_cast %26 : vector<1x28x512xbf16> to vector<28x512xbf16>
    %cst_15 = arith.constant dense<0.000000e+00> : vector<220x512xf32>
    %28 = tpu.matmul %25, %27, %cst_15 {dimension_numbers = #tpu.dot_dimension_numbers<[1], [0], [0], [1], [0, 0, 1, 1], [], []>} : vector<220x28xbf16>, vector<28x512xbf16>, vector<220x512xf32> -> vector<220x512xf32>
    %29 = arith.addf %23, %28 : vector<220x512xf32>
    %c0_16 = arith.constant 0 : index
    %c0_17 = arith.constant 0 : index
    %30 = vector.load %arg3[%c0_16, %c0_17] : memref<1x512xf32, #tpu.memory_space<vmem>>, vector<1x512xf32>
    %31 = vector.broadcast %30 : vector<1x512xf32> to vector<220x512xf32>
    %32 = arith.addf %29, %31 : vector<220x512xf32>
    %cst_18 = arith.constant 0.000000e+00 : f32
    %33 = vector.broadcast %cst_18 : f32 to vector<220x512xf32>
    %34 = arith.maximumf %32, %33 : vector<220x512xf32>
    %35 = vector.extract_strided_slice %34 {offsets = [0, 0], sizes = [219, 512], strides = [1, 1]} : vector<220x512xf32> to vector<219x512xf32>
    %36 = vector.extract_strided_slice %34 {offsets = [1, 0], sizes = [219, 512], strides = [1, 1]} : vector<220x512xf32> to vector<219x512xf32>
    %37 = arith.maximumf %35, %36 : vector<219x512xf32>
    %38 = vector.extract_strided_slice %37 {offsets = [0, 0], sizes = [219, 256], strides = [1, 1]} : vector<219x512xf32> to vector<219x256xf32>
    %39 = vector.extract_strided_slice %37 {offsets = [0, 256], sizes = [219, 256], strides = [1, 1]} : vector<219x512xf32> to vector<219x256xf32>
    %40 = arith.maximumf %38, %39 : vector<219x256xf32>
    %41 = vector.extract_strided_slice %40 {offsets = [0, 0], sizes = [211, 256], strides = [1, 1]} : vector<219x256xf32> to vector<211x256xf32>
    %42 = arith.truncf %41 : vector<211x256xf32> to vector<211x256xbf16>
    %c0_19 = arith.constant 0 : index
    %c0_20 = arith.constant 0 : index
    %c0_21 = arith.constant 0 : index
    %43 = vector.load %arg4[%c0_19, %c0_20, %c0_21] : memref<5x256x512xbf16, #tpu.memory_space<vmem>>, vector<1x256x512xbf16>
    %44 = vector.shape_cast %43 : vector<1x256x512xbf16> to vector<256x512xbf16>
    %cst_22 = arith.constant dense<0.000000e+00> : vector<211x512xf32>
    %45 = tpu.matmul %42, %44, %cst_22 {dimension_numbers = #tpu.dot_dimension_numbers<[1], [0], [0], [1], [0, 0, 1, 1], [], []>} : vector<211x256xbf16>, vector<256x512xbf16>, vector<211x512xf32> -> vector<211x512xf32>
    %46 = vector.extract_strided_slice %40 {offsets = [2, 0], sizes = [211, 256], strides = [1, 1]} : vector<219x256xf32> to vector<211x256xf32>
    %47 = arith.truncf %46 : vector<211x256xf32> to vector<211x256xbf16>
    %c1_23 = arith.constant 1 : index
    %c0_24 = arith.constant 0 : index
    %c0_25 = arith.constant 0 : index
    %48 = vector.load %arg4[%c1_23, %c0_24, %c0_25] : memref<5x256x512xbf16, #tpu.memory_space<vmem>>, vector<1x256x512xbf16>
    %49 = vector.shape_cast %48 : vector<1x256x512xbf16> to vector<256x512xbf16>
    %cst_26 = arith.constant dense<0.000000e+00> : vector<211x512xf32>
    %50 = tpu.matmul %47, %49, %cst_26 {dimension_numbers = #tpu.dot_dimension_numbers<[1], [0], [0], [1], [0, 0, 1, 1], [], []>} : vector<211x256xbf16>, vector<256x512xbf16>, vector<211x512xf32> -> vector<211x512xf32>
    %51 = arith.addf %45, %50 : vector<211x512xf32>
    %52 = vector.extract_strided_slice %40 {offsets = [4, 0], sizes = [211, 256], strides = [1, 1]} : vector<219x256xf32> to vector<211x256xf32>
    %53 = arith.truncf %52 : vector<211x256xf32> to vector<211x256xbf16>
    %c2_27 = arith.constant 2 : index
    %c0_28 = arith.constant 0 : index
    %c0_29 = arith.constant 0 : index
    %54 = vector.load %arg4[%c2_27, %c0_28, %c0_29] : memref<5x256x512xbf16, #tpu.memory_space<vmem>>, vector<1x256x512xbf16>
    %55 = vector.shape_cast %54 : vector<1x256x512xbf16> to vector<256x512xbf16>
    %cst_30 = arith.constant dense<0.000000e+00> : vector<211x512xf32>
    %56 = tpu.matmul %53, %55, %cst_30 {dimension_numbers = #tpu.dot_dimension_numbers<[1], [0], [0], [1], [0, 0, 1, 1], [], []>} : vector<211x256xbf16>, vector<256x512xbf16>, vector<211x512xf32> -> vector<211x512xf32>
    %57 = arith.addf %51, %56 : vector<211x512xf32>
    %58 = vector.extract_strided_slice %40 {offsets = [6, 0], sizes = [211, 256], strides = [1, 1]} : vector<219x256xf32> to vector<211x256xf32>
    %59 = arith.truncf %58 : vector<211x256xf32> to vector<211x256xbf16>
    %c3_31 = arith.constant 3 : index
    %c0_32 = arith.constant 0 : index
    %c0_33 = arith.constant 0 : index
    %60 = vector.load %arg4[%c3_31, %c0_32, %c0_33] : memref<5x256x512xbf16, #tpu.memory_space<vmem>>, vector<1x256x512xbf16>
    %61 = vector.shape_cast %60 : vector<1x256x512xbf16> to vector<256x512xbf16>
    %cst_34 = arith.constant dense<0.000000e+00> : vector<211x512xf32>
    %62 = tpu.matmul %59, %61, %cst_34 {dimension_numbers = #tpu.dot_dimension_numbers<[1], [0], [0], [1], [0, 0, 1, 1], [], []>} : vector<211x256xbf16>, vector<256x512xbf16>, vector<211x512xf32> -> vector<211x512xf32>
    %63 = arith.addf %57, %62 : vector<211x512xf32>
    %64 = vector.extract_strided_slice %40 {offsets = [8, 0], sizes = [211, 256], strides = [1, 1]} : vector<219x256xf32> to vector<211x256xf32>
    %65 = arith.truncf %64 : vector<211x256xf32> to vector<211x256xbf16>
    %c4_35 = arith.constant 4 : index
    %c0_36 = arith.constant 0 : index
    %c0_37 = arith.constant 0 : index
    %66 = vector.load %arg4[%c4_35, %c0_36, %c0_37] : memref<5x256x512xbf16, #tpu.memory_space<vmem>>, vector<1x256x512xbf16>
    %67 = vector.shape_cast %66 : vector<1x256x512xbf16> to vector<256x512xbf16>
    %cst_38 = arith.constant dense<0.000000e+00> : vector<211x512xf32>
    %68 = tpu.matmul %65, %67, %cst_38 {dimension_numbers = #tpu.dot_dimension_numbers<[1], [0], [0], [1], [0, 0, 1, 1], [], []>} : vector<211x256xbf16>, vector<256x512xbf16>, vector<211x512xf32> -> vector<211x512xf32>
    %69 = arith.addf %63, %68 : vector<211x512xf32>
    %c0_39 = arith.constant 0 : index
    %c0_40 = arith.constant 0 : index
    %70 = vector.load %arg5[%c0_39, %c0_40] : memref<1x512xf32, #tpu.memory_space<vmem>>, vector<1x512xf32>
    %71 = vector.broadcast %70 : vector<1x512xf32> to vector<211x512xf32>
    %72 = arith.addf %69, %71 : vector<211x512xf32>
    %cst_41 = arith.constant 0.000000e+00 : f32
    %73 = vector.broadcast %cst_41 : f32 to vector<211x512xf32>
    %74 = arith.maximumf %72, %73 : vector<211x512xf32>
    %75 = vector.extract_strided_slice %74 {offsets = [0, 0], sizes = [209, 512], strides = [1, 1]} : vector<211x512xf32> to vector<209x512xf32>
    %76 = vector.extract_strided_slice %74 {offsets = [2, 0], sizes = [209, 512], strides = [1, 1]} : vector<211x512xf32> to vector<209x512xf32>
    %77 = arith.maximumf %75, %76 : vector<209x512xf32>
    %78 = vector.extract_strided_slice %77 {offsets = [0, 0], sizes = [209, 256], strides = [1, 1]} : vector<209x512xf32> to vector<209x256xf32>
    %79 = vector.extract_strided_slice %77 {offsets = [0, 256], sizes = [209, 256], strides = [1, 1]} : vector<209x512xf32> to vector<209x256xf32>
    %80 = arith.maximumf %78, %79 : vector<209x256xf32>
    %81 = arith.truncf %80 : vector<209x256xf32> to vector<209x256xbf16>
    %c0_42 = arith.constant 0 : index
    %c0_43 = arith.constant 0 : index
    %82 = vector.load %arg7[%c0_42, %c0_43] : memref<1x512xf32, #tpu.memory_space<vmem>>, vector<1x512xf32>
    %c0_44 = arith.constant 0 : index
    %c0_45 = arith.constant 0 : index
    %c0_46 = arith.constant 0 : index
    %83 = vector.load %arg10[%c0_44, %c0_45, %c0_46] : memref<4x8x209xbf16, #tpu.memory_space<vmem>>, vector<1x8x209xbf16>
    %84 = vector.shape_cast %83 : vector<1x8x209xbf16> to vector<8x209xbf16>
    %cst_47 = arith.constant dense<0.000000e+00> : vector<8x256xf32>
    %85 = tpu.matmul %84, %81, %cst_47 {dimension_numbers = #tpu.dot_dimension_numbers<[1], [0], [0], [1], [0, 0, 1, 1], [], []>} : vector<8x209xbf16>, vector<209x256xbf16>, vector<8x256xf32> -> vector<8x256xf32>
    %86 = arith.truncf %85 : vector<8x256xf32> to vector<8x256xbf16>
    %c0_48 = arith.constant 0 : index
    %c0_49 = arith.constant 0 : index
    %c0_50 = arith.constant 0 : index
    %87 = vector.load %arg6[%c0_48, %c0_49, %c0_50] : memref<4x256x512xbf16, #tpu.memory_space<vmem>>, vector<1x256x512xbf16>
    %88 = vector.shape_cast %87 : vector<1x256x512xbf16> to vector<256x512xbf16>
    %cst_51 = arith.constant dense<0.000000e+00> : vector<8x512xf32>
    %89 = tpu.matmul %86, %88, %cst_51 {dimension_numbers = #tpu.dot_dimension_numbers<[1], [0], [0], [1], [0, 0, 1, 1], [], []>} : vector<8x256xbf16>, vector<256x512xbf16>, vector<8x512xf32> -> vector<8x512xf32>
    %90 = vector.broadcast %82 : vector<1x512xf32> to vector<8x512xf32>
    %91 = arith.addf %90, %89 : vector<8x512xf32>
    %c1_52 = arith.constant 1 : index
    %c0_53 = arith.constant 0 : index
    %c0_54 = arith.constant 0 : index
    %92 = vector.load %arg10[%c1_52, %c0_53, %c0_54] : memref<4x8x209xbf16, #tpu.memory_space<vmem>>, vector<1x8x209xbf16>
    %93 = vector.shape_cast %92 : vector<1x8x209xbf16> to vector<8x209xbf16>
    %cst_55 = arith.constant dense<0.000000e+00> : vector<8x256xf32>
    %94 = tpu.matmul %93, %81, %cst_55 {dimension_numbers = #tpu.dot_dimension_numbers<[1], [0], [0], [1], [0, 0, 1, 1], [], []>} : vector<8x209xbf16>, vector<209x256xbf16>, vector<8x256xf32> -> vector<8x256xf32>
    %95 = arith.truncf %94 : vector<8x256xf32> to vector<8x256xbf16>
    %c1_56 = arith.constant 1 : index
    %c0_57 = arith.constant 0 : index
    %c0_58 = arith.constant 0 : index
    %96 = vector.load %arg6[%c1_56, %c0_57, %c0_58] : memref<4x256x512xbf16, #tpu.memory_space<vmem>>, vector<1x256x512xbf16>
    %97 = vector.shape_cast %96 : vector<1x256x512xbf16> to vector<256x512xbf16>
    %cst_59 = arith.constant dense<0.000000e+00> : vector<8x512xf32>
    %98 = tpu.matmul %95, %97, %cst_59 {dimension_numbers = #tpu.dot_dimension_numbers<[1], [0], [0], [1], [0, 0, 1, 1], [], []>} : vector<8x256xbf16>, vector<256x512xbf16>, vector<8x512xf32> -> vector<8x512xf32>
    %99 = arith.addf %91, %98 : vector<8x512xf32>
    %c2_60 = arith.constant 2 : index
    %c0_61 = arith.constant 0 : index
    %c0_62 = arith.constant 0 : index
    %100 = vector.load %arg10[%c2_60, %c0_61, %c0_62] : memref<4x8x209xbf16, #tpu.memory_space<vmem>>, vector<1x8x209xbf16>
    %101 = vector.shape_cast %100 : vector<1x8x209xbf16> to vector<8x209xbf16>
    %cst_63 = arith.constant dense<0.000000e+00> : vector<8x256xf32>
    %102 = tpu.matmul %101, %81, %cst_63 {dimension_numbers = #tpu.dot_dimension_numbers<[1], [0], [0], [1], [0, 0, 1, 1], [], []>} : vector<8x209xbf16>, vector<209x256xbf16>, vector<8x256xf32> -> vector<8x256xf32>
    %103 = arith.truncf %102 : vector<8x256xf32> to vector<8x256xbf16>
    %c2_64 = arith.constant 2 : index
    %c0_65 = arith.constant 0 : index
    %c0_66 = arith.constant 0 : index
    %104 = vector.load %arg6[%c2_64, %c0_65, %c0_66] : memref<4x256x512xbf16, #tpu.memory_space<vmem>>, vector<1x256x512xbf16>
    %105 = vector.shape_cast %104 : vector<1x256x512xbf16> to vector<256x512xbf16>
    %cst_67 = arith.constant dense<0.000000e+00> : vector<8x512xf32>
    %106 = tpu.matmul %103, %105, %cst_67 {dimension_numbers = #tpu.dot_dimension_numbers<[1], [0], [0], [1], [0, 0, 1, 1], [], []>} : vector<8x256xbf16>, vector<256x512xbf16>, vector<8x512xf32> -> vector<8x512xf32>
    %107 = arith.addf %99, %106 : vector<8x512xf32>
    %c3_68 = arith.constant 3 : index
    %c0_69 = arith.constant 0 : index
    %c0_70 = arith.constant 0 : index
    %108 = vector.load %arg10[%c3_68, %c0_69, %c0_70] : memref<4x8x209xbf16, #tpu.memory_space<vmem>>, vector<1x8x209xbf16>
    %109 = vector.shape_cast %108 : vector<1x8x209xbf16> to vector<8x209xbf16>
    %cst_71 = arith.constant dense<0.000000e+00> : vector<8x256xf32>
    %110 = tpu.matmul %109, %81, %cst_71 {dimension_numbers = #tpu.dot_dimension_numbers<[1], [0], [0], [1], [0, 0, 1, 1], [], []>} : vector<8x209xbf16>, vector<209x256xbf16>, vector<8x256xf32> -> vector<8x256xf32>
    %111 = arith.truncf %110 : vector<8x256xf32> to vector<8x256xbf16>
    %c3_72 = arith.constant 3 : index
    %c0_73 = arith.constant 0 : index
    %c0_74 = arith.constant 0 : index
    %112 = vector.load %arg6[%c3_72, %c0_73, %c0_74] : memref<4x256x512xbf16, #tpu.memory_space<vmem>>, vector<1x256x512xbf16>
    %113 = vector.shape_cast %112 : vector<1x256x512xbf16> to vector<256x512xbf16>
    %cst_75 = arith.constant dense<0.000000e+00> : vector<8x512xf32>
    %114 = tpu.matmul %111, %113, %cst_75 {dimension_numbers = #tpu.dot_dimension_numbers<[1], [0], [0], [1], [0, 0, 1, 1], [], []>} : vector<8x256xbf16>, vector<256x512xbf16>, vector<8x512xf32> -> vector<8x512xf32>
    %115 = arith.addf %107, %114 : vector<8x512xf32>
    %cst_76 = arith.constant 0.000000e+00 : f32
    %116 = vector.broadcast %cst_76 : f32 to vector<8x512xf32>
    %117 = arith.maximumf %115, %116 : vector<8x512xf32>
    %118 = arith.truncf %117 : vector<8x512xf32> to vector<8x512xbf16>
    %c0_77 = arith.constant 0 : index
    %c0_78 = arith.constant 0 : index
    %119 = vector.load %arg8[%c0_77, %c0_78] : memref<512x128xbf16, #tpu.memory_space<vmem>>, vector<512x128xbf16>
    %cst_79 = arith.constant dense<0.000000e+00> : vector<8x128xf32>
    %120 = tpu.matmul %118, %119, %cst_79 {dimension_numbers = #tpu.dot_dimension_numbers<[1], [0], [0], [1], [0, 0, 1, 1], [], []>} : vector<8x512xbf16>, vector<512x128xbf16>, vector<8x128xf32> -> vector<8x128xf32>
    %c0_80 = arith.constant 0 : index
    %c0_81 = arith.constant 0 : index
    %121 = vector.load %arg9[%c0_80, %c0_81] : memref<1x128xf32, #tpu.memory_space<vmem>>, vector<1x128xf32>
    %122 = vector.broadcast %121 : vector<1x128xf32> to vector<8x128xf32>
    %123 = arith.addf %120, %122 : vector<8x128xf32>
    %c0_82 = arith.constant 0 : index
    %c0_83 = arith.constant 0 : index
    %124 = vector.load %arg11[%c0_82, %c0_83] : memref<8x128xf32, #tpu.memory_space<vmem>>, vector<8x128xf32>
    tpu.vector_store %arg11[%c0_82, %c0_83], %123 {strides = array<i32>} : memref<8x128xf32, #tpu.memory_space<vmem>>, vector<8x128xf32>,
    return
  }
  func.func @transform_0(%arg0: i32) -> (i32, i32) {
    %c0_i32 = arith.constant 0 : i32
    %c0_i32_0 = arith.constant 0 : i32
    return %arg0, %c0_i32 : i32, i32
  }
  func.func @transform_1(%arg0: i32) -> (i32, i32, i32) {
    %c0_i32 = arith.constant 0 : i32
    %c0_i32_0 = arith.constant 0 : i32
    %c0_i32_1 = arith.constant 0 : i32
    %c0_i32_2 = arith.constant 0 : i32
    return %c0_i32, %c0_i32_0, %c0_i32_1 : i32, i32, i32
  }
  func.func @transform_2(%arg0: i32) -> (i32, i32) {
    %c0_i32 = arith.constant 0 : i32
    %c0_i32_0 = arith.constant 0 : i32
    %c0_i32_1 = arith.constant 0 : i32
    return %c0_i32, %c0_i32_0 : i32, i32
  }
  func.func @transform_3(%arg0: i32) -> (i32, i32, i32) {
    %c0_i32 = arith.constant 0 : i32
    %c0_i32_0 = arith.constant 0 : i32
    %c0_i32_1 = arith.constant 0 : i32
    %c0_i32_2 = arith.constant 0 : i32
    return %c0_i32, %c0_i32_0, %c0_i32_1 : i32, i32, i32
  }
  func.func @transform_4(%arg0: i32) -> (i32, i32) {
    %c0_i32 = arith.constant 0 : i32
    %c0_i32_0 = arith.constant 0 : i32
    %c0_i32_1 = arith.constant 0 : i32
    return %c0_i32, %c0_i32_0 : i32, i32
  }
  func.func @transform_5(%arg0: i32) -> (i32, i32, i32) {
    %c0_i32 = arith.constant 0 : i32
    %c0_i32_0 = arith.constant 0 : i32
    %c0_i32_1 = arith.constant 0 : i32
    %c0_i32_2 = arith.constant 0 : i32
    return %c0_i32, %c0_i32_0, %c0_i32_1 : i32, i32, i32
  }
  func.func @transform_6(%arg0: i32) -> (i32, i32) {
    %c0_i32 = arith.constant 0 : i32
    %c0_i32_0 = arith.constant 0 : i32
    %c0_i32_1 = arith.constant 0 : i32
    return %c0_i32, %c0_i32_0 : i32, i32
  }
  func.func @transform_7(%arg0: i32) -> (i32, i32) {
    %c0_i32 = arith.constant 0 : i32
    %c0_i32_0 = arith.constant 0 : i32
    %c0_i32_1 = arith.constant 0 : i32
    return %c0_i32, %c0_i32_0 : i32, i32
  }
  func.func @transform_8(%arg0: i32) -> (i32, i32) {
    %c0_i32 = arith.constant 0 : i32
    %c0_i32_0 = arith.constant 0 : i32
    %c0_i32_1 = arith.constant 0 : i32
    return %c0_i32, %c0_i32_0 : i32, i32
  }
  func.func @transform_9(%arg0: i32) -> (i32, i32, i32) {
    %c0_i32 = arith.constant 0 : i32
    %c0_i32_0 = arith.constant 0 : i32
    %c0_i32_1 = arith.constant 0 : i32
    %c0_i32_2 = arith.constant 0 : i32
    return %c0_i32, %c0_i32_0, %c0_i32_1 : i32, i32, i32
  }
  func.func @transform_10(%arg0: i32) -> (i32, i32) {
    %c0_i32 = arith.constant 0 : i32
    %c0_i32_0 = arith.constant 0 : i32
    return %arg0, %c0_i32 : i32, i32
  }
}

</mosaic_0001>

<llo_original>
// kernel: net_forward.1
$region0: #{net_forward.1}
  #allocation0 [shape = 'u32[]', space=smem, size = 0x4, offset = 0x4, fixed_abs, tag = 'smem constant byte address 0x4 - core index']
  #allocation1 [shape = 'u32[144,128]{1,0:T(1,128)}', space=vmem, size = 0x12000, scoped, tag = 'internal scratch']
  %s0 = inlined_call_operand.hbm [shape: f32[448,28], index: 0, kind: input, shape index: {}]
  %s1 = inlined_call_operand.hbm [shape: bf16[5,28,512], index: 1, kind: input, shape index: {}]
  %s2 = inlined_call_operand.hbm [shape: f32[1,512], index: 2, kind: input, shape index: {}]
  %s3 = inlined_call_operand.hbm [shape: bf16[5,256,512], index: 3, kind: input, shape index: {}]
  %s4 = inlined_call_operand.hbm [shape: f32[1,512], index: 4, kind: input, shape index: {}]
  %s5 = inlined_call_operand.hbm [shape: bf16[4,256,512], index: 5, kind: input, shape index: {}]
  %s6 = inlined_call_operand.hbm [shape: f32[1,512], index: 6, kind: input, shape index: {}]
  %s7 = inlined_call_operand.hbm [shape: bf16[512,128], index: 7, kind: input, shape index: {}]
  %s8 = inlined_call_operand.hbm [shape: f32[1,128], index: 8, kind: input, shape index: {}]
  %s9 = inlined_call_operand.hbm [shape: bf16[4,8,209], index: 9, kind: input, shape index: {}]
  %s10 = inlined_call_operand.hbm [shape: f32[16,128], index: 10, kind: output, shape index: {}]
  %s11 = sld [smem:[#allocation0]]
  $region113: #{net_forward.1} parent=0
    _
  %s13 = ssub.s32 1, %s11
  %s14 = scalar_select 0, %s13, %s11
  $region1: #{net_forward.1} parent=0
    #allocation2 [shape = 'u8[229376]{0}', space=vmem, size = 0x38000, scoped, tag = 'input window, operand 0']
    #allocation3 [shape = 's32[2]{0}', space=sflag, size = 0x8, scoped, tag = 'scoped memory for net_forward.1']
    #allocation4 [shape = 's32[2]{0}', space=sflag, size = 0x8, scoped, tag = 'scoped memory for net_forward.1']
    #allocation5 [shape = 'u8[163840]{0}', space=vmem, size = 0x28000, scoped, tag = 'input window, operand 1, single buffered']
    #allocation6 [shape = 's32[1]{0}', space=sflag, size = 0x4, scoped, tag = 'scoped memory for net_forward.1']
    #allocation7 [shape = 'u8[2048]{0}', space=vmem, size = 0x800, scoped, tag = 'input window, operand 2, single buffered']
    #allocation8 [shape = 'u8[1310720]{0}', space=vmem, size = 0x140000, scoped, tag = 'input window, operand 3, single buffered']
    #allocation9 [shape = 's32[1]{0}', space=sflag, size = 0x4, scoped, tag = 'scoped memory for net_forward.1']
    #allocation10 [shape = 'u8[2048]{0}', space=vmem, size = 0x800, scoped, tag = 'input window, operand 4, single buffered']
    #allocation11 [shape = 'u8[1048576]{0}', space=vmem, size = 0x100000, scoped, tag = 'input window, operand 5, single buffered']
    #allocation12 [shape = 's32[1]{0}', space=sflag, size = 0x4, scoped, tag = 'scoped memory for net_forward.1']
    #allocation13 [shape = 'u8[2048]{0}', space=vmem, size = 0x800, scoped, tag = 'input window, operand 6, single buffered']
    #allocation14 [shape = 'u8[131072]{0}', space=vmem, size = 0x20000, scoped, tag = 'input window, operand 7, single buffered']
    #allocation15 [shape = 's32[1]{0}', space=sflag, size = 0x4, scoped, tag = 'scoped memory for net_forward.1']
    #allocation16 [shape = 'u8[512]{0}', space=vmem, size = 0x400, scoped, tag = 'input window, operand 8, single buffered']
    #allocation17 [shape = 'u8[16384]{0}', space=vmem, size = 0x4000, scoped, tag = 'input window, operand 9, single buffered']
    #allocation18 [shape = 's32[1]{0}', space=sflag, size = 0x4, scoped, tag = 'scoped memory for net_forward.1']
    #allocation19 [shape = 'u8[8192]{0}', space=vmem, size = 0x2000, scoped, tag = 'output window, operand 0']
    %15 = vsyncpa [#allocation3], 0
    %s16 = scalar_lea.sflag [#allocation3], 1
    %17 = vsyncpa %s16, 0
    %18 = vsyncpa [#allocation6], 0
    %19 = vsyncpa [#allocation9], 0
    %20 = vsyncpa [#allocation12], 0
    %21 = vsyncpa [#allocation15], 0
    %22 = vsyncpa [#allocation18], 0
    %23 = vsyncpa [#allocation4], 0
    %s24 = scalar_lea.sflag [#allocation4], 1
    %25 = vsyncpa %s24, 0
    loop: start=0, step=1, limit=4
    $region2: #{net_forward.1} parent=1 // loop_pre_header
      _
    $region3: #{net_forward.1} parent=1 // loop_header
      %s27 = sphi 0, %s31
      %p28 = scmp.ge.s32.totalorder %s27, 4
      %s37 = sphi 0, %s39
      %s40 = sphi 0, %s37
      %s41 = sphi 0, %s40
      %s57 = sphi 0, %s41
      %s61 = sphi 0, %s61
      %s63 = sphi 0, %s61
      %s64 = sphi 0, %s63
      %s78 = sphi 0, %s64
      %s82 = sphi 0, %s82
      %s84 = sphi 0, %s82
      %s85 = sphi 0, %s84
      %s99 = sphi 0, %s85
      %s103 = sphi 0, %s103
      %s105 = sphi 0, %s103
      %s106 = sphi 0, %s105
      %s120 = sphi 0, %s106
      %s124 = sphi 0, %s124
      %s126 = sphi 0, %s124
      %s127 = sphi 0, %s126
      %s141 = sphi 0, %s127
      %s145 = sphi 0, %s145
      %s147 = sphi 0, %s145
      %s148 = sphi 0, %s147
      %s162 = sphi 0, %s148
      %s166 = sphi 0, %s166
      %s168 = sphi 0, %s166
      %s169 = sphi 0, %s168
      %s183 = sphi 0, %s169
      %s187 = sphi 0, %s187
      %s189 = sphi 0, %s187
      %s190 = sphi 0, %s189
      %s204 = sphi 0, %s190
      %s208 = sphi 0, %s208
      %s210 = sphi 0, %s208
      %s211 = sphi 0, %s210
      %s225 = sphi 0, %s211
      %s229 = sphi 0, %s229
      %s231 = sphi 0, %s229
      %s232 = sphi 0, %s231
      %s246 = sphi 0, %s232
      %s252 = sphi 0, %s254
      %s255 = sphi 0, %s252
      %s256 = sphi 0, %s255
      %s272 = sphi 0, %s256
    $region4: #{net_forward.1} parent=1 // loop_header_branch
      %30 = sbr.rel (%p28) target = $region8
    $region5: #{net_forward.1} parent=1 // loop_body
      %s32 = ssub.s32 %s27, 1
      %s33 = ssub.s32 %s27, 2
      %s34 = sadd.s32 %s27, 1
      %s35 = ssub.s32 %s27, %s34
      %p36 = scmp.eq.s32.totalorder %s35, 0
      %s38 = sadd.s32 %s37, 1
      %s39 = scalar_select %p36, %s37, %s38
      %p42 = pneg %p36
      %p43 = scmp.eq.s32.totalorder %s27, 1
      %p44 = por %p42, %p43
      %p45 = scmp.ne.s32.totalorder %s37, %s40
      %p46 = scmp.eq.s32.totalorder %s27, 0
      %p47 = por %p45, %p46
      %p48 = scmp.ne.s32.totalorder %s37, %s40
      %p49 = scmp.eq.s32.totalorder %s32, 1
      %p50 = por %p48, %p49
      %p51 = scmp.ne.s32.totalorder %s40, %s41
      %p52 = scmp.eq.s32.totalorder %s32, 0
      %p53 = por %p51, %p52
      %p54 = scmp.ne.s32.totalorder %s40, %s41
      %p55 = scmp.eq.s32.totalorder %s33, 1
      %p56 = por %p54, %p55
      %p58 = scmp.ne.s32.totalorder %s41, %s57
      %p59 = scmp.eq.s32.totalorder %s33, 0
      %p60 = por %p58, %p59
      %s62 = sadd.s32 %s61, 1
      %p65 = scmp.eq.s32.totalorder %s27, 1
      %p66 = scmp.ne.s32.totalorder %s61, %s63
      %p67 = scmp.eq.s32.totalorder %s27, 0
      %p68 = por %p66, %p67
      %p69 = scmp.ne.s32.totalorder %s61, %s63
      %p70 = scmp.eq.s32.totalorder %s32, 1
      %p71 = por %p69, %p70
      %p72 = scmp.ne.s32.totalorder %s63, %s64
      %p73 = scmp.eq.s32.totalorder %s32, 0
      %p74 = por %p72, %p73
      %p75 = scmp.ne.s32.totalorder %s63, %s64
      %p76 = scmp.eq.s32.totalorder %s33, 1
      %p77 = por %p75, %p76
      %p79 = scmp.ne.s32.totalorder %s64, %s78
      %p80 = scmp.eq.s32.totalorder %s33, 0
      %p81 = por %p79, %p80
      %s83 = sadd.s32 %s82, 1
      %p86 = scmp.eq.s32.totalorder %s27, 1
      %p87 = scmp.ne.s32.totalorder %s82, %s84
      %p88 = scmp.eq.s32.totalorder %s27, 0
      %p89 = por %p87, %p88
      %p90 = scmp.ne.s32.totalorder %s82, %s84
      %p91 = scmp.eq.s32.totalorder %s32, 1
      %p92 = por %p90, %p91
      %p93 = scmp.ne.s32.totalorder %s84, %s85
      %p94 = scmp.eq.s32.totalorder %s32, 0
      %p95 = por %p93, %p94
      %p96 = scmp.ne.s32.totalorder %s84, %s85
      %p97 = scmp.eq.s32.totalorder %s33, 1
      %p98 = por %p96, %p97
      %p100 = scmp.ne.s32.totalorder %s85, %s99
      %p101 = scmp.eq.s32.totalorder %s33, 0
      %p102 = por %p100, %p101
      %s104 = sadd.s32 %s103, 1
      %p107 = scmp.eq.s32.totalorder %s27, 1
      %p108 = scmp.ne.s32.totalorder %s103, %s105
      %p109 = scmp.eq.s32.totalorder %s27, 0
      %p110 = por %p108, %p109
      %p111 = scmp.ne.s32.totalorder %s103, %s105
      %p112 = scmp.eq.s32.totalorder %s32, 1
      %p113 = por %p111, %p112
      %p114 = scmp.ne.s32.totalorder %s105, %s106
      %p115 = scmp.eq.s32.totalorder %s32, 0
      %p116 = por %p114, %p115
      %p117 = scmp.ne.s32.totalorder %s105, %s106
      %p118 = scmp.eq.s32.totalorder %s33, 1
      %p119 = por %p117, %p118
      %p121 = scmp.ne.s32.totalorder %s106, %s120
      %p122 = scmp.eq.s32.totalorder %s33, 0
      %p123 = por %p121, %p122
      %s125 = sadd.s32 %s124, 1
      %p128 = scmp.eq.s32.totalorder %s27, 1
      %p129 = scmp.ne.s32.totalorder %s124, %s126
      %p130 = scmp.eq.s32.totalorder %s27, 0
      %p131 = por %p129, %p130
      %p132 = scmp.ne.s32.totalorder %s124, %s126
      %p133 = scmp.eq.s32.totalorder %s32, 1
      %p134 = por %p132, %p133
      %p135 = scmp.ne.s32.totalorder %s126, %s127
      %p136 = scmp.eq.s32.totalorder %s32, 0
      %p137 = por %p135, %p136
      %p138 = scmp.ne.s32.totalorder %s126, %s127
      %p139 = scmp.eq.s32.totalorder %s33, 1
      %p140 = por %p138, %p139
      %p142 = scmp.ne.s32.totalorder %s127, %s141
      %p143 = scmp.eq.s32.totalorder %s33, 0
      %p144 = por %p142, %p143
      %s146 = sadd.s32 %s145, 1
      %p149 = scmp.eq.s32.totalorder %s27, 1
      %p150 = scmp.ne.s32.totalorder %s145, %s147
      %p151 = scmp.eq.s32.totalorder %s27, 0
      %p152 = por %p150, %p151
      %p153 = scmp.ne.s32.totalorder %s145, %s147
      %p154 = scmp.eq.s32.totalorder %s32, 1
      %p155 = por %p153, %p154
      %p156 = scmp.ne.s32.totalorder %s147, %s148
      %p157 = scmp.eq.s32.totalorder %s32, 0
      %p158 = por %p156, %p157
      %p159 = scmp.ne.s32.totalorder %s147, %s148
      %p160 = scmp.eq.s32.totalorder %s33, 1
      %p161 = por %p159, %p160
      %p163 = scmp.ne.s32.totalorder %s148, %s162
      %p164 = scmp.eq.s32.totalorder %s33, 0
      %p165 = por %p163, %p164
      %s167 = sadd.s32 %s166, 1
      %p170 = scmp.eq.s32.totalorder %s27, 1
      %p171 = scmp.ne.s32.totalorder %s166, %s168
      %p172 = scmp.eq.s32.totalorder %s27, 0
      %p173 = por %p171, %p172
      %p174 = scmp.ne.s32.totalorder %s166, %s168
      %p175 = scmp.eq.s32.totalorder %s32, 1
      %p176 = por %p174, %p175
      %p177 = scmp.ne.s32.totalorder %s168, %s169
      %p178 = scmp.eq.s32.totalorder %s32, 0
      %p179 = por %p177, %p178
      %p180 = scmp.ne.s32.totalorder %s168, %s169
      %p181 = scmp.eq.s32.totalorder %s33, 1
      %p182 = por %p180, %p181
      %p184 = scmp.ne.s32.totalorder %s169, %s183
      %p185 = scmp.eq.s32.totalorder %s33, 0
      %p186 = por %p184, %p185
      %s188 = sadd.s32 %s187, 1
      %p191 = scmp.eq.s32.totalorder %s27, 1
      %p192 = scmp.ne.s32.totalorder %s187, %s189
      %p193 = scmp.eq.s32.totalorder %s27, 0
      %p194 = por %p192, %p193
      %p195 = scmp.ne.s32.totalorder %s187, %s189
      %p196 = scmp.eq.s32.totalorder %s32, 1
      %p197 = por %p195, %p196
      %p198 = scmp.ne.s32.totalorder %s189, %s190
      %p199 = scmp.eq.s32.totalorder %s32, 0
      %p200 = por %p198, %p199
      %p201 = scmp.ne.s32.totalorder %s189, %s190
      %p202 = scmp.eq.s32.totalorder %s33, 1
      %p203 = por %p201, %p202
      %p205 = scmp.ne.s32.totalorder %s190, %s204
      %p206 = scmp.eq.s32.totalorder %s33, 0
      %p207 = por %p205, %p206
      %s209 = sadd.s32 %s208, 1
      %p212 = scmp.eq.s32.totalorder %s27, 1
      %p213 = scmp.ne.s32.totalorder %s208, %s210
      %p214 = scmp.eq.s32.totalorder %s27, 0
      %p215 = por %p213, %p214
      %p216 = scmp.ne.s32.totalorder %s208, %s210
      %p217 = scmp.eq.s32.totalorder %s32, 1
      %p218 = por %p216, %p217
      %p219 = scmp.ne.s32.totalorder %s210, %s211
      %p220 = scmp.eq.s32.totalorder %s32, 0
      %p221 = por %p219, %p220
      %p222 = scmp.ne.s32.totalorder %s210, %s211
      %p223 = scmp.eq.s32.totalorder %s33, 1
      %p224 = por %p222, %p223
      %p226 = scmp.ne.s32.totalorder %s211, %s225
      %p227 = scmp.eq.s32.totalorder %s33, 0
      %p228 = por %p226, %p227
      %s230 = sadd.s32 %s229, 1
      %p233 = scmp.eq.s32.totalorder %s27, 1
      %p234 = scmp.ne.s32.totalorder %s229, %s231
      %p235 = scmp.eq.s32.totalorder %s27, 0
      %p236 = por %p234, %p235
      %p237 = scmp.ne.s32.totalorder %s229, %s231
      %p238 = scmp.eq.s32.totalorder %s32, 1
      %p239 = por %p237, %p238
      %p240 = scmp.ne.s32.totalorder %s231, %s232
      %p241 = scmp.eq.s32.totalorder %s32, 0
      %p242 = por %p240, %p241
      %p243 = scmp.ne.s32.totalorder %s231, %s232
      %p244 = scmp.eq.s32.totalorder %s33, 1
      %p245 = por %p243, %p244
      %p247 = scmp.ne.s32.totalorder %s232, %s246
      %p248 = scmp.eq.s32.totalorder %s33, 0
      %p249 = por %p247, %p248
      %s250 = ssub.s32 %s27, %s34
      %p251 = scmp.eq.s32.totalorder %s250, 0
      %s253 = sadd.s32 %s252, 1
      %s254 = scalar_select %p251, %s252, %s253
      %p257 = pneg %p251
      %p258 = scmp.eq.s32.totalorder %s27, 1
      %p259 = por %p257, %p258
      %p260 = scmp.ne.s32.totalorder %s252, %s255
      %p261 = scmp.eq.s32.totalorder %s27, 0
      %p262 = por %p260, %p261
      %p263 = scmp.ne.s32.totalorder %s252, %s255
      %p264 = scmp.eq.s32.totalorder %s32, 1
      %p265 = por %p263, %p264
      %p266 = scmp.ne.s32.totalorder %s255, %s256
      %p267 = scmp.eq.s32.totalorder %s32, 0
      %p268 = por %p266, %p267
      %p269 = scmp.ne.s32.totalorder %s255, %s256
      %p270 = scmp.eq.s32.totalorder %s33, 1
      %p271 = por %p269, %p270
      %p273 = scmp.ne.s32.totalorder %s256, %s272
      %p274 = scmp.eq.s32.totalorder %s33, 0
      %p275 = por %p273, %p274
      %p276 = scmp.le.s32.totalorder 1, %s27
      %p277 = scmp.lt.s32.totalorder %s27, 3
      %p278 = pnand %p276, %p277
      %p279 = pneg %p278
      // Predicated region
      $region9: #{net_forward.1} parent=5 // pred_check
        _
      $region10: #{net_forward.1} parent=5 // pred_check_branch
        %281 = sbr.rel (%p278) target = $region12
      $region11: #{net_forward.1} parent=5 // pred_region
        %s282 = ssub.s32 %s27, 1
        // Predicated region
        $region13: #{net_forward.1} parent=11 // pred_check
          %p283 = pneg %p74
        $region14: #{net_forward.1} parent=11 // pred_check_branch
          %285 = sbr.rel (%p283) target = $region16
        $region15: #{net_forward.1} parent=11 // pred_region
          %s287 = ssub.s32 5120, 5120
          %288 = vsyncadd [#allocation6], %s287
          %s289 = sshll.u32 [#allocation5], 4
          %s290 = int_to_ptr.vmem [resolvable:$true] %s289
          %295 = dma.hbm_to_vmem [thread:$0]  %s1, 5120, %s290, [#allocation6], 256, 256, 16
        $region16: #{net_forward.1} parent=11 // pred_fallthru
          _
        // Predicated region
        $region17: #{net_forward.1} parent=11 // pred_check
          %p296 = pneg %p95
        $region18: #{net_forward.1} parent=11 // pred_check_branch
          %298 = sbr.rel (%p296) target = $region20
        $region19: #{net_forward.1} parent=11 // pred_region
          %s300 = ssub.s32 64, 64
          %301 = vsyncadd [#allocation6], %s300
          %s303 = sshll.u32 [#allocation7], 4
          %s304 = int_to_ptr.vmem [resolvable:$true] %s303
          %306 = dma.hbm_to_vmem [thread:$0]  %s2, 64, %s304, [#allocation6]
        $region20: #{net_forward.1} parent=11 // pred_fallthru
          _
        // Predicated region
        $region21: #{net_forward.1} parent=11 // pred_check
          %p307 = pneg %p116
        $region22: #{net_forward.1} parent=11 // pred_check_branch
          %309 = sbr.rel (%p307) target = $region24
        $region23: #{net_forward.1} parent=11 // pred_region
          %s311 = ssub.s32 40960, 40960
          %312 = vsyncadd [#allocation9], %s311
          %s313 = sshll.u32 [#allocation8], 4
          %s314 = int_to_ptr.vmem [resolvable:$true] %s313
          %319 = dma.hbm_to_vmem [thread:$0]  %s3, 40960, %s314, [#allocation9], 256, 256, 16
        $region24: #{net_forward.1} parent=11 // pred_fallthru
          _
        // Predicated region
        $region25: #{net_forward.1} parent=11 // pred_check
          %p320 = pneg %p137
        $region26: #{net_forward.1} parent=11 // pred_check_branch
          %322 = sbr.rel (%p320) target = $region28
        $region27: #{net_forward.1} parent=11 // pred_region
          %s324 = ssub.s32 64, 64
          %325 = vsyncadd [#allocation9], %s324
          %s327 = sshll.u32 [#allocation10], 4
          %s328 = int_to_ptr.vmem [resolvable:$true] %s327
          %330 = dma.hbm_to_vmem [thread:$0]  %s4, 64, %s328, [#allocation9]
        $region28: #{net_forward.1} parent=11 // pred_fallthru
          _
        // Predicated region
        $region29: #{net_forward.1} parent=11 // pred_check
          %p331 = pneg %p158
        $region30: #{net_forward.1} parent=11 // pred_check_branch
          %333 = sbr.rel (%p331) target = $region32
        $region31: #{net_forward.1} parent=11 // pred_region
          %s335 = ssub.s32 32768, 32768
          %336 = vsyncadd [#allocation12], %s335
          %s337 = sshll.u32 [#allocation11], 4
          %s338 = int_to_ptr.vmem [resolvable:$true] %s337
          %343 = dma.hbm_to_vmem [thread:$0]  %s5, 32768, %s338, [#allocation12], 256, 256, 16
        $region32: #{net_forward.1} parent=11 // pred_fallthru
          _
        // Predicated region
        $region33: #{net_forward.1} parent=11 // pred_check
          %p344 = pneg %p179
        $region34: #{net_forward.1} parent=11 // pred_check_branch
          %346 = sbr.rel (%p344) target = $region36
        $region35: #{net_forward.1} parent=11 // pred_region
          %s348 = ssub.s32 64, 64
          %349 = vsyncadd [#allocation12], %s348
          %s351 = sshll.u32 [#allocation13], 4
          %s352 = int_to_ptr.vmem [resolvable:$true] %s351
          %354 = dma.hbm_to_vmem [thread:$0]  %s6, 64, %s352, [#allocation12]
        $region36: #{net_forward.1} parent=11 // pred_fallthru
          _
        // Predicated region
        $region37: #{net_forward.1} parent=11 // pred_check
          %p355 = pneg %p200
        $region38: #{net_forward.1} parent=11 // pred_check_branch
          %357 = sbr.rel (%p355) target = $region40
        $region39: #{net_forward.1} parent=11 // pred_region
          %s359 = ssub.s32 4096, 4096
          %360 = vsyncadd [#allocation15], %s359
          %s361 = sshll.u32 [#allocation14], 4
          %s362 = int_to_ptr.vmem [resolvable:$true] %s361
          %367 = dma.hbm_to_vmem [thread:$0]  %s7, 4096, %s362, [#allocation15], 64, 64, 4
        $region40: #{net_forward.1} parent=11 // pred_fallthru
          _
        // Predicated region
        $region41: #{net_forward.1} parent=11 // pred_check
          %p368 = pneg %p221
        $region42: #{net_forward.1} parent=11 // pred_check_branch
          %370 = sbr.rel (%p368) target = $region44
        $region43: #{net_forward.1} parent=11 // pred_region
          %s372 = ssub.s32 16, 16
          %373 = vsyncadd [#allocation15], %s372
          %s375 = sshll.u32 [#allocation16], 4
          %s376 = int_to_ptr.vmem [resolvable:$true] %s375
          %378 = dma.hbm_to_vmem [thread:$0]  %s8, 16, %s376, [#allocation15]
        $region44: #{net_forward.1} parent=11 // pred_fallthru
          _
        // Predicated region
        $region45: #{net_forward.1} parent=11 // pred_check
          %p379 = pneg %p242
        $region46: #{net_forward.1} parent=11 // pred_check_branch
          %381 = sbr.rel (%p379) target = $region48
        $region47: #{net_forward.1} parent=11 // pred_region
          %s383 = ssub.s32 512, 512
          %384 = vsyncadd [#allocation18], %s383
          %s385 = sshll.u32 [#allocation17], 4
          %s386 = int_to_ptr.vmem [resolvable:$true] %s385
          %391 = dma.hbm_to_vmem [thread:$0]  %s9, 512, %s386, [#allocation18], 128, 128, 8
        $region48: #{net_forward.1} parent=11 // pred_fallthru
          _
      $region12: #{net_forward.1} parent=5 // pred_fallthru
        _
      %p392 = scmp.lt.s32.totalorder %s27, 2
      // Predicated region
      $region49: #{net_forward.1} parent=5 // pred_check
        %p393 = pneg %p392
      $region50: #{net_forward.1} parent=5 // pred_check_branch
        %395 = sbr.rel (%p393) target = $region52
      $region51: #{net_forward.1} parent=5 // pred_region
        // Predicated region
        $region53: #{net_forward.1} parent=51 // pred_check
          %p396 = pneg %p47
        $region54: #{net_forward.1} parent=51 // pred_check_branch
          %398 = sbr.rel (%p396) target = $region56
        $region55: #{net_forward.1} parent=51 // pred_region
          %s399 = sand.u32 %s37, 1
          %s400 = scalar_lea.sflag [#allocation3], %s399
          %s401 = sand.u32 %s37, 1
          %s402 = smul.addr %s401, 224
          %s403 = scalar_lea.vmem [#allocation2], %s402
          %s404 = smul.u32 28, %s27
          %s406 = ssub.s32 3584, 3584
          %407 = vsyncadd %s400, %s406
          %s408 = smul.addr %s404, 128
          %s409 = scalar_lea.hbm %s0, %s408
          %s410 = sshll.u32 %s403, 4
          %s411 = int_to_ptr.vmem [resolvable:$true] %s410
          %416 = dma.hbm_to_vmem [thread:$0]  %s409, 3584, %s411, %s400, 128, 128, 8
        $region56: #{net_forward.1} parent=51 // pred_fallthru
          _
      $region52: #{net_forward.1} parent=5 // pred_fallthru
        _
      %p417 = scmp.le.s32.totalorder 1, %s27
      %p418 = scmp.lt.s32.totalorder %s27, 3
      %p419 = pnand %p417, %p418
      %p420 = pneg %p419
      // Predicated region
      $region57: #{net_forward.1} parent=5 // pred_check
        _
      $region58: #{net_forward.1} parent=5 // pred_check_branch
        %422 = sbr.rel (%p419) target = $region60
      $region59: #{net_forward.1} parent=5 // pred_region
        %s423 = ssub.s32 %s27, 1
        %s424 = sand.u32 %s40, 1
        %s425 = scalar_lea.sflag [#allocation3], %s424
        %s426 = sand.u32 %s40, 1
        %s427 = smul.addr %s426, 224
        %s428 = scalar_lea.vmem [#allocation2], %s427
        // Predicated region
        $region61: #{net_forward.1} parent=59 // pred_check
          %p429 = pneg %p53
        $region62: #{net_forward.1} parent=59 // pred_check_branch
          %431 = sbr.rel (%p429) target = $region64
        $region63: #{net_forward.1} parent=59 // pred_region
          %432 = dma.done %s425, 3584
        $region64: #{net_forward.1} parent=59 // pred_fallthru
          _
        // Predicated region
        $region65: #{net_forward.1} parent=59 // pred_check
          %p433 = pneg %p74
        $region66: #{net_forward.1} parent=59 // pred_check_branch
          %435 = sbr.rel (%p433) target = $region68
        $region67: #{net_forward.1} parent=59 // pred_region
          %436 = dma.done [#allocation6], 5120
        $region68: #{net_forward.1} parent=59 // pred_fallthru
          _
        // Predicated region
        $region69: #{net_forward.1} parent=59 // pred_check
          %p437 = pneg %p95
        $region70: #{net_forward.1} parent=59 // pred_check_branch
          %439 = sbr.rel (%p437) target = $region72
        $region71: #{net_forward.1} parent=59 // pred_region
          %440 = dma.done [#allocation6], 64
        $region72: #{net_forward.1} parent=59 // pred_fallthru
          _
        // Predicated region
        $region73: #{net_forward.1} parent=59 // pred_check
          %p441 = pneg %p116
        $region74: #{net_forward.1} parent=59 // pred_check_branch
          %443 = sbr.rel (%p441) target = $region76
        $region75: #{net_forward.1} parent=59 // pred_region
          %444 = dma.done [#allocation9], 40960
        $region76: #{net_forward.1} parent=59 // pred_fallthru
          _
        // Predicated region
        $region77: #{net_forward.1} parent=59 // pred_check
          %p445 = pneg %p137
        $region78: #{net_forward.1} parent=59 // pred_check_branch
          %447 = sbr.rel (%p445) target = $region80
        $region79: #{net_forward.1} parent=59 // pred_region
          %448 = dma.done [#allocation9], 64
        $region80: #{net_forward.1} parent=59 // pred_fallthru
          _
        // Predicated region
        $region81: #{net_forward.1} parent=59 // pred_check
          %p449 = pneg %p158
        $region82: #{net_forward.1} parent=59 // pred_check_branch
          %451 = sbr.rel (%p449) target = $region84
        $region83: #{net_forward.1} parent=59 // pred_region
          %452 = dma.done [#allocation12], 32768
        $region84: #{net_forward.1} parent=59 // pred_fallthru
          _
        // Predicated region
        $region85: #{net_forward.1} parent=59 // pred_check
          %p453 = pneg %p179
        $region86: #{net_forward.1} parent=59 // pred_check_branch
          %455 = sbr.rel (%p453) target = $region88
        $region87: #{net_forward.1} parent=59 // pred_region
          %456 = dma.done [#allocation12], 64
        $region88: #{net_forward.1} parent=59 // pred_fallthru
          _
        // Predicated region
        $region89: #{net_forward.1} parent=59 // pred_check
          %p457 = pneg %p200
        $region90: #{net_forward.1} parent=59 // pred_check_branch
          %459 = sbr.rel (%p457) target = $region92
        $region91: #{net_forward.1} parent=59 // pred_region
          %460 = dma.done [#allocation15], 4096
        $region92: #{net_forward.1} parent=59 // pred_fallthru
          _
        // Predicated region
        $region93: #{net_forward.1} parent=59 // pred_check
          %p461 = pneg %p221
        $region94: #{net_forward.1} parent=59 // pred_check_branch
          %463 = sbr.rel (%p461) target = $region96
        $region95: #{net_forward.1} parent=59 // pred_region
          %464 = dma.done [#allocation15], 16
        $region96: #{net_forward.1} parent=59 // pred_fallthru
          _
        // Predicated region
        $region97: #{net_forward.1} parent=59 // pred_check
          %p465 = pneg %p242
        $region98: #{net_forward.1} parent=59 // pred_check_branch
          %467 = sbr.rel (%p465) target = $region100
        $region99: #{net_forward.1} parent=59 // pred_region
          %468 = dma.done [#allocation18], 512
        $region100: #{net_forward.1} parent=59 // pred_fallthru
          _
        %s469 = sand.u32 %s40, 1
        %s470 = scalar_lea.sflag [#allocation3], %s469
        %s471 = sand.u32 %s40, 1
        %s472 = smul.addr %s471, 224
        %s473 = scalar_lea.vmem [#allocation2], %s472
        %p474 = pneg %p53
        %p475 = pneg %p50
        %p476 = pneg %p74
        %p477 = pneg %p71
        %p478 = pneg %p95
        %p479 = pneg %p92
        %p480 = pneg %p116
        %p481 = pneg %p113
        %p482 = pneg %p137
        %p483 = pneg %p134
        %p484 = pneg %p158
        %p485 = pneg %p155
        %p486 = pneg %p179
        %p487 = pneg %p176
        %p488 = pneg %p200
        %p489 = pneg %p197
        %p490 = pneg %p221
        %p491 = pneg %p218
        %p492 = pneg %p242
        %p493 = pneg %p239
        %p494 = pneg %p268
        %p495 = pneg %p265
        %s496 = sand.u32 %s255, 1
        %s497 = scalar_lea.sflag [#allocation4], %s496
        %s498 = sand.u32 %s255, 1
        %s499 = smul.addr %s498, 8
        %s500 = scalar_lea.vmem [#allocation19], %s499
        %s501 = smul.u32 28, %s32
        %v503 = vld [vmem:[%s428] sm:$0xff]
        %v504 = vld [vmem:[%s428 + $0x8] sm:$0xff]
        %v505 = vld [vmem:[%s428 + $0x10] sm:$0xff]
        %v506 = vld [vmem:[%s428 + $0x18] sm:$0xff]
        %v507 = vld [vmem:[%s428 + $0x20] sm:$0xff]
        %v508 = vld [vmem:[%s428 + $0x28] sm:$0xff]
        %v509 = vld [vmem:[%s428 + $0x30] sm:$0xff]
        %v510 = vld [vmem:[%s428 + $0x38] sm:$0xff]
        %v511 = vld [vmem:[%s428 + $0x40] sm:$0xff]
        %v512 = vld [vmem:[%s428 + $0x48] sm:$0xff]
        %v513 = vld [vmem:[%s428 + $0x50] sm:$0xff]
        %v514 = vld [vmem:[%s428 + $0x58] sm:$0xff]
        %v515 = vld [vmem:[%s428 + $0x60] sm:$0xff]
        %v516 = vld [vmem:[%s428 + $0x68] sm:$0xff]
        %v517 = vld [vmem:[%s428 + $0x70] sm:$0xff]
        %v518 = vld [vmem:[%s428 + $0x78] sm:$0xff]
        %v519 = vld [vmem:[%s428 + $0x80] sm:$0xff]
        %v520 = vld [vmem:[%s428 + $0x88] sm:$0xff]
        %v521 = vld [vmem:[%s428 + $0x90] sm:$0xff]
        %v522 = vld [vmem:[%s428 + $0x98] sm:$0xff]
        %v523 = vld [vmem:[%s428 + $0xa0] sm:$0xff]
        %v524 = vld [vmem:[%s428 + $0xa8] sm:$0xff]
        %v525 = vld [vmem:[%s428 + $0xb0] sm:$0xff]
        %v526 = vld [vmem:[%s428 + $0xb8] sm:$0xff]
        %v527 = vld [vmem:[%s428 + $0xc0] sm:$0xff]
        %v528 = vld [vmem:[%s428 + $0xc8] sm:$0xff]
        %v529 = vld [vmem:[%s428 + $0xd0] sm:$0xff]
        %v530 = vld [vmem:[%s428 + $0xd8] sm:$0xff]
        %v531 = vpack.c.bf16 %v504, %v503
        %v532 = vpack.c.bf16 %v506, %v505
        %v533 = vpack.c.bf16 %v508, %v507
        %v534 = vpack.c.bf16 %v510, %v509
        %v535 = vpack.c.bf16 %v512, %v511
        %v536 = vpack.c.bf16 %v514, %v513
        %v537 = vpack.c.bf16 %v516, %v515
        %v538 = vpack.c.bf16 %v518, %v517
        %v539 = vpack.c.bf16 %v520, %v519
        %v540 = vpack.c.bf16 %v522, %v521
        %v541 = vpack.c.bf16 %v524, %v523
        %v542 = vpack.c.bf16 %v526, %v525
        %v543 = vpack.c.bf16 %v528, %v527
        %v544 = vpack.c.bf16 %v530, %v529
        %v545 = vld [vmem:[#allocation5] sm:$0xff]
        %v546 = vld [vmem:[#allocation5 + $0x8] sm:$0xff]
        %v547 = vld [vmem:[#allocation5 + $0x10] sm:$0xff]
        %v548 = vld [vmem:[#allocation5 + $0x18] sm:$0xff]
        %v549 = vld [vmem:[#allocation5 + $0x20] sm:$0xff]
        %v550 = vld [vmem:[#allocation5 + $0x28] sm:$0xff]
        %v551 = vld [vmem:[#allocation5 + $0x30] sm:$0x33]
        %v552 = vld [vmem:[#allocation5 + $0x38] sm:$0x33]
        %s553 = scalar_lea.vmem [#allocation5], 64
        %v554 = vld [vmem:[%s553] sm:$0xff]
        %v555 = vld [vmem:[%s553 + $0x8] sm:$0xff]
        %v556 = vld [vmem:[%s553 + $0x10] sm:$0xff]
        %v557 = vld [vmem:[%s553 + $0x18] sm:$0xff]
        %v558 = vld [vmem:[%s553 + $0x20] sm:$0xff]
        %v559 = vld [vmem:[%s553 + $0x28] sm:$0xff]
        %v560 = vld [vmem:[%s553 + $0x30] sm:$0x33]
        %v561 = vld [vmem:[%s553 + $0x38] sm:$0x33]
        %vm562 = vsmask.f32 7424
        %v564 = vshrl.u32 %v531, 16
        %v566 = vshll.u32 %v531, 16
        %v568 = vrot.slane %v566, 1
        %v569 = vor.u32 %v564, %v568
        %v571 = vshll.u32 %v532, 16
        %v573 = vrot.slane %v571, 1
        %v574 = vsel %vm562, %v569, %v573
        %v575 = vshrl.u32 %v532, 16
        %v577 = vor.u32 %v575, %v573
        %v579 = vshll.u32 %v533, 16
        %v581 = vrot.slane %v579, 1
        %v582 = vsel %vm562, %v577, %v581
        %v583 = vshrl.u32 %v533, 16
        %v585 = vor.u32 %v583, %v581
        %v587 = vshll.u32 %v534, 16
        %v589 = vrot.slane %v587, 1
        %v590 = vsel %vm562, %v585, %v589
        %v591 = vshrl.u32 %v534, 16
        %v593 = vor.u32 %v591, %v589
        %v595 = vshll.u32 %v535, 16
        %v597 = vrot.slane %v595, 1
        %v598 = vsel %vm562, %v593, %v597
        %v599 = vshrl.u32 %v535, 16
        %v601 = vor.u32 %v599, %v597
        %v603 = vshll.u32 %v536, 16
        %v605 = vrot.slane %v603, 1
        %v606 = vsel %vm562, %v601, %v605
        %v607 = vshrl.u32 %v536, 16
        %v609 = vor.u32 %v607, %v605
        %v611 = vshll.u32 %v537, 16
        %v613 = vrot.slane %v611, 1
        %v614 = vsel %vm562, %v609, %v613
        %v615 = vshrl.u32 %v537, 16
        %v617 = vor.u32 %v615, %v613
        %v619 = vshll.u32 %v538, 16
        %v621 = vrot.slane %v619, 1
        %v622 = vsel %vm562, %v617, %v621
        %v623 = vshrl.u32 %v538, 16
        %v625 = vor.u32 %v623, %v621
        %v627 = vshll.u32 %v539, 16
        %v629 = vrot.slane %v627, 1
        %v630 = vsel %vm562, %v625, %v629
        %v631 = vshrl.u32 %v539, 16
        %v633 = vor.u32 %v631, %v629
        %v635 = vshll.u32 %v540, 16
        %v637 = vrot.slane %v635, 1
        %v638 = vsel %vm562, %v633, %v637
        %v639 = vshrl.u32 %v540, 16
        %v641 = vor.u32 %v639, %v637
        %v643 = vshll.u32 %v541, 16
        %v645 = vrot.slane %v643, 1
        %v646 = vsel %vm562, %v641, %v645
        %v647 = vshrl.u32 %v541, 16
        %v649 = vor.u32 %v647, %v645
        %v651 = vshll.u32 %v542, 16
        %v653 = vrot.slane %v651, 1
        %v654 = vsel %vm562, %v649, %v653
        %v655 = vshrl.u32 %v542, 16
        %v657 = vor.u32 %v655, %v653
        %v659 = vshll.u32 %v543, 16
        %v661 = vrot.slane %v659, 1
        %v662 = vsel %vm562, %v657, %v661
        %v663 = vshrl.u32 %v543, 16
        %v665 = vor.u32 %v663, %v661
        %v667 = vshll.u32 %v544, 16
        %v669 = vrot.slane %v667, 1
        %v670 = vsel %vm562, %v665, %v669
        %v671 = vshrl.u32 %v544, 16
        %v673 = vor.u32 %v671, %v669
        %v682 = vunpack.c.l.b16 %v554
        %v683 = vunpack.c.h.b16 %v554
        %v684 = vunpack.c.l.b16 %v555
        %v685 = vunpack.c.h.b16 %v555
        %v686 = vunpack.c.l.b16 %v556
        %v687 = vunpack.c.h.b16 %v556
        %v688 = vunpack.c.l.b16 %v557
        %v689 = vunpack.c.h.b16 %v557
        %v690 = vunpack.c.l.b16 %v558
        %v691 = vunpack.c.h.b16 %v558
        %v692 = vunpack.c.l.b16 %v559
        %v693 = vunpack.c.h.b16 %v559
        %v694 = vunpack.c.l.b16 %v560
        %v695 = vunpack.c.h.b16 %v560
        %v696 = vunpack.c.l.b16 %v561
        %v697 = vunpack.c.h.b16 %v561
        %v698 = vpack.c.b16 %v686, %v682
        %v699 = vpack.c.b16 %v687, %v683
        %v700 = vpack.c.b16 %v688, %v684
        %v701 = vpack.c.b16 %v689, %v685
        %v702 = vpack.c.b16 %v694, %v690
        %v703 = vpack.c.b16 %v695, %v691
        %v704 = vpack.c.b16 %v696, %v692
        %v705 = vpack.c.b16 %v697, %v693
        %vm710 = vcmask 228352
        %v712 = vsel %vm710, %v574, 0
        %v715 = vsel %vm710, %v582, 0
        %v718 = vsel %vm710, %v590, 0
        %v721 = vsel %vm710, %v598, 0
        %v724 = vsel %vm710, %v606, 0
        %v727 = vsel %vm710, %v614, 0
        %v730 = vsel %vm710, %v622, 0
        %v733 = vsel %vm710, %v630, 0
        %v736 = vsel %vm710, %v638, 0
        %v739 = vsel %vm710, %v646, 0
        %v742 = vsel %vm710, %v654, 0
        %v745 = vsel %vm710, %v662, 0
        %v748 = vsel %vm710, %v670, 0
        %v751 = vsel %vm710, %v673, 0
        %vm753 = vcmask 1045504
        %v755 = vsel %vm753, %v702, 0
        %v758 = vsel %vm753, %v703, 0
        %v761 = vsel %vm753, %v704, 0
        %v764 = vsel %vm753, %v705, 0
        %766 = vmatprep.subr.bf16.mxu0 %v699
        %767 = vmatpush1.bf16.msra.mxu0 %v698
        %768 = vmatprep.subr.bf16.mxu0 %v758
        %769 = vmatpush1.bf16.msra.mxu0 %v755
        %770 = vmatprep.subr.bf16.mxu0 0
        %771 = vmatpush1.bf16.msra.mxu0 0
        %772 = vmatprep.subr.bf16.mxu0 0
        %773 = vmatpush1.bf16.msra.mxu0 0
        %774 = vmatprep.subr.bf16.mxu0 0
        %775 = vmatpush1.bf16.msra.mxu0 0
        %776 = vmatprep.subr.bf16.mxu0 0
        %777 = vmatpush1.bf16.msra.mxu0 0
        %778 = vmatprep.subr.bf16.mxu0 0
        %779 = vmatpush1.bf16.msra.mxu0 0
        %780 = vmatprep.subr.bf16.mxu0 0
        %781 = vmatpush1.bf16.msra.mxu0 0
        %782 = vmatprep.subr.bf16.mxu0 0
        %783 = vmatpush1.bf16.msra.mxu0 0
        %784 = vmatprep.subr.bf16.mxu0 0
        %785 = vmatpush1.bf16.msra.mxu0 0
        %786 = vmatprep.subr.bf16.mxu0 0
        %787 = vmatpush1.bf16.msra.mxu0 0
        %788 = vmatprep.subr.bf16.mxu0 0
        %789 = vmatpush1.bf16.msra.mxu0 0
        %790 = vmatprep.subr.bf16.mxu0 0
        %791 = vmatpush1.bf16.msra.mxu0 0
        %792 = vmatprep.subr.bf16.mxu0 0
        %793 = vmatpush1.bf16.msra.mxu0 0
        %794 = vmatprep.subr.bf16.mxu0 0
        %795 = vmatpush1.bf16.msra.mxu0 0
        %796 = vmatprep.subr.bf16.mxu0 0
        %797 = vmatpush1.bf16.msra.mxu0 0
        %798 = vmatprep.mubr.bf16.mxu0 0
        %799 = vmatmul.mubr.bf16.gmra.mrb[0].mxu0 %v712
        %v800 = vpop.f32.mrb[0].mxu0
        %v801 = vadd.f32 0.0, %v800
        %v802 = vpop.f32.mrb[0].mxu0
        %v803 = vadd.f32 0.0, %v802
        %v804 = vpop.f32.mrb[0].mxu0
        %v805 = vadd.f32 0.0, %v804
        %v806 = vpop.f32.mrb[0].mxu0
        %v807 = vadd.f32 0.0, %v806
        %808 = vmatprep.mubr.bf16.mxu0 0
        %809 = vmatmul.mubr.bf16.gmra.mrb[0].mxu0 %v715
        %v810 = vpop.f32.mrb[0].mxu0
        %v811 = vadd.f32 0.0, %v810
        %v812 = vpop.f32.mrb[0].mxu0
        %v813 = vadd.f32 0.0, %v812
        %v814 = vpop.f32.mrb[0].mxu0
        %v815 = vadd.f32 0.0, %v814
        %v816 = vpop.f32.mrb[0].mxu0
        %v817 = vadd.f32 0.0, %v816
        %818 = vmatprep.mubr.bf16.mxu0 0
        %819 = vmatmul.mubr.bf16.gmra.mrb[0].mxu0 %v718
        %v820 = vpop.f32.mrb[0].mxu0
        %v821 = vadd.f32 0.0, %v820
        %v822 = vpop.f32.mrb[0].mxu0
        %v823 = vadd.f32 0.0, %v822
        %v824 = vpop.f32.mrb[0].mxu0
        %v825 = vadd.f32 0.0, %v824
        %v826 = vpop.f32.mrb[0].mxu0
        %v827 = vadd.f32 0.0, %v826
        %828 = vmatprep.mubr.bf16.mxu0 0
        %829 = vmatmul.mubr.bf16.gmra.mrb[0].mxu0 %v721
        %v830 = vpop.f32.mrb[0].mxu0
        %v831 = vadd.f32 0.0, %v830
        %v832 = vpop.f32.mrb[0].mxu0
        %v833 = vadd.f32 0.0, %v832
        %v834 = vpop.f32.mrb[0].mxu0
        %v835 = vadd.f32 0.0, %v834
        %v836 = vpop.f32.mrb[0].mxu0
        %v837 = vadd.f32 0.0, %v836
        %838 = vmatprep.mubr.bf16.mxu0 0
        %839 = vmatmul.mubr.bf16.gmra.mrb[0].mxu0 %v724
        %v840 = vpop.f32.mrb[0].mxu0
        %v841 = vadd.f32 0.0, %v840
        %v842 = vpop.f32.mrb[0].mxu0
        %v843 = vadd.f32 0.0, %v842
        %v844 = vpop.f32.mrb[0].mxu0
        %v845 = vadd.f32 0.0, %v844
        %v846 = vpop.f32.mrb[0].mxu0
        %v847 = vadd.f32 0.0, %v846
        %848 = vmatprep.mubr.bf16.mxu0 0
        %849 = vmatmul.mubr.bf16.gmra.mrb[0].mxu0 %v727
        %v850 = vpop.f32.mrb[0].mxu0
        %v851 = vadd.f32 0.0, %v850
        %v852 = vpop.f32.mrb[0].mxu0
        %v853 = vadd.f32 0.0, %v852
        %v854 = vpop.f32.mrb[0].mxu0
        %v855 = vadd.f32 0.0, %v854
        %v856 = vpop.f32.mrb[0].mxu0
        %v857 = vadd.f32 0.0, %v856
        %858 = vmatprep.mubr.bf16.mxu0 0
        %859 = vmatmul.mubr.bf16.gmra.mrb[0].mxu0 %v730
        %v860 = vpop.f32.mrb[0].mxu0
        %v861 = vadd.f32 0.0, %v860
        %v862 = vpop.f32.mrb[0].mxu0
        %v863 = vadd.f32 0.0, %v862
        %v864 = vpop.f32.mrb[0].mxu0
        %v865 = vadd.f32 0.0, %v864
        %v866 = vpop.f32.mrb[0].mxu0
        %v867 = vadd.f32 0.0, %v866
        %868 = vmatprep.mubr.bf16.mxu0 0
        %869 = vmatmul.mubr.bf16.gmra.mrb[0].mxu0 %v733
        %v870 = vpop.f32.mrb[0].mxu0
        %v871 = vadd.f32 0.0, %v870
        %v872 = vpop.f32.mrb[0].mxu0
        %v873 = vadd.f32 0.0, %v872
        %v874 = vpop.f32.mrb[0].mxu0
        %v875 = vadd.f32 0.0, %v874
        %v876 = vpop.f32.mrb[0].mxu0
        %v877 = vadd.f32 0.0, %v876
        %878 = vmatprep.mubr.bf16.mxu0 0
        %879 = vmatmul.mubr.bf16.gmra.mrb[0].mxu0 %v736
        %v880 = vpop.f32.mrb[0].mxu0
        %v881 = vadd.f32 0.0, %v880
        %v882 = vpop.f32.mrb[0].mxu0
        %v883 = vadd.f32 0.0, %v882
        %v884 = vpop.f32.mrb[0].mxu0
        %v885 = vadd.f32 0.0, %v884
        %v886 = vpop.f32.mrb[0].mxu0
        %v887 = vadd.f32 0.0, %v886
        %888 = vmatprep.mubr.bf16.mxu0 0
        %889 = vmatmul.mubr.bf16.gmra.mrb[0].mxu0 %v739
        %v890 = vpop.f32.mrb[0].mxu0
        %v891 = vadd.f32 0.0, %v890
        %v892 = vpop.f32.mrb[0].mxu0
        %v893 = vadd.f32 0.0, %v892
        %v894 = vpop.f32.mrb[0].mxu0
        %v895 = vadd.f32 0.0, %v894
        %v896 = vpop.f32.mrb[0].mxu0
        %v897 = vadd.f32 0.0, %v896
        %898 = vmatprep.mubr.bf16.mxu0 0
        %899 = vmatmul.mubr.bf16.gmra.mrb[0].mxu0 %v742
        %v900 = vpop.f32.mrb[0].mxu0
        %v901 = vadd.f32 0.0, %v900
        %v902 = vpop.f32.mrb[0].mxu0
        %v903 = vadd.f32 0.0, %v902
        %v904 = vpop.f32.mrb[0].mxu0
        %v905 = vadd.f32 0.0, %v904
        %v906 = vpop.f32.mrb[0].mxu0
        %v907 = vadd.f32 0.0, %v906
        %908 = vmatprep.mubr.bf16.mxu0 0
        %909 = vmatmul.mubr.bf16.gmra.mrb[0].mxu0 %v745
        %v910 = vpop.f32.mrb[0].mxu0
        %v911 = vadd.f32 0.0, %v910
        %v912 = vpop.f32.mrb[0].mxu0
        %v913 = vadd.f32 0.0, %v912
        %v914 = vpop.f32.mrb[0].mxu0
        %v915 = vadd.f32 0.0, %v914
        %v916 = vpop.f32.mrb[0].mxu0
        %v917 = vadd.f32 0.0, %v916
        %918 = vmatprep.mubr.bf16.mxu0 0
        %919 = vmatmul.mubr.bf16.gmra.mrb[0].mxu0 %v748
        %v920 = vpop.f32.mrb[0].mxu0
        %v921 = vadd.f32 0.0, %v920
        %v922 = vpop.f32.mrb[0].mxu0
        %v923 = vadd.f32 0.0, %v922
        %v924 = vpop.f32.mrb[0].mxu0
        %v925 = vadd.f32 0.0, %v924
        %v926 = vpop.f32.mrb[0].mxu0
        %v927 = vadd.f32 0.0, %v926
        %928 = vmatprep.mubr.bf16.mxu0 0
        %929 = vmatmul.mubr.bf16.gmra.mrb[0].mxu0 %v751
        %v930 = vpop.f32.mrb[0].mxu0
        %v931 = vadd.f32 0.0, %v930
        %v932 = vpop.f32.mrb[0].mxu0
        %v933 = vadd.f32 0.0, %v932
        %v934 = vpop.f32.mrb[0].mxu0
        %v935 = vadd.f32 0.0, %v934
        %v936 = vpop.f32.mrb[0].mxu0
        %v937 = vadd.f32 0.0, %v936
        %938 = vdwg.mxu0
        %939 = vmatprep.subr.bf16.mxu0 %v701
        %940 = vmatpush1.bf16.msra.mxu0 %v700
        %941 = vmatprep.subr.bf16.mxu0 %v764
        %942 = vmatpush1.bf16.msra.mxu0 %v761
        %943 = vmatprep.subr.bf16.mxu0 0
        %944 = vmatpush1.bf16.msra.mxu0 0
        %945 = vmatprep.subr.bf16.mxu0 0
        %946 = vmatpush1.bf16.msra.mxu0 0
        %947 = vmatprep.subr.bf16.mxu0 0
        %948 = vmatpush1.bf16.msra.mxu0 0
        %949 = vmatprep.subr.bf16.mxu0 0
        %950 = vmatpush1.bf16.msra.mxu0 0
        %951 = vmatprep.subr.bf16.mxu0 0
        %952 = vmatpush1.bf16.msra.mxu0 0
        %953 = vmatprep.subr.bf16.mxu0 0
        %954 = vmatpush1.bf16.msra.mxu0 0
        %955 = vmatprep.subr.bf16.mxu0 0
        %956 = vmatpush1.bf16.msra.mxu0 0
        %957 = vmatprep.subr.bf16.mxu0 0
        %958 = vmatpush1.bf16.msra.mxu0 0
        %959 = vmatprep.subr.bf16.mxu0 0
        %960 = vmatpush1.bf16.msra.mxu0 0
        %961 = vmatprep.subr.bf16.mxu0 0
        %962 = vmatpush1.bf16.msra.mxu0 0
        %963 = vmatprep.subr.bf16.mxu0 0
        %964 = vmatpush1.bf16.msra.mxu0 0
        %965 = vmatprep.subr.bf16.mxu0 0
        %966 = vmatpush1.bf16.msra.mxu0 0
        %967 = vmatprep.subr.bf16.mxu0 0
        %968 = vmatpush1.bf16.msra.mxu0 0
        %969 = vmatprep.subr.bf16.mxu0 0
        %970 = vmatpush1.bf16.msra.mxu0 0
        %971 = vmatprep.mubr.bf16.mxu0 0
        %972 = vmatmul.mubr.bf16.gmra.mrb[0].mxu0 %v712
        %v973 = vpop.f32.mrb[0].mxu0
        %v974 = vadd.f32 0.0, %v973
        %v975 = vpop.f32.mrb[0].mxu0
        %v976 = vadd.f32 0.0, %v975
        %v977 = vpop.f32.mrb[0].mxu0
        %v978 = vadd.f32 0.0, %v977
        %v979 = vpop.f32.mrb[0].mxu0
        %v980 = vadd.f32 0.0, %v979
        %981 = vmatprep.mubr.bf16.mxu0 0
        %982 = vmatmul.mubr.bf16.gmra.mrb[0].mxu0 %v715
        %v983 = vpop.f32.mrb[0].mxu0
        %v984 = vadd.f32 0.0, %v983
        %v985 = vpop.f32.mrb[0].mxu0
        %v986 = vadd.f32 0.0, %v985
        %v987 = vpop.f32.mrb[0].mxu0
        %v988 = vadd.f32 0.0, %v987
        %v989 = vpop.f32.mrb[0].mxu0
        %v990 = vadd.f32 0.0, %v989
        %991 = vmatprep.mubr.bf16.mxu0 0
        %992 = vmatmul.mubr.bf16.gmra.mrb[0].mxu0 %v718
        %v993 = vpop.f32.mrb[0].mxu0
        %v994 = vadd.f32 0.0, %v993
        %v995 = vpop.f32.mrb[0].mxu0
        %v996 = vadd.f32 0.0, %v995
        %v997 = vpop.f32.mrb[0].mxu0
        %v998 = vadd.f32 0.0, %v997
        %v999 = vpop.f32.mrb[0].mxu0
        %v1000 = vadd.f32 0.0, %v999
        %1001 = vmatprep.mubr.bf16.mxu0 0
        %1002 = vmatmul.mubr.bf16.gmra.mrb[0].mxu0 %v721
        %v1003 = vpop.f32.mrb[0].mxu0
        %v1004 = vadd.f32 0.0, %v1003
        %v1005 = vpop.f32.mrb[0].mxu0
        %v1006 = vadd.f32 0.0, %v1005
        %v1007 = vpop.f32.mrb[0].mxu0
        %v1008 = vadd.f32 0.0, %v1007
        %v1009 = vpop.f32.mrb[0].mxu0
        %v1010 = vadd.f32 0.0, %v1009
        %1011 = vmatprep.mubr.bf16.mxu0 0
        %1012 = vmatmul.mubr.bf16.gmra.mrb[0].mxu0 %v724
        %v1013 = vpop.f32.mrb[0].mxu0
        %v1014 = vadd.f32 0.0, %v1013
        %v1015 = vpop.f32.mrb[0].mxu0
        %v1016 = vadd.f32 0.0, %v1015
        %v1017 = vpop.f32.mrb[0].mxu0
        %v1018 = vadd.f32 0.0, %v1017
        %v1019 = vpop.f32.mrb[0].mxu0
        %v1020 = vadd.f32 0.0, %v1019
        %1021 = vmatprep.mubr.bf16.mxu0 0
        %1022 = vmatmul.mubr.bf16.gmra.mrb[0].mxu0 %v727
        %v1023 = vpop.f32.mrb[0].mxu0
        %v1024 = vadd.f32 0.0, %v1023
        %v1025 = vpop.f32.mrb[0].mxu0
        %v1026 = vadd.f32 0.0, %v1025
        %v1027 = vpop.f32.mrb[0].mxu0
        %v1028 = vadd.f32 0.0, %v1027
        %v1029 = vpop.f32.mrb[0].mxu0
        %v1030 = vadd.f32 0.0, %v1029
        %1031 = vmatprep.mubr.bf16.mxu0 0
        %1032 = vmatmul.mubr.bf16.gmra.mrb[0].mxu0 %v730
        %v1033 = vpop.f32.mrb[0].mxu0
        %v1034 = vadd.f32 0.0, %v1033
        %v1035 = vpop.f32.mrb[0].mxu0
        %v1036 = vadd.f32 0.0, %v1035
        %v1037 = vpop.f32.mrb[0].mxu0
        %v1038 = vadd.f32 0.0, %v1037
        %v1039 = vpop.f32.mrb[0].mxu0
        %v1040 = vadd.f32 0.0, %v1039
        %1041 = vmatprep.mubr.bf16.mxu0 0
        %1042 = vmatmul.mubr.bf16.gmra.mrb[0].mxu0 %v733
        %v1043 = vpop.f32.mrb[0].mxu0
        %v1044 = vadd.f32 0.0, %v1043
        %v1045 = vpop.f32.mrb[0].mxu0
        %v1046 = vadd.f32 0.0, %v1045
        %v1047 = vpop.f32.mrb[0].mxu0
        %v1048 = vadd.f32 0.0, %v1047
        %v1049 = vpop.f32.mrb[0].mxu0
        %v1050 = vadd.f32 0.0, %v1049
        %1051 = vmatprep.mubr.bf16.mxu0 0
        %1052 = vmatmul.mubr.bf16.gmra.mrb[0].mxu0 %v736
        %v1053 = vpop.f32.mrb[0].mxu0
        %v1054 = vadd.f32 0.0, %v1053
        %v1055 = vpop.f32.mrb[0].mxu0
        %v1056 = vadd.f32 0.0, %v1055
        %v1057 = vpop.f32.mrb[0].mxu0
        %v1058 = vadd.f32 0.0, %v1057
        %v1059 = vpop.f32.mrb[0].mxu0
        %v1060 = vadd.f32 0.0, %v1059
        %1061 = vmatprep.mubr.bf16.mxu0 0
        %1062 = vmatmul.mubr.bf16.gmra.mrb[0].mxu0 %v739
        %v1063 = vpop.f32.mrb[0].mxu0
        %v1064 = vadd.f32 0.0, %v1063
        %v1065 = vpop.f32.mrb[0].mxu0
        %v1066 = vadd.f32 0.0, %v1065
        %v1067 = vpop.f32.mrb[0].mxu0
        %v1068 = vadd.f32 0.0, %v1067
        %v1069 = vpop.f32.mrb[0].mxu0
        %v1070 = vadd.f32 0.0, %v1069
        %1071 = vmatprep.mubr.bf16.mxu0 0
        %1072 = vmatmul.mubr.bf16.gmra.mrb[0].mxu0 %v742
        %v1073 = vpop.f32.mrb[0].mxu0
        %v1074 = vadd.f32 0.0, %v1073
        %v1075 = vpop.f32.mrb[0].mxu0
        %v1076 = vadd.f32 0.0, %v1075
        %v1077 = vpop.f32.mrb[0].mxu0
        %v1078 = vadd.f32 0.0, %v1077
        %v1079 = vpop.f32.mrb[0].mxu0
        %v1080 = vadd.f32 0.0, %v1079
        %1081 = vmatprep.mubr.bf16.mxu0 0
        %1082 = vmatmul.mubr.bf16.gmra.mrb[0].mxu0 %v745
        %v1083 = vpop.f32.mrb[0].mxu0
        %v1084 = vadd.f32 0.0, %v1083
        %v1085 = vpop.f32.mrb[0].mxu0
        %v1086 = vadd.f32 0.0, %v1085
        %v1087 = vpop.f32.mrb[0].mxu0
        %v1088 = vadd.f32 0.0, %v1087
        %v1089 = vpop.f32.mrb[0].mxu0
        %v1090 = vadd.f32 0.0, %v1089
        %1091 = vmatprep.mubr.bf16.mxu0 0
        %1092 = vmatmul.mubr.bf16.gmra.mrb[0].mxu0 %v748
        %v1093 = vpop.f32.mrb[0].mxu0
        %v1094 = vadd.f32 0.0, %v1093
        %v1095 = vpop.f32.mrb[0].mxu0
        %v1096 = vadd.f32 0.0, %v1095
        %v1097 = vpop.f32.mrb[0].mxu0
        %v1098 = vadd.f32 0.0, %v1097
        %v1099 = vpop.f32.mrb[0].mxu0
        %v1100 = vadd.f32 0.0, %v1099
        %1101 = vmatprep.mubr.bf16.mxu0 0
        %1102 = vmatmul.mubr.bf16.gmra.mrb[0].mxu0 %v751
        %v1103 = vpop.f32.mrb[0].mxu0
        %v1104 = vadd.f32 0.0, %v1103
        %v1105 = vpop.f32.mrb[0].mxu0
        %v1106 = vadd.f32 0.0, %v1105
        %v1107 = vpop.f32.mrb[0].mxu0
        %v1108 = vadd.f32 0.0, %v1107
        %v1109 = vpop.f32.mrb[0].mxu0
        %v1110 = vadd.f32 0.0, %v1109
        %1111 = vdwg.mxu0
        %v1120 = vunpack.c.l.b16 %v545
        %v1121 = vunpack.c.h.b16 %v545
        %v1122 = vunpack.c.l.b16 %v546
        %v1123 = vunpack.c.h.b16 %v546
        %v1124 = vunpack.c.l.b16 %v547
        %v1125 = vunpack.c.h.b16 %v547
        %v1126 = vunpack.c.l.b16 %v548
        %v1127 = vunpack.c.h.b16 %v548
        %v1128 = vunpack.c.l.b16 %v549
        %v1129 = vunpack.c.h.b16 %v549
        %v1130 = vunpack.c.l.b16 %v550
        %v1131 = vunpack.c.h.b16 %v550
        %v1132 = vunpack.c.l.b16 %v551
        %v1133 = vunpack.c.h.b16 %v551
        %v1134 = vunpack.c.l.b16 %v552
        %v1135 = vunpack.c.h.b16 %v552
        %v1136 = vpack.c.b16 %v1124, %v1120
        %v1137 = vpack.c.b16 %v1125, %v1121
        %v1138 = vpack.c.b16 %v1126, %v1122
        %v1139 = vpack.c.b16 %v1127, %v1123
        %v1140 = vpack.c.b16 %v1132, %v1128
        %v1141 = vpack.c.b16 %v1133, %v1129
        %v1142 = vpack.c.b16 %v1134, %v1130
        %v1143 = vpack.c.b16 %v1135, %v1131
        %v1148 = vsel %vm710, %v531, 0
        %v1150 = vsel %vm710, %v532, 0
        %v1152 = vsel %vm710, %v533, 0
        %v1154 = vsel %vm710, %v534, 0
        %v1156 = vsel %vm710, %v535, 0
        %v1158 = vsel %vm710, %v536, 0
        %v1160 = vsel %vm710, %v537, 0
        %v1162 = vsel %vm710, %v538, 0
        %v1164 = vsel %vm710, %v539, 0
        %v1166 = vsel %vm710, %v540, 0
        %v1168 = vsel %vm710, %v541, 0
        %v1170 = vsel %vm710, %v542, 0
        %v1172 = vsel %vm710, %v543, 0
        %v1174 = vsel %vm710, %v544, 0
        %v1177 = vsel %vm753, %v1140, 0
        %v1180 = vsel %vm753, %v1141, 0
        %v1183 = vsel %vm753, %v1142, 0
        %v1186 = vsel %vm753, %v1143, 0
        %1188 = vmatprep.subr.bf16.mxu0 %v1137
        %1189 = vmatpush1.bf16.msra.mxu0 %v1136
        %1190 = vmatprep.subr.bf16.mxu0 %v1180
        %1191 = vmatpush1.bf16.msra.mxu0 %v1177
        %1192 = vmatprep.subr.bf16.mxu0 0
        %1193 = vmatpush1.bf16.msra.mxu0 0
        %1194 = vmatprep.subr.bf16.mxu0 0
        %1195 = vmatpush1.bf16.msra.mxu0 0
        %1196 = vmatprep.subr.bf16.mxu0 0
        %1197 = vmatpush1.bf16.msra.mxu0 0
        %1198 = vmatprep.subr.bf16.mxu0 0
        %1199 = vmatpush1.bf16.msra.mxu0 0
        %1200 = vmatprep.subr.bf16.mxu0 0
        %1201 = vmatpush1.bf16.msra.mxu0 0
        %1202 = vmatprep.subr.bf16.mxu0 0
        %1203 = vmatpush1.bf16.msra.mxu0 0
        %1204 = vmatprep.subr.bf16.mxu0 0
        %1205 = vmatpush1.bf16.msra.mxu0 0
        %1206 = vmatprep.subr.bf16.mxu0 0
        %1207 = vmatpush1.bf16.msra.mxu0 0
        %1208 = vmatprep.subr.bf16.mxu0 0
        %1209 = vmatpush1.bf16.msra.mxu0 0
        %1210 = vmatprep.subr.bf16.mxu0 0
        %1211 = vmatpush1.bf16.msra.mxu0 0
        %1212 = vmatprep.subr.bf16.mxu0 0
        %1213 = vmatpush1.bf16.msra.mxu0 0
        %1214 = vmatprep.subr.bf16.mxu0 0
        %1215 = vmatpush1.bf16.msra.mxu0 0
        %1216 = vmatprep.subr.bf16.mxu0 0
        %1217 = vmatpush1.bf16.msra.mxu0 0
        %1218 = vmatprep.subr.bf16.mxu0 0
        %1219 = vmatpush1.bf16.msra.mxu0 0
        %1220 = vmatprep.mubr.bf16.mxu0 0
        %1221 = vmatmul.mubr.bf16.gmra.mrb[0].mxu0 %v1148
        %v1222 = vpop.f32.mrb[0].mxu0
        %v1223 = vadd.f32 %v801, %v1222
        %v1224 = vpop.f32.mrb[0].mxu0
        %v1225 = vadd.f32 %v803, %v1224
        %v1226 = vpop.f32.mrb[0].mxu0
        %v1227 = vadd.f32 %v805, %v1226
        %v1228 = vpop.f32.mrb[0].mxu0
        %v1229 = vadd.f32 %v807, %v1228
        %1230 = vmatprep.mubr.bf16.mxu0 0
        %1231 = vmatmul.mubr.bf16.gmra.mrb[0].mxu0 %v1150
        %v1232 = vpop.f32.mrb[0].mxu0
        %v1233 = vadd.f32 %v811, %v1232
        %v1234 = vpop.f32.mrb[0].mxu0
        %v1235 = vadd.f32 %v813, %v1234
        %v1236 = vpop.f32.mrb[0].mxu0
        %v1237 = vadd.f32 %v815, %v1236
        %v1238 = vpop.f32.mrb[0].mxu0
        %v1239 = vadd.f32 %v817, %v1238
        %1240 = vmatprep.mubr.bf16.mxu0 0
        %1241 = vmatmul.mubr.bf16.gmra.mrb[0].mxu0 %v1152
        %v1242 = vpop.f32.mrb[0].mxu0
        %v1243 = vadd.f32 %v821, %v1242
        %v1244 = vpop.f32.mrb[0].mxu0
        %v1245 = vadd.f32 %v823, %v1244
        %v1246 = vpop.f32.mrb[0].mxu0
        %v1247 = vadd.f32 %v825, %v1246
        %v1248 = vpop.f32.mrb[0].mxu0
        %v1249 = vadd.f32 %v827, %v1248
        %1250 = vmatprep.mubr.bf16.mxu0 0
        %1251 = vmatmul.mubr.bf16.gmra.mrb[0].mxu0 %v1154
        %v1252 = vpop.f32.mrb[0].mxu0
        %v1253 = vadd.f32 %v831, %v1252
        %v1254 = vpop.f32.mrb[0].mxu0
        %v1255 = vadd.f32 %v833, %v1254
        %v1256 = vpop.f32.mrb[0].mxu0
        %v1257 = vadd.f32 %v835, %v1256
        %v1258 = vpop.f32.mrb[0].mxu0
        %v1259 = vadd.f32 %v837, %v1258
        %1260 = vmatprep.mubr.bf16.mxu0 0
        %1261 = vmatmul.mubr.bf16.gmra.mrb[0].mxu0 %v1156
        %v1262 = vpop.f32.mrb[0].mxu0
        %v1263 = vadd.f32 %v841, %v1262
        %v1264 = vpop.f32.mrb[0].mxu0
        %v1265 = vadd.f32 %v843, %v1264
        %v1266 = vpop.f32.mrb[0].mxu0
        %v1267 = vadd.f32 %v845, %v1266
        %v1268 = vpop.f32.mrb[0].mxu0
        %v1269 = vadd.f32 %v847, %v1268
        %1270 = vmatprep.mubr.bf16.mxu0 0
        %1271 = vmatmul.mubr.bf16.gmra.mrb[0].mxu0 %v1158
        %v1272 = vpop.f32.mrb[0].mxu0
        %v1273 = vadd.f32 %v851, %v1272
        %v1274 = vpop.f32.mrb[0].mxu0
        %v1275 = vadd.f32 %v853, %v1274
        %v1276 = vpop.f32.mrb[0].mxu0
        %v1277 = vadd.f32 %v855, %v1276
        %v1278 = vpop.f32.mrb[0].mxu0
        %v1279 = vadd.f32 %v857, %v1278
        %1280 = vmatprep.mubr.bf16.mxu0 0
        %1281 = vmatmul.mubr.bf16.gmra.mrb[0].mxu0 %v1160
        %v1282 = vpop.f32.mrb[0].mxu0
        %v1283 = vadd.f32 %v861, %v1282
        %v1284 = vpop.f32.mrb[0].mxu0
        %v1285 = vadd.f32 %v863, %v1284
        %v1286 = vpop.f32.mrb[0].mxu0
        %v1287 = vadd.f32 %v865, %v1286
        %v1288 = vpop.f32.mrb[0].mxu0
        %v1289 = vadd.f32 %v867, %v1288
        %1290 = vmatprep.mubr.bf16.mxu0 0
        %1291 = vmatmul.mubr.bf16.gmra.mrb[0].mxu0 %v1162
        %v1292 = vpop.f32.mrb[0].mxu0
        %v1293 = vadd.f32 %v871, %v1292
        %v1294 = vpop.f32.mrb[0].mxu0
        %v1295 = vadd.f32 %v873, %v1294
        %v1296 = vpop.f32.mrb[0].mxu0
        %v1297 = vadd.f32 %v875, %v1296
        %v1298 = vpop.f32.mrb[0].mxu0
        %v1299 = vadd.f32 %v877, %v1298
        %1300 = vmatprep.mubr.bf16.mxu0 0
        %1301 = vmatmul.mubr.bf16.gmra.mrb[0].mxu0 %v1164
        %v1302 = vpop.f32.mrb[0].mxu0
        %v1303 = vadd.f32 %v881, %v1302
        %v1304 = vpop.f32.mrb[0].mxu0
        %v1305 = vadd.f32 %v883, %v1304
        %v1306 = vpop.f32.mrb[0].mxu0
        %v1307 = vadd.f32 %v885, %v1306
        %v1308 = vpop.f32.mrb[0].mxu0
        %v1309 = vadd.f32 %v887, %v1308
        %1310 = vmatprep.mubr.bf16.mxu0 0
        %1311 = vmatmul.mubr.bf16.gmra.mrb[0].mxu0 %v1166
        %v1312 = vpop.f32.mrb[0].mxu0
        %v1313 = vadd.f32 %v891, %v1312
        %v1314 = vpop.f32.mrb[0].mxu0
        %v1315 = vadd.f32 %v893, %v1314
        %v1316 = vpop.f32.mrb[0].mxu0
        %v1317 = vadd.f32 %v895, %v1316
        %v1318 = vpop.f32.mrb[0].mxu0
        %v1319 = vadd.f32 %v897, %v1318
        %1320 = vmatprep.mubr.bf16.mxu0 0
        %1321 = vmatmul.mubr.bf16.gmra.mrb[0].mxu0 %v1168
        %v1322 = vpop.f32.mrb[0].mxu0
        %v1323 = vadd.f32 %v901, %v1322
        %v1324 = vpop.f32.mrb[0].mxu0
        %v1325 = vadd.f32 %v903, %v1324
        %v1326 = vpop.f32.mrb[0].mxu0
        %v1327 = vadd.f32 %v905, %v1326
        %v1328 = vpop.f32.mrb[0].mxu0
        %v1329 = vadd.f32 %v907, %v1328
        %1330 = vmatprep.mubr.bf16.mxu0 0
        %1331 = vmatmul.mubr.bf16.gmra.mrb[0].mxu0 %v1170
        %v1332 = vpop.f32.mrb[0].mxu0
        %v1333 = vadd.f32 %v911, %v1332
        %v1334 = vpop.f32.mrb[0].mxu0
        %v1335 = vadd.f32 %v913, %v1334
        %v1336 = vpop.f32.mrb[0].mxu0
        %v1337 = vadd.f32 %v915, %v1336
        %v1338 = vpop.f32.mrb[0].mxu0
        %v1339 = vadd.f32 %v917, %v1338
        %1340 = vmatprep.mubr.bf16.mxu0 0
        %1341 = vmatmul.mubr.bf16.gmra.mrb[0].mxu0 %v1172
        %v1342 = vpop.f32.mrb[0].mxu0
        %v1343 = vadd.f32 %v921, %v1342
        %v1344 = vpop.f32.mrb[0].mxu0
        %v1345 = vadd.f32 %v923, %v1344
        %v1346 = vpop.f32.mrb[0].mxu0
        %v1347 = vadd.f32 %v925, %v1346
        %v1348 = vpop.f32.mrb[0].mxu0
        %v1349 = vadd.f32 %v927, %v1348
        %1350 = vmatprep.mubr.bf16.mxu0 0
        %1351 = vmatmul.mubr.bf16.gmra.mrb[0].mxu0 %v1174
        %v1352 = vpop.f32.mrb[0].mxu0
        %v1353 = vadd.f32 %v931, %v1352
        %v1354 = vpop.f32.mrb[0].mxu0
        %v1355 = vadd.f32 %v933, %v1354
        %v1356 = vpop.f32.mrb[0].mxu0
        %v1357 = vadd.f32 %v935, %v1356
        %v1358 = vpop.f32.mrb[0].mxu0
        %v1359 = vadd.f32 %v937, %v1358
        %1360 = vdwg.mxu0
        %1361 = vmatprep.subr.bf16.mxu0 %v1139
        %1362 = vmatpush1.bf16.msra.mxu0 %v1138
        %1363 = vmatprep.subr.bf16.mxu0 %v1186
        %1364 = vmatpush1.bf16.msra.mxu0 %v1183
        %1365 = vmatprep.subr.bf16.mxu0 0
        %1366 = vmatpush1.bf16.msra.mxu0 0
        %1367 = vmatprep.subr.bf16.mxu0 0
        %1368 = vmatpush1.bf16.msra.mxu0 0
        %1369 = vmatprep.subr.bf16.mxu0 0
        %1370 = vmatpush1.bf16.msra.mxu0 0
        %1371 = vmatprep.subr.bf16.mxu0 0
        %1372 = vmatpush1.bf16.msra.mxu0 0
        %1373 = vmatprep.subr.bf16.mxu0 0
        %1374 = vmatpush1.bf16.msra.mxu0 0
        %1375 = vmatprep.subr.bf16.mxu0 0
        %1376 = vmatpush1.bf16.msra.mxu0 0
        %1377 = vmatprep.subr.bf16.mxu0 0
        %1378 = vmatpush1.bf16.msra.mxu0 0
        %1379 = vmatprep.subr.bf16.mxu0 0
        %1380 = vmatpush1.bf16.msra.mxu0 0
        %1381 = vmatprep.subr.bf16.mxu0 0
        %1382 = vmatpush1.bf16.msra.mxu0 0
        %1383 = vmatprep.subr.bf16.mxu0 0
        %1384 = vmatpush1.bf16.msra.mxu0 0
        %1385 = vmatprep.subr.bf16.mxu0 0
        %1386 = vmatpush1.bf16.msra.mxu0 0
        %1387 = vmatprep.subr.bf16.mxu0 0
        %1388 = vmatpush1.bf16.msra.mxu0 0
        %1389 = vmatprep.subr.bf16.mxu0 0
        %1390 = vmatpush1.bf16.msra.mxu0 0
        %1391 = vmatprep.subr.bf16.mxu0 0
        %1392 = vmatpush1.bf16.msra.mxu0 0
        %1393 = vmatprep.mubr.bf16.mxu0 0
        %1394 = vmatmul.mubr.bf16.gmra.mrb[0].mxu0 %v1148
        %v1395 = vpop.f32.mrb[0].mxu0
        %v1396 = vadd.f32 %v974, %v1395
        %v1397 = vpop.f32.mrb[0].mxu0
        %v1398 = vadd.f32 %v976, %v1397
        %v1399 = vpop.f32.mrb[0].mxu0
        %v1400 = vadd.f32 %v978, %v1399
        %v1401 = vpop.f32.mrb[0].mxu0
        %v1402 = vadd.f32 %v980, %v1401
        %1403 = vmatprep.mubr.bf16.mxu0 0
        %1404 = vmatmul.mubr.bf16.gmra.mrb[0].mxu0 %v1150
        %v1405 = vpop.f32.mrb[0].mxu0
        %v1406 = vadd.f32 %v984, %v1405
        %v1407 = vpop.f32.mrb[0].mxu0
        %v1408 = vadd.f32 %v986, %v1407
        %v1409 = vpop.f32.mrb[0].mxu0
        %v1410 = vadd.f32 %v988, %v1409
        %v1411 = vpop.f32.mrb[0].mxu0
        %v1412 = vadd.f32 %v990, %v1411
        %1413 = vmatprep.mubr.bf16.mxu0 0
        %1414 = vmatmul.mubr.bf16.gmra.mrb[0].mxu0 %v1152
        %v1415 = vpop.f32.mrb[0].mxu0
        %v1416 = vadd.f32 %v994, %v1415
        %v1417 = vpop.f32.mrb[0].mxu0
        %v1418 = vadd.f32 %v996, %v1417
        %v1419 = vpop.f32.mrb[0].mxu0
        %v1420 = vadd.f32 %v998, %v1419
        %v1421 = vpop.f32.mrb[0].mxu0
        %v1422 = vadd.f32 %v1000, %v1421
        %1423 = vmatprep.mubr.bf16.mxu0 0
        %1424 = vmatmul.mubr.bf16.gmra.mrb[0].mxu0 %v1154
        %v1425 = vpop.f32.mrb[0].mxu0
        %v1426 = vadd.f32 %v1004, %v1425
        %v1427 = vpop.f32.mrb[0].mxu0
        %v1428 = vadd.f32 %v1006, %v1427
        %v1429 = vpop.f32.mrb[0].mxu0
        %v1430 = vadd.f32 %v1008, %v1429
        %v1431 = vpop.f32.mrb[0].mxu0
        %v1432 = vadd.f32 %v1010, %v1431
        %1433 = vmatprep.mubr.bf16.mxu0 0
        %1434 = vmatmul.mubr.bf16.gmra.mrb[0].mxu0 %v1156
        %v1435 = vpop.f32.mrb[0].mxu0
        %v1436 = vadd.f32 %v1014, %v1435
        %v1437 = vpop.f32.mrb[0].mxu0
        %v1438 = vadd.f32 %v1016, %v1437
        %v1439 = vpop.f32.mrb[0].mxu0
        %v1440 = vadd.f32 %v1018, %v1439
        %v1441 = vpop.f32.mrb[0].mxu0
        %v1442 = vadd.f32 %v1020, %v1441
        %1443 = vmatprep.mubr.bf16.mxu0 0
        %1444 = vmatmul.mubr.bf16.gmra.mrb[0].mxu0 %v1158
        %v1445 = vpop.f32.mrb[0].mxu0
        %v1446 = vadd.f32 %v1024, %v1445
        %v1447 = vpop.f32.mrb[0].mxu0
        %v1448 = vadd.f32 %v1026, %v1447
        %v1449 = vpop.f32.mrb[0].mxu0
        %v1450 = vadd.f32 %v1028, %v1449
        %v1451 = vpop.f32.mrb[0].mxu0
        %v1452 = vadd.f32 %v1030, %v1451
        %1453 = vmatprep.mubr.bf16.mxu0 0
        %1454 = vmatmul.mubr.bf16.gmra.mrb[0].mxu0 %v1160
        %v1455 = vpop.f32.mrb[0].mxu0
        %v1456 = vadd.f32 %v1034, %v1455
        %v1457 = vpop.f32.mrb[0].mxu0
        %v1458 = vadd.f32 %v1036, %v1457
        %v1459 = vpop.f32.mrb[0].mxu0
        %v1460 = vadd.f32 %v1038, %v1459
        %v1461 = vpop.f32.mrb[0].mxu0
        %v1462 = vadd.f32 %v1040, %v1461
        %1463 = vmatprep.mubr.bf16.mxu0 0
        %1464 = vmatmul.mubr.bf16.gmra.mrb[0].mxu0 %v1162
        %v1465 = vpop.f32.mrb[0].mxu0
        %v1466 = vadd.f32 %v1044, %v1465
        %v1467 = vpop.f32.mrb[0].mxu0
        %v1468 = vadd.f32 %v1046, %v1467
        %v1469 = vpop.f32.mrb[0].mxu0
        %v1470 = vadd.f32 %v1048, %v1469
        %v1471 = vpop.f32.mrb[0].mxu0
        %v1472 = vadd.f32 %v1050, %v1471
        %1473 = vmatprep.mubr.bf16.mxu0 0
        %1474 = vmatmul.mubr.bf16.gmra.mrb[0].mxu0 %v1164
        %v1475 = vpop.f32.mrb[0].mxu0
        %v1476 = vadd.f32 %v1054, %v1475
        %v1477 = vpop.f32.mrb[0].mxu0
        %v1478 = vadd.f32 %v1056, %v1477
        %v1479 = vpop.f32.mrb[0].mxu0
        %v1480 = vadd.f32 %v1058, %v1479
        %v1481 = vpop.f32.mrb[0].mxu0
        %v1482 = vadd.f32 %v1060, %v1481
        %1483 = vmatprep.mubr.bf16.mxu0 0
        %1484 = vmatmul.mubr.bf16.gmra.mrb[0].mxu0 %v1166
        %v1485 = vpop.f32.mrb[0].mxu0
        %v1486 = vadd.f32 %v1064, %v1485
        %v1487 = vpop.f32.mrb[0].mxu0
        %v1488 = vadd.f32 %v1066, %v1487
        %v1489 = vpop.f32.mrb[0].mxu0
        %v1490 = vadd.f32 %v1068, %v1489
        %v1491 = vpop.f32.mrb[0].mxu0
        %v1492 = vadd.f32 %v1070, %v1491
        %1493 = vmatprep.mubr.bf16.mxu0 0
        %1494 = vmatmul.mubr.bf16.gmra.mrb[0].mxu0 %v1168
        %v1495 = vpop.f32.mrb[0].mxu0
        %v1496 = vadd.f32 %v1074, %v1495
        %v1497 = vpop.f32.mrb[0].mxu0
        %v1498 = vadd.f32 %v1076, %v1497
        %v1499 = vpop.f32.mrb[0].mxu0
        %v1500 = vadd.f32 %v1078, %v1499
        %v1501 = vpop.f32.mrb[0].mxu0
        %v1502 = vadd.f32 %v1080, %v1501
        %1503 = vmatprep.mubr.bf16.mxu0 0
        %1504 = vmatmul.mubr.bf16.gmra.mrb[0].mxu0 %v1170
        %v1505 = vpop.f32.mrb[0].mxu0
        %v1506 = vadd.f32 %v1084, %v1505
        %v1507 = vpop.f32.mrb[0].mxu0
        %v1508 = vadd.f32 %v1086, %v1507
        %v1509 = vpop.f32.mrb[0].mxu0
        %v1510 = vadd.f32 %v1088, %v1509
        %v1511 = vpop.f32.mrb[0].mxu0
        %v1512 = vadd.f32 %v1090, %v1511
        %1513 = vmatprep.mubr.bf16.mxu0 0
        %1514 = vmatmul.mubr.bf16.gmra.mrb[0].mxu0 %v1172
        %v1515 = vpop.f32.mrb[0].mxu0
        %v1516 = vadd.f32 %v1094, %v1515
        %v1517 = vpop.f32.mrb[0].mxu0
        %v1518 = vadd.f32 %v1096, %v1517
        %v1519 = vpop.f32.mrb[0].mxu0
        %v1520 = vadd.f32 %v1098, %v1519
        %v1521 = vpop.f32.mrb[0].mxu0
        %v1522 = vadd.f32 %v1100, %v1521
        %1523 = vmatprep.mubr.bf16.mxu0 0
        %1524 = vmatmul.mubr.bf16.gmra.mrb[0].mxu0 %v1174
        %v1525 = vpop.f32.mrb[0].mxu0
        %v1526 = vadd.f32 %v1104, %v1525
        %v1527 = vpop.f32.mrb[0].mxu0
        %v1528 = vadd.f32 %v1106, %v1527
        %v1529 = vpop.f32.mrb[0].mxu0
        %v1530 = vadd.f32 %v1108, %v1529
        %v1531 = vpop.f32.mrb[0].mxu0
        %v1532 = vadd.f32 %v1110, %v1531
        %1533 = vdwg.mxu0
        %s1534 = scalar_lea.vmem [#allocation5], 128
        %v1535 = vld [vmem:[%s1534] sm:$0xff]
        %v1536 = vld [vmem:[%s1534 + $0x8] sm:$0xff]
        %v1537 = vld [vmem:[%s1534 + $0x10] sm:$0xff]
        %v1538 = vld [vmem:[%s1534 + $0x18] sm:$0xff]
        %v1539 = vld [vmem:[%s1534 + $0x20] sm:$0xff]
        %v1540 = vld [vmem:[%s1534 + $0x28] sm:$0xff]
        %v1541 = vld [vmem:[%s1534 + $0x30] sm:$0x33]
        %v1542 = vld [vmem:[%s1534 + $0x38] sm:$0x33]
        %vm1557 = vcmask 1046528
        %v1558 = vrot.slane %v531, 1
        %v1559 = vrot.slane %v532, 1
        %v1560 = vsel %vm1557, %v1558, %v1559
        %v1561 = vrot.slane %v533, 1
        %v1562 = vsel %vm1557, %v1559, %v1561
        %v1563 = vrot.slane %v534, 1
        %v1564 = vsel %vm1557, %v1561, %v1563
        %v1565 = vrot.slane %v535, 1
        %v1566 = vsel %vm1557, %v1563, %v1565
        %v1567 = vrot.slane %v536, 1
        %v1568 = vsel %vm1557, %v1565, %v1567
        %v1569 = vrot.slane %v537, 1
        %v1570 = vsel %vm1557, %v1567, %v1569
        %v1571 = vrot.slane %v538, 1
        %v1572 = vsel %vm1557, %v1569, %v1571
        %v1573 = vrot.slane %v539, 1
        %v1574 = vsel %vm1557, %v1571, %v1573
        %v1575 = vrot.slane %v540, 1
        %v1576 = vsel %vm1557, %v1573, %v1575
        %v1577 = vrot.slane %v541, 1
        %v1578 = vsel %vm1557, %v1575, %v1577
        %v1579 = vrot.slane %v542, 1
        %v1580 = vsel %vm1557, %v1577, %v1579
        %v1581 = vrot.slane %v543, 1
        %v1582 = vsel %vm1557, %v1579, %v1581
        %v1583 = vrot.slane %v544, 1
        %v1584 = vsel %vm1557, %v1581, %v1583
        %v1593 = vunpack.c.l.b16 %v1535
        %v1594 = vunpack.c.h.b16 %v1535
        %v1595 = vunpack.c.l.b16 %v1536
        %v1596 = vunpack.c.h.b16 %v1536
        %v1597 = vunpack.c.l.b16 %v1537
        %v1598 = vunpack.c.h.b16 %v1537
        %v1599 = vunpack.c.l.b16 %v1538
        %v1600 = vunpack.c.h.b16 %v1538
        %v1601 = vunpack.c.l.b16 %v1539
        %v1602 = vunpack.c.h.b16 %v1539
        %v1603 = vunpack.c.l.b16 %v1540
        %v1604 = vunpack.c.h.b16 %v1540
        %v1605 = vunpack.c.l.b16 %v1541
        %v1606 = vunpack.c.h.b16 %v1541
        %v1607 = vunpack.c.l.b16 %v1542
        %v1608 = vunpack.c.h.b16 %v1542
        %v1609 = vpack.c.b16 %v1597, %v1593
        %v1610 = vpack.c.b16 %v1598, %v1594
        %v1611 = vpack.c.b16 %v1599, %v1595
        %v1612 = vpack.c.b16 %v1600, %v1596
        %v1613 = vpack.c.b16 %v1605, %v1601
        %v1614 = vpack.c.b16 %v1606, %v1602
        %v1615 = vpack.c.b16 %v1607, %v1603
        %v1616 = vpack.c.b16 %v1608, %v1604
        %v1622 = vsel %vm710, %v1560, 0
        %v1625 = vsel %vm710, %v1562, 0
        %v1628 = vsel %vm710, %v1564, 0
        %v1631 = vsel %vm710, %v1566, 0
        %v1634 = vsel %vm710, %v1568, 0
        %v1637 = vsel %vm710, %v1570, 0
        %v1640 = vsel %vm710, %v1572, 0
        %v1643 = vsel %vm710, %v1574, 0
        %v1646 = vsel %vm710, %v1576, 0
        %v1649 = vsel %vm710, %v1578, 0
        %v1652 = vsel %vm710, %v1580, 0
        %v1655 = vsel %vm710, %v1582, 0
        %v1658 = vsel %vm710, %v1584, 0
        %v1661 = vsel %vm710, %v1583, 0
        %v1664 = vsel %vm753, %v1613, 0
        %v1667 = vsel %vm753, %v1614, 0
        %v1670 = vsel %vm753, %v1615, 0
        %v1673 = vsel %vm753, %v1616, 0
        %1675 = vmatprep.subr.bf16.mxu0 %v1610
        %1676 = vmatpush1.bf16.msra.mxu0 %v1609
        %1677 = vmatprep.subr.bf16.mxu0 %v1667
        %1678 = vmatpush1.bf16.msra.mxu0 %v1664
        %1679 = vmatprep.subr.bf16.mxu0 0
        %1680 = vmatpush1.bf16.msra.mxu0 0
        %1681 = vmatprep.subr.bf16.mxu0 0
        %1682 = vmatpush1.bf16.msra.mxu0 0
        %1683 = vmatprep.subr.bf16.mxu0 0
        %1684 = vmatpush1.bf16.msra.mxu0 0
        %1685 = vmatprep.subr.bf16.mxu0 0
        %1686 = vmatpush1.bf16.msra.mxu0 0
        %1687 = vmatprep.subr.bf16.mxu0 0
        %1688 = vmatpush1.bf16.msra.mxu0 0
        %1689 = vmatprep.subr.bf16.mxu0 0
        %1690 = vmatpush1.bf16.msra.mxu0 0
        %1691 = vmatprep.subr.bf16.mxu0 0
        %1692 = vmatpush1.bf16.msra.mxu0 0
        %1693 = vmatprep.subr.bf16.mxu0 0
        %1694 = vmatpush1.bf16.msra.mxu0 0
        %1695 = vmatprep.subr.bf16.mxu0 0
        %1696 = vmatpush1.bf16.msra.mxu0 0
        %1697 = vmatprep.subr.bf16.mxu0 0
        %1698 = vmatpush1.bf16.msra.mxu0 0
        %1699 = vmatprep.subr.bf16.mxu0 0
        %1700 = vmatpush1.bf16.msra.mxu0 0
        %1701 = vmatprep.subr.bf16.mxu0 0
        %1702 = vmatpush1.bf16.msra.mxu0 0
        %1703 = vmatprep.subr.bf16.mxu0 0
        %1704 = vmatpush1.bf16.msra.mxu0 0
        %1705 = vmatprep.subr.bf16.mxu0 0
        %1706 = vmatpush1.bf16.msra.mxu0 0
        %1707 = vmatprep.mubr.bf16.mxu0 0
        %1708 = vmatmul.mubr.bf16.gmra.mrb[0].mxu0 %v1622
        %v1709 = vpop.f32.mrb[0].mxu0
        %v1710 = vadd.f32 0.0, %v1709
        %v1711 = vpop.f32.mrb[0].mxu0
        %v1712 = vadd.f32 0.0, %v1711
        %v1713 = vpop.f32.mrb[0].mxu0
        %v1714 = vadd.f32 0.0, %v1713
        %v1715 = vpop.f32.mrb[0].mxu0
        %v1716 = vadd.f32 0.0, %v1715
        %1717 = vmatprep.mubr.bf16.mxu0 0
        %1718 = vmatmul.mubr.bf16.gmra.mrb[0].mxu0 %v1625
        %v1719 = vpop.f32.mrb[0].mxu0
        %v1720 = vadd.f32 0.0, %v1719
        %v1721 = vpop.f32.mrb[0].mxu0
        %v1722 = vadd.f32 0.0, %v1721
        %v1723 = vpop.f32.mrb[0].mxu0
        %v1724 = vadd.f32 0.0, %v1723
        %v1725 = vpop.f32.mrb[0].mxu0
        %v1726 = vadd.f32 0.0, %v1725
        %1727 = vmatprep.mubr.bf16.mxu0 0
        %1728 = vmatmul.mubr.bf16.gmra.mrb[0].mxu0 %v1628
        %v1729 = vpop.f32.mrb[0].mxu0
        %v1730 = vadd.f32 0.0, %v1729
        %v1731 = vpop.f32.mrb[0].mxu0
        %v1732 = vadd.f32 0.0, %v1731
        %v1733 = vpop.f32.mrb[0].mxu0
        %v1734 = vadd.f32 0.0, %v1733
        %v1735 = vpop.f32.mrb[0].mxu0
        %v1736 = vadd.f32 0.0, %v1735
        %1737 = vmatprep.mubr.bf16.mxu0 0
        %1738 = vmatmul.mubr.bf16.gmra.mrb[0].mxu0 %v1631
        %v1739 = vpop.f32.mrb[0].mxu0
        %v1740 = vadd.f32 0.0, %v1739
        %v1741 = vpop.f32.mrb[0].mxu0
        %v1742 = vadd.f32 0.0, %v1741
        %v1743 = vpop.f32.mrb[0].mxu0
        %v1744 = vadd.f32 0.0, %v1743
        %v1745 = vpop.f32.mrb[0].mxu0
        %v1746 = vadd.f32 0.0, %v1745
        %1747 = vmatprep.mubr.bf16.mxu0 0
        %1748 = vmatmul.mubr.bf16.gmra.mrb[0].mxu0 %v1634
        %v1749 = vpop.f32.mrb[0].mxu0
        %v1750 = vadd.f32 0.0, %v1749
        %v1751 = vpop.f32.mrb[0].mxu0
        %v1752 = vadd.f32 0.0, %v1751
        %v1753 = vpop.f32.mrb[0].mxu0
        %v1754 = vadd.f32 0.0, %v1753
        %v1755 = vpop.f32.mrb[0].mxu0
        %v1756 = vadd.f32 0.0, %v1755
        %1757 = vmatprep.mubr.bf16.mxu0 0
        %1758 = vmatmul.mubr.bf16.gmra.mrb[0].mxu0 %v1637
        %v1759 = vpop.f32.mrb[0].mxu0
        %v1760 = vadd.f32 0.0, %v1759
        %v1761 = vpop.f32.mrb[0].mxu0
        %v1762 = vadd.f32 0.0, %v1761
        %v1763 = vpop.f32.mrb[0].mxu0
        %v1764 = vadd.f32 0.0, %v1763
        %v1765 = vpop.f32.mrb[0].mxu0
        %v1766 = vadd.f32 0.0, %v1765
        %1767 = vmatprep.mubr.bf16.mxu0 0
        %1768 = vmatmul.mubr.bf16.gmra.mrb[0].mxu0 %v1640
        %v1769 = vpop.f32.mrb[0].mxu0
        %v1770 = vadd.f32 0.0, %v1769
        %v1771 = vpop.f32.mrb[0].mxu0
        %v1772 = vadd.f32 0.0, %v1771
        %v1773 = vpop.f32.mrb[0].mxu0
        %v1774 = vadd.f32 0.0, %v1773
        %v1775 = vpop.f32.mrb[0].mxu0
        %v1776 = vadd.f32 0.0, %v1775
        %1777 = vmatprep.mubr.bf16.mxu0 0
        %1778 = vmatmul.mubr.bf16.gmra.mrb[0].mxu0 %v1643
        %v1779 = vpop.f32.mrb[0].mxu0
        %v1780 = vadd.f32 0.0, %v1779
        %v1781 = vpop.f32.mrb[0].mxu0
        %v1782 = vadd.f32 0.0, %v1781
        %v1783 = vpop.f32.mrb[0].mxu0
        %v1784 = vadd.f32 0.0, %v1783
        %v1785 = vpop.f32.mrb[0].mxu0
        %v1786 = vadd.f32 0.0, %v1785
        %1787 = vmatprep.mubr.bf16.mxu0 0
        %1788 = vmatmul.mubr.bf16.gmra.mrb[0].mxu0 %v1646
        %v1789 = vpop.f32.mrb[0].mxu0
        %v1790 = vadd.f32 0.0, %v1789
        %v1791 = vpop.f32.mrb[0].mxu0
        %v1792 = vadd.f32 0.0, %v1791
        %v1793 = vpop.f32.mrb[0].mxu0
        %v1794 = vadd.f32 0.0, %v1793
        %v1795 = vpop.f32.mrb[0].mxu0
        %v1796 = vadd.f32 0.0, %v1795
        %1797 = vmatprep.mubr.bf16.mxu0 0
        %1798 = vmatmul.mubr.bf16.gmra.mrb[0].mxu0 %v1649
        %v1799 = vpop.f32.mrb[0].mxu0
        %v1800 = vadd.f32 0.0, %v1799
        %v1801 = vpop.f32.mrb[0].mxu0
        %v1802 = vadd.f32 0.0, %v1801
        %v1803 = vpop.f32.mrb[0].mxu0
        %v1804 = vadd.f32 0.0, %v1803
        %v1805 = vpop.f32.mrb[0].mxu0
        %v1806 = vadd.f32 0.0, %v1805
        %1807 = vmatprep.mubr.bf16.mxu0 0
        %1808 = vmatmul.mubr.bf16.gmra.mrb[0].mxu0 %v1652
        %v1809 = vpop.f32.mrb[0].mxu0
        %v1810 = vadd.f32 0.0, %v1809
        %v1811 = vpop.f32.mrb[0].mxu0
        %v1812 = vadd.f32 0.0, %v1811
        %v1813 = vpop.f32.mrb[0].mxu0
        %v1814 = vadd.f32 0.0, %v1813
        %v1815 = vpop.f32.mrb[0].mxu0
        %v1816 = vadd.f32 0.0, %v1815
        %1817 = vmatprep.mubr.bf16.mxu0 0
        %1818 = vmatmul.mubr.bf16.gmra.mrb[0].mxu0 %v1655
        %v1819 = vpop.f32.mrb[0].mxu0
        %v1820 = vadd.f32 0.0, %v1819
        %v1821 = vpop.f32.mrb[0].mxu0
        %v1822 = vadd.f32 0.0, %v1821
        %v1823 = vpop.f32.mrb[0].mxu0
        %v1824 = vadd.f32 0.0, %v1823
        %v1825 = vpop.f32.mrb[0].mxu0
        %v1826 = vadd.f32 0.0, %v1825
        %1827 = vmatprep.mubr.bf16.mxu0 0
        %1828 = vmatmul.mubr.bf16.gmra.mrb[0].mxu0 %v1658
        %v1829 = vpop.f32.mrb[0].mxu0
        %v1830 = vadd.f32 0.0, %v1829
        %v1831 = vpop.f32.mrb[0].mxu0
        %v1832 = vadd.f32 0.0, %v1831
        %v1833 = vpop.f32.mrb[0].mxu0
        %v1834 = vadd.f32 0.0, %v1833
        %v1835 = vpop.f32.mrb[0].mxu0
        %v1836 = vadd.f32 0.0, %v1835
        %1837 = vmatprep.mubr.bf16.mxu0 0
        %1838 = vmatmul.mubr.bf16.gmra.mrb[0].mxu0 %v1661
        %v1839 = vpop.f32.mrb[0].mxu0
        %v1840 = vadd.f32 0.0, %v1839
        %v1841 = vpop.f32.mrb[0].mxu0
        %v1842 = vadd.f32 0.0, %v1841
        %v1843 = vpop.f32.mrb[0].mxu0
        %v1844 = vadd.f32 0.0, %v1843
        %v1845 = vpop.f32.mrb[0].mxu0
        %v1846 = vadd.f32 0.0, %v1845
        %1847 = vdwg.mxu0
        %1848 = vmatprep.subr.bf16.mxu0 %v1612
        %1849 = vmatpush1.bf16.msra.mxu0 %v1611
        %1850 = vmatprep.subr.bf16.mxu0 %v1673
        %1851 = vmatpush1.bf16.msra.mxu0 %v1670
        %1852 = vmatprep.subr.bf16.mxu0 0
        %1853 = vmatpush1.bf16.msra.mxu0 0
        %1854 = vmatprep.subr.bf16.mxu0 0
        %1855 = vmatpush1.bf16.msra.mxu0 0
        %1856 = vmatprep.subr.bf16.mxu0 0
        %1857 = vmatpush1.bf16.msra.mxu0 0
        %1858 = vmatprep.subr.bf16.mxu0 0
        %1859 = vmatpush1.bf16.msra.mxu0 0
        %1860 = vmatprep.subr.bf16.mxu0 0
        %1861 = vmatpush1.bf16.msra.mxu0 0
        %1862 = vmatprep.subr.bf16.mxu0 0
        %1863 = vmatpush1.bf16.msra.mxu0 0
        %1864 = vmatprep.subr.bf16.mxu0 0
        %1865 = vmatpush1.bf16.msra.mxu0 0
        %1866 = vmatprep.subr.bf16.mxu0 0
        %1867 = vmatpush1.bf16.msra.mxu0 0
        %1868 = vmatprep.subr.bf16.mxu0 0
        %1869 = vmatpush1.bf16.msra.mxu0 0
        %1870 = vmatprep.subr.bf16.mxu0 0
        %1871 = vmatpush1.bf16.msra.mxu0 0
        %1872 = vmatprep.subr.bf16.mxu0 0
        %1873 = vmatpush1.bf16.msra.mxu0 0
        %1874 = vmatprep.subr.bf16.mxu0 0
        %1875 = vmatpush1.bf16.msra.mxu0 0
        %1876 = vmatprep.subr.bf16.mxu0 0
        %1877 = vmatpush1.bf16.msra.mxu0 0
        %1878 = vmatprep.subr.bf16.mxu0 0
        %1879 = vmatpush1.bf16.msra.mxu0 0
        %1880 = vmatprep.mubr.bf16.mxu0 0
        %1881 = vmatmul.mubr.bf16.gmra.mrb[0].mxu0 %v1622
        %v1882 = vpop.f32.mrb[0].mxu0
        %v1883 = vadd.f32 0.0, %v1882
        %v1884 = vpop.f32.mrb[0].mxu0
        %v1885 = vadd.f32 0.0, %v1884
        %v1886 = vpop.f32.mrb[0].mxu0
        %v1887 = vadd.f32 0.0, %v1886
        %v1888 = vpop.f32.mrb[0].mxu0
        %v1889 = vadd.f32 0.0, %v1888
        %1890 = vmatprep.mubr.bf16.mxu0 0
        %1891 = vmatmul.mubr.bf16.gmra.mrb[0].mxu0 %v1625
        %v1892 = vpop.f32.mrb[0].mxu0
        %v1893 = vadd.f32 0.0, %v1892
        %v1894 = vpop.f32.mrb[0].mxu0
        %v1895 = vadd.f32 0.0, %v1894
        %v1896 = vpop.f32.mrb[0].mxu0
        %v1897 = vadd.f32 0.0, %v1896
        %v1898 = vpop.f32.mrb[0].mxu0
        %v1899 = vadd.f32 0.0, %v1898
        %1900 = vmatprep.mubr.bf16.mxu0 0
        %1901 = vmatmul.mubr.bf16.gmra.mrb[0].mxu0 %v1628
        %v1902 = vpop.f32.mrb[0].mxu0
        %v1903 = vadd.f32 0.0, %v1902
        %v1904 = vpop.f32.mrb[0].mxu0
        %v1905 = vadd.f32 0.0, %v1904
        %v1906 = vpop.f32.mrb[0].mxu0
        %v1907 = vadd.f32 0.0, %v1906
        %v1908 = vpop.f32.mrb[0].mxu0
        %v1909 = vadd.f32 0.0, %v1908
        %1910 = vmatprep.mubr.bf16.mxu0 0
        %1911 = vmatmul.mubr.bf16.gmra.mrb[0].mxu0 %v1631
        %v1912 = vpop.f32.mrb[0].mxu0
        %v1913 = vadd.f32 0.0, %v1912
        %v1914 = vpop.f32.mrb[0].mxu0
        %v1915 = vadd.f32 0.0, %v1914
        %v1916 = vpop.f32.mrb[0].mxu0
        %v1917 = vadd.f32 0.0, %v1916
        %v1918 = vpop.f32.mrb[0].mxu0
        %v1919 = vadd.f32 0.0, %v1918
        %1920 = vmatprep.mubr.bf16.mxu0 0
        %1921 = vmatmul.mubr.bf16.gmra.mrb[0].mxu0 %v1634
        %v1922 = vpop.f32.mrb[0].mxu0
        %v1923 = vadd.f32 0.0, %v1922
        %v1924 = vpop.f32.mrb[0].mxu0
        %v1925 = vadd.f32 0.0, %v1924
        %v1926 = vpop.f32.mrb[0].mxu0
        %v1927 = vadd.f32 0.0, %v1926
        %v1928 = vpop.f32.mrb[0].mxu0
        %v1929 = vadd.f32 0.0, %v1928
        %1930 = vmatprep.mubr.bf16.mxu0 0
        %1931 = vmatmul.mubr.bf16.gmra.mrb[0].mxu0 %v1637
        %v1932 = vpop.f32.mrb[0].mxu0
        %v1933 = vadd.f32 0.0, %v1932
        %v1934 = vpop.f32.mrb[0].mxu0
        %v1935 = vadd.f32 0.0, %v1934
        %v1936 = vpop.f32.mrb[0].mxu0
        %v1937 = vadd.f32 0.0, %v1936
        %v1938 = vpop.f32.mrb[0].mxu0
        %v1939 = vadd.f32 0.0, %v1938
        %1940 = vmatprep.mubr.bf16.mxu0 0
        %1941 = vmatmul.mubr.bf16.gmra.mrb[0].mxu0 %v1640
        %v1942 = vpop.f32.mrb[0].mxu0
        %v1943 = vadd.f32 0.0, %v1942
        %v1944 = vpop.f32.mrb[0].mxu0
        %v1945 = vadd.f32 0.0, %v1944
        %v1946 = vpop.f32.mrb[0].mxu0
        %v1947 = vadd.f32 0.0, %v1946
        %v1948 = vpop.f32.mrb[0].mxu0
        %v1949 = vadd.f32 0.0, %v1948
        %1950 = vmatprep.mubr.bf16.mxu0 0
        %1951 = vmatmul.mubr.bf16.gmra.mrb[0].mxu0 %v1643
        %v1952 = vpop.f32.mrb[0].mxu0
        %v1953 = vadd.f32 0.0, %v1952
        %v1954 = vpop.f32.mrb[0].mxu0
        %v1955 = vadd.f32 0.0, %v1954
        %v1956 = vpop.f32.mrb[0].mxu0
        %v1957 = vadd.f32 0.0, %v1956
        %v1958 = vpop.f32.mrb[0].mxu0
        %v1959 = vadd.f32 0.0, %v1958
        %1960 = vmatprep.mubr.bf16.mxu0 0
        %1961 = vmatmul.mubr.bf16.gmra.mrb[0].mxu0 %v1646
        %v1962 = vpop.f32.mrb[0].mxu0
        %v1963 = vadd.f32 0.0, %v1962
        %v1964 = vpop.f32.mrb[0].mxu0
        %v1965 = vadd.f32 0.0, %v1964
        %v1966 = vpop.f32.mrb[0].mxu0
        %v1967 = vadd.f32 0.0, %v1966
        %v1968 = vpop.f32.mrb[0].mxu0
        %v1969 = vadd.f32 0.0, %v1968
        %1970 = vmatprep.mubr.bf16.mxu0 0
        %1971 = vmatmul.mubr.bf16.gmra.mrb[0].mxu0 %v1649
        %v1972 = vpop.f32.mrb[0].mxu0
        %v1973 = vadd.f32 0.0, %v1972
        %v1974 = vpop.f32.mrb[0].mxu0
        %v1975 = vadd.f32 0.0, %v1974
        %v1976 = vpop.f32.mrb[0].mxu0
        %v1977 = vadd.f32 0.0, %v1976
        %v1978 = vpop.f32.mrb[0].mxu0
        %v1979 = vadd.f32 0.0, %v1978
        %1980 = vmatprep.mubr.bf16.mxu0 0
        %1981 = vmatmul.mubr.bf16.gmra.mrb[0].mxu0 %v1652
        %v1982 = vpop.f32.mrb[0].mxu0
        %v1983 = vadd.f32 0.0, %v1982
        %v1984 = vpop.f32.mrb[0].mxu0
        %v1985 = vadd.f32 0.0, %v1984
        %v1986 = vpop.f32.mrb[0].mxu0
        %v1987 = vadd.f32 0.0, %v1986
        %v1988 = vpop.f32.mrb[0].mxu0
        %v1989 = vadd.f32 0.0, %v1988
        %1990 = vmatprep.mubr.bf16.mxu0 0
        %1991 = vmatmul.mubr.bf16.gmra.mrb[0].mxu0 %v1655
        %v1992 = vpop.f32.mrb[0].mxu0
        %v1993 = vadd.f32 0.0, %v1992
        %v1994 = vpop.f32.mrb[0].mxu0
        %v1995 = vadd.f32 0.0, %v1994
        %v1996 = vpop.f32.mrb[0].mxu0
        %v1997 = vadd.f32 0.0, %v1996
        %v1998 = vpop.f32.mrb[0].mxu0
        %v1999 = vadd.f32 0.0, %v1998
        %2000 = vmatprep.mubr.bf16.mxu0 0
        %2001 = vmatmul.mubr.bf16.gmra.mrb[0].mxu0 %v1658
        %v2002 = vpop.f32.mrb[0].mxu0
        %v2003 = vadd.f32 0.0, %v2002
        %v2004 = vpop.f32.mrb[0].mxu0
        %v2005 = vadd.f32 0.0, %v2004
        %v2006 = vpop.f32.mrb[0].mxu0
        %v2007 = vadd.f32 0.0, %v2006
        %v2008 = vpop.f32.mrb[0].mxu0
        %v2009 = vadd.f32 0.0, %v2008
        %2010 = vmatprep.mubr.bf16.mxu0 0
        %2011 = vmatmul.mubr.bf16.gmra.mrb[0].mxu0 %v1661
        %v2012 = vpop.f32.mrb[0].mxu0
        %v2013 = vadd.f32 0.0, %v2012
        %v2014 = vpop.f32.mrb[0].mxu0
        %v2015 = vadd.f32 0.0, %v2014
        %v2016 = vpop.f32.mrb[0].mxu0
        %v2017 = vadd.f32 0.0, %v2016
        %v2018 = vpop.f32.mrb[0].mxu0
        %v2019 = vadd.f32 0.0, %v2018
        %2020 = vdwg.mxu0
        %v2021 = vadd.f32 %v1223, %v1710
        %v2022 = vadd.f32 %v1225, %v1712
        %v2023 = vadd.f32 %v1396, %v1883
        %v2024 = vadd.f32 %v1398, %v1885
        %v2025 = vadd.f32 %v1227, %v1714
        %v2026 = vadd.f32 %v1229, %v1716
        %v2027 = vadd.f32 %v1400, %v1887
        %v2028 = vadd.f32 %v1402, %v1889
        %v2029 = vadd.f32 %v1233, %v1720
        %v2030 = vadd.f32 %v1235, %v1722
        %v2031 = vadd.f32 %v1406, %v1893
        %v2032 = vadd.f32 %v1408, %v1895
        %v2033 = vadd.f32 %v1237, %v1724
        %v2034 = vadd.f32 %v1239, %v1726
        %v2035 = vadd.f32 %v1410, %v1897
        %v2036 = vadd.f32 %v1412, %v1899
        %v2037 = vadd.f32 %v1243, %v1730
        %v2038 = vadd.f32 %v1245, %v1732
        %v2039 = vadd.f32 %v1416, %v1903
        %v2040 = vadd.f32 %v1418, %v1905
        %v2041 = vadd.f32 %v1247, %v1734
        %v2042 = vadd.f32 %v1249, %v1736
        %v2043 = vadd.f32 %v1420, %v1907
        %v2044 = vadd.f32 %v1422, %v1909
        %v2045 = vadd.f32 %v1253, %v1740
        %v2046 = vadd.f32 %v1255, %v1742
        %v2047 = vadd.f32 %v1426, %v1913
        %v2048 = vadd.f32 %v1428, %v1915
        %v2049 = vadd.f32 %v1257, %v1744
        %v2050 = vadd.f32 %v1259, %v1746
        %v2051 = vadd.f32 %v1430, %v1917
        %v2052 = vadd.f32 %v1432, %v1919
        %v2053 = vadd.f32 %v1263, %v1750
        %v2054 = vadd.f32 %v1265, %v1752
        %v2055 = vadd.f32 %v1436, %v1923
        %v2056 = vadd.f32 %v1438, %v1925
        %v2057 = vadd.f32 %v1267, %v1754
        %v2058 = vadd.f32 %v1269, %v1756
        %v2059 = vadd.f32 %v1440, %v1927
        %v2060 = vadd.f32 %v1442, %v1929
        %v2061 = vadd.f32 %v1273, %v1760
        %v2062 = vadd.f32 %v1275, %v1762
        %v2063 = vadd.f32 %v1446, %v1933
        %v2064 = vadd.f32 %v1448, %v1935
        %v2065 = vadd.f32 %v1277, %v1764
        %v2066 = vadd.f32 %v1279, %v1766
        %v2067 = vadd.f32 %v1450, %v1937
        %v2068 = vadd.f32 %v1452, %v1939
        %v2069 = vadd.f32 %v1283, %v1770
        %v2070 = vadd.f32 %v1285, %v1772
        %v2071 = vadd.f32 %v1456, %v1943
        %v2072 = vadd.f32 %v1458, %v1945
        %v2073 = vadd.f32 %v1287, %v1774
        %v2074 = vadd.f32 %v1289, %v1776
        %v2075 = vadd.f32 %v1460, %v1947
        %v2076 = vadd.f32 %v1462, %v1949
        %v2077 = vadd.f32 %v1293, %v1780
        %v2078 = vadd.f32 %v1295, %v1782
        %v2079 = vadd.f32 %v1466, %v1953
        %v2080 = vadd.f32 %v1468, %v1955
        %v2081 = vadd.f32 %v1297, %v1784
        %v2082 = vadd.f32 %v1299, %v1786
        %v2083 = vadd.f32 %v1470, %v1957
        %v2084 = vadd.f32 %v1472, %v1959
        %v2085 = vadd.f32 %v1303, %v1790
        %v2086 = vadd.f32 %v1305, %v1792
        %v2087 = vadd.f32 %v1476, %v1963
        %v2088 = vadd.f32 %v1478, %v1965
        %v2089 = vadd.f32 %v1307, %v1794
        %v2090 = vadd.f32 %v1309, %v1796
        %v2091 = vadd.f32 %v1480, %v1967
        %v2092 = vadd.f32 %v1482, %v1969
        %v2093 = vadd.f32 %v1313, %v1800
        %v2094 = vadd.f32 %v1315, %v1802
        %v2095 = vadd.f32 %v1486, %v1973
        %v2096 = vadd.f32 %v1488, %v1975
        %v2097 = vadd.f32 %v1317, %v1804
        %v2098 = vadd.f32 %v1319, %v1806
        %v2099 = vadd.f32 %v1490, %v1977
        %v2100 = vadd.f32 %v1492, %v1979
        %v2101 = vadd.f32 %v1323, %v1810
        %v2102 = vadd.f32 %v1325, %v1812
        %v2103 = vadd.f32 %v1496, %v1983
        %v2104 = vadd.f32 %v1498, %v1985
        %v2105 = vadd.f32 %v1327, %v1814
        %v2106 = vadd.f32 %v1329, %v1816
        %v2107 = vadd.f32 %v1500, %v1987
        %v2108 = vadd.f32 %v1502, %v1989
        %v2109 = vadd.f32 %v1333, %v1820
        %v2110 = vadd.f32 %v1335, %v1822
        %v2111 = vadd.f32 %v1506, %v1993
        %v2112 = vadd.f32 %v1508, %v1995
        %v2113 = vadd.f32 %v1337, %v1824
        %v2114 = vadd.f32 %v1339, %v1826
        %v2115 = vadd.f32 %v1510, %v1997
        %v2116 = vadd.f32 %v1512, %v1999
        %v2117 = vadd.f32 %v1343, %v1830
        %v2118 = vadd.f32 %v1345, %v1832
        %v2119 = vadd.f32 %v1516, %v2003
        %v2120 = vadd.f32 %v1518, %v2005
        %v2121 = vadd.f32 %v1347, %v1834
        %v2122 = vadd.f32 %v1349, %v1836
        %v2123 = vadd.f32 %v1520, %v2007
        %v2124 = vadd.f32 %v1522, %v2009
        %v2125 = vadd.f32 %v1353, %v1840
        %v2126 = vadd.f32 %v1355, %v1842
        %v2127 = vadd.f32 %v1526, %v2013
        %v2128 = vadd.f32 %v1528, %v2015
        %v2129 = vadd.f32 %v1357, %v1844
        %v2130 = vadd.f32 %v1359, %v1846
        %v2131 = vadd.f32 %v1530, %v2017
        %v2132 = vadd.f32 %v1532, %v2019
        %s2133 = scalar_lea.vmem [#allocation5], 192
        %v2134 = vld [vmem:[%s2133] sm:$0xff]
        %v2135 = vld [vmem:[%s2133 + $0x8] sm:$0xff]
        %v2136 = vld [vmem:[%s2133 + $0x10] sm:$0xff]
        %v2137 = vld [vmem:[%s2133 + $0x18] sm:$0xff]
        %v2138 = vld [vmem:[%s2133 + $0x20] sm:$0xff]
        %v2139 = vld [vmem:[%s2133 + $0x28] sm:$0xff]
        %v2140 = vld [vmem:[%s2133 + $0x30] sm:$0x33]
        %v2141 = vld [vmem:[%s2133 + $0x38] sm:$0x33]
        %vm2142 = vsmask.f32 6400
        %v2143 = vrot.slane %v564, 1
        %v2144 = vrot.slane %v566, 2
        %v2145 = vor.u32 %v2143, %v2144
        %v2146 = vrot.slane %v575, 1
        %v2147 = vrot.slane %v571, 2
        %v2148 = vor.u32 %v2146, %v2147
        %v2149 = vsel %vm2142, %v2145, %v2148
        %v2150 = vrot.slane %v583, 1
        %v2151 = vrot.slane %v579, 2
        %v2152 = vor.u32 %v2150, %v2151
        %v2153 = vsel %vm2142, %v2148, %v2152
        %v2154 = vrot.slane %v591, 1
        %v2155 = vrot.slane %v587, 2
        %v2156 = vor.u32 %v2154, %v2155
        %v2157 = vsel %vm2142, %v2152, %v2156
        %v2158 = vrot.slane %v599, 1
        %v2159 = vrot.slane %v595, 2
        %v2160 = vor.u32 %v2158, %v2159
        %v2161 = vsel %vm2142, %v2156, %v2160
        %v2162 = vrot.slane %v607, 1
        %v2163 = vrot.slane %v603, 2
        %v2164 = vor.u32 %v2162, %v2163
        %v2165 = vsel %vm2142, %v2160, %v2164
        %v2166 = vrot.slane %v615, 1
        %v2167 = vrot.slane %v611, 2
        %v2168 = vor.u32 %v2166, %v2167
        %v2169 = vsel %vm2142, %v2164, %v2168
        %v2170 = vrot.slane %v623, 1
        %v2171 = vrot.slane %v619, 2
        %v2172 = vor.u32 %v2170, %v2171
        %v2173 = vsel %vm2142, %v2168, %v2172
        %v2174 = vrot.slane %v631, 1
        %v2175 = vrot.slane %v627, 2
        %v2176 = vor.u32 %v2174, %v2175
        %v2177 = vsel %vm2142, %v2172, %v2176
        %v2178 = vrot.slane %v639, 1
        %v2179 = vrot.slane %v635, 2
        %v2180 = vor.u32 %v2178, %v2179
        %v2181 = vsel %vm2142, %v2176, %v2180
        %v2182 = vrot.slane %v647, 1
        %v2183 = vrot.slane %v643, 2
        %v2184 = vor.u32 %v2182, %v2183
        %v2185 = vsel %vm2142, %v2180, %v2184
        %v2186 = vrot.slane %v655, 1
        %v2187 = vrot.slane %v651, 2
        %v2188 = vor.u32 %v2186, %v2187
        %v2189 = vsel %vm2142, %v2184, %v2188
        %v2190 = vrot.slane %v663, 1
        %v2191 = vrot.slane %v659, 2
        %v2192 = vor.u32 %v2190, %v2191
        %v2193 = vsel %vm2142, %v2188, %v2192
        %v2194 = vrot.slane %v671, 1
        %v2195 = vrot.slane %v667, 2
        %v2196 = vor.u32 %v2194, %v2195
        %v2197 = vsel %vm2142, %v2192, %v2196
        %v2206 = vunpack.c.l.b16 %v2134
        %v2207 = vunpack.c.h.b16 %v2134
        %v2208 = vunpack.c.l.b16 %v2135
        %v2209 = vunpack.c.h.b16 %v2135
        %v2210 = vunpack.c.l.b16 %v2136
        %v2211 = vunpack.c.h.b16 %v2136
        %v2212 = vunpack.c.l.b16 %v2137
        %v2213 = vunpack.c.h.b16 %v2137
        %v2214 = vunpack.c.l.b16 %v2138
        %v2215 = vunpack.c.h.b16 %v2138
        %v2216 = vunpack.c.l.b16 %v2139
        %v2217 = vunpack.c.h.b16 %v2139
        %v2218 = vunpack.c.l.b16 %v2140
        %v2219 = vunpack.c.h.b16 %v2140
        %v2220 = vunpack.c.l.b16 %v2141
        %v2221 = vunpack.c.h.b16 %v2141
        %v2222 = vpack.c.b16 %v2210, %v2206
        %v2223 = vpack.c.b16 %v2211, %v2207
        %v2224 = vpack.c.b16 %v2212, %v2208
        %v2225 = vpack.c.b16 %v2213, %v2209
        %v2226 = vpack.c.b16 %v2218, %v2214
        %v2227 = vpack.c.b16 %v2219, %v2215
        %v2228 = vpack.c.b16 %v2220, %v2216
        %v2229 = vpack.c.b16 %v2221, %v2217
        %v2235 = vsel %vm710, %v2149, 0
        %v2238 = vsel %vm710, %v2153, 0
        %v2241 = vsel %vm710, %v2157, 0
        %v2244 = vsel %vm710, %v2161, 0
        %v2247 = vsel %vm710, %v2165, 0
        %v2250 = vsel %vm710, %v2169, 0
        %v2253 = vsel %vm710, %v2173, 0
        %v2256 = vsel %vm710, %v2177, 0
        %v2259 = vsel %vm710, %v2181, 0
        %v2262 = vsel %vm710, %v2185, 0
        %v2265 = vsel %vm710, %v2189, 0
        %v2268 = vsel %vm710, %v2193, 0
        %v2271 = vsel %vm710, %v2197, 0
        %v2274 = vsel %vm710, %v2196, 0
        %v2277 = vsel %vm753, %v2226, 0
        %v2280 = vsel %vm753, %v2227, 0
        %v2283 = vsel %vm753, %v2228, 0
        %v2286 = vsel %vm753, %v2229, 0
        %2288 = vmatprep.subr.bf16.mxu0 %v2223
        %2289 = vmatpush1.bf16.msra.mxu0 %v2222
        %2290 = vmatprep.subr.bf16.mxu0 %v2280
        %2291 = vmatpush1.bf16.msra.mxu0 %v2277
        %2292 = vmatprep.subr.bf16.mxu0 0
        %2293 = vmatpush1.bf16.msra.mxu0 0
        %2294 = vmatprep.subr.bf16.mxu0 0
        %2295 = vmatpush1.bf16.msra.mxu0 0
        %2296 = vmatprep.subr.bf16.mxu0 0
        %2297 = vmatpush1.bf16.msra.mxu0 0
        %2298 = vmatprep.subr.bf16.mxu0 0
        %2299 = vmatpush1.bf16.msra.mxu0 0
        %2300 = vmatprep.subr.bf16.mxu0 0
        %2301 = vmatpush1.bf16.msra.mxu0 0
        %2302 = vmatprep.subr.bf16.mxu0 0
        %2303 = vmatpush1.bf16.msra.mxu0 0
        %2304 = vmatprep.subr.bf16.mxu0 0
        %2305 = vmatpush1.bf16.msra.mxu0 0
        %2306 = vmatprep.subr.bf16.mxu0 0
        %2307 = vmatpush1.bf16.msra.mxu0 0
        %2308 = vmatprep.subr.bf16.mxu0 0
        %2309 = vmatpush1.bf16.msra.mxu0 0
        %2310 = vmatprep.subr.bf16.mxu0 0
        %2311 = vmatpush1.bf16.msra.mxu0 0
        %2312 = vmatprep.subr.bf16.mxu0 0
        %2313 = vmatpush1.bf16.msra.mxu0 0
        %2314 = vmatprep.subr.bf16.mxu0 0
        %2315 = vmatpush1.bf16.msra.mxu0 0
        %2316 = vmatprep.subr.bf16.mxu0 0
        %2317 = vmatpush1.bf16.msra.mxu0 0
        %2318 = vmatprep.subr.bf16.mxu0 0
        %2319 = vmatpush1.bf16.msra.mxu0 0
        %2320 = vmatprep.mubr.bf16.mxu0 0
        %2321 = vmatmul.mubr.bf16.gmra.mrb[0].mxu0 %v2235
        %v2322 = vpop.f32.mrb[0].mxu0
        %v2323 = vadd.f32 0.0, %v2322
        %v2324 = vpop.f32.mrb[0].mxu0
        %v2325 = vadd.f32 0.0, %v2324
        %v2326 = vpop.f32.mrb[0].mxu0
        %v2327 = vadd.f32 0.0, %v2326
        %v2328 = vpop.f32.mrb[0].mxu0
        %v2329 = vadd.f32 0.0, %v2328
        %2330 = vmatprep.mubr.bf16.mxu0 0
        %2331 = vmatmul.mubr.bf16.gmra.mrb[0].mxu0 %v2238
        %v2332 = vpop.f32.mrb[0].mxu0
        %v2333 = vadd.f32 0.0, %v2332
        %v2334 = vpop.f32.mrb[0].mxu0
        %v2335 = vadd.f32 0.0, %v2334
        %v2336 = vpop.f32.mrb[0].mxu0
        %v2337 = vadd.f32 0.0, %v2336
        %v2338 = vpop.f32.mrb[0].mxu0
        %v2339 = vadd.f32 0.0, %v2338
        %2340 = vmatprep.mubr.bf16.mxu0 0
        %2341 = vmatmul.mubr.bf16.gmra.mrb[0].mxu0 %v2241
        %v2342 = vpop.f32.mrb[0].mxu0
        %v2343 = vadd.f32 0.0, %v2342
        %v2344 = vpop.f32.mrb[0].mxu0
        %v2345 = vadd.f32 0.0, %v2344
        %v2346 = vpop.f32.mrb[0].mxu0
        %v2347 = vadd.f32 0.0, %v2346
        %v2348 = vpop.f32.mrb[0].mxu0
        %v2349 = vadd.f32 0.0, %v2348
        %2350 = vmatprep.mubr.bf16.mxu0 0
        %2351 = vmatmul.mubr.bf16.gmra.mrb[0].mxu0 %v2244
        %v2352 = vpop.f32.mrb[0].mxu0
        %v2353 = vadd.f32 0.0, %v2352
        %v2354 = vpop.f32.mrb[0].mxu0
        %v2355 = vadd.f32 0.0, %v2354
        %v2356 = vpop.f32.mrb[0].mxu0
        %v2357 = vadd.f32 0.0, %v2356
        %v2358 = vpop.f32.mrb[0].mxu0
        %v2359 = vadd.f32 0.0, %v2358
        %2360 = vmatprep.mubr.bf16.mxu0 0
        %2361 = vmatmul.mubr.bf16.gmra.mrb[0].mxu0 %v2247
        %v2362 = vpop.f32.mrb[0].mxu0
        %v2363 = vadd.f32 0.0, %v2362
        %v2364 = vpop.f32.mrb[0].mxu0
        %v2365 = vadd.f32 0.0, %v2364
        %v2366 = vpop.f32.mrb[0].mxu0
        %v2367 = vadd.f32 0.0, %v2366
        %v2368 = vpop.f32.mrb[0].mxu0
        %v2369 = vadd.f32 0.0, %v2368
        %2370 = vmatprep.mubr.bf16.mxu0 0
        %2371 = vmatmul.mubr.bf16.gmra.mrb[0].mxu0 %v2250
        %v2372 = vpop.f32.mrb[0].mxu0
        %v2373 = vadd.f32 0.0, %v2372
        %v2374 = vpop.f32.mrb[0].mxu0
        %v2375 = vadd.f32 0.0, %v2374
        %v2376 = vpop.f32.mrb[0].mxu0
        %v2377 = vadd.f32 0.0, %v2376
        %v2378 = vpop.f32.mrb[0].mxu0
        %v2379 = vadd.f32 0.0, %v2378
        %2380 = vmatprep.mubr.bf16.mxu0 0
        %2381 = vmatmul.mubr.bf16.gmra.mrb[0].mxu0 %v2253
        %v2382 = vpop.f32.mrb[0].mxu0
        %v2383 = vadd.f32 0.0, %v2382
        %v2384 = vpop.f32.mrb[0].mxu0
        %v2385 = vadd.f32 0.0, %v2384
        %v2386 = vpop.f32.mrb[0].mxu0
        %v2387 = vadd.f32 0.0, %v2386
        %v2388 = vpop.f32.mrb[0].mxu0
        %v2389 = vadd.f32 0.0, %v2388
        %2390 = vmatprep.mubr.bf16.mxu0 0
        %2391 = vmatmul.mubr.bf16.gmra.mrb[0].mxu0 %v2256
        %v2392 = vpop.f32.mrb[0].mxu0
        %v2393 = vadd.f32 0.0, %v2392
        %v2394 = vpop.f32.mrb[0].mxu0
        %v2395 = vadd.f32 0.0, %v2394
        %v2396 = vpop.f32.mrb[0].mxu0
        %v2397 = vadd.f32 0.0, %v2396
        %v2398 = vpop.f32.mrb[0].mxu0
        %v2399 = vadd.f32 0.0, %v2398
        %2400 = vmatprep.mubr.bf16.mxu0 0
        %2401 = vmatmul.mubr.bf16.gmra.mrb[0].mxu0 %v2259
        %v2402 = vpop.f32.mrb[0].mxu0
        %v2403 = vadd.f32 0.0, %v2402
        %v2404 = vpop.f32.mrb[0].mxu0
        %v2405 = vadd.f32 0.0, %v2404
        %v2406 = vpop.f32.mrb[0].mxu0
        %v2407 = vadd.f32 0.0, %v2406
        %v2408 = vpop.f32.mrb[0].mxu0
        %v2409 = vadd.f32 0.0, %v2408
        %2410 = vmatprep.mubr.bf16.mxu0 0
        %2411 = vmatmul.mubr.bf16.gmra.mrb[0].mxu0 %v2262
        %v2412 = vpop.f32.mrb[0].mxu0
        %v2413 = vadd.f32 0.0, %v2412
        %v2414 = vpop.f32.mrb[0].mxu0
        %v2415 = vadd.f32 0.0, %v2414
        %v2416 = vpop.f32.mrb[0].mxu0
        %v2417 = vadd.f32 0.0, %v2416
        %v2418 = vpop.f32.mrb[0].mxu0
        %v2419 = vadd.f32 0.0, %v2418
        %2420 = vmatprep.mubr.bf16.mxu0 0
        %2421 = vmatmul.mubr.bf16.gmra.mrb[0].mxu0 %v2265
        %v2422 = vpop.f32.mrb[0].mxu0
        %v2423 = vadd.f32 0.0, %v2422
        %v2424 = vpop.f32.mrb[0].mxu0
        %v2425 = vadd.f32 0.0, %v2424
        %v2426 = vpop.f32.mrb[0].mxu0
        %v2427 = vadd.f32 0.0, %v2426
        %v2428 = vpop.f32.mrb[0].mxu0
        %v2429 = vadd.f32 0.0, %v2428
        %2430 = vmatprep.mubr.bf16.mxu0 0
        %2431 = vmatmul.mubr.bf16.gmra.mrb[0].mxu0 %v2268
        %v2432 = vpop.f32.mrb[0].mxu0
        %v2433 = vadd.f32 0.0, %v2432
        %v2434 = vpop.f32.mrb[0].mxu0
        %v2435 = vadd.f32 0.0, %v2434
        %v2436 = vpop.f32.mrb[0].mxu0
        %v2437 = vadd.f32 0.0, %v2436
        %v2438 = vpop.f32.mrb[0].mxu0
        %v2439 = vadd.f32 0.0, %v2438
        %2440 = vmatprep.mubr.bf16.mxu0 0
        %2441 = vmatmul.mubr.bf16.gmra.mrb[0].mxu0 %v2271
        %v2442 = vpop.f32.mrb[0].mxu0
        %v2443 = vadd.f32 0.0, %v2442
        %v2444 = vpop.f32.mrb[0].mxu0
        %v2445 = vadd.f32 0.0, %v2444
        %v2446 = vpop.f32.mrb[0].mxu0
        %v2447 = vadd.f32 0.0, %v2446
        %v2448 = vpop.f32.mrb[0].mxu0
        %v2449 = vadd.f32 0.0, %v2448
        %2450 = vmatprep.mubr.bf16.mxu0 0
        %2451 = vmatmul.mubr.bf16.gmra.mrb[0].mxu0 %v2274
        %v2452 = vpop.f32.mrb[0].mxu0
        %v2453 = vadd.f32 0.0, %v2452
        %v2454 = vpop.f32.mrb[0].mxu0
        %v2455 = vadd.f32 0.0, %v2454
        %v2456 = vpop.f32.mrb[0].mxu0
        %v2457 = vadd.f32 0.0, %v2456
        %v2458 = vpop.f32.mrb[0].mxu0
        %v2459 = vadd.f32 0.0, %v2458
        %2460 = vdwg.mxu0
        %2461 = vmatprep.subr.bf16.mxu0 %v2225
        %2462 = vmatpush1.bf16.msra.mxu0 %v2224
        %2463 = vmatprep.subr.bf16.mxu0 %v2286
        %2464 = vmatpush1.bf16.msra.mxu0 %v2283
        %2465 = vmatprep.subr.bf16.mxu0 0
        %2466 = vmatpush1.bf16.msra.mxu0 0
        %2467 = vmatprep.subr.bf16.mxu0 0
        %2468 = vmatpush1.bf16.msra.mxu0 0
        %2469 = vmatprep.subr.bf16.mxu0 0
        %2470 = vmatpush1.bf16.msra.mxu0 0
        %2471 = vmatprep.subr.bf16.mxu0 0
        %2472 = vmatpush1.bf16.msra.mxu0 0
        %2473 = vmatprep.subr.bf16.mxu0 0
        %2474 = vmatpush1.bf16.msra.mxu0 0
        %2475 = vmatprep.subr.bf16.mxu0 0
        %2476 = vmatpush1.bf16.msra.mxu0 0
        %2477 = vmatprep.subr.bf16.mxu0 0
        %2478 = vmatpush1.bf16.msra.mxu0 0
        %2479 = vmatprep.subr.bf16.mxu0 0
        %2480 = vmatpush1.bf16.msra.mxu0 0
        %2481 = vmatprep.subr.bf16.mxu0 0
        %2482 = vmatpush1.bf16.msra.mxu0 0
        %2483 = vmatprep.subr.bf16.mxu0 0
        %2484 = vmatpush1.bf16.msra.mxu0 0
        %2485 = vmatprep.subr.bf16.mxu0 0
        %2486 = vmatpush1.bf16.msra.mxu0 0
        %2487 = vmatprep.subr.bf16.mxu0 0
        %2488 = vmatpush1.bf16.msra.mxu0 0
        %2489 = vmatprep.subr.bf16.mxu0 0
        %2490 = vmatpush1.bf16.msra.mxu0 0
        %2491 = vmatprep.subr.bf16.mxu0 0
        %2492 = vmatpush1.bf16.msra.mxu0 0
        %2493 = vmatprep.mubr.bf16.mxu0 0
        %2494 = vmatmul.mubr.bf16.gmra.mrb[0].mxu0 %v2235
        %v2495 = vpop.f32.mrb[0].mxu0
        %v2496 = vadd.f32 0.0, %v2495
        %v2497 = vpop.f32.mrb[0].mxu0
        %v2498 = vadd.f32 0.0, %v2497
        %v2499 = vpop.f32.mrb[0].mxu0
        %v2500 = vadd.f32 0.0, %v2499
        %v2501 = vpop.f32.mrb[0].mxu0
        %v2502 = vadd.f32 0.0, %v2501
        %2503 = vmatprep.mubr.bf16.mxu0 0
        %2504 = vmatmul.mubr.bf16.gmra.mrb[0].mxu0 %v2238
        %v2505 = vpop.f32.mrb[0].mxu0
        %v2506 = vadd.f32 0.0, %v2505
        %v2507 = vpop.f32.mrb[0].mxu0
        %v2508 = vadd.f32 0.0, %v2507
        %v2509 = vpop.f32.mrb[0].mxu0
        %v2510 = vadd.f32 0.0, %v2509
        %v2511 = vpop.f32.mrb[0].mxu0
        %v2512 = vadd.f32 0.0, %v2511
        %2513 = vmatprep.mubr.bf16.mxu0 0
        %2514 = vmatmul.mubr.bf16.gmra.mrb[0].mxu0 %v2241
        %v2515 = vpop.f32.mrb[0].mxu0
        %v2516 = vadd.f32 0.0, %v2515
        %v2517 = vpop.f32.mrb[0].mxu0
        %v2518 = vadd.f32 0.0, %v2517
        %v2519 = vpop.f32.mrb[0].mxu0
        %v2520 = vadd.f32 0.0, %v2519
        %v2521 = vpop.f32.mrb[0].mxu0
        %v2522 = vadd.f32 0.0, %v2521
        %2523 = vmatprep.mubr.bf16.mxu0 0
        %2524 = vmatmul.mubr.bf16.gmra.mrb[0].mxu0 %v2244
        %v2525 = vpop.f32.mrb[0].mxu0
        %v2526 = vadd.f32 0.0, %v2525
        %v2527 = vpop.f32.mrb[0].mxu0
        %v2528 = vadd.f32 0.0, %v2527
        %v2529 = vpop.f32.mrb[0].mxu0
        %v2530 = vadd.f32 0.0, %v2529
        %v2531 = vpop.f32.mrb[0].mxu0
        %v2532 = vadd.f32 0.0, %v2531
        %2533 = vmatprep.mubr.bf16.mxu0 0
        %2534 = vmatmul.mubr.bf16.gmra.mrb[0].mxu0 %v2247
        %v2535 = vpop.f32.mrb[0].mxu0
        %v2536 = vadd.f32 0.0, %v2535
        %v2537 = vpop.f32.mrb[0].mxu0
        %v2538 = vadd.f32 0.0, %v2537
        %v2539 = vpop.f32.mrb[0].mxu0
        %v2540 = vadd.f32 0.0, %v2539
        %v2541 = vpop.f32.mrb[0].mxu0
        %v2542 = vadd.f32 0.0, %v2541
        %2543 = vmatprep.mubr.bf16.mxu0 0
        %2544 = vmatmul.mubr.bf16.gmra.mrb[0].mxu0 %v2250
        %v2545 = vpop.f32.mrb[0].mxu0
        %v2546 = vadd.f32 0.0, %v2545
        %v2547 = vpop.f32.mrb[0].mxu0
        %v2548 = vadd.f32 0.0, %v2547
        %v2549 = vpop.f32.mrb[0].mxu0
        %v2550 = vadd.f32 0.0, %v2549
        %v2551 = vpop.f32.mrb[0].mxu0
        %v2552 = vadd.f32 0.0, %v2551
        %2553 = vmatprep.mubr.bf16.mxu0 0
        %2554 = vmatmul.mubr.bf16.gmra.mrb[0].mxu0 %v2253
        %v2555 = vpop.f32.mrb[0].mxu0
        %v2556 = vadd.f32 0.0, %v2555
        %v2557 = vpop.f32.mrb[0].mxu0
        %v2558 = vadd.f32 0.0, %v2557
        %v2559 = vpop.f32.mrb[0].mxu0
        %v2560 = vadd.f32 0.0, %v2559
        %v2561 = vpop.f32.mrb[0].mxu0
        %v2562 = vadd.f32 0.0, %v2561
        %2563 = vmatprep.mubr.bf16.mxu0 0
        %2564 = vmatmul.mubr.bf16.gmra.mrb[0].mxu0 %v2256
        %v2565 = vpop.f32.mrb[0].mxu0
        %v2566 = vadd.f32 0.0, %v2565
        %v2567 = vpop.f32.mrb[0].mxu0
        %v2568 = vadd.f32 0.0, %v2567
        %v2569 = vpop.f32.mrb[0].mxu0
        %v2570 = vadd.f32 0.0, %v2569
        %v2571 = vpop.f32.mrb[0].mxu0
        %v2572 = vadd.f32 0.0, %v2571
        %2573 = vmatprep.mubr.bf16.mxu0 0
        %2574 = vmatmul.mubr.bf16.gmra.mrb[0].mxu0 %v2259
        %v2575 = vpop.f32.mrb[0].mxu0
        %v2576 = vadd.f32 0.0, %v2575
        %v2577 = vpop.f32.mrb[0].mxu0
        %v2578 = vadd.f32 0.0, %v2577
        %v2579 = vpop.f32.mrb[0].mxu0
        %v2580 = vadd.f32 0.0, %v2579
        %v2581 = vpop.f32.mrb[0].mxu0
        %v2582 = vadd.f32 0.0, %v2581
        %2583 = vmatprep.mubr.bf16.mxu0 0
        %2584 = vmatmul.mubr.bf16.gmra.mrb[0].mxu0 %v2262
        %v2585 = vpop.f32.mrb[0].mxu0
        %v2586 = vadd.f32 0.0, %v2585
        %v2587 = vpop.f32.mrb[0].mxu0
        %v2588 = vadd.f32 0.0, %v2587
        %v2589 = vpop.f32.mrb[0].mxu0
        %v2590 = vadd.f32 0.0, %v2589
        %v2591 = vpop.f32.mrb[0].mxu0
        %v2592 = vadd.f32 0.0, %v2591
        %2593 = vmatprep.mubr.bf16.mxu0 0
        %2594 = vmatmul.mubr.bf16.gmra.mrb[0].mxu0 %v2265
        %v2595 = vpop.f32.mrb[0].mxu0
        %v2596 = vadd.f32 0.0, %v2595
        %v2597 = vpop.f32.mrb[0].mxu0
        %v2598 = vadd.f32 0.0, %v2597
        %v2599 = vpop.f32.mrb[0].mxu0
        %v2600 = vadd.f32 0.0, %v2599
        %v2601 = vpop.f32.mrb[0].mxu0
        %v2602 = vadd.f32 0.0, %v2601
        %2603 = vmatprep.mubr.bf16.mxu0 0
        %2604 = vmatmul.mubr.bf16.gmra.mrb[0].mxu0 %v2268
        %v2605 = vpop.f32.mrb[0].mxu0
        %v2606 = vadd.f32 0.0, %v2605
        %v2607 = vpop.f32.mrb[0].mxu0
        %v2608 = vadd.f32 0.0, %v2607
        %v2609 = vpop.f32.mrb[0].mxu0
        %v2610 = vadd.f32 0.0, %v2609
        %v2611 = vpop.f32.mrb[0].mxu0
        %v2612 = vadd.f32 0.0, %v2611
        %2613 = vmatprep.mubr.bf16.mxu0 0
        %2614 = vmatmul.mubr.bf16.gmra.mrb[0].mxu0 %v2271
        %v2615 = vpop.f32.mrb[0].mxu0
        %v2616 = vadd.f32 0.0, %v2615
        %v2617 = vpop.f32.mrb[0].mxu0
        %v2618 = vadd.f32 0.0, %v2617
        %v2619 = vpop.f32.mrb[0].mxu0
        %v2620 = vadd.f32 0.0, %v2619
        %v2621 = vpop.f32.mrb[0].mxu0
        %v2622 = vadd.f32 0.0, %v2621
        %2623 = vmatprep.mubr.bf16.mxu0 0
        %2624 = vmatmul.mubr.bf16.gmra.mrb[0].mxu0 %v2274
        %v2625 = vpop.f32.mrb[0].mxu0
        %v2626 = vadd.f32 0.0, %v2625
        %v2627 = vpop.f32.mrb[0].mxu0
        %v2628 = vadd.f32 0.0, %v2627
        %v2629 = vpop.f32.mrb[0].mxu0
        %v2630 = vadd.f32 0.0, %v2629
        %v2631 = vpop.f32.mrb[0].mxu0
        %v2632 = vadd.f32 0.0, %v2631
        %2633 = vdwg.mxu0
        %v2634 = vadd.f32 %v2021, %v2323
        %v2635 = vadd.f32 %v2022, %v2325
        %v2636 = vadd.f32 %v2023, %v2496
        %v2637 = vadd.f32 %v2024, %v2498
        %v2638 = vadd.f32 %v2025, %v2327
        %v2639 = vadd.f32 %v2026, %v2329
        %v2640 = vadd.f32 %v2027, %v2500
        %v2641 = vadd.f32 %v2028, %v2502
        %v2642 = vadd.f32 %v2029, %v2333
        %v2643 = vadd.f32 %v2030, %v2335
        %v2644 = vadd.f32 %v2031, %v2506
        %v2645 = vadd.f32 %v2032, %v2508
        %v2646 = vadd.f32 %v2033, %v2337
        %v2647 = vadd.f32 %v2034, %v2339
        %v2648 = vadd.f32 %v2035, %v2510
        %v2649 = vadd.f32 %v2036, %v2512
        %v2650 = vadd.f32 %v2037, %v2343
        %v2651 = vadd.f32 %v2038, %v2345
        %v2652 = vadd.f32 %v2039, %v2516
        %v2653 = vadd.f32 %v2040, %v2518
        %v2654 = vadd.f32 %v2041, %v2347
        %v2655 = vadd.f32 %v2042, %v2349
        %v2656 = vadd.f32 %v2043, %v2520
        %v2657 = vadd.f32 %v2044, %v2522
        %v2658 = vadd.f32 %v2045, %v2353
        %v2659 = vadd.f32 %v2046, %v2355
        %v2660 = vadd.f32 %v2047, %v2526
        %v2661 = vadd.f32 %v2048, %v2528
        %v2662 = vadd.f32 %v2049, %v2357
        %v2663 = vadd.f32 %v2050, %v2359
        %v2664 = vadd.f32 %v2051, %v2530
        %v2665 = vadd.f32 %v2052, %v2532
        %v2666 = vadd.f32 %v2053, %v2363
        %v2667 = vadd.f32 %v2054, %v2365
        %v2668 = vadd.f32 %v2055, %v2536
        %v2669 = vadd.f32 %v2056, %v2538
        %v2670 = vadd.f32 %v2057, %v2367
        %v2671 = vadd.f32 %v2058, %v2369
        %v2672 = vadd.f32 %v2059, %v2540
        %v2673 = vadd.f32 %v2060, %v2542
        %v2674 = vadd.f32 %v2061, %v2373
        %v2675 = vadd.f32 %v2062, %v2375
        %v2676 = vadd.f32 %v2063, %v2546
        %v2677 = vadd.f32 %v2064, %v2548
        %v2678 = vadd.f32 %v2065, %v2377
        %v2679 = vadd.f32 %v2066, %v2379
        %v2680 = vadd.f32 %v2067, %v2550
        %v2681 = vadd.f32 %v2068, %v2552
        %v2682 = vadd.f32 %v2069, %v2383
        %v2683 = vadd.f32 %v2070, %v2385
        %v2684 = vadd.f32 %v2071, %v2556
        %v2685 = vadd.f32 %v2072, %v2558
        %v2686 = vadd.f32 %v2073, %v2387
        %v2687 = vadd.f32 %v2074, %v2389
        %v2688 = vadd.f32 %v2075, %v2560
        %v2689 = vadd.f32 %v2076, %v2562
        %v2690 = vadd.f32 %v2077, %v2393
        %v2691 = vadd.f32 %v2078, %v2395
        %v2692 = vadd.f32 %v2079, %v2566
        %v2693 = vadd.f32 %v2080, %v2568
        %v2694 = vadd.f32 %v2081, %v2397
        %v2695 = vadd.f32 %v2082, %v2399
        %v2696 = vadd.f32 %v2083, %v2570
        %v2697 = vadd.f32 %v2084, %v2572
        %v2698 = vadd.f32 %v2085, %v2403
        %v2699 = vadd.f32 %v2086, %v2405
        %v2700 = vadd.f32 %v2087, %v2576
        %v2701 = vadd.f32 %v2088, %v2578
        %v2702 = vadd.f32 %v2089, %v2407
        %v2703 = vadd.f32 %v2090, %v2409
        %v2704 = vadd.f32 %v2091, %v2580
        %v2705 = vadd.f32 %v2092, %v2582
        %v2706 = vadd.f32 %v2093, %v2413
        %v2707 = vadd.f32 %v2094, %v2415
        %v2708 = vadd.f32 %v2095, %v2586
        %v2709 = vadd.f32 %v2096, %v2588
        %v2710 = vadd.f32 %v2097, %v2417
        %v2711 = vadd.f32 %v2098, %v2419
        %v2712 = vadd.f32 %v2099, %v2590
        %v2713 = vadd.f32 %v2100, %v2592
        %v2714 = vadd.f32 %v2101, %v2423
        %v2715 = vadd.f32 %v2102, %v2425
        %v2716 = vadd.f32 %v2103, %v2596
        %v2717 = vadd.f32 %v2104, %v2598
        %v2718 = vadd.f32 %v2105, %v2427
        %v2719 = vadd.f32 %v2106, %v2429
        %v2720 = vadd.f32 %v2107, %v2600
        %v2721 = vadd.f32 %v2108, %v2602
        %v2722 = vadd.f32 %v2109, %v2433
        %v2723 = vadd.f32 %v2110, %v2435
        %v2724 = vadd.f32 %v2111, %v2606
        %v2725 = vadd.f32 %v2112, %v2608
        %v2726 = vadd.f32 %v2113, %v2437
        %v2727 = vadd.f32 %v2114, %v2439
        %v2728 = vadd.f32 %v2115, %v2610
        %v2729 = vadd.f32 %v2116, %v2612
        %v2730 = vadd.f32 %v2117, %v2443
        %v2731 = vadd.f32 %v2118, %v2445
        %v2732 = vadd.f32 %v2119, %v2616
        %v2733 = vadd.f32 %v2120, %v2618
        %v2734 = vadd.f32 %v2121, %v2447
        %v2735 = vadd.f32 %v2122, %v2449
        %v2736 = vadd.f32 %v2123, %v2620
        %v2737 = vadd.f32 %v2124, %v2622
        %v2738 = vadd.f32 %v2125, %v2453
        %v2739 = vadd.f32 %v2126, %v2455
        %v2740 = vadd.f32 %v2127, %v2626
        %v2741 = vadd.f32 %v2128, %v2628
        %v2742 = vadd.f32 %v2129, %v2457
        %v2743 = vadd.f32 %v2130, %v2459
        %v2744 = vadd.f32 %v2131, %v2630
        %v2745 = vadd.f32 %v2132, %v2632
        %s2746 = scalar_lea.vmem [#allocation5], 256
        %v2747 = vld [vmem:[%s2746] sm:$0xff]
        %v2748 = vld [vmem:[%s2746 + $0x8] sm:$0xff]
        %v2749 = vld [vmem:[%s2746 + $0x10] sm:$0xff]
        %v2750 = vld [vmem:[%s2746 + $0x18] sm:$0xff]
        %v2751 = vld [vmem:[%s2746 + $0x20] sm:$0xff]
        %v2752 = vld [vmem:[%s2746 + $0x28] sm:$0xff]
        %v2753 = vld [vmem:[%s2746 + $0x30] sm:$0x33]
        %v2754 = vld [vmem:[%s2746 + $0x38] sm:$0x33]
        %vm2755 = vcmask 1045504
        %v2756 = vrot.slane %v531, 2
        %v2757 = vrot.slane %v532, 2
        %v2758 = vsel %vm2755, %v2756, %v2757
        %v2759 = vrot.slane %v533, 2
        %v2760 = vsel %vm2755, %v2757, %v2759
        %v2761 = vrot.slane %v534, 2
        %v2762 = vsel %vm2755, %v2759, %v2761
        %v2763 = vrot.slane %v535, 2
        %v2764 = vsel %vm2755, %v2761, %v2763
        %v2765 = vrot.slane %v536, 2
        %v2766 = vsel %vm2755, %v2763, %v2765
        %v2767 = vrot.slane %v537, 2
        %v2768 = vsel %vm2755, %v2765, %v2767
        %v2769 = vrot.slane %v538, 2
        %v2770 = vsel %vm2755, %v2767, %v2769
        %v2771 = vrot.slane %v539, 2
        %v2772 = vsel %vm2755, %v2769, %v2771
        %v2773 = vrot.slane %v540, 2
        %v2774 = vsel %vm2755, %v2771, %v2773
        %v2775 = vrot.slane %v541, 2
        %v2776 = vsel %vm2755, %v2773, %v2775
        %v2777 = vrot.slane %v542, 2
        %v2778 = vsel %vm2755, %v2775, %v2777
        %v2779 = vrot.slane %v543, 2
        %v2780 = vsel %vm2755, %v2777, %v2779
        %v2781 = vrot.slane %v544, 2
        %v2782 = vsel %vm2755, %v2779, %v2781
        %v2791 = vunpack.c.l.b16 %v2747
        %v2792 = vunpack.c.h.b16 %v2747
        %v2793 = vunpack.c.l.b16 %v2748
        %v2794 = vunpack.c.h.b16 %v2748
        %v2795 = vunpack.c.l.b16 %v2749
        %v2796 = vunpack.c.h.b16 %v2749
        %v2797 = vunpack.c.l.b16 %v2750
        %v2798 = vunpack.c.h.b16 %v2750
        %v2799 = vunpack.c.l.b16 %v2751
        %v2800 = vunpack.c.h.b16 %v2751
        %v2801 = vunpack.c.l.b16 %v2752
        %v2802 = vunpack.c.h.b16 %v2752
        %v2803 = vunpack.c.l.b16 %v2753
        %v2804 = vunpack.c.h.b16 %v2753
        %v2805 = vunpack.c.l.b16 %v2754
        %v2806 = vunpack.c.h.b16 %v2754
        %v2807 = vpack.c.b16 %v2795, %v2791
        %v2808 = vpack.c.b16 %v2796, %v2792
        %v2809 = vpack.c.b16 %v2797, %v2793
        %v2810 = vpack.c.b16 %v2798, %v2794
        %v2811 = vpack.c.b16 %v2803, %v2799
        %v2812 = vpack.c.b16 %v2804, %v2800
        %v2813 = vpack.c.b16 %v2805, %v2801
        %v2814 = vpack.c.b16 %v2806, %v2802
        %v2820 = vsel %vm710, %v2758, 0
        %v2823 = vsel %vm710, %v2760, 0
        %v2826 = vsel %vm710, %v2762, 0
        %v2829 = vsel %vm710, %v2764, 0
        %v2832 = vsel %vm710, %v2766, 0
        %v2835 = vsel %vm710, %v2768, 0
        %v2838 = vsel %vm710, %v2770, 0
        %v2841 = vsel %vm710, %v2772, 0
        %v2844 = vsel %vm710, %v2774, 0
        %v2847 = vsel %vm710, %v2776, 0
        %v2850 = vsel %vm710, %v2778, 0
        %v2853 = vsel %vm710, %v2780, 0
        %v2856 = vsel %vm710, %v2782, 0
        %v2859 = vsel %vm710, %v2781, 0
        %v2862 = vsel %vm753, %v2811, 0
        %v2865 = vsel %vm753, %v2812, 0
        %v2868 = vsel %vm753, %v2813, 0
        %v2871 = vsel %vm753, %v2814, 0
        %2873 = vmatprep.subr.bf16.mxu0 %v2808
        %2874 = vmatpush1.bf16.msra.mxu0 %v2807
        %2875 = vmatprep.subr.bf16.mxu0 %v2865
        %2876 = vmatpush1.bf16.msra.mxu0 %v2862
        %2877 = vmatprep.subr.bf16.mxu0 0
        %2878 = vmatpush1.bf16.msra.mxu0 0
        %2879 = vmatprep.subr.bf16.mxu0 0
        %2880 = vmatpush1.bf16.msra.mxu0 0
        %2881 = vmatprep.subr.bf16.mxu0 0
        %2882 = vmatpush1.bf16.msra.mxu0 0
        %2883 = vmatprep.subr.bf16.mxu0 0
        %2884 = vmatpush1.bf16.msra.mxu0 0
        %2885 = vmatprep.subr.bf16.mxu0 0
        %2886 = vmatpush1.bf16.msra.mxu0 0
        %2887 = vmatprep.subr.bf16.mxu0 0
        %2888 = vmatpush1.bf16.msra.mxu0 0
        %2889 = vmatprep.subr.bf16.mxu0 0
        %2890 = vmatpush1.bf16.msra.mxu0 0
        %2891 = vmatprep.subr.bf16.mxu0 0
        %2892 = vmatpush1.bf16.msra.mxu0 0
        %2893 = vmatprep.subr.bf16.mxu0 0
        %2894 = vmatpush1.bf16.msra.mxu0 0
        %2895 = vmatprep.subr.bf16.mxu0 0
        %2896 = vmatpush1.bf16.msra.mxu0 0
        %2897 = vmatprep.subr.bf16.mxu0 0
        %2898 = vmatpush1.bf16.msra.mxu0 0
        %2899 = vmatprep.subr.bf16.mxu0 0
        %2900 = vmatpush1.bf16.msra.mxu0 0
        %2901 = vmatprep.subr.bf16.mxu0 0
        %2902 = vmatpush1.bf16.msra.mxu0 0
        %2903 = vmatprep.subr.bf16.mxu0 0
        %2904 = vmatpush1.bf16.msra.mxu0 0
        %2905 = vmatprep.mubr.bf16.mxu0 0
        %2906 = vmatmul.mubr.bf16.gmra.mrb[0].mxu0 %v2820
        %v2907 = vpop.f32.mrb[0].mxu0
        %v2908 = vadd.f32 0.0, %v2907
        %v2909 = vpop.f32.mrb[0].mxu0
        %v2910 = vadd.f32 0.0, %v2909
        %v2911 = vpop.f32.mrb[0].mxu0
        %v2912 = vadd.f32 0.0, %v2911
        %v2913 = vpop.f32.mrb[0].mxu0
        %v2914 = vadd.f32 0.0, %v2913
        %2915 = vmatprep.mubr.bf16.mxu0 0
        %2916 = vmatmul.mubr.bf16.gmra.mrb[0].mxu0 %v2823
        %v2917 = vpop.f32.mrb[0].mxu0
        %v2918 = vadd.f32 0.0, %v2917
        %v2919 = vpop.f32.mrb[0].mxu0
        %v2920 = vadd.f32 0.0, %v2919
        %v2921 = vpop.f32.mrb[0].mxu0
        %v2922 = vadd.f32 0.0, %v2921
        %v2923 = vpop.f32.mrb[0].mxu0
        %v2924 = vadd.f32 0.0, %v2923
        %2925 = vmatprep.mubr.bf16.mxu0 0
        %2926 = vmatmul.mubr.bf16.gmra.mrb[0].mxu0 %v2826
        %v2927 = vpop.f32.mrb[0].mxu0
        %v2928 = vadd.f32 0.0, %v2927
        %v2929 = vpop.f32.mrb[0].mxu0
        %v2930 = vadd.f32 0.0, %v2929
        %v2931 = vpop.f32.mrb[0].mxu0
        %v2932 = vadd.f32 0.0, %v2931
        %v2933 = vpop.f32.mrb[0].mxu0
        %v2934 = vadd.f32 0.0, %v2933
        %2935 = vmatprep.mubr.bf16.mxu0 0
        %2936 = vmatmul.mubr.bf16.gmra.mrb[0].mxu0 %v2829
        %v2937 = vpop.f32.mrb[0].mxu0
        %v2938 = vadd.f32 0.0, %v2937
        %v2939 = vpop.f32.mrb[0].mxu0
        %v2940 = vadd.f32 0.0, %v2939
        %v2941 = vpop.f32.mrb[0].mxu0
        %v2942 = vadd.f32 0.0, %v2941
        %v2943 = vpop.f32.mrb[0].mxu0
        %v2944 = vadd.f32 0.0, %v2943
        %2945 = vmatprep.mubr.bf16.mxu0 0
        %2946 = vmatmul.mubr.bf16.gmra.mrb[0].mxu0 %v2832
        %v2947 = vpop.f32.mrb[0].mxu0
        %v2948 = vadd.f32 0.0, %v2947
        %v2949 = vpop.f32.mrb[0].mxu0
        %v2950 = vadd.f32 0.0, %v2949
        %v2951 = vpop.f32.mrb[0].mxu0
        %v2952 = vadd.f32 0.0, %v2951
        %v2953 = vpop.f32.mrb[0].mxu0
        %v2954 = vadd.f32 0.0, %v2953
        %2955 = vmatprep.mubr.bf16.mxu0 0
        %2956 = vmatmul.mubr.bf16.gmra.mrb[0].mxu0 %v2835
        %v2957 = vpop.f32.mrb[0].mxu0
        %v2958 = vadd.f32 0.0, %v2957
        %v2959 = vpop.f32.mrb[0].mxu0
        %v2960 = vadd.f32 0.0, %v2959
        %v2961 = vpop.f32.mrb[0].mxu0
        %v2962 = vadd.f32 0.0, %v2961
        %v2963 = vpop.f32.mrb[0].mxu0
        %v2964 = vadd.f32 0.0, %v2963
        %2965 = vmatprep.mubr.bf16.mxu0 0
        %2966 = vmatmul.mubr.bf16.gmra.mrb[0].mxu0 %v2838
        %v2967 = vpop.f32.mrb[0].mxu0
        %v2968 = vadd.f32 0.0, %v2967
        %v2969 = vpop.f32.mrb[0].mxu0
        %v2970 = vadd.f32 0.0, %v2969
        %v2971 = vpop.f32.mrb[0].mxu0
        %v2972 = vadd.f32 0.0, %v2971
        %v2973 = vpop.f32.mrb[0].mxu0
        %v2974 = vadd.f32 0.0, %v2973
        %2975 = vmatprep.mubr.bf16.mxu0 0
        %2976 = vmatmul.mubr.bf16.gmra.mrb[0].mxu0 %v2841
        %v2977 = vpop.f32.mrb[0].mxu0
        %v2978 = vadd.f32 0.0, %v2977
        %v2979 = vpop.f32.mrb[0].mxu0
        %v2980 = vadd.f32 0.0, %v2979
        %v2981 = vpop.f32.mrb[0].mxu0
        %v2982 = vadd.f32 0.0, %v2981
        %v2983 = vpop.f32.mrb[0].mxu0
        %v2984 = vadd.f32 0.0, %v2983
        %2985 = vmatprep.mubr.bf16.mxu0 0
        %2986 = vmatmul.mubr.bf16.gmra.mrb[0].mxu0 %v2844
        %v2987 = vpop.f32.mrb[0].mxu0
        %v2988 = vadd.f32 0.0, %v2987
        %v2989 = vpop.f32.mrb[0].mxu0
        %v2990 = vadd.f32 0.0, %v2989
        %v2991 = vpop.f32.mrb[0].mxu0
        %v2992 = vadd.f32 0.0, %v2991
        %v2993 = vpop.f32.mrb[0].mxu0
        %v2994 = vadd.f32 0.0, %v2993
        %2995 = vmatprep.mubr.bf16.mxu0 0
        %2996 = vmatmul.mubr.bf16.gmra.mrb[0].mxu0 %v2847
        %v2997 = vpop.f32.mrb[0].mxu0
        %v2998 = vadd.f32 0.0, %v2997
        %v2999 = vpop.f32.mrb[0].mxu0
        %v3000 = vadd.f32 0.0, %v2999
        %v3001 = vpop.f32.mrb[0].mxu0
        %v3002 = vadd.f32 0.0, %v3001
        %v3003 = vpop.f32.mrb[0].mxu0
        %v3004 = vadd.f32 0.0, %v3003
        %3005 = vmatprep.mubr.bf16.mxu0 0
        %3006 = vmatmul.mubr.bf16.gmra.mrb[0].mxu0 %v2850
        %v3007 = vpop.f32.mrb[0].mxu0
        %v3008 = vadd.f32 0.0, %v3007
        %v3009 = vpop.f32.mrb[0].mxu0
        %v3010 = vadd.f32 0.0, %v3009
        %v3011 = vpop.f32.mrb[0].mxu0
        %v3012 = vadd.f32 0.0, %v3011
        %v3013 = vpop.f32.mrb[0].mxu0
        %v3014 = vadd.f32 0.0, %v3013
        %3015 = vmatprep.mubr.bf16.mxu0 0
        %3016 = vmatmul.mubr.bf16.gmra.mrb[0].mxu0 %v2853
        %v3017 = vpop.f32.mrb[0].mxu0
        %v3018 = vadd.f32 0.0, %v3017
        %v3019 = vpop.f32.mrb[0].mxu0
        %v3020 = vadd.f32 0.0, %v3019
        %v3021 = vpop.f32.mrb[0].mxu0
        %v3022 = vadd.f32 0.0, %v3021
        %v3023 = vpop.f32.mrb[0].mxu0
        %v3024 = vadd.f32 0.0, %v3023
        %3025 = vmatprep.mubr.bf16.mxu0 0
        %3026 = vmatmul.mubr.bf16.gmra.mrb[0].mxu0 %v2856
        %v3027 = vpop.f32.mrb[0].mxu0
        %v3028 = vadd.f32 0.0, %v3027
        %v3029 = vpop.f32.mrb[0].mxu0
        %v3030 = vadd.f32 0.0, %v3029
        %v3031 = vpop.f32.mrb[0].mxu0
        %v3032 = vadd.f32 0.0, %v3031
        %v3033 = vpop.f32.mrb[0].mxu0
        %v3034 = vadd.f32 0.0, %v3033
        %3035 = vmatprep.mubr.bf16.mxu0 0
        %3036 = vmatmul.mubr.bf16.gmra.mrb[0].mxu0 %v2859
        %v3037 = vpop.f32.mrb[0].mxu0
        %v3038 = vadd.f32 0.0, %v3037
        %v3039 = vpop.f32.mrb[0].mxu0
        %v3040 = vadd.f32 0.0, %v3039
        %v3041 = vpop.f32.mrb[0].mxu0
        %v3042 = vadd.f32 0.0, %v3041
        %v3043 = vpop.f32.mrb[0].mxu0
        %v3044 = vadd.f32 0.0, %v3043
        %3045 = vdwg.mxu0
        %3046 = vmatprep.subr.bf16.mxu0 %v2810
        %3047 = vmatpush1.bf16.msra.mxu0 %v2809
        %3048 = vmatprep.subr.bf16.mxu0 %v2871
        %3049 = vmatpush1.bf16.msra.mxu0 %v2868
        %3050 = vmatprep.subr.bf16.mxu0 0
        %3051 = vmatpush1.bf16.msra.mxu0 0
        %3052 = vmatprep.subr.bf16.mxu0 0
        %3053 = vmatpush1.bf16.msra.mxu0 0
        %3054 = vmatprep.subr.bf16.mxu0 0
        %3055 = vmatpush1.bf16.msra.mxu0 0
        %3056 = vmatprep.subr.bf16.mxu0 0
        %3057 = vmatpush1.bf16.msra.mxu0 0
        %3058 = vmatprep.subr.bf16.mxu0 0
        %3059 = vmatpush1.bf16.msra.mxu0 0
        %3060 = vmatprep.subr.bf16.mxu0 0
        %3061 = vmatpush1.bf16.msra.mxu0 0
        %3062 = vmatprep.subr.bf16.mxu0 0
        %3063 = vmatpush1.bf16.msra.mxu0 0
        %3064 = vmatprep.subr.bf16.mxu0 0
        %3065 = vmatpush1.bf16.msra.mxu0 0
        %3066 = vmatprep.subr.bf16.mxu0 0
        %3067 = vmatpush1.bf16.msra.mxu0 0
        %3068 = vmatprep.subr.bf16.mxu0 0
        %3069 = vmatpush1.bf16.msra.mxu0 0
        %3070 = vmatprep.subr.bf16.mxu0 0
        %3071 = vmatpush1.bf16.msra.mxu0 0
        %3072 = vmatprep.subr.bf16.mxu0 0
        %3073 = vmatpush1.bf16.msra.mxu0 0
        %3074 = vmatprep.subr.bf16.mxu0 0
        %3075 = vmatpush1.bf16.msra.mxu0 0
        %3076 = vmatprep.subr.bf16.mxu0 0
        %3077 = vmatpush1.bf16.msra.mxu0 0
        %3078 = vmatprep.mubr.bf16.mxu0 0
        %3079 = vmatmul.mubr.bf16.gmra.mrb[0].mxu0 %v2820
        %v3080 = vpop.f32.mrb[0].mxu0
        %v3081 = vadd.f32 0.0, %v3080
        %v3082 = vpop.f32.mrb[0].mxu0
        %v3083 = vadd.f32 0.0, %v3082
        %v3084 = vpop.f32.mrb[0].mxu0
        %v3085 = vadd.f32 0.0, %v3084
        %v3086 = vpop.f32.mrb[0].mxu0
        %v3087 = vadd.f32 0.0, %v3086
        %3088 = vmatprep.mubr.bf16.mxu0 0
        %3089 = vmatmul.mubr.bf16.gmra.mrb[0].mxu0 %v2823
        %v3090 = vpop.f32.mrb[0].mxu0
        %v3091 = vadd.f32 0.0, %v3090
        %v3092 = vpop.f32.mrb[0].mxu0
        %v3093 = vadd.f32 0.0, %v3092
        %v3094 = vpop.f32.mrb[0].mxu0
        %v3095 = vadd.f32 0.0, %v3094
        %v3096 = vpop.f32.mrb[0].mxu0
        %v3097 = vadd.f32 0.0, %v3096
        %3098 = vmatprep.mubr.bf16.mxu0 0
        %3099 = vmatmul.mubr.bf16.gmra.mrb[0].mxu0 %v2826
        %v3100 = vpop.f32.mrb[0].mxu0
        %v3101 = vadd.f32 0.0, %v3100
        %v3102 = vpop.f32.mrb[0].mxu0
        %v3103 = vadd.f32 0.0, %v3102
        %v3104 = vpop.f32.mrb[0].mxu0
        %v3105 = vadd.f32 0.0, %v3104
        %v3106 = vpop.f32.mrb[0].mxu0
        %v3107 = vadd.f32 0.0, %v3106
        %3108 = vmatprep.mubr.bf16.mxu0 0
        %3109 = vmatmul.mubr.bf16.gmra.mrb[0].mxu0 %v2829
        %v3110 = vpop.f32.mrb[0].mxu0
        %v3111 = vadd.f32 0.0, %v3110
        %v3112 = vpop.f32.mrb[0].mxu0
        %v3113 = vadd.f32 0.0, %v3112
        %v3114 = vpop.f32.mrb[0].mxu0
        %v3115 = vadd.f32 0.0, %v3114
        %v3116 = vpop.f32.mrb[0].mxu0
        %v3117 = vadd.f32 0.0, %v3116
        %3118 = vmatprep.mubr.bf16.mxu0 0
        %3119 = vmatmul.mubr.bf16.gmra.mrb[0].mxu0 %v2832
        %v3120 = vpop.f32.mrb[0].mxu0
        %v3121 = vadd.f32 0.0, %v3120
        %v3122 = vpop.f32.mrb[0].mxu0
        %v3123 = vadd.f32 0.0, %v3122
        %v3124 = vpop.f32.mrb[0].mxu0
        %v3125 = vadd.f32 0.0, %v3124
        %v3126 = vpop.f32.mrb[0].mxu0
        %v3127 = vadd.f32 0.0, %v3126
        %3128 = vmatprep.mubr.bf16.mxu0 0
        %3129 = vmatmul.mubr.bf16.gmra.mrb[0].mxu0 %v2835
        %v3130 = vpop.f32.mrb[0].mxu0
        %v3131 = vadd.f32 0.0, %v3130
        %v3132 = vpop.f32.mrb[0].mxu0
        %v3133 = vadd.f32 0.0, %v3132
        %v3134 = vpop.f32.mrb[0].mxu0
        %v3135 = vadd.f32 0.0, %v3134
        %v3136 = vpop.f32.mrb[0].mxu0
        %v3137 = vadd.f32 0.0, %v3136
        %3138 = vmatprep.mubr.bf16.mxu0 0
        %3139 = vmatmul.mubr.bf16.gmra.mrb[0].mxu0 %v2838
        %v3140 = vpop.f32.mrb[0].mxu0
        %v3141 = vadd.f32 0.0, %v3140
        %v3142 = vpop.f32.mrb[0].mxu0
        %v3143 = vadd.f32 0.0, %v3142
        %v3144 = vpop.f32.mrb[0].mxu0
        %v3145 = vadd.f32 0.0, %v3144
        %v3146 = vpop.f32.mrb[0].mxu0
        %v3147 = vadd.f32 0.0, %v3146
        %3148 = vmatprep.mubr.bf16.mxu0 0
        %3149 = vmatmul.mubr.bf16.gmra.mrb[0].mxu0 %v2841
        %v3150 = vpop.f32.mrb[0].mxu0
        %v3151 = vadd.f32 0.0, %v3150
        %v3152 = vpop.f32.mrb[0].mxu0
        %v3153 = vadd.f32 0.0, %v3152
        %v3154 = vpop.f32.mrb[0].mxu0
        %v3155 = vadd.f32 0.0, %v3154
        %v3156 = vpop.f32.mrb[0].mxu0
        %v3157 = vadd.f32 0.0, %v3156
        %3158 = vmatprep.mubr.bf16.mxu0 0
        %3159 = vmatmul.mubr.bf16.gmra.mrb[0].mxu0 %v2844
        %v3160 = vpop.f32.mrb[0].mxu0
        %v3161 = vadd.f32 0.0, %v3160
        %v3162 = vpop.f32.mrb[0].mxu0
        %v3163 = vadd.f32 0.0, %v3162
        %v3164 = vpop.f32.mrb[0].mxu0
        %v3165 = vadd.f32 0.0, %v3164
        %v3166 = vpop.f32.mrb[0].mxu0
        %v3167 = vadd.f32 0.0, %v3166
        %3168 = vmatprep.mubr.bf16.mxu0 0
        %3169 = vmatmul.mubr.bf16.gmra.mrb[0].mxu0 %v2847
        %v3170 = vpop.f32.mrb[0].mxu0
        %v3171 = vadd.f32 0.0, %v3170
        %v3172 = vpop.f32.mrb[0].mxu0
        %v3173 = vadd.f32 0.0, %v3172
        %v3174 = vpop.f32.mrb[0].mxu0
        %v3175 = vadd.f32 0.0, %v3174
        %v3176 = vpop.f32.mrb[0].mxu0
        %v3177 = vadd.f32 0.0, %v3176
        %3178 = vmatprep.mubr.bf16.mxu0 0
        %3179 = vmatmul.mubr.bf16.gmra.mrb[0].mxu0 %v2850
        %v3180 = vpop.f32.mrb[0].mxu0
        %v3181 = vadd.f32 0.0, %v3180
        %v3182 = vpop.f32.mrb[0].mxu0
        %v3183 = vadd.f32 0.0, %v3182
        %v3184 = vpop.f32.mrb[0].mxu0
        %v3185 = vadd.f32 0.0, %v3184
        %v3186 = vpop.f32.mrb[0].mxu0
        %v3187 = vadd.f32 0.0, %v3186
        %3188 = vmatprep.mubr.bf16.mxu0 0
        %3189 = vmatmul.mubr.bf16.gmra.mrb[0].mxu0 %v2853
        %v3190 = vpop.f32.mrb[0].mxu0
        %v3191 = vadd.f32 0.0, %v3190
        %v3192 = vpop.f32.mrb[0].mxu0
        %v3193 = vadd.f32 0.0, %v3192
        %v3194 = vpop.f32.mrb[0].mxu0
        %v3195 = vadd.f32 0.0, %v3194
        %v3196 = vpop.f32.mrb[0].mxu0
        %v3197 = vadd.f32 0.0, %v3196
        %3198 = vmatprep.mubr.bf16.mxu0 0
        %3199 = vmatmul.mubr.bf16.gmra.mrb[0].mxu0 %v2856
        %v3200 = vpop.f32.mrb[0].mxu0
        %v3201 = vadd.f32 0.0, %v3200
        %v3202 = vpop.f32.mrb[0].mxu0
        %v3203 = vadd.f32 0.0, %v3202
        %v3204 = vpop.f32.mrb[0].mxu0
        %v3205 = vadd.f32 0.0, %v3204
        %v3206 = vpop.f32.mrb[0].mxu0
        %v3207 = vadd.f32 0.0, %v3206
        %3208 = vmatprep.mubr.bf16.mxu0 0
        %3209 = vmatmul.mubr.bf16.gmra.mrb[0].mxu0 %v2859
        %v3210 = vpop.f32.mrb[0].mxu0
        %v3211 = vadd.f32 0.0, %v3210
        %v3212 = vpop.f32.mrb[0].mxu0
        %v3213 = vadd.f32 0.0, %v3212
        %v3214 = vpop.f32.mrb[0].mxu0
        %v3215 = vadd.f32 0.0, %v3214
        %v3216 = vpop.f32.mrb[0].mxu0
        %v3217 = vadd.f32 0.0, %v3216
        %3218 = vdwg.mxu0
        %v3219 = vadd.f32 %v2634, %v2908
        %v3220 = vadd.f32 %v2635, %v2910
        %v3221 = vadd.f32 %v2636, %v3081
        %v3222 = vadd.f32 %v2637, %v3083
        %v3223 = vadd.f32 %v2638, %v2912
        %v3224 = vadd.f32 %v2639, %v2914
        %v3225 = vadd.f32 %v2640, %v3085
        %v3226 = vadd.f32 %v2641, %v3087
        %v3227 = vadd.f32 %v2642, %v2918
        %v3228 = vadd.f32 %v2643, %v2920
        %v3229 = vadd.f32 %v2644, %v3091
        %v3230 = vadd.f32 %v2645, %v3093
        %v3231 = vadd.f32 %v2646, %v2922
        %v3232 = vadd.f32 %v2647, %v2924
        %v3233 = vadd.f32 %v2648, %v3095
        %v3234 = vadd.f32 %v2649, %v3097
        %v3235 = vadd.f32 %v2650, %v2928
        %v3236 = vadd.f32 %v2651, %v2930
        %v3237 = vadd.f32 %v2652, %v3101
        %v3238 = vadd.f32 %v2653, %v3103
        %v3239 = vadd.f32 %v2654, %v2932
        %v3240 = vadd.f32 %v2655, %v2934
        %v3241 = vadd.f32 %v2656, %v3105
        %v3242 = vadd.f32 %v2657, %v3107
        %v3243 = vadd.f32 %v2658, %v2938
        %v3244 = vadd.f32 %v2659, %v2940
        %v3245 = vadd.f32 %v2660, %v3111
        %v3246 = vadd.f32 %v2661, %v3113
        %v3247 = vadd.f32 %v2662, %v2942
        %v3248 = vadd.f32 %v2663, %v2944
        %v3249 = vadd.f32 %v2664, %v3115
        %v3250 = vadd.f32 %v2665, %v3117
        %v3251 = vadd.f32 %v2666, %v2948
        %v3252 = vadd.f32 %v2667, %v2950
        %v3253 = vadd.f32 %v2668, %v3121
        %v3254 = vadd.f32 %v2669, %v3123
        %v3255 = vadd.f32 %v2670, %v2952
        %v3256 = vadd.f32 %v2671, %v2954
        %v3257 = vadd.f32 %v2672, %v3125
        %v3258 = vadd.f32 %v2673, %v3127
        %v3259 = vadd.f32 %v2674, %v2958
        %v3260 = vadd.f32 %v2675, %v2960
        %v3261 = vadd.f32 %v2676, %v3131
        %v3262 = vadd.f32 %v2677, %v3133
        %v3263 = vadd.f32 %v2678, %v2962
        %v3264 = vadd.f32 %v2679, %v2964
        %v3265 = vadd.f32 %v2680, %v3135
        %v3266 = vadd.f32 %v2681, %v3137
        %v3267 = vadd.f32 %v2682, %v2968
        %v3268 = vadd.f32 %v2683, %v2970
        %v3269 = vadd.f32 %v2684, %v3141
        %v3270 = vadd.f32 %v2685, %v3143
        %v3271 = vadd.f32 %v2686, %v2972
        %v3272 = vadd.f32 %v2687, %v2974
        %v3273 = vadd.f32 %v2688, %v3145
        %v3274 = vadd.f32 %v2689, %v3147
        %v3275 = vadd.f32 %v2690, %v2978
        %v3276 = vadd.f32 %v2691, %v2980
        %v3277 = vadd.f32 %v2692, %v3151
        %v3278 = vadd.f32 %v2693, %v3153
        %v3279 = vadd.f32 %v2694, %v2982
        %v3280 = vadd.f32 %v2695, %v2984
        %v3281 = vadd.f32 %v2696, %v3155
        %v3282 = vadd.f32 %v2697, %v3157
        %v3283 = vadd.f32 %v2698, %v2988
        %v3284 = vadd.f32 %v2699, %v2990
        %v3285 = vadd.f32 %v2700, %v3161
        %v3286 = vadd.f32 %v2701, %v3163
        %v3287 = vadd.f32 %v2702, %v2992
        %v3288 = vadd.f32 %v2703, %v2994
        %v3289 = vadd.f32 %v2704, %v3165
        %v3290 = vadd.f32 %v2705, %v3167
        %v3291 = vadd.f32 %v2706, %v2998
        %v3292 = vadd.f32 %v2707, %v3000
        %v3293 = vadd.f32 %v2708, %v3171
        %v3294 = vadd.f32 %v2709, %v3173
        %v3295 = vadd.f32 %v2710, %v3002
        %v3296 = vadd.f32 %v2711, %v3004
        %v3297 = vadd.f32 %v2712, %v3175
        %v3298 = vadd.f32 %v2713, %v3177
        %v3299 = vadd.f32 %v2714, %v3008
        %v3300 = vadd.f32 %v2715, %v3010
        %v3301 = vadd.f32 %v2716, %v3181
        %v3302 = vadd.f32 %v2717, %v3183
        %v3303 = vadd.f32 %v2718, %v3012
        %v3304 = vadd.f32 %v2719, %v3014
        %v3305 = vadd.f32 %v2720, %v3185
        %v3306 = vadd.f32 %v2721, %v3187
        %v3307 = vadd.f32 %v2722, %v3018
        %v3308 = vadd.f32 %v2723, %v3020
        %v3309 = vadd.f32 %v2724, %v3191
        %v3310 = vadd.f32 %v2725, %v3193
        %v3311 = vadd.f32 %v2726, %v3022
        %v3312 = vadd.f32 %v2727, %v3024
        %v3313 = vadd.f32 %v2728, %v3195
        %v3314 = vadd.f32 %v2729, %v3197
        %v3315 = vadd.f32 %v2730, %v3028
        %v3316 = vadd.f32 %v2731, %v3030
        %v3317 = vadd.f32 %v2732, %v3201
        %v3318 = vadd.f32 %v2733, %v3203
        %v3319 = vadd.f32 %v2734, %v3032
        %v3320 = vadd.f32 %v2735, %v3034
        %v3321 = vadd.f32 %v2736, %v3205
        %v3322 = vadd.f32 %v2737, %v3207
        %v3323 = vadd.f32 %v2738, %v3038
        %v3324 = vadd.f32 %v2739, %v3040
        %v3325 = vadd.f32 %v2740, %v3211
        %v3326 = vadd.f32 %v2741, %v3213
        %v3327 = vadd.f32 %v2742, %v3042
        %v3328 = vadd.f32 %v2743, %v3044
        %v3329 = vadd.f32 %v2744, %v3215
        %v3330 = vadd.f32 %v2745, %v3217
        %v3331 = vld [vmem:[#allocation7] sm:$0xf]
        %v3333 = vlaneseq
        %v3334 = vshrl.u32 %v3333, 7
        %v3335 = vsub.s32 0, %v3334
        %v3336 = vrot.slane %v3331, %v3335
        %v3337 = vlaneseq
        %v3338 = vshrl.u32 %v3337, 7
        %v3339 = vsub.s32 1, %v3338
        %v3340 = vrot.slane %v3331, %v3339
        %v3341 = vlaneseq
        %v3342 = vshrl.u32 %v3341, 7
        %v3343 = vsub.s32 2, %v3342
        %v3344 = vrot.slane %v3331, %v3343
        %v3345 = vlaneseq
        %v3346 = vshrl.u32 %v3345, 7
        %v3347 = vsub.s32 3, %v3346
        %v3348 = vrot.slane %v3331, %v3347
        %v3353 = vadd.f32 %v3219, %v3336
        %v3354 = vadd.f32 %v3220, %v3340
        %v3355 = vadd.f32 %v3221, %v3344
        %v3356 = vadd.f32 %v3222, %v3348
        %v3357 = vadd.f32 %v3223, %v3336
        %v3358 = vadd.f32 %v3224, %v3340
        %v3359 = vadd.f32 %v3225, %v3344
        %v3360 = vadd.f32 %v3226, %v3348
        %v3361 = vadd.f32 %v3227, %v3336
        %v3362 = vadd.f32 %v3228, %v3340
        %v3363 = vadd.f32 %v3229, %v3344
        %v3364 = vadd.f32 %v3230, %v3348
        %v3365 = vadd.f32 %v3231, %v3336
        %v3366 = vadd.f32 %v3232, %v3340
        %v3367 = vadd.f32 %v3233, %v3344
        %v3368 = vadd.f32 %v3234, %v3348
        %v3369 = vadd.f32 %v3235, %v3336
        %v3370 = vadd.f32 %v3236, %v3340
        %v3371 = vadd.f32 %v3237, %v3344
        %v3372 = vadd.f32 %v3238, %v3348
        %v3373 = vadd.f32 %v3239, %v3336
        %v3374 = vadd.f32 %v3240, %v3340
        %v3375 = vadd.f32 %v3241, %v3344
        %v3376 = vadd.f32 %v3242, %v3348
        %v3377 = vadd.f32 %v3243, %v3336
        %v3378 = vadd.f32 %v3244, %v3340
        %v3379 = vadd.f32 %v3245, %v3344
        %v3380 = vadd.f32 %v3246, %v3348
        %v3381 = vadd.f32 %v3247, %v3336
        %v3382 = vadd.f32 %v3248, %v3340
        %v3383 = vadd.f32 %v3249, %v3344
        %v3384 = vadd.f32 %v3250, %v3348
        %v3385 = vadd.f32 %v3251, %v3336
        %v3386 = vadd.f32 %v3252, %v3340
        %v3387 = vadd.f32 %v3253, %v3344
        %v3388 = vadd.f32 %v3254, %v3348
        %v3389 = vadd.f32 %v3255, %v3336
        %v3390 = vadd.f32 %v3256, %v3340
        %v3391 = vadd.f32 %v3257, %v3344
        %v3392 = vadd.f32 %v3258, %v3348
        %v3393 = vadd.f32 %v3259, %v3336
        %v3394 = vadd.f32 %v3260, %v3340
        %v3395 = vadd.f32 %v3261, %v3344
        %v3396 = vadd.f32 %v3262, %v3348
        %v3397 = vadd.f32 %v3263, %v3336
        %v3398 = vadd.f32 %v3264, %v3340
        %v3399 = vadd.f32 %v3265, %v3344
        %v3400 = vadd.f32 %v3266, %v3348
        %v3401 = vadd.f32 %v3267, %v3336
        %v3402 = vadd.f32 %v3268, %v3340
        %v3403 = vadd.f32 %v3269, %v3344
        %v3404 = vadd.f32 %v3270, %v3348
        %v3405 = vadd.f32 %v3271, %v3336
        %v3406 = vadd.f32 %v3272, %v3340
        %v3407 = vadd.f32 %v3273, %v3344
        %v3408 = vadd.f32 %v3274, %v3348
        %v3409 = vadd.f32 %v3275, %v3336
        %v3410 = vadd.f32 %v3276, %v3340
        %v3411 = vadd.f32 %v3277, %v3344
        %v3412 = vadd.f32 %v3278, %v3348
        %v3413 = vadd.f32 %v3279, %v3336
        %v3414 = vadd.f32 %v3280, %v3340
        %v3415 = vadd.f32 %v3281, %v3344
        %v3416 = vadd.f32 %v3282, %v3348
        %v3417 = vadd.f32 %v3283, %v3336
        %v3418 = vadd.f32 %v3284, %v3340
        %v3419 = vadd.f32 %v3285, %v3344
        %v3420 = vadd.f32 %v3286, %v3348
        %v3421 = vadd.f32 %v3287, %v3336
        %v3422 = vadd.f32 %v3288, %v3340
        %v3423 = vadd.f32 %v3289, %v3344
        %v3424 = vadd.f32 %v3290, %v3348
        %v3425 = vadd.f32 %v3291, %v3336
        %v3426 = vadd.f32 %v3292, %v3340
        %v3427 = vadd.f32 %v3293, %v3344
        %v3428 = vadd.f32 %v3294, %v3348
        %v3429 = vadd.f32 %v3295, %v3336
        %v3430 = vadd.f32 %v3296, %v3340
        %v3431 = vadd.f32 %v3297, %v3344
        %v3432 = vadd.f32 %v3298, %v3348
        %v3433 = vadd.f32 %v3299, %v3336
        %v3434 = vadd.f32 %v3300, %v3340
        %v3435 = vadd.f32 %v3301, %v3344
        %v3436 = vadd.f32 %v3302, %v3348
        %v3437 = vadd.f32 %v3303, %v3336
        %v3438 = vadd.f32 %v3304, %v3340
        %v3439 = vadd.f32 %v3305, %v3344
        %v3440 = vadd.f32 %v3306, %v3348
        %v3441 = vadd.f32 %v3307, %v3336
        %v3442 = vadd.f32 %v3308, %v3340
        %v3443 = vadd.f32 %v3309, %v3344
        %v3444 = vadd.f32 %v3310, %v3348
        %v3445 = vadd.f32 %v3311, %v3336
        %v3446 = vadd.f32 %v3312, %v3340
        %v3447 = vadd.f32 %v3313, %v3344
        %v3448 = vadd.f32 %v3314, %v3348
        %v3449 = vadd.f32 %v3315, %v3336
        %v3450 = vadd.f32 %v3316, %v3340
        %v3451 = vadd.f32 %v3317, %v3344
        %v3452 = vadd.f32 %v3318, %v3348
        %v3453 = vadd.f32 %v3319, %v3336
        %v3454 = vadd.f32 %v3320, %v3340
        %v3455 = vadd.f32 %v3321, %v3344
        %v3456 = vadd.f32 %v3322, %v3348
        %v3457 = vadd.f32 %v3323, %v3336
        %v3458 = vadd.f32 %v3324, %v3340
        %v3459 = vadd.f32 %v3325, %v3344
        %v3460 = vadd.f32 %v3326, %v3348
        %v3461 = vadd.f32 %v3327, %v3336
        %v3462 = vadd.f32 %v3328, %v3340
        %v3463 = vadd.f32 %v3329, %v3344
        %v3464 = vadd.f32 %v3330, %v3348
        %v3465 = vmax.f32 %v3353, 0.0
        %v3466 = vmax.f32 %v3354, 0.0
        %v3467 = vmax.f32 %v3355, 0.0
        %v3468 = vmax.f32 %v3356, 0.0
        %v3469 = vmax.f32 %v3357, 0.0
        %v3470 = vmax.f32 %v3358, 0.0
        %v3471 = vmax.f32 %v3359, 0.0
        %v3472 = vmax.f32 %v3360, 0.0
        %v3473 = vmax.f32 %v3361, 0.0
        %v3474 = vmax.f32 %v3362, 0.0
        %v3475 = vmax.f32 %v3363, 0.0
        %v3476 = vmax.f32 %v3364, 0.0
        %v3477 = vmax.f32 %v3365, 0.0
        %v3478 = vmax.f32 %v3366, 0.0
        %v3479 = vmax.f32 %v3367, 0.0
        %v3480 = vmax.f32 %v3368, 0.0
        %v3481 = vmax.f32 %v3369, 0.0
        %v3482 = vmax.f32 %v3370, 0.0
        %v3483 = vmax.f32 %v3371, 0.0
        %v3484 = vmax.f32 %v3372, 0.0
        %v3485 = vmax.f32 %v3373, 0.0
        %v3486 = vmax.f32 %v3374, 0.0
        %v3487 = vmax.f32 %v3375, 0.0
        %v3488 = vmax.f32 %v3376, 0.0
        %v3489 = vmax.f32 %v3377, 0.0
        %v3490 = vmax.f32 %v3378, 0.0
        %v3491 = vmax.f32 %v3379, 0.0
        %v3492 = vmax.f32 %v3380, 0.0
        %v3493 = vmax.f32 %v3381, 0.0
        %v3494 = vmax.f32 %v3382, 0.0
        %v3495 = vmax.f32 %v3383, 0.0
        %v3496 = vmax.f32 %v3384, 0.0
        %v3497 = vmax.f32 %v3385, 0.0
        %v3498 = vmax.f32 %v3386, 0.0
        %v3499 = vmax.f32 %v3387, 0.0
        %v3500 = vmax.f32 %v3388, 0.0
        %v3501 = vmax.f32 %v3389, 0.0
        %v3502 = vmax.f32 %v3390, 0.0
        %v3503 = vmax.f32 %v3391, 0.0
        %v3504 = vmax.f32 %v3392, 0.0
        %v3505 = vmax.f32 %v3393, 0.0
        %v3506 = vmax.f32 %v3394, 0.0
        %v3507 = vmax.f32 %v3395, 0.0
        %v3508 = vmax.f32 %v3396, 0.0
        %v3509 = vmax.f32 %v3397, 0.0
        %v3510 = vmax.f32 %v3398, 0.0
        %v3511 = vmax.f32 %v3399, 0.0
        %v3512 = vmax.f32 %v3400, 0.0
        %v3513 = vmax.f32 %v3401, 0.0
        %v3514 = vmax.f32 %v3402, 0.0
        %v3515 = vmax.f32 %v3403, 0.0
        %v3516 = vmax.f32 %v3404, 0.0
        %v3517 = vmax.f32 %v3405, 0.0
        %v3518 = vmax.f32 %v3406, 0.0
        %v3519 = vmax.f32 %v3407, 0.0
        %v3520 = vmax.f32 %v3408, 0.0
        %v3521 = vmax.f32 %v3409, 0.0
        %v3522 = vmax.f32 %v3410, 0.0
        %v3523 = vmax.f32 %v3411, 0.0
        %v3524 = vmax.f32 %v3412, 0.0
        %v3525 = vmax.f32 %v3413, 0.0
        %v3526 = vmax.f32 %v3414, 0.0
        %v3527 = vmax.f32 %v3415, 0.0
        %v3528 = vmax.f32 %v3416, 0.0
        %v3529 = vmax.f32 %v3417, 0.0
        %v3530 = vmax.f32 %v3418, 0.0
        %v3531 = vmax.f32 %v3419, 0.0
        %v3532 = vmax.f32 %v3420, 0.0
        %v3533 = vmax.f32 %v3421, 0.0
        %v3534 = vmax.f32 %v3422, 0.0
        %v3535 = vmax.f32 %v3423, 0.0
        %v3536 = vmax.f32 %v3424, 0.0
        %v3537 = vmax.f32 %v3425, 0.0
        %v3538 = vmax.f32 %v3426, 0.0
        %v3539 = vmax.f32 %v3427, 0.0
        %v3540 = vmax.f32 %v3428, 0.0
        %v3541 = vmax.f32 %v3429, 0.0
        %v3542 = vmax.f32 %v3430, 0.0
        %v3543 = vmax.f32 %v3431, 0.0
        %v3544 = vmax.f32 %v3432, 0.0
        %v3545 = vmax.f32 %v3433, 0.0
        %v3546 = vmax.f32 %v3434, 0.0
        %v3547 = vmax.f32 %v3435, 0.0
        %v3548 = vmax.f32 %v3436, 0.0
        %v3549 = vmax.f32 %v3437, 0.0
        %v3550 = vmax.f32 %v3438, 0.0
        %v3551 = vmax.f32 %v3439, 0.0
        %v3552 = vmax.f32 %v3440, 0.0
        %v3553 = vmax.f32 %v3441, 0.0
        %v3554 = vmax.f32 %v3442, 0.0
        %v3555 = vmax.f32 %v3443, 0.0
        %v3556 = vmax.f32 %v3444, 0.0
        %v3557 = vmax.f32 %v3445, 0.0
        %v3558 = vmax.f32 %v3446, 0.0
        %v3559 = vmax.f32 %v3447, 0.0
        %v3560 = vmax.f32 %v3448, 0.0
        %v3561 = vmax.f32 %v3449, 0.0
        %v3562 = vmax.f32 %v3450, 0.0
        %v3563 = vmax.f32 %v3451, 0.0
        %v3564 = vmax.f32 %v3452, 0.0
        %v3565 = vmax.f32 %v3453, 0.0
        %v3566 = vmax.f32 %v3454, 0.0
        %v3567 = vmax.f32 %v3455, 0.0
        %v3568 = vmax.f32 %v3456, 0.0
        %v3569 = vmax.f32 %v3457, 0.0
        %v3570 = vmax.f32 %v3458, 0.0
        %v3571 = vmax.f32 %v3459, 0.0
        %v3572 = vmax.f32 %v3460, 0.0
        %v3573 = vmax.f32 %v3461, 0.0
        %v3574 = vmax.f32 %v3462, 0.0
        %v3575 = vmax.f32 %v3463, 0.0
        %v3576 = vmax.f32 %v3464, 0.0
        %vm3689 = vcmask 1046528
        %v3690 = vrot.slane %v3465, 1
        %v3691 = vrot.slane %v3469, 1
        %v3692 = vsel %vm3689, %v3690, %v3691
        %v3693 = vrot.slane %v3466, 1
        %v3694 = vrot.slane %v3470, 1
        %v3695 = vsel %vm3689, %v3693, %v3694
        %v3696 = vrot.slane %v3467, 1
        %v3697 = vrot.slane %v3471, 1
        %v3698 = vsel %vm3689, %v3696, %v3697
        %v3699 = vrot.slane %v3468, 1
        %v3700 = vrot.slane %v3472, 1
        %v3701 = vsel %vm3689, %v3699, %v3700
        %v3702 = vrot.slane %v3473, 1
        %v3703 = vsel %vm3689, %v3691, %v3702
        %v3704 = vrot.slane %v3474, 1
        %v3705 = vsel %vm3689, %v3694, %v3704
        %v3706 = vrot.slane %v3475, 1
        %v3707 = vsel %vm3689, %v3697, %v3706
        %v3708 = vrot.slane %v3476, 1
        %v3709 = vsel %vm3689, %v3700, %v3708
        %v3710 = vrot.slane %v3477, 1
        %v3711 = vsel %vm3689, %v3702, %v3710
        %v3712 = vrot.slane %v3478, 1
        %v3713 = vsel %vm3689, %v3704, %v3712
        %v3714 = vrot.slane %v3479, 1
        %v3715 = vsel %vm3689, %v3706, %v3714
        %v3716 = vrot.slane %v3480, 1
        %v3717 = vsel %vm3689, %v3708, %v3716
        %v3718 = vrot.slane %v3481, 1
        %v3719 = vsel %vm3689, %v3710, %v3718
        %v3720 = vrot.slane %v3482, 1
        %v3721 = vsel %vm3689, %v3712, %v3720
        %v3722 = vrot.slane %v3483, 1
        %v3723 = vsel %vm3689, %v3714, %v3722
        %v3724 = vrot.slane %v3484, 1
        %v3725 = vsel %vm3689, %v3716, %v3724
        %v3726 = vrot.slane %v3485, 1
        %v3727 = vsel %vm3689, %v3718, %v3726
        %v3728 = vrot.slane %v3486, 1
        %v3729 = vsel %vm3689, %v3720, %v3728
        %v3730 = vrot.slane %v3487, 1
        %v3731 = vsel %vm3689, %v3722, %v3730
        %v3732 = vrot.slane %v3488, 1
        %v3733 = vsel %vm3689, %v3724, %v3732
        %v3734 = vrot.slane %v3489, 1
        %v3735 = vsel %vm3689, %v3726, %v3734
        %v3736 = vrot.slane %v3490, 1
        %v3737 = vsel %vm3689, %v3728, %v3736
        %v3738 = vrot.slane %v3491, 1
        %v3739 = vsel %vm3689, %v3730, %v3738
        %v3740 = vrot.slane %v3492, 1
        %v3741 = vsel %vm3689, %v3732, %v3740
        %v3742 = vrot.slane %v3493, 1
        %v3743 = vsel %vm3689, %v3734, %v3742
        %v3744 = vrot.slane %v3494, 1
        %v3745 = vsel %vm3689, %v3736, %v3744
        %v3746 = vrot.slane %v3495, 1
        %v3747 = vsel %vm3689, %v3738, %v3746
        %v3748 = vrot.slane %v3496, 1
        %v3749 = vsel %vm3689, %v3740, %v3748
        %v3750 = vrot.slane %v3497, 1
        %v3751 = vsel %vm3689, %v3742, %v3750
        %v3752 = vrot.slane %v3498, 1
        %v3753 = vsel %vm3689, %v3744, %v3752
        %v3754 = vrot.slane %v3499, 1
        %v3755 = vsel %vm3689, %v3746, %v3754
        %v3756 = vrot.slane %v3500, 1
        %v3757 = vsel %vm3689, %v3748, %v3756
        %v3758 = vrot.slane %v3501, 1
        %v3759 = vsel %vm3689, %v3750, %v3758
        %v3760 = vrot.slane %v3502, 1
        %v3761 = vsel %vm3689, %v3752, %v3760
        %v3762 = vrot.slane %v3503, 1
        %v3763 = vsel %vm3689, %v3754, %v3762
        %v3764 = vrot.slane %v3504, 1
        %v3765 = vsel %vm3689, %v3756, %v3764
        %v3766 = vrot.slane %v3505, 1
        %v3767 = vsel %vm3689, %v3758, %v3766
        %v3768 = vrot.slane %v3506, 1
        %v3769 = vsel %vm3689, %v3760, %v3768
        %v3770 = vrot.slane %v3507, 1
        %v3771 = vsel %vm3689, %v3762, %v3770
        %v3772 = vrot.slane %v3508, 1
        %v3773 = vsel %vm3689, %v3764, %v3772
        %v3774 = vrot.slane %v3509, 1
        %v3775 = vsel %vm3689, %v3766, %v3774
        %v3776 = vrot.slane %v3510, 1
        %v3777 = vsel %vm3689, %v3768, %v3776
        %v3778 = vrot.slane %v3511, 1
        %v3779 = vsel %vm3689, %v3770, %v3778
        %v3780 = vrot.slane %v3512, 1
        %v3781 = vsel %vm3689, %v3772, %v3780
        %v3782 = vrot.slane %v3513, 1
        %v3783 = vsel %vm3689, %v3774, %v3782
        %v3784 = vrot.slane %v3514, 1
        %v3785 = vsel %vm3689, %v3776, %v3784
        %v3786 = vrot.slane %v3515, 1
        %v3787 = vsel %vm3689, %v3778, %v3786
        %v3788 = vrot.slane %v3516, 1
        %v3789 = vsel %vm3689, %v3780, %v3788
        %v3790 = vrot.slane %v3517, 1
        %v3791 = vsel %vm3689, %v3782, %v3790
        %v3792 = vrot.slane %v3518, 1
        %v3793 = vsel %vm3689, %v3784, %v3792
        %v3794 = vrot.slane %v3519, 1
        %v3795 = vsel %vm3689, %v3786, %v3794
        %v3796 = vrot.slane %v3520, 1
        %v3797 = vsel %vm3689, %v3788, %v3796
        %v3798 = vrot.slane %v3521, 1
        %v3799 = vsel %vm3689, %v3790, %v3798
        %v3800 = vrot.slane %v3522, 1
        %v3801 = vsel %vm3689, %v3792, %v3800
        %v3802 = vrot.slane %v3523, 1
        %v3803 = vsel %vm3689, %v3794, %v3802
        %v3804 = vrot.slane %v3524, 1
        %v3805 = vsel %vm3689, %v3796, %v3804
        %v3806 = vrot.slane %v3525, 1
        %v3807 = vsel %vm3689, %v3798, %v3806
        %v3808 = vrot.slane %v3526, 1
        %v3809 = vsel %vm3689, %v3800, %v3808
        %v3810 = vrot.slane %v3527, 1
        %v3811 = vsel %vm3689, %v3802, %v3810
        %v3812 = vrot.slane %v3528, 1
        %v3813 = vsel %vm3689, %v3804, %v3812
        %v3814 = vrot.slane %v3529, 1
        %v3815 = vsel %vm3689, %v3806, %v3814
        %v3816 = vrot.slane %v3530, 1
        %v3817 = vsel %vm3689, %v3808, %v3816
        %v3818 = vrot.slane %v3531, 1
        %v3819 = vsel %vm3689, %v3810, %v3818
        %v3820 = vrot.slane %v3532, 1
        %v3821 = vsel %vm3689, %v3812, %v3820
        %v3822 = vrot.slane %v3533, 1
        %v3823 = vsel %vm3689, %v3814, %v3822
        %v3824 = vrot.slane %v3534, 1
        %v3825 = vsel %vm3689, %v3816, %v3824
        %v3826 = vrot.slane %v3535, 1
        %v3827 = vsel %vm3689, %v3818, %v3826
        %v3828 = vrot.slane %v3536, 1
        %v3829 = vsel %vm3689, %v3820, %v3828
        %v3830 = vrot.slane %v3537, 1
        %v3831 = vsel %vm3689, %v3822, %v3830
        %v3832 = vrot.slane %v3538, 1
        %v3833 = vsel %vm3689, %v3824, %v3832
        %v3834 = vrot.slane %v3539, 1
        %v3835 = vsel %vm3689, %v3826, %v3834
        %v3836 = vrot.slane %v3540, 1
        %v3837 = vsel %vm3689, %v3828, %v3836
        %v3838 = vrot.slane %v3541, 1
        %v3839 = vsel %vm3689, %v3830, %v3838
        %v3840 = vrot.slane %v3542, 1
        %v3841 = vsel %vm3689, %v3832, %v3840
        %v3842 = vrot.slane %v3543, 1
        %v3843 = vsel %vm3689, %v3834, %v3842
        %v3844 = vrot.slane %v3544, 1
        %v3845 = vsel %vm3689, %v3836, %v3844
        %v3846 = vrot.slane %v3545, 1
        %v3847 = vsel %vm3689, %v3838, %v3846
        %v3848 = vrot.slane %v3546, 1
        %v3849 = vsel %vm3689, %v3840, %v3848
        %v3850 = vrot.slane %v3547, 1
        %v3851 = vsel %vm3689, %v3842, %v3850
        %v3852 = vrot.slane %v3548, 1
        %v3853 = vsel %vm3689, %v3844, %v3852
        %v3854 = vrot.slane %v3549, 1
        %v3855 = vsel %vm3689, %v3846, %v3854
        %v3856 = vrot.slane %v3550, 1
        %v3857 = vsel %vm3689, %v3848, %v3856
        %v3858 = vrot.slane %v3551, 1
        %v3859 = vsel %vm3689, %v3850, %v3858
        %v3860 = vrot.slane %v3552, 1
        %v3861 = vsel %vm3689, %v3852, %v3860
        %v3862 = vrot.slane %v3553, 1
        %v3863 = vsel %vm3689, %v3854, %v3862
        %v3864 = vrot.slane %v3554, 1
        %v3865 = vsel %vm3689, %v3856, %v3864
        %v3866 = vrot.slane %v3555, 1
        %v3867 = vsel %vm3689, %v3858, %v3866
        %v3868 = vrot.slane %v3556, 1
        %v3869 = vsel %vm3689, %v3860, %v3868
        %v3870 = vrot.slane %v3557, 1
        %v3871 = vsel %vm3689, %v3862, %v3870
        %v3872 = vrot.slane %v3558, 1
        %v3873 = vsel %vm3689, %v3864, %v3872
        %v3874 = vrot.slane %v3559, 1
        %v3875 = vsel %vm3689, %v3866, %v3874
        %v3876 = vrot.slane %v3560, 1
        %v3877 = vsel %vm3689, %v3868, %v3876
        %v3878 = vrot.slane %v3561, 1
        %v3879 = vsel %vm3689, %v3870, %v3878
        %v3880 = vrot.slane %v3562, 1
        %v3881 = vsel %vm3689, %v3872, %v3880
        %v3882 = vrot.slane %v3563, 1
        %v3883 = vsel %vm3689, %v3874, %v3882
        %v3884 = vrot.slane %v3564, 1
        %v3885 = vsel %vm3689, %v3876, %v3884
        %v3886 = vrot.slane %v3565, 1
        %v3887 = vsel %vm3689, %v3878, %v3886
        %v3888 = vrot.slane %v3566, 1
        %v3889 = vsel %vm3689, %v3880, %v3888
        %v3890 = vrot.slane %v3567, 1
        %v3891 = vsel %vm3689, %v3882, %v3890
        %v3892 = vrot.slane %v3568, 1
        %v3893 = vsel %vm3689, %v3884, %v3892
        %v3894 = vrot.slane %v3569, 1
        %v3895 = vsel %vm3689, %v3886, %v3894
        %v3896 = vrot.slane %v3570, 1
        %v3897 = vsel %vm3689, %v3888, %v3896
        %v3898 = vrot.slane %v3571, 1
        %v3899 = vsel %vm3689, %v3890, %v3898
        %v3900 = vrot.slane %v3572, 1
        %v3901 = vsel %vm3689, %v3892, %v3900
        %v3902 = vrot.slane %v3573, 1
        %v3903 = vsel %vm3689, %v3894, %v3902
        %v3904 = vrot.slane %v3574, 1
        %v3905 = vsel %vm3689, %v3896, %v3904
        %v3906 = vrot.slane %v3575, 1
        %v3907 = vsel %vm3689, %v3898, %v3906
        %v3908 = vrot.slane %v3576, 1
        %v3909 = vsel %vm3689, %v3900, %v3908
        %v4022 = vmax.f32 %v3465, %v3692
        %v4023 = vmax.f32 %v3466, %v3695
        %v4024 = vmax.f32 %v3467, %v3698
        %v4025 = vmax.f32 %v3468, %v3701
        %v4026 = vmax.f32 %v3469, %v3703
        %v4027 = vmax.f32 %v3470, %v3705
        %v4028 = vmax.f32 %v3471, %v3707
        %v4029 = vmax.f32 %v3472, %v3709
        %v4030 = vmax.f32 %v3473, %v3711
        %v4031 = vmax.f32 %v3474, %v3713
        %v4032 = vmax.f32 %v3475, %v3715
        %v4033 = vmax.f32 %v3476, %v3717
        %v4034 = vmax.f32 %v3477, %v3719
        %v4035 = vmax.f32 %v3478, %v3721
        %v4036 = vmax.f32 %v3479, %v3723
        %v4037 = vmax.f32 %v3480, %v3725
        %v4038 = vmax.f32 %v3481, %v3727
        %v4039 = vmax.f32 %v3482, %v3729
        %v4040 = vmax.f32 %v3483, %v3731
        %v4041 = vmax.f32 %v3484, %v3733
        %v4042 = vmax.f32 %v3485, %v3735
        %v4043 = vmax.f32 %v3486, %v3737
        %v4044 = vmax.f32 %v3487, %v3739
        %v4045 = vmax.f32 %v3488, %v3741
        %v4046 = vmax.f32 %v3489, %v3743
        %v4047 = vmax.f32 %v3490, %v3745
        %v4048 = vmax.f32 %v3491, %v3747
        %v4049 = vmax.f32 %v3492, %v3749
        %v4050 = vmax.f32 %v3493, %v3751
        %v4051 = vmax.f32 %v3494, %v3753
        %v4052 = vmax.f32 %v3495, %v3755
        %v4053 = vmax.f32 %v3496, %v3757
        %v4054 = vmax.f32 %v3497, %v3759
        %v4055 = vmax.f32 %v3498, %v3761
        %v4056 = vmax.f32 %v3499, %v3763
        %v4057 = vmax.f32 %v3500, %v3765
        %v4058 = vmax.f32 %v3501, %v3767
        %v4059 = vmax.f32 %v3502, %v3769
        %v4060 = vmax.f32 %v3503, %v3771
        %v4061 = vmax.f32 %v3504, %v3773
        %v4062 = vmax.f32 %v3505, %v3775
        %v4063 = vmax.f32 %v3506, %v3777
        %v4064 = vmax.f32 %v3507, %v3779
        %v4065 = vmax.f32 %v3508, %v3781
        %v4066 = vmax.f32 %v3509, %v3783
        %v4067 = vmax.f32 %v3510, %v3785
        %v4068 = vmax.f32 %v3511, %v3787
        %v4069 = vmax.f32 %v3512, %v3789
        %v4070 = vmax.f32 %v3513, %v3791
        %v4071 = vmax.f32 %v3514, %v3793
        %v4072 = vmax.f32 %v3515, %v3795
        %v4073 = vmax.f32 %v3516, %v3797
        %v4074 = vmax.f32 %v3517, %v3799
        %v4075 = vmax.f32 %v3518, %v3801
        %v4076 = vmax.f32 %v3519, %v3803
        %v4077 = vmax.f32 %v3520, %v3805
        %v4078 = vmax.f32 %v3521, %v3807
        %v4079 = vmax.f32 %v3522, %v3809
        %v4080 = vmax.f32 %v3523, %v3811
        %v4081 = vmax.f32 %v3524, %v3813
        %v4082 = vmax.f32 %v3525, %v3815
        %v4083 = vmax.f32 %v3526, %v3817
        %v4084 = vmax.f32 %v3527, %v3819
        %v4085 = vmax.f32 %v3528, %v3821
        %v4086 = vmax.f32 %v3529, %v3823
        %v4087 = vmax.f32 %v3530, %v3825
        %v4088 = vmax.f32 %v3531, %v3827
        %v4089 = vmax.f32 %v3532, %v3829
        %v4090 = vmax.f32 %v3533, %v3831
        %v4091 = vmax.f32 %v3534, %v3833
        %v4092 = vmax.f32 %v3535, %v3835
        %v4093 = vmax.f32 %v3536, %v3837
        %v4094 = vmax.f32 %v3537, %v3839
        %v4095 = vmax.f32 %v3538, %v3841
        %v4096 = vmax.f32 %v3539, %v3843
        %v4097 = vmax.f32 %v3540, %v3845
        %v4098 = vmax.f32 %v3541, %v3847
        %v4099 = vmax.f32 %v3542, %v3849
        %v4100 = vmax.f32 %v3543, %v3851
        %v4101 = vmax.f32 %v3544, %v3853
        %v4102 = vmax.f32 %v3545, %v3855
        %v4103 = vmax.f32 %v3546, %v3857
        %v4104 = vmax.f32 %v3547, %v3859
        %v4105 = vmax.f32 %v3548, %v3861
        %v4106 = vmax.f32 %v3549, %v3863
        %v4107 = vmax.f32 %v3550, %v3865
        %v4108 = vmax.f32 %v3551, %v3867
        %v4109 = vmax.f32 %v3552, %v3869
        %v4110 = vmax.f32 %v3553, %v3871
        %v4111 = vmax.f32 %v3554, %v3873
        %v4112 = vmax.f32 %v3555, %v3875
        %v4113 = vmax.f32 %v3556, %v3877
        %v4114 = vmax.f32 %v3557, %v3879
        %v4115 = vmax.f32 %v3558, %v3881
        %v4116 = vmax.f32 %v3559, %v3883
        %v4117 = vmax.f32 %v3560, %v3885
        %v4118 = vmax.f32 %v3561, %v3887
        %v4119 = vmax.f32 %v3562, %v3889
        %v4120 = vmax.f32 %v3563, %v3891
        %v4121 = vmax.f32 %v3564, %v3893
        %v4122 = vmax.f32 %v3565, %v3895
        %v4123 = vmax.f32 %v3566, %v3897
        %v4124 = vmax.f32 %v3567, %v3899
        %v4125 = vmax.f32 %v3568, %v3901
        %v4126 = vmax.f32 %v3569, %v3903
        %v4127 = vmax.f32 %v3570, %v3905
        %v4128 = vmax.f32 %v3571, %v3907
        %v4129 = vmax.f32 %v3572, %v3909
        %v4130 = vmax.f32 %v3573, %v3902
        %v4131 = vmax.f32 %v3574, %v3904
        %v4132 = vmax.f32 %v3575, %v3906
        %v4133 = vmax.f32 %v3576, %v3908
        %v4134 = vmax.f32 %v4022, %v4024
        %v4135 = vmax.f32 %v4023, %v4025
        %v4136 = vmax.f32 %v4026, %v4028
        %v4137 = vmax.f32 %v4027, %v4029
        %v4138 = vmax.f32 %v4030, %v4032
        %v4139 = vmax.f32 %v4031, %v4033
        %v4140 = vmax.f32 %v4034, %v4036
        %v4141 = vmax.f32 %v4035, %v4037
        %v4142 = vmax.f32 %v4038, %v4040
        %v4143 = vmax.f32 %v4039, %v4041
        %v4144 = vmax.f32 %v4042, %v4044
        %v4145 = vmax.f32 %v4043, %v4045
        %v4146 = vmax.f32 %v4046, %v4048
        %v4147 = vmax.f32 %v4047, %v4049
        %v4148 = vmax.f32 %v4050, %v4052
        %v4149 = vmax.f32 %v4051, %v4053
        %v4150 = vmax.f32 %v4054, %v4056
        %v4151 = vmax.f32 %v4055, %v4057
        %v4152 = vmax.f32 %v4058, %v4060
        %v4153 = vmax.f32 %v4059, %v4061
        %v4154 = vmax.f32 %v4062, %v4064
        %v4155 = vmax.f32 %v4063, %v4065
        %v4156 = vmax.f32 %v4066, %v4068
        %v4157 = vmax.f32 %v4067, %v4069
        %v4158 = vmax.f32 %v4070, %v4072
        %v4159 = vmax.f32 %v4071, %v4073
        %v4160 = vmax.f32 %v4074, %v4076
        %v4161 = vmax.f32 %v4075, %v4077
        %v4162 = vmax.f32 %v4078, %v4080
        %v4163 = vmax.f32 %v4079, %v4081
        %v4164 = vmax.f32 %v4082, %v4084
        %v4165 = vmax.f32 %v4083, %v4085
        %v4166 = vmax.f32 %v4086, %v4088
        %v4167 = vmax.f32 %v4087, %v4089
        %v4168 = vmax.f32 %v4090, %v4092
        %v4169 = vmax.f32 %v4091, %v4093
        %v4170 = vmax.f32 %v4094, %v4096
        %v4171 = vmax.f32 %v4095, %v4097
        %v4172 = vmax.f32 %v4098, %v4100
        %v4173 = vmax.f32 %v4099, %v4101
        %v4174 = vmax.f32 %v4102, %v4104
        %v4175 = vmax.f32 %v4103, %v4105
        %v4176 = vmax.f32 %v4106, %v4108
        %v4177 = vmax.f32 %v4107, %v4109
        %v4178 = vmax.f32 %v4110, %v4112
        %v4179 = vmax.f32 %v4111, %v4113
        %v4180 = vmax.f32 %v4114, %v4116
        %v4181 = vmax.f32 %v4115, %v4117
        %v4182 = vmax.f32 %v4118, %v4120
        %v4183 = vmax.f32 %v4119, %v4121
        %v4184 = vmax.f32 %v4122, %v4124
        %v4185 = vmax.f32 %v4123, %v4125
        %v4186 = vmax.f32 %v4126, %v4128
        %v4187 = vmax.f32 %v4127, %v4129
        %v4188 = vmax.f32 %v4130, %v4132
        %v4189 = vmax.f32 %v4131, %v4133
        %v4190 = vpack.c.bf16 %v4136, %v4134
        %v4191 = vpack.c.bf16 %v4137, %v4135
        %v4192 = vpack.c.bf16 %v4140, %v4138
        %v4193 = vpack.c.bf16 %v4141, %v4139
        %v4194 = vpack.c.bf16 %v4144, %v4142
        %v4195 = vpack.c.bf16 %v4145, %v4143
        %v4196 = vpack.c.bf16 %v4148, %v4146
        %v4197 = vpack.c.bf16 %v4149, %v4147
        %v4198 = vpack.c.bf16 %v4152, %v4150
        %v4199 = vpack.c.bf16 %v4153, %v4151
        %v4200 = vpack.c.bf16 %v4156, %v4154
        %v4201 = vpack.c.bf16 %v4157, %v4155
        %v4202 = vpack.c.bf16 %v4160, %v4158
        %v4203 = vpack.c.bf16 %v4161, %v4159
        %v4204 = vpack.c.bf16 %v4164, %v4162
        %v4205 = vpack.c.bf16 %v4165, %v4163
        %v4206 = vpack.c.bf16 %v4168, %v4166
        %v4207 = vpack.c.bf16 %v4169, %v4167
        %v4208 = vpack.c.bf16 %v4172, %v4170
        %v4209 = vpack.c.bf16 %v4173, %v4171
        %v4210 = vpack.c.bf16 %v4176, %v4174
        %v4211 = vpack.c.bf16 %v4177, %v4175
        %v4212 = vpack.c.bf16 %v4180, %v4178
        %v4213 = vpack.c.bf16 %v4181, %v4179
        %v4214 = vpack.c.bf16 %v4184, %v4182
        %v4215 = vpack.c.bf16 %v4185, %v4183
        %v4216 = vpack.c.bf16 %v4186, %v4186
        %v4217 = vpack.c.bf16 %v4187, %v4187
        %v4218 = vld [vmem:[#allocation8] sm:$0xff]
        %v4219 = vld [vmem:[#allocation8 + $0x8] sm:$0xff]
        %v4220 = vld [vmem:[#allocation8 + $0x10] sm:$0xff]
        %v4221 = vld [vmem:[#allocation8 + $0x18] sm:$0xff]
        %v4222 = vld [vmem:[#allocation8 + $0x20] sm:$0xff]
        %v4223 = vld [vmem:[#allocation8 + $0x28] sm:$0xff]
        %v4224 = vld [vmem:[#allocation8 + $0x30] sm:$0xff]
        %v4225 = vld [vmem:[#allocation8 + $0x38] sm:$0xff]
        %v4226 = vld [vmem:[#allocation8 + $0x40] sm:$0xff]
        %v4227 = vld [vmem:[#allocation8 + $0x48] sm:$0xff]
        %v4228 = vld [vmem:[#allocation8 + $0x50] sm:$0xff]
        %v4229 = vld [vmem:[#allocation8 + $0x58] sm:$0xff]
        %v4230 = vld [vmem:[#allocation8 + $0x60] sm:$0xff]
        %v4231 = vld [vmem:[#allocation8 + $0x68] sm:$0xff]
        %v4232 = vld [vmem:[#allocation8 + $0x70] sm:$0xff]
        %v4233 = vld [vmem:[#allocation8 + $0x78] sm:$0xff]
        %v4234 = vld [vmem:[#allocation8 + $0x80] sm:$0xff]
        %v4235 = vld [vmem:[#allocation8 + $0x88] sm:$0xff]
        %v4236 = vld [vmem:[#allocation8 + $0x90] sm:$0xff]
        %v4237 = vld [vmem:[#allocation8 + $0x98] sm:$0xff]
        %v4238 = vld [vmem:[#allocation8 + $0xa0] sm:$0xff]
        %v4239 = vld [vmem:[#allocation8 + $0xa8] sm:$0xff]
        %v4240 = vld [vmem:[#allocation8 + $0xb0] sm:$0xff]
        %v4241 = vld [vmem:[#allocation8 + $0xb8] sm:$0xff]
        %v4242 = vld [vmem:[#allocation8 + $0xc0] sm:$0xff]
        %v4243 = vld [vmem:[#allocation8 + $0xc8] sm:$0xff]
        %v4244 = vld [vmem:[#allocation8 + $0xd0] sm:$0xff]
        %v4245 = vld [vmem:[#allocation8 + $0xd8] sm:$0xff]
        %v4246 = vld [vmem:[#allocation8 + $0xe0] sm:$0xff]
        %v4247 = vld [vmem:[#allocation8 + $0xe8] sm:$0xff]
        %v4248 = vld [vmem:[#allocation8 + $0xf0] sm:$0xff]
        %v4249 = vld [vmem:[#allocation8 + $0xf8] sm:$0xff]
        %v4250 = vld [vmem:[#allocation8 + $0x100] sm:$0xff]
        %v4251 = vld [vmem:[#allocation8 + $0x108] sm:$0xff]
        %v4252 = vld [vmem:[#allocation8 + $0x110] sm:$0xff]
        %v4253 = vld [vmem:[#allocation8 + $0x118] sm:$0xff]
        %v4254 = vld [vmem:[#allocation8 + $0x120] sm:$0xff]
        %v4255 = vld [vmem:[#allocation8 + $0x128] sm:$0xff]
        %v4256 = vld [vmem:[#allocation8 + $0x130] sm:$0xff]
        %v4257 = vld [vmem:[#allocation8 + $0x138] sm:$0xff]
        %v4258 = vld [vmem:[#allocation8 + $0x140] sm:$0xff]
        %v4259 = vld [vmem:[#allocation8 + $0x148] sm:$0xff]
        %v4260 = vld [vmem:[#allocation8 + $0x150] sm:$0xff]
        %v4261 = vld [vmem:[#allocation8 + $0x158] sm:$0xff]
        %v4262 = vld [vmem:[#allocation8 + $0x160] sm:$0xff]
        %v4263 = vld [vmem:[#allocation8 + $0x168] sm:$0xff]
        %v4264 = vld [vmem:[#allocation8 + $0x170] sm:$0xff]
        %v4265 = vld [vmem:[#allocation8 + $0x178] sm:$0xff]
        %v4266 = vld [vmem:[#allocation8 + $0x180] sm:$0xff]
        %v4267 = vld [vmem:[#allocation8 + $0x188] sm:$0xff]
        %v4268 = vld [vmem:[#allocation8 + $0x190] sm:$0xff]
        %v4269 = vld [vmem:[#allocation8 + $0x198] sm:$0xff]
        %v4270 = vld [vmem:[#allocation8 + $0x1a0] sm:$0xff]
        %v4271 = vld [vmem:[#allocation8 + $0x1a8] sm:$0xff]
        %v4272 = vld [vmem:[#allocation8 + $0x1b0] sm:$0xff]
        %v4273 = vld [vmem:[#allocation8 + $0x1b8] sm:$0xff]
        %v4274 = vld [vmem:[#allocation8 + $0x1c0] sm:$0xff]
        %v4275 = vld [vmem:[#allocation8 + $0x1c8] sm:$0xff]
        %v4276 = vld [vmem:[#allocation8 + $0x1d0] sm:$0xff]
        %v4277 = vld [vmem:[#allocation8 + $0x1d8] sm:$0xff]
        %v4278 = vld [vmem:[#allocation8 + $0x1e0] sm:$0xff]
        %v4279 = vld [vmem:[#allocation8 + $0x1e8] sm:$0xff]
        %v4280 = vld [vmem:[#allocation8 + $0x1f0] sm:$0xff]
        %v4281 = vld [vmem:[#allocation8 + $0x1f8] sm:$0xff]
        %s4282 = scalar_lea.vmem [#allocation8], 512
        %v4283 = vld [vmem:[%s4282] sm:$0xff]
        %v4284 = vld [vmem:[%s4282 + $0x8] sm:$0xff]
        %v4285 = vld [vmem:[%s4282 + $0x10] sm:$0xff]
        %v4286 = vld [vmem:[%s4282 + $0x18] sm:$0xff]
        %v4287 = vld [vmem:[%s4282 + $0x20] sm:$0xff]
        %v4288 = vld [vmem:[%s4282 + $0x28] sm:$0xff]
        %v4289 = vld [vmem:[%s4282 + $0x30] sm:$0xff]
        %v4290 = vld [vmem:[%s4282 + $0x38] sm:$0xff]
        %v4291 = vld [vmem:[%s4282 + $0x40] sm:$0xff]
        %v4292 = vld [vmem:[%s4282 + $0x48] sm:$0xff]
        %v4293 = vld [vmem:[%s4282 + $0x50] sm:$0xff]
        %v4294 = vld [vmem:[%s4282 + $0x58] sm:$0xff]
        %v4295 = vld [vmem:[%s4282 + $0x60] sm:$0xff]
        %v4296 = vld [vmem:[%s4282 + $0x68] sm:$0xff]
        %v4297 = vld [vmem:[%s4282 + $0x70] sm:$0xff]
        %v4298 = vld [vmem:[%s4282 + $0x78] sm:$0xff]
        %v4299 = vld [vmem:[%s4282 + $0x80] sm:$0xff]
        %v4300 = vld [vmem:[%s4282 + $0x88] sm:$0xff]
        %v4301 = vld [vmem:[%s4282 + $0x90] sm:$0xff]
        %v4302 = vld [vmem:[%s4282 + $0x98] sm:$0xff]
        %v4303 = vld [vmem:[%s4282 + $0xa0] sm:$0xff]
        %v4304 = vld [vmem:[%s4282 + $0xa8] sm:$0xff]
        %v4305 = vld [vmem:[%s4282 + $0xb0] sm:$0xff]
        %v4306 = vld [vmem:[%s4282 + $0xb8] sm:$0xff]
        %v4307 = vld [vmem:[%s4282 + $0xc0] sm:$0xff]
        %v4308 = vld [vmem:[%s4282 + $0xc8] sm:$0xff]
        %v4309 = vld [vmem:[%s4282 + $0xd0] sm:$0xff]
        %v4310 = vld [vmem:[%s4282 + $0xd8] sm:$0xff]
        %v4311 = vld [vmem:[%s4282 + $0xe0] sm:$0xff]
        %v4312 = vld [vmem:[%s4282 + $0xe8] sm:$0xff]
        %v4313 = vld [vmem:[%s4282 + $0xf0] sm:$0xff]
        %v4314 = vld [vmem:[%s4282 + $0xf8] sm:$0xff]
        %v4315 = vld [vmem:[%s4282 + $0x100] sm:$0xff]
        %v4316 = vld [vmem:[%s4282 + $0x108] sm:$0xff]
        %v4317 = vld [vmem:[%s4282 + $0x110] sm:$0xff]
        %v4318 = vld [vmem:[%s4282 + $0x118] sm:$0xff]
        %v4319 = vld [vmem:[%s4282 + $0x120] sm:$0xff]
        %v4320 = vld [vmem:[%s4282 + $0x128] sm:$0xff]
        %v4321 = vld [vmem:[%s4282 + $0x130] sm:$0xff]
        %v4322 = vld [vmem:[%s4282 + $0x138] sm:$0xff]
        %v4323 = vld [vmem:[%s4282 + $0x140] sm:$0xff]
        %v4324 = vld [vmem:[%s4282 + $0x148] sm:$0xff]
        %v4325 = vld [vmem:[%s4282 + $0x150] sm:$0xff]
        %v4326 = vld [vmem:[%s4282 + $0x158] sm:$0xff]
        %v4327 = vld [vmem:[%s4282 + $0x160] sm:$0xff]
        %v4328 = vld [vmem:[%s4282 + $0x168] sm:$0xff]
        %v4329 = vld [vmem:[%s4282 + $0x170] sm:$0xff]
        %v4330 = vld [vmem:[%s4282 + $0x178] sm:$0xff]
        %v4331 = vld [vmem:[%s4282 + $0x180] sm:$0xff]
        %v4332 = vld [vmem:[%s4282 + $0x188] sm:$0xff]
        %v4333 = vld [vmem:[%s4282 + $0x190] sm:$0xff]
        %v4334 = vld [vmem:[%s4282 + $0x198] sm:$0xff]
        %v4335 = vld [vmem:[%s4282 + $0x1a0] sm:$0xff]
        %v4336 = vld [vmem:[%s4282 + $0x1a8] sm:$0xff]
        %v4337 = vld [vmem:[%s4282 + $0x1b0] sm:$0xff]
        %v4338 = vld [vmem:[%s4282 + $0x1b8] sm:$0xff]
        %v4339 = vld [vmem:[%s4282 + $0x1c0] sm:$0xff]
        %v4340 = vld [vmem:[%s4282 + $0x1c8] sm:$0xff]
        %v4341 = vld [vmem:[%s4282 + $0x1d0] sm:$0xff]
        %v4342 = vld [vmem:[%s4282 + $0x1d8] sm:$0xff]
        %v4343 = vld [vmem:[%s4282 + $0x1e0] sm:$0xff]
        %v4344 = vld [vmem:[%s4282 + $0x1e8] sm:$0xff]
        %v4345 = vld [vmem:[%s4282 + $0x1f0] sm:$0xff]
        %v4346 = vld [vmem:[%s4282 + $0x1f8] sm:$0xff]
        %v4375 = vrot.slane %v4190, 1
        %v4376 = vrot.slane %v4192, 1
        %v4377 = vsel %vm1557, %v4375, %v4376
        %v4378 = vrot.slane %v4191, 1
        %v4379 = vrot.slane %v4193, 1
        %v4380 = vsel %vm1557, %v4378, %v4379
        %v4381 = vrot.slane %v4194, 1
        %v4382 = vsel %vm1557, %v4376, %v4381
        %v4383 = vrot.slane %v4195, 1
        %v4384 = vsel %vm1557, %v4379, %v4383
        %v4385 = vrot.slane %v4196, 1
        %v4386 = vsel %vm1557, %v4381, %v4385
        %v4387 = vrot.slane %v4197, 1
        %v4388 = vsel %vm1557, %v4383, %v4387
        %v4389 = vrot.slane %v4198, 1
        %v4390 = vsel %vm1557, %v4385, %v4389
        %v4391 = vrot.slane %v4199, 1
        %v4392 = vsel %vm1557, %v4387, %v4391
        %v4393 = vrot.slane %v4200, 1
        %v4394 = vsel %vm1557, %v4389, %v4393
        %v4395 = vrot.slane %v4201, 1
        %v4396 = vsel %vm1557, %v4391, %v4395
        %v4397 = vrot.slane %v4202, 1
        %v4398 = vsel %vm1557, %v4393, %v4397
        %v4399 = vrot.slane %v4203, 1
        %v4400 = vsel %vm1557, %v4395, %v4399
        %v4401 = vrot.slane %v4204, 1
        %v4402 = vsel %vm1557, %v4397, %v4401
        %v4403 = vrot.slane %v4205, 1
        %v4404 = vsel %vm1557, %v4399, %v4403
        %v4405 = vrot.slane %v4206, 1
        %v4406 = vsel %vm1557, %v4401, %v4405
        %v4407 = vrot.slane %v4207, 1
        %v4408 = vsel %vm1557, %v4403, %v4407
        %v4409 = vrot.slane %v4208, 1
        %v4410 = vsel %vm1557, %v4405, %v4409
        %v4411 = vrot.slane %v4209, 1
        %v4412 = vsel %vm1557, %v4407, %v4411
        %v4413 = vrot.slane %v4210, 1
        %v4414 = vsel %vm1557, %v4409, %v4413
        %v4415 = vrot.slane %v4211, 1
        %v4416 = vsel %vm1557, %v4411, %v4415
        %v4417 = vrot.slane %v4212, 1
        %v4418 = vsel %vm1557, %v4413, %v4417
        %v4419 = vrot.slane %v4213, 1
        %v4420 = vsel %vm1557, %v4415, %v4419
        %v4421 = vrot.slane %v4214, 1
        %v4422 = vsel %vm1557, %v4417, %v4421
        %v4423 = vrot.slane %v4215, 1
        %v4424 = vsel %vm1557, %v4419, %v4423
        %v4425 = vrot.slane %v4216, 1
        %v4426 = vsel %vm1557, %v4421, %v4425
        %v4427 = vrot.slane %v4217, 1
        %v4428 = vsel %vm1557, %v4423, %v4427
        %v4521 = vunpack.c.l.b16 %v4283
        %v4522 = vunpack.c.h.b16 %v4283
        %v4523 = vunpack.c.l.b16 %v4284
        %v4524 = vunpack.c.h.b16 %v4284
        %v4525 = vunpack.c.l.b16 %v4285
        %v4526 = vunpack.c.h.b16 %v4285
        %v4527 = vunpack.c.l.b16 %v4286
        %v4528 = vunpack.c.h.b16 %v4286
        %v4529 = vunpack.c.l.b16 %v4287
        %v4530 = vunpack.c.h.b16 %v4287
        %v4531 = vunpack.c.l.b16 %v4288
        %v4532 = vunpack.c.h.b16 %v4288
        %v4533 = vunpack.c.l.b16 %v4289
        %v4534 = vunpack.c.h.b16 %v4289
        %v4535 = vunpack.c.l.b16 %v4290
        %v4536 = vunpack.c.h.b16 %v4290
        %v4537 = vunpack.c.l.b16 %v4291
        %v4538 = vunpack.c.h.b16 %v4291
        %v4539 = vunpack.c.l.b16 %v4292
        %v4540 = vunpack.c.h.b16 %v4292
        %v4541 = vunpack.c.l.b16 %v4293
        %v4542 = vunpack.c.h.b16 %v4293
        %v4543 = vunpack.c.l.b16 %v4294
        %v4544 = vunpack.c.h.b16 %v4294
        %v4545 = vunpack.c.l.b16 %v4295
        %v4546 = vunpack.c.h.b16 %v4295
        %v4547 = vunpack.c.l.b16 %v4296
        %v4548 = vunpack.c.h.b16 %v4296
        %v4549 = vunpack.c.l.b16 %v4297
        %v4550 = vunpack.c.h.b16 %v4297
        %v4551 = vunpack.c.l.b16 %v4298
        %v4552 = vunpack.c.h.b16 %v4298
        %v4553 = vunpack.c.l.b16 %v4299
        %v4554 = vunpack.c.h.b16 %v4299
        %v4555 = vunpack.c.l.b16 %v4300
        %v4556 = vunpack.c.h.b16 %v4300
        %v4557 = vunpack.c.l.b16 %v4301
        %v4558 = vunpack.c.h.b16 %v4301
        %v4559 = vunpack.c.l.b16 %v4302
        %v4560 = vunpack.c.h.b16 %v4302
        %v4561 = vunpack.c.l.b16 %v4303
        %v4562 = vunpack.c.h.b16 %v4303
        %v4563 = vunpack.c.l.b16 %v4304
        %v4564 = vunpack.c.h.b16 %v4304
        %v4565 = vunpack.c.l.b16 %v4305
        %v4566 = vunpack.c.h.b16 %v4305
        %v4567 = vunpack.c.l.b16 %v4306
        %v4568 = vunpack.c.h.b16 %v4306
        %v4569 = vunpack.c.l.b16 %v4307
        %v4570 = vunpack.c.h.b16 %v4307
        %v4571 = vunpack.c.l.b16 %v4308
        %v4572 = vunpack.c.h.b16 %v4308
        %v4573 = vunpack.c.l.b16 %v4309
        %v4574 = vunpack.c.h.b16 %v4309
        %v4575 = vunpack.c.l.b16 %v4310
        %v4576 = vunpack.c.h.b16 %v4310
        %v4577 = vunpack.c.l.b16 %v4311
        %v4578 = vunpack.c.h.b16 %v4311
        %v4579 = vunpack.c.l.b16 %v4312
        %v4580 = vunpack.c.h.b16 %v4312
        %v4581 = vunpack.c.l.b16 %v4313
        %v4582 = vunpack.c.h.b16 %v4313
        %v4583 = vunpack.c.l.b16 %v4314
        %v4584 = vunpack.c.h.b16 %v4314
        %v4585 = vunpack.c.l.b16 %v4315
        %v4586 = vunpack.c.h.b16 %v4315
        %v4587 = vunpack.c.l.b16 %v4316
        %v4588 = vunpack.c.h.b16 %v4316
        %v4589 = vunpack.c.l.b16 %v4317
        %v4590 = vunpack.c.h.b16 %v4317
        %v4591 = vunpack.c.l.b16 %v4318
        %v4592 = vunpack.c.h.b16 %v4318
        %v4593 = vunpack.c.l.b16 %v4319
        %v4594 = vunpack.c.h.b16 %v4319
        %v4595 = vunpack.c.l.b16 %v4320
        %v4596 = vunpack.c.h.b16 %v4320
        %v4597 = vunpack.c.l.b16 %v4321
        %v4598 = vunpack.c.h.b16 %v4321
        %v4599 = vunpack.c.l.b16 %v4322
        %v4600 = vunpack.c.h.b16 %v4322
        %v4601 = vunpack.c.l.b16 %v4323
        %v4602 = vunpack.c.h.b16 %v4323
        %v4603 = vunpack.c.l.b16 %v4324
        %v4604 = vunpack.c.h.b16 %v4324
        %v4605 = vunpack.c.l.b16 %v4325
        %v4606 = vunpack.c.h.b16 %v4325
        %v4607 = vunpack.c.l.b16 %v4326
        %v4608 = vunpack.c.h.b16 %v4326
        %v4609 = vunpack.c.l.b16 %v4327
        %v4610 = vunpack.c.h.b16 %v4327
        %v4611 = vunpack.c.l.b16 %v4328
        %v4612 = vunpack.c.h.b16 %v4328
        %v4613 = vunpack.c.l.b16 %v4329
        %v4614 = vunpack.c.h.b16 %v4329
        %v4615 = vunpack.c.l.b16 %v4330
        %v4616 = vunpack.c.h.b16 %v4330
        %v4617 = vunpack.c.l.b16 %v4331
        %v4618 = vunpack.c.h.b16 %v4331
        %v4619 = vunpack.c.l.b16 %v4332
        %v4620 = vunpack.c.h.b16 %v4332
        %v4621 = vunpack.c.l.b16 %v4333
        %v4622 = vunpack.c.h.b16 %v4333
        %v4623 = vunpack.c.l.b16 %v4334
        %v4624 = vunpack.c.h.b16 %v4334
        %v4625 = vunpack.c.l.b16 %v4335
        %v4626 = vunpack.c.h.b16 %v4335
        %v4627 = vunpack.c.l.b16 %v4336
        %v4628 = vunpack.c.h.b16 %v4336
        %v4629 = vunpack.c.l.b16 %v4337
        %v4630 = vunpack.c.h.b16 %v4337
        %v4631 = vunpack.c.l.b16 %v4338
        %v4632 = vunpack.c.h.b16 %v4338
        %v4633 = vunpack.c.l.b16 %v4339
        %v4634 = vunpack.c.h.b16 %v4339
        %v4635 = vunpack.c.l.b16 %v4340
        %v4636 = vunpack.c.h.b16 %v4340
        %v4637 = vunpack.c.l.b16 %v4341
        %v4638 = vunpack.c.h.b16 %v4341
        %v4639 = vunpack.c.l.b16 %v4342
        %v4640 = vunpack.c.h.b16 %v4342
        %v4641 = vunpack.c.l.b16 %v4343
        %v4642 = vunpack.c.h.b16 %v4343
        %v4643 = vunpack.c.l.b16 %v4344
        %v4644 = vunpack.c.h.b16 %v4344
        %v4645 = vunpack.c.l.b16 %v4345
        %v4646 = vunpack.c.h.b16 %v4345
        %v4647 = vunpack.c.l.b16 %v4346
        %v4648 = vunpack.c.h.b16 %v4346
        %v4649 = vpack.c.b16 %v4525, %v4521
        %v4650 = vpack.c.b16 %v4526, %v4522
        %v4651 = vpack.c.b16 %v4527, %v4523
        %v4652 = vpack.c.b16 %v4528, %v4524
        %v4653 = vpack.c.b16 %v4533, %v4529
        %v4654 = vpack.c.b16 %v4534, %v4530
        %v4655 = vpack.c.b16 %v4535, %v4531
        %v4656 = vpack.c.b16 %v4536, %v4532
        %v4657 = vpack.c.b16 %v4541, %v4537
        %v4658 = vpack.c.b16 %v4542, %v4538
        %v4659 = vpack.c.b16 %v4543, %v4539
        %v4660 = vpack.c.b16 %v4544, %v4540
        %v4661 = vpack.c.b16 %v4549, %v4545
        %v4662 = vpack.c.b16 %v4550, %v4546
        %v4663 = vpack.c.b16 %v4551, %v4547
        %v4664 = vpack.c.b16 %v4552, %v4548
        %v4665 = vpack.c.b16 %v4557, %v4553
        %v4666 = vpack.c.b16 %v4558, %v4554
        %v4667 = vpack.c.b16 %v4559, %v4555
        %v4668 = vpack.c.b16 %v4560, %v4556
        %v4669 = vpack.c.b16 %v4565, %v4561
        %v4670 = vpack.c.b16 %v4566, %v4562
        %v4671 = vpack.c.b16 %v4567, %v4563
        %v4672 = vpack.c.b16 %v4568, %v4564
        %v4673 = vpack.c.b16 %v4573, %v4569
        %v4674 = vpack.c.b16 %v4574, %v4570
        %v4675 = vpack.c.b16 %v4575, %v4571
        %v4676 = vpack.c.b16 %v4576, %v4572
        %v4677 = vpack.c.b16 %v4581, %v4577
        %v4678 = vpack.c.b16 %v4582, %v4578
        %v4679 = vpack.c.b16 %v4583, %v4579
        %v4680 = vpack.c.b16 %v4584, %v4580
        %v4681 = vpack.c.b16 %v4589, %v4585
        %v4682 = vpack.c.b16 %v4590, %v4586
        %v4683 = vpack.c.b16 %v4591, %v4587
        %v4684 = vpack.c.b16 %v4592, %v4588
        %v4685 = vpack.c.b16 %v4597, %v4593
        %v4686 = vpack.c.b16 %v4598, %v4594
        %v4687 = vpack.c.b16 %v4599, %v4595
        %v4688 = vpack.c.b16 %v4600, %v4596
        %v4689 = vpack.c.b16 %v4605, %v4601
        %v4690 = vpack.c.b16 %v4606, %v4602
        %v4691 = vpack.c.b16 %v4607, %v4603
        %v4692 = vpack.c.b16 %v4608, %v4604
        %v4693 = vpack.c.b16 %v4613, %v4609
        %v4694 = vpack.c.b16 %v4614, %v4610
        %v4695 = vpack.c.b16 %v4615, %v4611
        %v4696 = vpack.c.b16 %v4616, %v4612
        %v4697 = vpack.c.b16 %v4621, %v4617
        %v4698 = vpack.c.b16 %v4622, %v4618
        %v4699 = vpack.c.b16 %v4623, %v4619
        %v4700 = vpack.c.b16 %v4624, %v4620
        %v4701 = vpack.c.b16 %v4629, %v4625
        %v4702 = vpack.c.b16 %v4630, %v4626
        %v4703 = vpack.c.b16 %v4631, %v4627
        %v4704 = vpack.c.b16 %v4632, %v4628
        %v4705 = vpack.c.b16 %v4637, %v4633
        %v4706 = vpack.c.b16 %v4638, %v4634
        %v4707 = vpack.c.b16 %v4639, %v4635
        %v4708 = vpack.c.b16 %v4640, %v4636
        %v4709 = vpack.c.b16 %v4645, %v4641
        %v4710 = vpack.c.b16 %v4646, %v4642
        %v4711 = vpack.c.b16 %v4647, %v4643
        %v4712 = vpack.c.b16 %v4648, %v4644
        %4777 = vmatprep.subr.bf16.mxu0 %v4650
        %4778 = vmatpush1.bf16.msra.mxu0 %v4649
        %4779 = vmatprep.subr.bf16.mxu0 %v4654
        %4780 = vmatpush1.bf16.msra.mxu0 %v4653
        %4781 = vmatprep.subr.bf16.mxu0 %v4658
        %4782 = vmatpush1.bf16.msra.mxu0 %v4657
        %4783 = vmatprep.subr.bf16.mxu0 %v4662
        %4784 = vmatpush1.bf16.msra.mxu0 %v4661
        %4785 = vmatprep.subr.bf16.mxu0 %v4666
        %4786 = vmatpush1.bf16.msra.mxu0 %v4665
        %4787 = vmatprep.subr.bf16.mxu0 %v4670
        %4788 = vmatpush1.bf16.msra.mxu0 %v4669
        %4789 = vmatprep.subr.bf16.mxu0 %v4674
        %4790 = vmatpush1.bf16.msra.mxu0 %v4673
        %4791 = vmatprep.subr.bf16.mxu0 %v4678
        %4792 = vmatpush1.bf16.msra.mxu0 %v4677
        %4793 = vmatprep.subr.bf16.mxu0 %v4682
        %4794 = vmatpush1.bf16.msra.mxu0 %v4681
        %4795 = vmatprep.subr.bf16.mxu0 %v4686
        %4796 = vmatpush1.bf16.msra.mxu0 %v4685
        %4797 = vmatprep.subr.bf16.mxu0 %v4690
        %4798 = vmatpush1.bf16.msra.mxu0 %v4689
        %4799 = vmatprep.subr.bf16.mxu0 %v4694
        %4800 = vmatpush1.bf16.msra.mxu0 %v4693
        %4801 = vmatprep.subr.bf16.mxu0 %v4698
        %4802 = vmatpush1.bf16.msra.mxu0 %v4697
        %4803 = vmatprep.subr.bf16.mxu0 %v4702
        %4804 = vmatpush1.bf16.msra.mxu0 %v4701
        %4805 = vmatprep.subr.bf16.mxu0 %v4706
        %4806 = vmatpush1.bf16.msra.mxu0 %v4705
        %4807 = vmatprep.subr.bf16.mxu0 %v4710
        %4808 = vmatpush1.bf16.msra.mxu0 %v4709
        %4809 = vmatprep.mubr.bf16.mxu0 %v4380
        %4810 = vmatmul.mubr.bf16.gmra.mrb[0].mxu0 %v4377
        %v4811 = vpop.f32.mrb[0].mxu0
        %v4812 = vadd.f32 0.0, %v4811
        %v4813 = vpop.f32.mrb[0].mxu0
        %v4814 = vadd.f32 0.0, %v4813
        %v4815 = vpop.f32.mrb[0].mxu0
        %v4816 = vadd.f32 0.0, %v4815
        %v4817 = vpop.f32.mrb[0].mxu0
        %v4818 = vadd.f32 0.0, %v4817
        %4819 = vmatprep.mubr.bf16.mxu0 %v4384
        %4820 = vmatmul.mubr.bf16.gmra.mrb[0].mxu0 %v4382
        %v4821 = vpop.f32.mrb[0].mxu0
        %v4822 = vadd.f32 0.0, %v4821
        %v4823 = vpop.f32.mrb[0].mxu0
        %v4824 = vadd.f32 0.0, %v4823
        %v4825 = vpop.f32.mrb[0].mxu0
        %v4826 = vadd.f32 0.0, %v4825
        %v4827 = vpop.f32.mrb[0].mxu0
        %v4828 = vadd.f32 0.0, %v4827
        %4829 = vmatprep.mubr.bf16.mxu0 %v4388
        %4830 = vmatmul.mubr.bf16.gmra.mrb[0].mxu0 %v4386
        %v4831 = vpop.f32.mrb[0].mxu0
        %v4832 = vadd.f32 0.0, %v4831
        %v4833 = vpop.f32.mrb[0].mxu0
        %v4834 = vadd.f32 0.0, %v4833
        %v4835 = vpop.f32.mrb[0].mxu0
        %v4836 = vadd.f32 0.0, %v4835
        %v4837 = vpop.f32.mrb[0].mxu0
        %v4838 = vadd.f32 0.0, %v4837
        %4839 = vmatprep.mubr.bf16.mxu0 %v4392
        %4840 = vmatmul.mubr.bf16.gmra.mrb[0].mxu0 %v4390
        %v4841 = vpop.f32.mrb[0].mxu0
        %v4842 = vadd.f32 0.0, %v4841
        %v4843 = vpop.f32.mrb[0].mxu0
        %v4844 = vadd.f32 0.0, %v4843
        %v4845 = vpop.f32.mrb[0].mxu0
        %v4846 = vadd.f32 0.0, %v4845
        %v4847 = vpop.f32.mrb[0].mxu0
        %v4848 = vadd.f32 0.0, %v4847
        %4849 = vmatprep.mubr.bf16.mxu0 %v4396
        %4850 = vmatmul.mubr.bf16.gmra.mrb[0].mxu0 %v4394
        %v4851 = vpop.f32.mrb[0].mxu0
        %v4852 = vadd.f32 0.0, %v4851
        %v4853 = vpop.f32.mrb[0].mxu0
        %v4854 = vadd.f32 0.0, %v4853
        %v4855 = vpop.f32.mrb[0].mxu0
        %v4856 = vadd.f32 0.0, %v4855
        %v4857 = vpop.f32.mrb[0].mxu0
        %v4858 = vadd.f32 0.0, %v4857
        %4859 = vmatprep.mubr.bf16.mxu0 %v4400
        %4860 = vmatmul.mubr.bf16.gmra.mrb[0].mxu0 %v4398
        %v4861 = vpop.f32.mrb[0].mxu0
        %v4862 = vadd.f32 0.0, %v4861
        %v4863 = vpop.f32.mrb[0].mxu0
        %v4864 = vadd.f32 0.0, %v4863
        %v4865 = vpop.f32.mrb[0].mxu0
        %v4866 = vadd.f32 0.0, %v4865
        %v4867 = vpop.f32.mrb[0].mxu0
        %v4868 = vadd.f32 0.0, %v4867
        %4869 = vmatprep.mubr.bf16.mxu0 %v4404
        %4870 = vmatmul.mubr.bf16.gmra.mrb[0].mxu0 %v4402
        %v4871 = vpop.f32.mrb[0].mxu0
        %v4872 = vadd.f32 0.0, %v4871
        %v4873 = vpop.f32.mrb[0].mxu0
        %v4874 = vadd.f32 0.0, %v4873
        %v4875 = vpop.f32.mrb[0].mxu0
        %v4876 = vadd.f32 0.0, %v4875
        %v4877 = vpop.f32.mrb[0].mxu0
        %v4878 = vadd.f32 0.0, %v4877
        %4879 = vmatprep.mubr.bf16.mxu0 %v4408
        %4880 = vmatmul.mubr.bf16.gmra.mrb[0].mxu0 %v4406
        %v4881 = vpop.f32.mrb[0].mxu0
        %v4882 = vadd.f32 0.0, %v4881
        %v4883 = vpop.f32.mrb[0].mxu0
        %v4884 = vadd.f32 0.0, %v4883
        %v4885 = vpop.f32.mrb[0].mxu0
        %v4886 = vadd.f32 0.0, %v4885
        %v4887 = vpop.f32.mrb[0].mxu0
        %v4888 = vadd.f32 0.0, %v4887
        %4889 = vmatprep.mubr.bf16.mxu0 %v4412
        %4890 = vmatmul.mubr.bf16.gmra.mrb[0].mxu0 %v4410
        %v4891 = vpop.f32.mrb[0].mxu0
        %v4892 = vadd.f32 0.0, %v4891
        %v4893 = vpop.f32.mrb[0].mxu0
        %v4894 = vadd.f32 0.0, %v4893
        %v4895 = vpop.f32.mrb[0].mxu0
        %v4896 = vadd.f32 0.0, %v4895
        %v4897 = vpop.f32.mrb[0].mxu0
        %v4898 = vadd.f32 0.0, %v4897
        %4899 = vmatprep.mubr.bf16.mxu0 %v4416
        %4900 = vmatmul.mubr.bf16.gmra.mrb[0].mxu0 %v4414
        %v4901 = vpop.f32.mrb[0].mxu0
        %v4902 = vadd.f32 0.0, %v4901
        %v4903 = vpop.f32.mrb[0].mxu0
        %v4904 = vadd.f32 0.0, %v4903
        %v4905 = vpop.f32.mrb[0].mxu0
        %v4906 = vadd.f32 0.0, %v4905
        %v4907 = vpop.f32.mrb[0].mxu0
        %v4908 = vadd.f32 0.0, %v4907
        %4909 = vmatprep.mubr.bf16.mxu0 %v4420
        %4910 = vmatmul.mubr.bf16.gmra.mrb[0].mxu0 %v4418
        %v4911 = vpop.f32.mrb[0].mxu0
        %v4912 = vadd.f32 0.0, %v4911
        %v4913 = vpop.f32.mrb[0].mxu0
        %v4914 = vadd.f32 0.0, %v4913
        %v4915 = vpop.f32.mrb[0].mxu0
        %v4916 = vadd.f32 0.0, %v4915
        %v4917 = vpop.f32.mrb[0].mxu0
        %v4918 = vadd.f32 0.0, %v4917
        %4919 = vmatprep.mubr.bf16.mxu0 %v4424
        %4920 = vmatmul.mubr.bf16.gmra.mrb[0].mxu0 %v4422
        %v4921 = vpop.f32.mrb[0].mxu0
        %v4922 = vadd.f32 0.0, %v4921
        %v4923 = vpop.f32.mrb[0].mxu0
        %v4924 = vadd.f32 0.0, %v4923
        %v4925 = vpop.f32.mrb[0].mxu0
        %v4926 = vadd.f32 0.0, %v4925
        %v4927 = vpop.f32.mrb[0].mxu0
        %v4928 = vadd.f32 0.0, %v4927
        %4929 = vmatprep.mubr.bf16.mxu0 %v4428
        %4930 = vmatmul.mubr.bf16.gmra.mrb[0].mxu0 %v4426
        %v4931 = vpop.f32.mrb[0].mxu0
        %v4932 = vadd.f32 0.0, %v4931
        %v4933 = vpop.f32.mrb[0].mxu0
        %v4934 = vadd.f32 0.0, %v4933
        %v4935 = vpop.f32.mrb[0].mxu0
        %v4936 = vadd.f32 0.0, %v4935
        %v4937 = vpop.f32.mrb[0].mxu0
        %v4938 = vadd.f32 0.0, %v4937
        %4939 = vmatprep.mubr.bf16.mxu0 %v4427
        %4940 = vmatmul.mubr.bf16.gmra.mrb[0].mxu0 %v4425
        %v4941 = vpop.f32.mrb[0].mxu0
        %v4942 = vadd.f32 0.0, %v4941
        %v4943 = vpop.f32.mrb[0].mxu0
        %v4944 = vadd.f32 0.0, %v4943
        %v4945 = vpop.f32.mrb[0].mxu0
        %v4946 = vpop.f32.mrb[0].mxu0
        %4947 = vdwg.mxu0
        %4948 = vmatprep.subr.bf16.mxu0 %v4652
        %4949 = vmatpush1.bf16.msra.mxu0 %v4651
        %4950 = vmatprep.subr.bf16.mxu0 %v4656
        %4951 = vmatpush1.bf16.msra.mxu0 %v4655
        %4952 = vmatprep.subr.bf16.mxu0 %v4660
        %4953 = vmatpush1.bf16.msra.mxu0 %v4659
        %4954 = vmatprep.subr.bf16.mxu0 %v4664
        %4955 = vmatpush1.bf16.msra.mxu0 %v4663
        %4956 = vmatprep.subr.bf16.mxu0 %v4668
        %4957 = vmatpush1.bf16.msra.mxu0 %v4667
        %4958 = vmatprep.subr.bf16.mxu0 %v4672
        %4959 = vmatpush1.bf16.msra.mxu0 %v4671
        %4960 = vmatprep.subr.bf16.mxu0 %v4676
        %4961 = vmatpush1.bf16.msra.mxu0 %v4675
        %4962 = vmatprep.subr.bf16.mxu0 %v4680
        %4963 = vmatpush1.bf16.msra.mxu0 %v4679
        %4964 = vmatprep.subr.bf16.mxu0 %v4684
        %4965 = vmatpush1.bf16.msra.mxu0 %v4683
        %4966 = vmatprep.subr.bf16.mxu0 %v4688
        %4967 = vmatpush1.bf16.msra.mxu0 %v4687
        %4968 = vmatprep.subr.bf16.mxu0 %v4692
        %4969 = vmatpush1.bf16.msra.mxu0 %v4691
        %4970 = vmatprep.subr.bf16.mxu0 %v4696
        %4971 = vmatpush1.bf16.msra.mxu0 %v4695
        %4972 = vmatprep.subr.bf16.mxu0 %v4700
        %4973 = vmatpush1.bf16.msra.mxu0 %v4699
        %4974 = vmatprep.subr.bf16.mxu0 %v4704
        %4975 = vmatpush1.bf16.msra.mxu0 %v4703
        %4976 = vmatprep.subr.bf16.mxu0 %v4708
        %4977 = vmatpush1.bf16.msra.mxu0 %v4707
        %4978 = vmatprep.subr.bf16.mxu0 %v4712
        %4979 = vmatpush1.bf16.msra.mxu0 %v4711
        %4980 = vmatprep.mubr.bf16.mxu0 %v4380
        %4981 = vmatmul.mubr.bf16.gmra.mrb[0].mxu0 %v4377
        %v4982 = vpop.f32.mrb[0].mxu0
        %v4983 = vadd.f32 0.0, %v4982
        %v4984 = vpop.f32.mrb[0].mxu0
        %v4985 = vadd.f32 0.0, %v4984
        %v4986 = vpop.f32.mrb[0].mxu0
        %v4987 = vadd.f32 0.0, %v4986
        %v4988 = vpop.f32.mrb[0].mxu0
        %v4989 = vadd.f32 0.0, %v4988
        %4990 = vmatprep.mubr.bf16.mxu0 %v4384
        %4991 = vmatmul.mubr.bf16.gmra.mrb[0].mxu0 %v4382
        %v4992 = vpop.f32.mrb[0].mxu0
        %v4993 = vadd.f32 0.0, %v4992
        %v4994 = vpop.f32.mrb[0].mxu0
        %v4995 = vadd.f32 0.0, %v4994
        %v4996 = vpop.f32.mrb[0].mxu0
        %v4997 = vadd.f32 0.0, %v4996
        %v4998 = vpop.f32.mrb[0].mxu0
        %v4999 = vadd.f32 0.0, %v4998
        %5000 = vmatprep.mubr.bf16.mxu0 %v4388
        %5001 = vmatmul.mubr.bf16.gmra.mrb[0].mxu0 %v4386
        %v5002 = vpop.f32.mrb[0].mxu0
        %v5003 = vadd.f32 0.0, %v5002
        %v5004 = vpop.f32.mrb[0].mxu0
        %v5005 = vadd.f32 0.0, %v5004
        %v5006 = vpop.f32.mrb[0].mxu0
        %v5007 = vadd.f32 0.0, %v5006
        %v5008 = vpop.f32.mrb[0].mxu0
        %v5009 = vadd.f32 0.0, %v5008
        %5010 = vmatprep.mubr.bf16.mxu0 %v4392
        %5011 = vmatmul.mubr.bf16.gmra.mrb[0].mxu0 %v4390
        %v5012 = vpop.f32.mrb[0].mxu0
        %v5013 = vadd.f32 0.0, %v5012
        %v5014 = vpop.f32.mrb[0].mxu0
        %v5015 = vadd.f32 0.0, %v5014
        %v5016 = vpop.f32.mrb[0].mxu0
        %v5017 = vadd.f32 0.0, %v5016
        %v5018 = vpop.f32.mrb[0].mxu0
        %v5019 = vadd.f32 0.0, %v5018
        %5020 = vmatprep.mubr.bf16.mxu0 %v4396
        %5021 = vmatmul.mubr.bf16.gmra.mrb[0].mxu0 %v4394
        %v5022 = vpop.f32.mrb[0].mxu0
        %v5023 = vadd.f32 0.0, %v5022
        %v5024 = vpop.f32.mrb[0].mxu0
        %v5025 = vadd.f32 0.0, %v5024
        %v5026 = vpop.f32.mrb[0].mxu0
        %v5027 = vadd.f32 0.0, %v5026
        %v5028 = vpop.f32.mrb[0].mxu0
        %v5029 = vadd.f32 0.0, %v5028
        %5030 = vmatprep.mubr.bf16.mxu0 %v4400
        %5031 = vmatmul.mubr.bf16.gmra.mrb[0].mxu0 %v4398
        %v5032 = vpop.f32.mrb[0].mxu0
        %v5033 = vadd.f32 0.0, %v5032
        %v5034 = vpop.f32.mrb[0].mxu0
        %v5035 = vadd.f32 0.0, %v5034
        %v5036 = vpop.f32.mrb[0].mxu0
        %v5037 = vadd.f32 0.0, %v5036
        %v5038 = vpop.f32.mrb[0].mxu0
        %v5039 = vadd.f32 0.0, %v5038
        %5040 = vmatprep.mubr.bf16.mxu0 %v4404
        %5041 = vmatmul.mubr.bf16.gmra.mrb[0].mxu0 %v4402
        %v5042 = vpop.f32.mrb[0].mxu0
        %v5043 = vadd.f32 0.0, %v5042
        %v5044 = vpop.f32.mrb[0].mxu0
        %v5045 = vadd.f32 0.0, %v5044
        %v5046 = vpop.f32.mrb[0].mxu0
        %v5047 = vadd.f32 0.0, %v5046
        %v5048 = vpop.f32.mrb[0].mxu0
        %v5049 = vadd.f32 0.0, %v5048
        %5050 = vmatprep.mubr.bf16.mxu0 %v4408
        %5051 = vmatmul.mubr.bf16.gmra.mrb[0].mxu0 %v4406
        %v5052 = vpop.f32.mrb[0].mxu0
        %v5053 = vadd.f32 0.0, %v5052
        %v5054 = vpop.f32.mrb[0].mxu0
        %v5055 = vadd.f32 0.0, %v5054
        %v5056 = vpop.f32.mrb[0].mxu0
        %v5057 = vadd.f32 0.0, %v5056
        %v5058 = vpop.f32.mrb[0].mxu0
        %v5059 = vadd.f32 0.0, %v5058
        %5060 = vmatprep.mubr.bf16.mxu0 %v4412
        %5061 = vmatmul.mubr.bf16.gmra.mrb[0].mxu0 %v4410
        %v5062 = vpop.f32.mrb[0].mxu0
        %v5063 = vadd.f32 0.0, %v5062
        %v5064 = vpop.f32.mrb[0].mxu0
        %v5065 = vadd.f32 0.0, %v5064
        %v5066 = vpop.f32.mrb[0].mxu0
        %v5067 = vadd.f32 0.0, %v5066
        %v5068 = vpop.f32.mrb[0].mxu0
        %v5069 = vadd.f32 0.0, %v5068
        %5070 = vmatprep.mubr.bf16.mxu0 %v4416
        %5071 = vmatmul.mubr.bf16.gmra.mrb[0].mxu0 %v4414
        %v5072 = vpop.f32.mrb[0].mxu0
        %v5073 = vadd.f32 0.0, %v5072
        %v5074 = vpop.f32.mrb[0].mxu0
        %v5075 = vadd.f32 0.0, %v5074
        %v5076 = vpop.f32.mrb[0].mxu0
        %v5077 = vadd.f32 0.0, %v5076
        %v5078 = vpop.f32.mrb[0].mxu0
        %v5079 = vadd.f32 0.0, %v5078
        %5080 = vmatprep.mubr.bf16.mxu0 %v4420
        %5081 = vmatmul.mubr.bf16.gmra.mrb[0].mxu0 %v4418
        %v5082 = vpop.f32.mrb[0].mxu0
        %v5083 = vadd.f32 0.0, %v5082
        %v5084 = vpop.f32.mrb[0].mxu0
        %v5085 = vadd.f32 0.0, %v5084
        %v5086 = vpop.f32.mrb[0].mxu0
        %v5087 = vadd.f32 0.0, %v5086
        %v5088 = vpop.f32.mrb[0].mxu0
        %v5089 = vadd.f32 0.0, %v5088
        %5090 = vmatprep.mubr.bf16.mxu0 %v4424
        %5091 = vmatmul.mubr.bf16.gmra.mrb[0].mxu0 %v4422
        %v5092 = vpop.f32.mrb[0].mxu0
        %v5093 = vadd.f32 0.0, %v5092
        %v5094 = vpop.f32.mrb[0].mxu0
        %v5095 = vadd.f32 0.0, %v5094
        %v5096 = vpop.f32.mrb[0].mxu0
        %v5097 = vadd.f32 0.0, %v5096
        %v5098 = vpop.f32.mrb[0].mxu0
        %v5099 = vadd.f32 0.0, %v5098
        %5100 = vmatprep.mubr.bf16.mxu0 %v4428
        %5101 = vmatmul.mubr.bf16.gmra.mrb[0].mxu0 %v4426
        %v5102 = vpop.f32.mrb[0].mxu0
        %v5103 = vadd.f32 0.0, %v5102
        %v5104 = vpop.f32.mrb[0].mxu0
        %v5105 = vadd.f32 0.0, %v5104
        %v5106 = vpop.f32.mrb[0].mxu0
        %v5107 = vadd.f32 0.0, %v5106
        %v5108 = vpop.f32.mrb[0].mxu0
        %v5109 = vadd.f32 0.0, %v5108
        %5110 = vmatprep.mubr.bf16.mxu0 %v4427
        %5111 = vmatmul.mubr.bf16.gmra.mrb[0].mxu0 %v4425
        %v5112 = vpop.f32.mrb[0].mxu0
        %v5113 = vadd.f32 0.0, %v5112
        %v5114 = vpop.f32.mrb[0].mxu0
        %v5115 = vadd.f32 0.0, %v5114
        %v5116 = vpop.f32.mrb[0].mxu0
        %v5117 = vpop.f32.mrb[0].mxu0
        %5118 = vdwg.mxu0
        %v5183 = vunpack.c.l.b16 %v4218
        %v5184 = vunpack.c.h.b16 %v4218
        %v5185 = vunpack.c.l.b16 %v4219
        %v5186 = vunpack.c.h.b16 %v4219
        %v5187 = vunpack.c.l.b16 %v4220
        %v5188 = vunpack.c.h.b16 %v4220
        %v5189 = vunpack.c.l.b16 %v4221
        %v5190 = vunpack.c.h.b16 %v4221
        %v5191 = vunpack.c.l.b16 %v4222
        %v5192 = vunpack.c.h.b16 %v4222
        %v5193 = vunpack.c.l.b16 %v4223
        %v5194 = vunpack.c.h.b16 %v4223
        %v5195 = vunpack.c.l.b16 %v4224
        %v5196 = vunpack.c.h.b16 %v4224
        %v5197 = vunpack.c.l.b16 %v4225
        %v5198 = vunpack.c.h.b16 %v4225
        %v5199 = vunpack.c.l.b16 %v4226
        %v5200 = vunpack.c.h.b16 %v4226
        %v5201 = vunpack.c.l.b16 %v4227
        %v5202 = vunpack.c.h.b16 %v4227
        %v5203 = vunpack.c.l.b16 %v4228
        %v5204 = vunpack.c.h.b16 %v4228
        %v5205 = vunpack.c.l.b16 %v4229
        %v5206 = vunpack.c.h.b16 %v4229
        %v5207 = vunpack.c.l.b16 %v4230
        %v5208 = vunpack.c.h.b16 %v4230
        %v5209 = vunpack.c.l.b16 %v4231
        %v5210 = vunpack.c.h.b16 %v4231
        %v5211 = vunpack.c.l.b16 %v4232
        %v5212 = vunpack.c.h.b16 %v4232
        %v5213 = vunpack.c.l.b16 %v4233
        %v5214 = vunpack.c.h.b16 %v4233
        %v5215 = vunpack.c.l.b16 %v4234
        %v5216 = vunpack.c.h.b16 %v4234
        %v5217 = vunpack.c.l.b16 %v4235
        %v5218 = vunpack.c.h.b16 %v4235
        %v5219 = vunpack.c.l.b16 %v4236
        %v5220 = vunpack.c.h.b16 %v4236
        %v5221 = vunpack.c.l.b16 %v4237
        %v5222 = vunpack.c.h.b16 %v4237
        %v5223 = vunpack.c.l.b16 %v4238
        %v5224 = vunpack.c.h.b16 %v4238
        %v5225 = vunpack.c.l.b16 %v4239
        %v5226 = vunpack.c.h.b16 %v4239
        %v5227 = vunpack.c.l.b16 %v4240
        %v5228 = vunpack.c.h.b16 %v4240
        %v5229 = vunpack.c.l.b16 %v4241
        %v5230 = vunpack.c.h.b16 %v4241
        %v5231 = vunpack.c.l.b16 %v4242
        %v5232 = vunpack.c.h.b16 %v4242
        %v5233 = vunpack.c.l.b16 %v4243
        %v5234 = vunpack.c.h.b16 %v4243
        %v5235 = vunpack.c.l.b16 %v4244
        %v5236 = vunpack.c.h.b16 %v4244
        %v5237 = vunpack.c.l.b16 %v4245
        %v5238 = vunpack.c.h.b16 %v4245
        %v5239 = vunpack.c.l.b16 %v4246
        %v5240 = vunpack.c.h.b16 %v4246
        %v5241 = vunpack.c.l.b16 %v4247
        %v5242 = vunpack.c.h.b16 %v4247
        %v5243 = vunpack.c.l.b16 %v4248
        %v5244 = vunpack.c.h.b16 %v4248
        %v5245 = vunpack.c.l.b16 %v4249
        %v5246 = vunpack.c.h.b16 %v4249
        %v5247 = vunpack.c.l.b16 %v4250
        %v5248 = vunpack.c.h.b16 %v4250
        %v5249 = vunpack.c.l.b16 %v4251
        %v5250 = vunpack.c.h.b16 %v4251
        %v5251 = vunpack.c.l.b16 %v4252
        %v5252 = vunpack.c.h.b16 %v4252
        %v5253 = vunpack.c.l.b16 %v4253
        %v5254 = vunpack.c.h.b16 %v4253
        %v5255 = vunpack.c.l.b16 %v4254
        %v5256 = vunpack.c.h.b16 %v4254
        %v5257 = vunpack.c.l.b16 %v4255
        %v5258 = vunpack.c.h.b16 %v4255
        %v5259 = vunpack.c.l.b16 %v4256
        %v5260 = vunpack.c.h.b16 %v4256
        %v5261 = vunpack.c.l.b16 %v4257
        %v5262 = vunpack.c.h.b16 %v4257
        %v5263 = vunpack.c.l.b16 %v4258
        %v5264 = vunpack.c.h.b16 %v4258
        %v5265 = vunpack.c.l.b16 %v4259
        %v5266 = vunpack.c.h.b16 %v4259
        %v5267 = vunpack.c.l.b16 %v4260
        %v5268 = vunpack.c.h.b16 %v4260
        %v5269 = vunpack.c.l.b16 %v4261
        %v5270 = vunpack.c.h.b16 %v4261
        %v5271 = vunpack.c.l.b16 %v4262
        %v5272 = vunpack.c.h.b16 %v4262
        %v5273 = vunpack.c.l.b16 %v4263
        %v5274 = vunpack.c.h.b16 %v4263
        %v5275 = vunpack.c.l.b16 %v4264
        %v5276 = vunpack.c.h.b16 %v4264
        %v5277 = vunpack.c.l.b16 %v4265
        %v5278 = vunpack.c.h.b16 %v4265
        %v5279 = vunpack.c.l.b16 %v4266
        %v5280 = vunpack.c.h.b16 %v4266
        %v5281 = vunpack.c.l.b16 %v4267
        %v5282 = vunpack.c.h.b16 %v4267
        %v5283 = vunpack.c.l.b16 %v4268
        %v5284 = vunpack.c.h.b16 %v4268
        %v5285 = vunpack.c.l.b16 %v4269
        %v5286 = vunpack.c.h.b16 %v4269
        %v5287 = vunpack.c.l.b16 %v4270
        %v5288 = vunpack.c.h.b16 %v4270
        %v5289 = vunpack.c.l.b16 %v4271
        %v5290 = vunpack.c.h.b16 %v4271
        %v5291 = vunpack.c.l.b16 %v4272
        %v5292 = vunpack.c.h.b16 %v4272
        %v5293 = vunpack.c.l.b16 %v4273
        %v5294 = vunpack.c.h.b16 %v4273
        %v5295 = vunpack.c.l.b16 %v4274
        %v5296 = vunpack.c.h.b16 %v4274
        %v5297 = vunpack.c.l.b16 %v4275
        %v5298 = vunpack.c.h.b16 %v4275
        %v5299 = vunpack.c.l.b16 %v4276
        %v5300 = vunpack.c.h.b16 %v4276
        %v5301 = vunpack.c.l.b16 %v4277
        %v5302 = vunpack.c.h.b16 %v4277
        %v5303 = vunpack.c.l.b16 %v4278
        %v5304 = vunpack.c.h.b16 %v4278
        %v5305 = vunpack.c.l.b16 %v4279
        %v5306 = vunpack.c.h.b16 %v4279
        %v5307 = vunpack.c.l.b16 %v4280
        %v5308 = vunpack.c.h.b16 %v4280
        %v5309 = vunpack.c.l.b16 %v4281
        %v5310 = vunpack.c.h.b16 %v4281
        %v5311 = vpack.c.b16 %v5187, %v5183
        %v5312 = vpack.c.b16 %v5188, %v5184
        %v5313 = vpack.c.b16 %v5189, %v5185
        %v5314 = vpack.c.b16 %v5190, %v5186
        %v5315 = vpack.c.b16 %v5195, %v5191
        %v5316 = vpack.c.b16 %v5196, %v5192
        %v5317 = vpack.c.b16 %v5197, %v5193
        %v5318 = vpack.c.b16 %v5198, %v5194
        %v5319 = vpack.c.b16 %v5203, %v5199
        %v5320 = vpack.c.b16 %v5204, %v5200
        %v5321 = vpack.c.b16 %v5205, %v5201
        %v5322 = vpack.c.b16 %v5206, %v5202
        %v5323 = vpack.c.b16 %v5211, %v5207
        %v5324 = vpack.c.b16 %v5212, %v5208
        %v5325 = vpack.c.b16 %v5213, %v5209
        %v5326 = vpack.c.b16 %v5214, %v5210
        %v5327 = vpack.c.b16 %v5219, %v5215
        %v5328 = vpack.c.b16 %v5220, %v5216
        %v5329 = vpack.c.b16 %v5221, %v5217
        %v5330 = vpack.c.b16 %v5222, %v5218
        %v5331 = vpack.c.b16 %v5227, %v5223
        %v5332 = vpack.c.b16 %v5228, %v5224
        %v5333 = vpack.c.b16 %v5229, %v5225
        %v5334 = vpack.c.b16 %v5230, %v5226
        %v5335 = vpack.c.b16 %v5235, %v5231
        %v5336 = vpack.c.b16 %v5236, %v5232
        %v5337 = vpack.c.b16 %v5237, %v5233
        %v5338 = vpack.c.b16 %v5238, %v5234
        %v5339 = vpack.c.b16 %v5243, %v5239
        %v5340 = vpack.c.b16 %v5244, %v5240
        %v5341 = vpack.c.b16 %v5245, %v5241
        %v5342 = vpack.c.b16 %v5246, %v5242
        %v5343 = vpack.c.b16 %v5251, %v5247
        %v5344 = vpack.c.b16 %v5252, %v5248
        %v5345 = vpack.c.b16 %v5253, %v5249
        %v5346 = vpack.c.b16 %v5254, %v5250
        %v5347 = vpack.c.b16 %v5259, %v5255
        %v5348 = vpack.c.b16 %v5260, %v5256
        %v5349 = vpack.c.b16 %v5261, %v5257
        %v5350 = vpack.c.b16 %v5262, %v5258
        %v5351 = vpack.c.b16 %v5267, %v5263
        %v5352 = vpack.c.b16 %v5268, %v5264
        %v5353 = vpack.c.b16 %v5269, %v5265
        %v5354 = vpack.c.b16 %v5270, %v5266
        %v5355 = vpack.c.b16 %v5275, %v5271
        %v5356 = vpack.c.b16 %v5276, %v5272
        %v5357 = vpack.c.b16 %v5277, %v5273
        %v5358 = vpack.c.b16 %v5278, %v5274
        %v5359 = vpack.c.b16 %v5283, %v5279
        %v5360 = vpack.c.b16 %v5284, %v5280
        %v5361 = vpack.c.b16 %v5285, %v5281
        %v5362 = vpack.c.b16 %v5286, %v5282
        %v5363 = vpack.c.b16 %v5291, %v5287
        %v5364 = vpack.c.b16 %v5292, %v5288
        %v5365 = vpack.c.b16 %v5293, %v5289
        %v5366 = vpack.c.b16 %v5294, %v5290
        %v5367 = vpack.c.b16 %v5299, %v5295
        %v5368 = vpack.c.b16 %v5300, %v5296
        %v5369 = vpack.c.b16 %v5301, %v5297
        %v5370 = vpack.c.b16 %v5302, %v5298
        %v5371 = vpack.c.b16 %v5307, %v5303
        %v5372 = vpack.c.b16 %v5308, %v5304
        %v5373 = vpack.c.b16 %v5309, %v5305
        %v5374 = vpack.c.b16 %v5310, %v5306
        %5439 = vmatprep.subr.bf16.mxu0 %v5312
        %5440 = vmatpush1.bf16.msra.mxu0 %v5311
        %5441 = vmatprep.subr.bf16.mxu0 %v5316
        %5442 = vmatpush1.bf16.msra.mxu0 %v5315
        %5443 = vmatprep.subr.bf16.mxu0 %v5320
        %5444 = vmatpush1.bf16.msra.mxu0 %v5319
        %5445 = vmatprep.subr.bf16.mxu0 %v5324
        %5446 = vmatpush1.bf16.msra.mxu0 %v5323
        %5447 = vmatprep.subr.bf16.mxu0 %v5328
        %5448 = vmatpush1.bf16.msra.mxu0 %v5327
        %5449 = vmatprep.subr.bf16.mxu0 %v5332
        %5450 = vmatpush1.bf16.msra.mxu0 %v5331
        %5451 = vmatprep.subr.bf16.mxu0 %v5336
        %5452 = vmatpush1.bf16.msra.mxu0 %v5335
        %5453 = vmatprep.subr.bf16.mxu0 %v5340
        %5454 = vmatpush1.bf16.msra.mxu0 %v5339
        %5455 = vmatprep.subr.bf16.mxu0 %v5344
        %5456 = vmatpush1.bf16.msra.mxu0 %v5343
        %5457 = vmatprep.subr.bf16.mxu0 %v5348
        %5458 = vmatpush1.bf16.msra.mxu0 %v5347
        %5459 = vmatprep.subr.bf16.mxu0 %v5352
        %5460 = vmatpush1.bf16.msra.mxu0 %v5351
        %5461 = vmatprep.subr.bf16.mxu0 %v5356
        %5462 = vmatpush1.bf16.msra.mxu0 %v5355
        %5463 = vmatprep.subr.bf16.mxu0 %v5360
        %5464 = vmatpush1.bf16.msra.mxu0 %v5359
        %5465 = vmatprep.subr.bf16.mxu0 %v5364
        %5466 = vmatpush1.bf16.msra.mxu0 %v5363
        %5467 = vmatprep.subr.bf16.mxu0 %v5368
        %5468 = vmatpush1.bf16.msra.mxu0 %v5367
        %5469 = vmatprep.subr.bf16.mxu0 %v5372
        %5470 = vmatpush1.bf16.msra.mxu0 %v5371
        %5471 = vmatprep.mubr.bf16.mxu0 %v4191
        %5472 = vmatmul.mubr.bf16.gmra.mrb[0].mxu0 %v4190
        %v5473 = vpop.f32.mrb[0].mxu0
        %v5474 = vadd.f32 %v4812, %v5473
        %v5475 = vpop.f32.mrb[0].mxu0
        %v5476 = vadd.f32 %v4814, %v5475
        %v5477 = vpop.f32.mrb[0].mxu0
        %v5478 = vadd.f32 %v4816, %v5477
        %v5479 = vpop.f32.mrb[0].mxu0
        %v5480 = vadd.f32 %v4818, %v5479
        %5481 = vmatprep.mubr.bf16.mxu0 %v4193
        %5482 = vmatmul.mubr.bf16.gmra.mrb[0].mxu0 %v4192
        %v5483 = vpop.f32.mrb[0].mxu0
        %v5484 = vadd.f32 %v4822, %v5483
        %v5485 = vpop.f32.mrb[0].mxu0
        %v5486 = vadd.f32 %v4824, %v5485
        %v5487 = vpop.f32.mrb[0].mxu0
        %v5488 = vadd.f32 %v4826, %v5487
        %v5489 = vpop.f32.mrb[0].mxu0
        %v5490 = vadd.f32 %v4828, %v5489
        %5491 = vmatprep.mubr.bf16.mxu0 %v4195
        %5492 = vmatmul.mubr.bf16.gmra.mrb[0].mxu0 %v4194
        %v5493 = vpop.f32.mrb[0].mxu0
        %v5494 = vadd.f32 %v4832, %v5493
        %v5495 = vpop.f32.mrb[0].mxu0
        %v5496 = vadd.f32 %v4834, %v5495
        %v5497 = vpop.f32.mrb[0].mxu0
        %v5498 = vadd.f32 %v4836, %v5497
        %v5499 = vpop.f32.mrb[0].mxu0
        %v5500 = vadd.f32 %v4838, %v5499
        %5501 = vmatprep.mubr.bf16.mxu0 %v4197
        %5502 = vmatmul.mubr.bf16.gmra.mrb[0].mxu0 %v4196
        %v5503 = vpop.f32.mrb[0].mxu0
        %v5504 = vadd.f32 %v4842, %v5503
        %v5505 = vpop.f32.mrb[0].mxu0
        %v5506 = vadd.f32 %v4844, %v5505
        %v5507 = vpop.f32.mrb[0].mxu0
        %v5508 = vadd.f32 %v4846, %v5507
        %v5509 = vpop.f32.mrb[0].mxu0
        %v5510 = vadd.f32 %v4848, %v5509
        %5511 = vmatprep.mubr.bf16.mxu0 %v4199
        %5512 = vmatmul.mubr.bf16.gmra.mrb[0].mxu0 %v4198
        %v5513 = vpop.f32.mrb[0].mxu0
        %v5514 = vadd.f32 %v4852, %v5513
        %v5515 = vpop.f32.mrb[0].mxu0
        %v5516 = vadd.f32 %v4854, %v5515
        %v5517 = vpop.f32.mrb[0].mxu0
        %v5518 = vadd.f32 %v4856, %v5517
        %v5519 = vpop.f32.mrb[0].mxu0
        %v5520 = vadd.f32 %v4858, %v5519
        %5521 = vmatprep.mubr.bf16.mxu0 %v4201
        %5522 = vmatmul.mubr.bf16.gmra.mrb[0].mxu0 %v4200
        %v5523 = vpop.f32.mrb[0].mxu0
        %v5524 = vadd.f32 %v4862, %v5523
        %v5525 = vpop.f32.mrb[0].mxu0
        %v5526 = vadd.f32 %v4864, %v5525
        %v5527 = vpop.f32.mrb[0].mxu0
        %v5528 = vadd.f32 %v4866, %v5527
        %v5529 = vpop.f32.mrb[0].mxu0
        %v5530 = vadd.f32 %v4868, %v5529
        %5531 = vmatprep.mubr.bf16.mxu0 %v4203
        %5532 = vmatmul.mubr.bf16.gmra.mrb[0].mxu0 %v4202
        %v5533 = vpop.f32.mrb[0].mxu0
        %v5534 = vadd.f32 %v4872, %v5533
        %v5535 = vpop.f32.mrb[0].mxu0
        %v5536 = vadd.f32 %v4874, %v5535
        %v5537 = vpop.f32.mrb[0].mxu0
        %v5538 = vadd.f32 %v4876, %v5537
        %v5539 = vpop.f32.mrb[0].mxu0
        %v5540 = vadd.f32 %v4878, %v5539
        %5541 = vmatprep.mubr.bf16.mxu0 %v4205
        %5542 = vmatmul.mubr.bf16.gmra.mrb[0].mxu0 %v4204
        %v5543 = vpop.f32.mrb[0].mxu0
        %v5544 = vadd.f32 %v4882, %v5543
        %v5545 = vpop.f32.mrb[0].mxu0
        %v5546 = vadd.f32 %v4884, %v5545
        %v5547 = vpop.f32.mrb[0].mxu0
        %v5548 = vadd.f32 %v4886, %v5547
        %v5549 = vpop.f32.mrb[0].mxu0
        %v5550 = vadd.f32 %v4888, %v5549
        %5551 = vmatprep.mubr.bf16.mxu0 %v4207
        %5552 = vmatmul.mubr.bf16.gmra.mrb[0].mxu0 %v4206
        %v5553 = vpop.f32.mrb[0].mxu0
        %v5554 = vadd.f32 %v4892, %v5553
        %v5555 = vpop.f32.mrb[0].mxu0
        %v5556 = vadd.f32 %v4894, %v5555
        %v5557 = vpop.f32.mrb[0].mxu0
        %v5558 = vadd.f32 %v4896, %v5557
        %v5559 = vpop.f32.mrb[0].mxu0
        %v5560 = vadd.f32 %v4898, %v5559
        %5561 = vmatprep.mubr.bf16.mxu0 %v4209
        %5562 = vmatmul.mubr.bf16.gmra.mrb[0].mxu0 %v4208
        %v5563 = vpop.f32.mrb[0].mxu0
        %v5564 = vadd.f32 %v4902, %v5563
        %v5565 = vpop.f32.mrb[0].mxu0
        %v5566 = vadd.f32 %v4904, %v5565
        %v5567 = vpop.f32.mrb[0].mxu0
        %v5568 = vadd.f32 %v4906, %v5567
        %v5569 = vpop.f32.mrb[0].mxu0
        %v5570 = vadd.f32 %v4908, %v5569
        %5571 = vmatprep.mubr.bf16.mxu0 %v4211
        %5572 = vmatmul.mubr.bf16.gmra.mrb[0].mxu0 %v4210
        %v5573 = vpop.f32.mrb[0].mxu0
        %v5574 = vadd.f32 %v4912, %v5573
        %v5575 = vpop.f32.mrb[0].mxu0
        %v5576 = vadd.f32 %v4914, %v5575
        %v5577 = vpop.f32.mrb[0].mxu0
        %v5578 = vadd.f32 %v4916, %v5577
        %v5579 = vpop.f32.mrb[0].mxu0
        %v5580 = vadd.f32 %v4918, %v5579
        %5581 = vmatprep.mubr.bf16.mxu0 %v4213
        %5582 = vmatmul.mubr.bf16.gmra.mrb[0].mxu0 %v4212
        %v5583 = vpop.f32.mrb[0].mxu0
        %v5584 = vadd.f32 %v4922, %v5583
        %v5585 = vpop.f32.mrb[0].mxu0
        %v5586 = vadd.f32 %v4924, %v5585
        %v5587 = vpop.f32.mrb[0].mxu0
        %v5588 = vadd.f32 %v4926, %v5587
        %v5589 = vpop.f32.mrb[0].mxu0
        %v5590 = vadd.f32 %v4928, %v5589
        %5591 = vmatprep.mubr.bf16.mxu0 %v4215
        %5592 = vmatmul.mubr.bf16.gmra.mrb[0].mxu0 %v4214
        %v5593 = vpop.f32.mrb[0].mxu0
        %v5594 = vadd.f32 %v4932, %v5593
        %v5595 = vpop.f32.mrb[0].mxu0
        %v5596 = vadd.f32 %v4934, %v5595
        %v5597 = vpop.f32.mrb[0].mxu0
        %v5598 = vadd.f32 %v4936, %v5597
        %v5599 = vpop.f32.mrb[0].mxu0
        %v5600 = vadd.f32 %v4938, %v5599
        %5601 = vmatprep.mubr.bf16.mxu0 %v4217
        %5602 = vmatmul.mubr.bf16.gmra.mrb[0].mxu0 %v4216
        %v5603 = vpop.f32.mrb[0].mxu0
        %v5604 = vadd.f32 %v4942, %v5603
        %v5605 = vpop.f32.mrb[0].mxu0
        %v5606 = vadd.f32 %v4944, %v5605
        %v5607 = vpop.f32.mrb[0].mxu0
        %v5608 = vpop.f32.mrb[0].mxu0
        %5609 = vdwg.mxu0
        %5610 = vmatprep.subr.bf16.mxu0 %v5314
        %5611 = vmatpush1.bf16.msra.mxu0 %v5313
        %5612 = vmatprep.subr.bf16.mxu0 %v5318
        %5613 = vmatpush1.bf16.msra.mxu0 %v5317
        %5614 = vmatprep.subr.bf16.mxu0 %v5322
        %5615 = vmatpush1.bf16.msra.mxu0 %v5321
        %5616 = vmatprep.subr.bf16.mxu0 %v5326
        %5617 = vmatpush1.bf16.msra.mxu0 %v5325
        %5618 = vmatprep.subr.bf16.mxu0 %v5330
        %5619 = vmatpush1.bf16.msra.mxu0 %v5329
        %5620 = vmatprep.subr.bf16.mxu0 %v5334
        %5621 = vmatpush1.bf16.msra.mxu0 %v5333
        %5622 = vmatprep.subr.bf16.mxu0 %v5338
        %5623 = vmatpush1.bf16.msra.mxu0 %v5337
        %5624 = vmatprep.subr.bf16.mxu0 %v5342
        %5625 = vmatpush1.bf16.msra.mxu0 %v5341
        %5626 = vmatprep.subr.bf16.mxu0 %v5346
        %5627 = vmatpush1.bf16.msra.mxu0 %v5345
        %5628 = vmatprep.subr.bf16.mxu0 %v5350
        %5629 = vmatpush1.bf16.msra.mxu0 %v5349
        %5630 = vmatprep.subr.bf16.mxu0 %v5354
        %5631 = vmatpush1.bf16.msra.mxu0 %v5353
        %5632 = vmatprep.subr.bf16.mxu0 %v5358
        %5633 = vmatpush1.bf16.msra.mxu0 %v5357
        %5634 = vmatprep.subr.bf16.mxu0 %v5362
        %5635 = vmatpush1.bf16.msra.mxu0 %v5361
        %5636 = vmatprep.subr.bf16.mxu0 %v5366
        %5637 = vmatpush1.bf16.msra.mxu0 %v5365
        %5638 = vmatprep.subr.bf16.mxu0 %v5370
        %5639 = vmatpush1.bf16.msra.mxu0 %v5369
        %5640 = vmatprep.subr.bf16.mxu0 %v5374
        %5641 = vmatpush1.bf16.msra.mxu0 %v5373
        %5642 = vmatprep.mubr.bf16.mxu0 %v4191
        %5643 = vmatmul.mubr.bf16.gmra.mrb[0].mxu0 %v4190
        %v5644 = vpop.f32.mrb[0].mxu0
        %v5645 = vadd.f32 %v4983, %v5644
        %v5646 = vpop.f32.mrb[0].mxu0
        %v5647 = vadd.f32 %v4985, %v5646
        %v5648 = vpop.f32.mrb[0].mxu0
        %v5649 = vadd.f32 %v4987, %v5648
        %v5650 = vpop.f32.mrb[0].mxu0
        %v5651 = vadd.f32 %v4989, %v5650
        %5652 = vmatprep.mubr.bf16.mxu0 %v4193
        %5653 = vmatmul.mubr.bf16.gmra.mrb[0].mxu0 %v4192
        %v5654 = vpop.f32.mrb[0].mxu0
        %v5655 = vadd.f32 %v4993, %v5654
        %v5656 = vpop.f32.mrb[0].mxu0
        %v5657 = vadd.f32 %v4995, %v5656
        %v5658 = vpop.f32.mrb[0].mxu0
        %v5659 = vadd.f32 %v4997, %v5658
        %v5660 = vpop.f32.mrb[0].mxu0
        %v5661 = vadd.f32 %v4999, %v5660
        %5662 = vmatprep.mubr.bf16.mxu0 %v4195
        %5663 = vmatmul.mubr.bf16.gmra.mrb[0].mxu0 %v4194
        %v5664 = vpop.f32.mrb[0].mxu0
        %v5665 = vadd.f32 %v5003, %v5664
        %v5666 = vpop.f32.mrb[0].mxu0
        %v5667 = vadd.f32 %v5005, %v5666
        %v5668 = vpop.f32.mrb[0].mxu0
        %v5669 = vadd.f32 %v5007, %v5668
        %v5670 = vpop.f32.mrb[0].mxu0
        %v5671 = vadd.f32 %v5009, %v5670
        %5672 = vmatprep.mubr.bf16.mxu0 %v4197
        %5673 = vmatmul.mubr.bf16.gmra.mrb[0].mxu0 %v4196
        %v5674 = vpop.f32.mrb[0].mxu0
        %v5675 = vadd.f32 %v5013, %v5674
        %v5676 = vpop.f32.mrb[0].mxu0
        %v5677 = vadd.f32 %v5015, %v5676
        %v5678 = vpop.f32.mrb[0].mxu0
        %v5679 = vadd.f32 %v5017, %v5678
        %v5680 = vpop.f32.mrb[0].mxu0
        %v5681 = vadd.f32 %v5019, %v5680
        %5682 = vmatprep.mubr.bf16.mxu0 %v4199
        %5683 = vmatmul.mubr.bf16.gmra.mrb[0].mxu0 %v4198
        %v5684 = vpop.f32.mrb[0].mxu0
        %v5685 = vadd.f32 %v5023, %v5684
        %v5686 = vpop.f32.mrb[0].mxu0
        %v5687 = vadd.f32 %v5025, %v5686
        %v5688 = vpop.f32.mrb[0].mxu0
        %v5689 = vadd.f32 %v5027, %v5688
        %v5690 = vpop.f32.mrb[0].mxu0
        %v5691 = vadd.f32 %v5029, %v5690
        %5692 = vmatprep.mubr.bf16.mxu0 %v4201
        %5693 = vmatmul.mubr.bf16.gmra.mrb[0].mxu0 %v4200
        %v5694 = vpop.f32.mrb[0].mxu0
        %v5695 = vadd.f32 %v5033, %v5694
        %v5696 = vpop.f32.mrb[0].mxu0
        %v5697 = vadd.f32 %v5035, %v5696
        %v5698 = vpop.f32.mrb[0].mxu0
        %v5699 = vadd.f32 %v5037, %v5698
        %v5700 = vpop.f32.mrb[0].mxu0
        %v5701 = vadd.f32 %v5039, %v5700
        %5702 = vmatprep.mubr.bf16.mxu0 %v4203
        %5703 = vmatmul.mubr.bf16.gmra.mrb[0].mxu0 %v4202
        %v5704 = vpop.f32.mrb[0].mxu0
        %v5705 = vadd.f32 %v5043, %v5704
        %v5706 = vpop.f32.mrb[0].mxu0
        %v5707 = vadd.f32 %v5045, %v5706
        %v5708 = vpop.f32.mrb[0].mxu0
        %v5709 = vadd.f32 %v5047, %v5708
        %v5710 = vpop.f32.mrb[0].mxu0
        %v5711 = vadd.f32 %v5049, %v5710
        %5712 = vmatprep.mubr.bf16.mxu0 %v4205
        %5713 = vmatmul.mubr.bf16.gmra.mrb[0].mxu0 %v4204
        %v5714 = vpop.f32.mrb[0].mxu0
        %v5715 = vadd.f32 %v5053, %v5714
        %v5716 = vpop.f32.mrb[0].mxu0
        %v5717 = vadd.f32 %v5055, %v5716
        %v5718 = vpop.f32.mrb[0].mxu0
        %v5719 = vadd.f32 %v5057, %v5718
        %v5720 = vpop.f32.mrb[0].mxu0
        %v5721 = vadd.f32 %v5059, %v5720
        %5722 = vmatprep.mubr.bf16.mxu0 %v4207
        %5723 = vmatmul.mubr.bf16.gmra.mrb[0].mxu0 %v4206
        %v5724 = vpop.f32.mrb[0].mxu0
        %v5725 = vadd.f32 %v5063, %v5724
        %v5726 = vpop.f32.mrb[0].mxu0
        %v5727 = vadd.f32 %v5065, %v5726
        %v5728 = vpop.f32.mrb[0].mxu0
        %v5729 = vadd.f32 %v5067, %v5728
        %v5730 = vpop.f32.mrb[0].mxu0
        %v5731 = vadd.f32 %v5069, %v5730
        %5732 = vmatprep.mubr.bf16.mxu0 %v4209
        %5733 = vmatmul.mubr.bf16.gmra.mrb[0].mxu0 %v4208
        %v5734 = vpop.f32.mrb[0].mxu0
        %v5735 = vadd.f32 %v5073, %v5734
        %v5736 = vpop.f32.mrb[0].mxu0
        %v5737 = vadd.f32 %v5075, %v5736
        %v5738 = vpop.f32.mrb[0].mxu0
        %v5739 = vadd.f32 %v5077, %v5738
        %v5740 = vpop.f32.mrb[0].mxu0
        %v5741 = vadd.f32 %v5079, %v5740
        %5742 = vmatprep.mubr.bf16.mxu0 %v4211
        %5743 = vmatmul.mubr.bf16.gmra.mrb[0].mxu0 %v4210
        %v5744 = vpop.f32.mrb[0].mxu0
        %v5745 = vadd.f32 %v5083, %v5744
        %v5746 = vpop.f32.mrb[0].mxu0
        %v5747 = vadd.f32 %v5085, %v5746
        %v5748 = vpop.f32.mrb[0].mxu0
        %v5749 = vadd.f32 %v5087, %v5748
        %v5750 = vpop.f32.mrb[0].mxu0
        %v5751 = vadd.f32 %v5089, %v5750
        %5752 = vmatprep.mubr.bf16.mxu0 %v4213
        %5753 = vmatmul.mubr.bf16.gmra.mrb[0].mxu0 %v4212
        %v5754 = vpop.f32.mrb[0].mxu0
        %v5755 = vadd.f32 %v5093, %v5754
        %v5756 = vpop.f32.mrb[0].mxu0
        %v5757 = vadd.f32 %v5095, %v5756
        %v5758 = vpop.f32.mrb[0].mxu0
        %v5759 = vadd.f32 %v5097, %v5758
        %v5760 = vpop.f32.mrb[0].mxu0
        %v5761 = vadd.f32 %v5099, %v5760
        %5762 = vmatprep.mubr.bf16.mxu0 %v4215
        %5763 = vmatmul.mubr.bf16.gmra.mrb[0].mxu0 %v4214
        %v5764 = vpop.f32.mrb[0].mxu0
        %v5765 = vadd.f32 %v5103, %v5764
        %v5766 = vpop.f32.mrb[0].mxu0
        %v5767 = vadd.f32 %v5105, %v5766
        %v5768 = vpop.f32.mrb[0].mxu0
        %v5769 = vadd.f32 %v5107, %v5768
        %v5770 = vpop.f32.mrb[0].mxu0
        %v5771 = vadd.f32 %v5109, %v5770
        %5772 = vmatprep.mubr.bf16.mxu0 %v4217
        %5773 = vmatmul.mubr.bf16.gmra.mrb[0].mxu0 %v4216
        %v5774 = vpop.f32.mrb[0].mxu0
        %v5775 = vadd.f32 %v5113, %v5774
        %v5776 = vpop.f32.mrb[0].mxu0
        %v5777 = vadd.f32 %v5115, %v5776
        %v5778 = vpop.f32.mrb[0].mxu0
        %v5779 = vpop.f32.mrb[0].mxu0
        %5780 = vdwg.mxu0
        %s5781 = scalar_lea.vmem [#allocation8], 1024
        %v5782 = vld [vmem:[%s5781] sm:$0xff]
        %v5783 = vld [vmem:[%s5781 + $0x8] sm:$0xff]
        %v5784 = vld [vmem:[%s5781 + $0x10] sm:$0xff]
        %v5785 = vld [vmem:[%s5781 + $0x18] sm:$0xff]
        %v5786 = vld [vmem:[%s5781 + $0x20] sm:$0xff]
        %v5787 = vld [vmem:[%s5781 + $0x28] sm:$0xff]
        %v5788 = vld [vmem:[%s5781 + $0x30] sm:$0xff]
        %v5789 = vld [vmem:[%s5781 + $0x38] sm:$0xff]
        %v5790 = vld [vmem:[%s5781 + $0x40] sm:$0xff]
        %v5791 = vld [vmem:[%s5781 + $0x48] sm:$0xff]
        %v5792 = vld [vmem:[%s5781 + $0x50] sm:$0xff]
        %v5793 = vld [vmem:[%s5781 + $0x58] sm:$0xff]
        %v5794 = vld [vmem:[%s5781 + $0x60] sm:$0xff]
        %v5795 = vld [vmem:[%s5781 + $0x68] sm:$0xff]
        %v5796 = vld [vmem:[%s5781 + $0x70] sm:$0xff]
        %v5797 = vld [vmem:[%s5781 + $0x78] sm:$0xff]
        %v5798 = vld [vmem:[%s5781 + $0x80] sm:$0xff]
        %v5799 = vld [vmem:[%s5781 + $0x88] sm:$0xff]
        %v5800 = vld [vmem:[%s5781 + $0x90] sm:$0xff]
        %v5801 = vld [vmem:[%s5781 + $0x98] sm:$0xff]
        %v5802 = vld [vmem:[%s5781 + $0xa0] sm:$0xff]
        %v5803 = vld [vmem:[%s5781 + $0xa8] sm:$0xff]
        %v5804 = vld [vmem:[%s5781 + $0xb0] sm:$0xff]
        %v5805 = vld [vmem:[%s5781 + $0xb8] sm:$0xff]
        %v5806 = vld [vmem:[%s5781 + $0xc0] sm:$0xff]
        %v5807 = vld [vmem:[%s5781 + $0xc8] sm:$0xff]
        %v5808 = vld [vmem:[%s5781 + $0xd0] sm:$0xff]
        %v5809 = vld [vmem:[%s5781 + $0xd8] sm:$0xff]
        %v5810 = vld [vmem:[%s5781 + $0xe0] sm:$0xff]
        %v5811 = vld [vmem:[%s5781 + $0xe8] sm:$0xff]
        %v5812 = vld [vmem:[%s5781 + $0xf0] sm:$0xff]
        %v5813 = vld [vmem:[%s5781 + $0xf8] sm:$0xff]
        %v5814 = vld [vmem:[%s5781 + $0x100] sm:$0xff]
        %v5815 = vld [vmem:[%s5781 + $0x108] sm:$0xff]
        %v5816 = vld [vmem:[%s5781 + $0x110] sm:$0xff]
        %v5817 = vld [vmem:[%s5781 + $0x118] sm:$0xff]
        %v5818 = vld [vmem:[%s5781 + $0x120] sm:$0xff]
        %v5819 = vld [vmem:[%s5781 + $0x128] sm:$0xff]
        %v5820 = vld [vmem:[%s5781 + $0x130] sm:$0xff]
        %v5821 = vld [vmem:[%s5781 + $0x138] sm:$0xff]
        %v5822 = vld [vmem:[%s5781 + $0x140] sm:$0xff]
        %v5823 = vld [vmem:[%s5781 + $0x148] sm:$0xff]
        %v5824 = vld [vmem:[%s5781 + $0x150] sm:$0xff]
        %v5825 = vld [vmem:[%s5781 + $0x158] sm:$0xff]
        %v5826 = vld [vmem:[%s5781 + $0x160] sm:$0xff]
        %v5827 = vld [vmem:[%s5781 + $0x168] sm:$0xff]
        %v5828 = vld [vmem:[%s5781 + $0x170] sm:$0xff]
        %v5829 = vld [vmem:[%s5781 + $0x178] sm:$0xff]
        %v5830 = vld [vmem:[%s5781 + $0x180] sm:$0xff]
        %v5831 = vld [vmem:[%s5781 + $0x188] sm:$0xff]
        %v5832 = vld [vmem:[%s5781 + $0x190] sm:$0xff]
        %v5833 = vld [vmem:[%s5781 + $0x198] sm:$0xff]
        %v5834 = vld [vmem:[%s5781 + $0x1a0] sm:$0xff]
        %v5835 = vld [vmem:[%s5781 + $0x1a8] sm:$0xff]
        %v5836 = vld [vmem:[%s5781 + $0x1b0] sm:$0xff]
        %v5837 = vld [vmem:[%s5781 + $0x1b8] sm:$0xff]
        %v5838 = vld [vmem:[%s5781 + $0x1c0] sm:$0xff]
        %v5839 = vld [vmem:[%s5781 + $0x1c8] sm:$0xff]
        %v5840 = vld [vmem:[%s5781 + $0x1d0] sm:$0xff]
        %v5841 = vld [vmem:[%s5781 + $0x1d8] sm:$0xff]
        %v5842 = vld [vmem:[%s5781 + $0x1e0] sm:$0xff]
        %v5843 = vld [vmem:[%s5781 + $0x1e8] sm:$0xff]
        %v5844 = vld [vmem:[%s5781 + $0x1f0] sm:$0xff]
        %v5845 = vld [vmem:[%s5781 + $0x1f8] sm:$0xff]
        %v5846 = vrot.slane %v4190, 2
        %v5847 = vrot.slane %v4192, 2
        %v5848 = vsel %vm2755, %v5846, %v5847
        %v5849 = vrot.slane %v4191, 2
        %v5850 = vrot.slane %v4193, 2
        %v5851 = vsel %vm2755, %v5849, %v5850
        %v5852 = vrot.slane %v4194, 2
        %v5853 = vsel %vm2755, %v5847, %v5852
        %v5854 = vrot.slane %v4195, 2
        %v5855 = vsel %vm2755, %v5850, %v5854
        %v5856 = vrot.slane %v4196, 2
        %v5857 = vsel %vm2755, %v5852, %v5856
        %v5858 = vrot.slane %v4197, 2
        %v5859 = vsel %vm2755, %v5854, %v5858
        %v5860 = vrot.slane %v4198, 2
        %v5861 = vsel %vm2755, %v5856, %v5860
        %v5862 = vrot.slane %v4199, 2
        %v5863 = vsel %vm2755, %v5858, %v5862
        %v5864 = vrot.slane %v4200, 2
        %v5865 = vsel %vm2755, %v5860, %v5864
        %v5866 = vrot.slane %v4201, 2
        %v5867 = vsel %vm2755, %v5862, %v5866
        %v5868 = vrot.slane %v4202, 2
        %v5869 = vsel %vm2755, %v5864, %v5868
        %v5870 = vrot.slane %v4203, 2
        %v5871 = vsel %vm2755, %v5866, %v5870
        %v5872 = vrot.slane %v4204, 2
        %v5873 = vsel %vm2755, %v5868, %v5872
        %v5874 = vrot.slane %v4205, 2
        %v5875 = vsel %vm2755, %v5870, %v5874
        %v5876 = vrot.slane %v4206, 2
        %v5877 = vsel %vm2755, %v5872, %v5876
        %v5878 = vrot.slane %v4207, 2
        %v5879 = vsel %vm2755, %v5874, %v5878
        %v5880 = vrot.slane %v4208, 2
        %v5881 = vsel %vm2755, %v5876, %v5880
        %v5882 = vrot.slane %v4209, 2
        %v5883 = vsel %vm2755, %v5878, %v5882
        %v5884 = vrot.slane %v4210, 2
        %v5885 = vsel %vm2755, %v5880, %v5884
        %v5886 = vrot.slane %v4211, 2
        %v5887 = vsel %vm2755, %v5882, %v5886
        %v5888 = vrot.slane %v4212, 2
        %v5889 = vsel %vm2755, %v5884, %v5888
        %v5890 = vrot.slane %v4213, 2
        %v5891 = vsel %vm2755, %v5886, %v5890
        %v5892 = vrot.slane %v4214, 2
        %v5893 = vsel %vm2755, %v5888, %v5892
        %v5894 = vrot.slane %v4215, 2
        %v5895 = vsel %vm2755, %v5890, %v5894
        %v5896 = vrot.slane %v4216, 2
        %v5897 = vsel %vm2755, %v5892, %v5896
        %v5898 = vrot.slane %v4217, 2
        %v5899 = vsel %vm2755, %v5894, %v5898
        %v5992 = vunpack.c.l.b16 %v5782
        %v5993 = vunpack.c.h.b16 %v5782
        %v5994 = vunpack.c.l.b16 %v5783
        %v5995 = vunpack.c.h.b16 %v5783
        %v5996 = vunpack.c.l.b16 %v5784
        %v5997 = vunpack.c.h.b16 %v5784
        %v5998 = vunpack.c.l.b16 %v5785
        %v5999 = vunpack.c.h.b16 %v5785
        %v6000 = vunpack.c.l.b16 %v5786
        %v6001 = vunpack.c.h.b16 %v5786
        %v6002 = vunpack.c.l.b16 %v5787
        %v6003 = vunpack.c.h.b16 %v5787
        %v6004 = vunpack.c.l.b16 %v5788
        %v6005 = vunpack.c.h.b16 %v5788
        %v6006 = vunpack.c.l.b16 %v5789
        %v6007 = vunpack.c.h.b16 %v5789
        %v6008 = vunpack.c.l.b16 %v5790
        %v6009 = vunpack.c.h.b16 %v5790
        %v6010 = vunpack.c.l.b16 %v5791
        %v6011 = vunpack.c.h.b16 %v5791
        %v6012 = vunpack.c.l.b16 %v5792
        %v6013 = vunpack.c.h.b16 %v5792
        %v6014 = vunpack.c.l.b16 %v5793
        %v6015 = vunpack.c.h.b16 %v5793
        %v6016 = vunpack.c.l.b16 %v5794
        %v6017 = vunpack.c.h.b16 %v5794
        %v6018 = vunpack.c.l.b16 %v5795
        %v6019 = vunpack.c.h.b16 %v5795
        %v6020 = vunpack.c.l.b16 %v5796
        %v6021 = vunpack.c.h.b16 %v5796
        %v6022 = vunpack.c.l.b16 %v5797
        %v6023 = vunpack.c.h.b16 %v5797
        %v6024 = vunpack.c.l.b16 %v5798
        %v6025 = vunpack.c.h.b16 %v5798
        %v6026 = vunpack.c.l.b16 %v5799
        %v6027 = vunpack.c.h.b16 %v5799
        %v6028 = vunpack.c.l.b16 %v5800
        %v6029 = vunpack.c.h.b16 %v5800
        %v6030 = vunpack.c.l.b16 %v5801
        %v6031 = vunpack.c.h.b16 %v5801
        %v6032 = vunpack.c.l.b16 %v5802
        %v6033 = vunpack.c.h.b16 %v5802
        %v6034 = vunpack.c.l.b16 %v5803
        %v6035 = vunpack.c.h.b16 %v5803
        %v6036 = vunpack.c.l.b16 %v5804
        %v6037 = vunpack.c.h.b16 %v5804
        %v6038 = vunpack.c.l.b16 %v5805
        %v6039 = vunpack.c.h.b16 %v5805
        %v6040 = vunpack.c.l.b16 %v5806
        %v6041 = vunpack.c.h.b16 %v5806
        %v6042 = vunpack.c.l.b16 %v5807
        %v6043 = vunpack.c.h.b16 %v5807
        %v6044 = vunpack.c.l.b16 %v5808
        %v6045 = vunpack.c.h.b16 %v5808
        %v6046 = vunpack.c.l.b16 %v5809
        %v6047 = vunpack.c.h.b16 %v5809
        %v6048 = vunpack.c.l.b16 %v5810
        %v6049 = vunpack.c.h.b16 %v5810
        %v6050 = vunpack.c.l.b16 %v5811
        %v6051 = vunpack.c.h.b16 %v5811
        %v6052 = vunpack.c.l.b16 %v5812
        %v6053 = vunpack.c.h.b16 %v5812
        %v6054 = vunpack.c.l.b16 %v5813
        %v6055 = vunpack.c.h.b16 %v5813
        %v6056 = vunpack.c.l.b16 %v5814
        %v6057 = vunpack.c.h.b16 %v5814
        %v6058 = vunpack.c.l.b16 %v5815
        %v6059 = vunpack.c.h.b16 %v5815
        %v6060 = vunpack.c.l.b16 %v5816
        %v6061 = vunpack.c.h.b16 %v5816
        %v6062 = vunpack.c.l.b16 %v5817
        %v6063 = vunpack.c.h.b16 %v5817
        %v6064 = vunpack.c.l.b16 %v5818
        %v6065 = vunpack.c.h.b16 %v5818
        %v6066 = vunpack.c.l.b16 %v5819
        %v6067 = vunpack.c.h.b16 %v5819
        %v6068 = vunpack.c.l.b16 %v5820
        %v6069 = vunpack.c.h.b16 %v5820
        %v6070 = vunpack.c.l.b16 %v5821
        %v6071 = vunpack.c.h.b16 %v5821
        %v6072 = vunpack.c.l.b16 %v5822
        %v6073 = vunpack.c.h.b16 %v5822
        %v6074 = vunpack.c.l.b16 %v5823
        %v6075 = vunpack.c.h.b16 %v5823
        %v6076 = vunpack.c.l.b16 %v5824
        %v6077 = vunpack.c.h.b16 %v5824
        %v6078 = vunpack.c.l.b16 %v5825
        %v6079 = vunpack.c.h.b16 %v5825
        %v6080 = vunpack.c.l.b16 %v5826
        %v6081 = vunpack.c.h.b16 %v5826
        %v6082 = vunpack.c.l.b16 %v5827
        %v6083 = vunpack.c.h.b16 %v5827
        %v6084 = vunpack.c.l.b16 %v5828
        %v6085 = vunpack.c.h.b16 %v5828
        %v6086 = vunpack.c.l.b16 %v5829
        %v6087 = vunpack.c.h.b16 %v5829
        %v6088 = vunpack.c.l.b16 %v5830
        %v6089 = vunpack.c.h.b16 %v5830
        %v6090 = vunpack.c.l.b16 %v5831
        %v6091 = vunpack.c.h.b16 %v5831
        %v6092 = vunpack.c.l.b16 %v5832
        %v6093 = vunpack.c.h.b16 %v5832
        %v6094 = vunpack.c.l.b16 %v5833
        %v6095 = vunpack.c.h.b16 %v5833
        %v6096 = vunpack.c.l.b16 %v5834
        %v6097 = vunpack.c.h.b16 %v5834
        %v6098 = vunpack.c.l.b16 %v5835
        %v6099 = vunpack.c.h.b16 %v5835
        %v6100 = vunpack.c.l.b16 %v5836
        %v6101 = vunpack.c.h.b16 %v5836
        %v6102 = vunpack.c.l.b16 %v5837
        %v6103 = vunpack.c.h.b16 %v5837
        %v6104 = vunpack.c.l.b16 %v5838
        %v6105 = vunpack.c.h.b16 %v5838
        %v6106 = vunpack.c.l.b16 %v5839
        %v6107 = vunpack.c.h.b16 %v5839
        %v6108 = vunpack.c.l.b16 %v5840
        %v6109 = vunpack.c.h.b16 %v5840
        %v6110 = vunpack.c.l.b16 %v5841
        %v6111 = vunpack.c.h.b16 %v5841
        %v6112 = vunpack.c.l.b16 %v5842
        %v6113 = vunpack.c.h.b16 %v5842
        %v6114 = vunpack.c.l.b16 %v5843
        %v6115 = vunpack.c.h.b16 %v5843
        %v6116 = vunpack.c.l.b16 %v5844
        %v6117 = vunpack.c.h.b16 %v5844
        %v6118 = vunpack.c.l.b16 %v5845
        %v6119 = vunpack.c.h.b16 %v5845
        %v6120 = vpack.c.b16 %v5996, %v5992
        %v6121 = vpack.c.b16 %v5997, %v5993
        %v6122 = vpack.c.b16 %v5998, %v5994
        %v6123 = vpack.c.b16 %v5999, %v5995
        %v6124 = vpack.c.b16 %v6004, %v6000
        %v6125 = vpack.c.b16 %v6005, %v6001
        %v6126 = vpack.c.b16 %v6006, %v6002
        %v6127 = vpack.c.b16 %v6007, %v6003
        %v6128 = vpack.c.b16 %v6012, %v6008
        %v6129 = vpack.c.b16 %v6013, %v6009
        %v6130 = vpack.c.b16 %v6014, %v6010
        %v6131 = vpack.c.b16 %v6015, %v6011
        %v6132 = vpack.c.b16 %v6020, %v6016
        %v6133 = vpack.c.b16 %v6021, %v6017
        %v6134 = vpack.c.b16 %v6022, %v6018
        %v6135 = vpack.c.b16 %v6023, %v6019
        %v6136 = vpack.c.b16 %v6028, %v6024
        %v6137 = vpack.c.b16 %v6029, %v6025
        %v6138 = vpack.c.b16 %v6030, %v6026
        %v6139 = vpack.c.b16 %v6031, %v6027
        %v6140 = vpack.c.b16 %v6036, %v6032
        %v6141 = vpack.c.b16 %v6037, %v6033
        %v6142 = vpack.c.b16 %v6038, %v6034
        %v6143 = vpack.c.b16 %v6039, %v6035
        %v6144 = vpack.c.b16 %v6044, %v6040
        %v6145 = vpack.c.b16 %v6045, %v6041
        %v6146 = vpack.c.b16 %v6046, %v6042
        %v6147 = vpack.c.b16 %v6047, %v6043
        %v6148 = vpack.c.b16 %v6052, %v6048
        %v6149 = vpack.c.b16 %v6053, %v6049
        %v6150 = vpack.c.b16 %v6054, %v6050
        %v6151 = vpack.c.b16 %v6055, %v6051
        %v6152 = vpack.c.b16 %v6060, %v6056
        %v6153 = vpack.c.b16 %v6061, %v6057
        %v6154 = vpack.c.b16 %v6062, %v6058
        %v6155 = vpack.c.b16 %v6063, %v6059
        %v6156 = vpack.c.b16 %v6068, %v6064
        %v6157 = vpack.c.b16 %v6069, %v6065
        %v6158 = vpack.c.b16 %v6070, %v6066
        %v6159 = vpack.c.b16 %v6071, %v6067
        %v6160 = vpack.c.b16 %v6076, %v6072
        %v6161 = vpack.c.b16 %v6077, %v6073
        %v6162 = vpack.c.b16 %v6078, %v6074
        %v6163 = vpack.c.b16 %v6079, %v6075
        %v6164 = vpack.c.b16 %v6084, %v6080
        %v6165 = vpack.c.b16 %v6085, %v6081
        %v6166 = vpack.c.b16 %v6086, %v6082
        %v6167 = vpack.c.b16 %v6087, %v6083
        %v6168 = vpack.c.b16 %v6092, %v6088
        %v6169 = vpack.c.b16 %v6093, %v6089
        %v6170 = vpack.c.b16 %v6094, %v6090
        %v6171 = vpack.c.b16 %v6095, %v6091
        %v6172 = vpack.c.b16 %v6100, %v6096
        %v6173 = vpack.c.b16 %v6101, %v6097
        %v6174 = vpack.c.b16 %v6102, %v6098
        %v6175 = vpack.c.b16 %v6103, %v6099
        %v6176 = vpack.c.b16 %v6108, %v6104
        %v6177 = vpack.c.b16 %v6109, %v6105
        %v6178 = vpack.c.b16 %v6110, %v6106
        %v6179 = vpack.c.b16 %v6111, %v6107
        %v6180 = vpack.c.b16 %v6116, %v6112
        %v6181 = vpack.c.b16 %v6117, %v6113
        %v6182 = vpack.c.b16 %v6118, %v6114
        %v6183 = vpack.c.b16 %v6119, %v6115
        %6248 = vmatprep.subr.bf16.mxu0 %v6121
        %6249 = vmatpush1.bf16.msra.mxu0 %v6120
        %6250 = vmatprep.subr.bf16.mxu0 %v6125
        %6251 = vmatpush1.bf16.msra.mxu0 %v6124
        %6252 = vmatprep.subr.bf16.mxu0 %v6129
        %6253 = vmatpush1.bf16.msra.mxu0 %v6128
        %6254 = vmatprep.subr.bf16.mxu0 %v6133
        %6255 = vmatpush1.bf16.msra.mxu0 %v6132
        %6256 = vmatprep.subr.bf16.mxu0 %v6137
        %6257 = vmatpush1.bf16.msra.mxu0 %v6136
        %6258 = vmatprep.subr.bf16.mxu0 %v6141
        %6259 = vmatpush1.bf16.msra.mxu0 %v6140
        %6260 = vmatprep.subr.bf16.mxu0 %v6145
        %6261 = vmatpush1.bf16.msra.mxu0 %v6144
        %6262 = vmatprep.subr.bf16.mxu0 %v6149
        %6263 = vmatpush1.bf16.msra.mxu0 %v6148
        %6264 = vmatprep.subr.bf16.mxu0 %v6153
        %6265 = vmatpush1.bf16.msra.mxu0 %v6152
        %6266 = vmatprep.subr.bf16.mxu0 %v6157
        %6267 = vmatpush1.bf16.msra.mxu0 %v6156
        %6268 = vmatprep.subr.bf16.mxu0 %v6161
        %6269 = vmatpush1.bf16.msra.mxu0 %v6160
        %6270 = vmatprep.subr.bf16.mxu0 %v6165
        %6271 = vmatpush1.bf16.msra.mxu0 %v6164
        %6272 = vmatprep.subr.bf16.mxu0 %v6169
        %6273 = vmatpush1.bf16.msra.mxu0 %v6168
        %6274 = vmatprep.subr.bf16.mxu0 %v6173
        %6275 = vmatpush1.bf16.msra.mxu0 %v6172
        %6276 = vmatprep.subr.bf16.mxu0 %v6177
        %6277 = vmatpush1.bf16.msra.mxu0 %v6176
        %6278 = vmatprep.subr.bf16.mxu0 %v6181
        %6279 = vmatpush1.bf16.msra.mxu0 %v6180
        %6280 = vmatprep.mubr.bf16.mxu0 %v5851
        %6281 = vmatmul.mubr.bf16.gmra.mrb[0].mxu0 %v5848
        %v6282 = vpop.f32.mrb[0].mxu0
        %v6283 = vadd.f32 0.0, %v6282
        %v6284 = vpop.f32.mrb[0].mxu0
        %v6285 = vadd.f32 0.0, %v6284
        %v6286 = vpop.f32.mrb[0].mxu0
        %v6287 = vadd.f32 0.0, %v6286
        %v6288 = vpop.f32.mrb[0].mxu0
        %v6289 = vadd.f32 0.0, %v6288
        %6290 = vmatprep.mubr.bf16.mxu0 %v5855
        %6291 = vmatmul.mubr.bf16.gmra.mrb[0].mxu0 %v5853
        %v6292 = vpop.f32.mrb[0].mxu0
        %v6293 = vadd.f32 0.0, %v6292
        %v6294 = vpop.f32.mrb[0].mxu0
        %v6295 = vadd.f32 0.0, %v6294
        %v6296 = vpop.f32.mrb[0].mxu0
        %v6297 = vadd.f32 0.0, %v6296
        %v6298 = vpop.f32.mrb[0].mxu0
        %v6299 = vadd.f32 0.0, %v6298
        %6300 = vmatprep.mubr.bf16.mxu0 %v5859
        %6301 = vmatmul.mubr.bf16.gmra.mrb[0].mxu0 %v5857
        %v6302 = vpop.f32.mrb[0].mxu0
        %v6303 = vadd.f32 0.0, %v6302
        %v6304 = vpop.f32.mrb[0].mxu0
        %v6305 = vadd.f32 0.0, %v6304
        %v6306 = vpop.f32.mrb[0].mxu0
        %v6307 = vadd.f32 0.0, %v6306
        %v6308 = vpop.f32.mrb[0].mxu0
        %v6309 = vadd.f32 0.0, %v6308
        %6310 = vmatprep.mubr.bf16.mxu0 %v5863
        %6311 = vmatmul.mubr.bf16.gmra.mrb[0].mxu0 %v5861
        %v6312 = vpop.f32.mrb[0].mxu0
        %v6313 = vadd.f32 0.0, %v6312
        %v6314 = vpop.f32.mrb[0].mxu0
        %v6315 = vadd.f32 0.0, %v6314
        %v6316 = vpop.f32.mrb[0].mxu0
        %v6317 = vadd.f32 0.0, %v6316
        %v6318 = vpop.f32.mrb[0].mxu0
        %v6319 = vadd.f32 0.0, %v6318
        %6320 = vmatprep.mubr.bf16.mxu0 %v5867
        %6321 = vmatmul.mubr.bf16.gmra.mrb[0].mxu0 %v5865
        %v6322 = vpop.f32.mrb[0].mxu0
        %v6323 = vadd.f32 0.0, %v6322
        %v6324 = vpop.f32.mrb[0].mxu0
        %v6325 = vadd.f32 0.0, %v6324
        %v6326 = vpop.f32.mrb[0].mxu0
        %v6327 = vadd.f32 0.0, %v6326
        %v6328 = vpop.f32.mrb[0].mxu0
        %v6329 = vadd.f32 0.0, %v6328
        %6330 = vmatprep.mubr.bf16.mxu0 %v5871
        %6331 = vmatmul.mubr.bf16.gmra.mrb[0].mxu0 %v5869
        %v6332 = vpop.f32.mrb[0].mxu0
        %v6333 = vadd.f32 0.0, %v6332
        %v6334 = vpop.f32.mrb[0].mxu0
        %v6335 = vadd.f32 0.0, %v6334
        %v6336 = vpop.f32.mrb[0].mxu0
        %v6337 = vadd.f32 0.0, %v6336
        %v6338 = vpop.f32.mrb[0].mxu0
        %v6339 = vadd.f32 0.0, %v6338
        %6340 = vmatprep.mubr.bf16.mxu0 %v5875
        %6341 = vmatmul.mubr.bf16.gmra.mrb[0].mxu0 %v5873
        %v6342 = vpop.f32.mrb[0].mxu0
        %v6343 = vadd.f32 0.0, %v6342
        %v6344 = vpop.f32.mrb[0].mxu0
        %v6345 = vadd.f32 0.0, %v6344
        %v6346 = vpop.f32.mrb[0].mxu0
        %v6347 = vadd.f32 0.0, %v6346
        %v6348 = vpop.f32.mrb[0].mxu0
        %v6349 = vadd.f32 0.0, %v6348
        %6350 = vmatprep.mubr.bf16.mxu0 %v5879
        %6351 = vmatmul.mubr.bf16.gmra.mrb[0].mxu0 %v5877
        %v6352 = vpop.f32.mrb[0].mxu0
        %v6353 = vadd.f32 0.0, %v6352
        %v6354 = vpop.f32.mrb[0].mxu0
        %v6355 = vadd.f32 0.0, %v6354
        %v6356 = vpop.f32.mrb[0].mxu0
        %v6357 = vadd.f32 0.0, %v6356
        %v6358 = vpop.f32.mrb[0].mxu0
        %v6359 = vadd.f32 0.0, %v6358
        %6360 = vmatprep.mubr.bf16.mxu0 %v5883
        %6361 = vmatmul.mubr.bf16.gmra.mrb[0].mxu0 %v5881
        %v6362 = vpop.f32.mrb[0].mxu0
        %v6363 = vadd.f32 0.0, %v6362
        %v6364 = vpop.f32.mrb[0].mxu0
        %v6365 = vadd.f32 0.0, %v6364
        %v6366 = vpop.f32.mrb[0].mxu0
        %v6367 = vadd.f32 0.0, %v6366
        %v6368 = vpop.f32.mrb[0].mxu0
        %v6369 = vadd.f32 0.0, %v6368
        %6370 = vmatprep.mubr.bf16.mxu0 %v5887
        %6371 = vmatmul.mubr.bf16.gmra.mrb[0].mxu0 %v5885
        %v6372 = vpop.f32.mrb[0].mxu0
        %v6373 = vadd.f32 0.0, %v6372
        %v6374 = vpop.f32.mrb[0].mxu0
        %v6375 = vadd.f32 0.0, %v6374
        %v6376 = vpop.f32.mrb[0].mxu0
        %v6377 = vadd.f32 0.0, %v6376
        %v6378 = vpop.f32.mrb[0].mxu0
        %v6379 = vadd.f32 0.0, %v6378
        %6380 = vmatprep.mubr.bf16.mxu0 %v5891
        %6381 = vmatmul.mubr.bf16.gmra.mrb[0].mxu0 %v5889
        %v6382 = vpop.f32.mrb[0].mxu0
        %v6383 = vadd.f32 0.0, %v6382
        %v6384 = vpop.f32.mrb[0].mxu0
        %v6385 = vadd.f32 0.0, %v6384
        %v6386 = vpop.f32.mrb[0].mxu0
        %v6387 = vadd.f32 0.0, %v6386
        %v6388 = vpop.f32.mrb[0].mxu0
        %v6389 = vadd.f32 0.0, %v6388
        %6390 = vmatprep.mubr.bf16.mxu0 %v5895
        %6391 = vmatmul.mubr.bf16.gmra.mrb[0].mxu0 %v5893
        %v6392 = vpop.f32.mrb[0].mxu0
        %v6393 = vadd.f32 0.0, %v6392
        %v6394 = vpop.f32.mrb[0].mxu0
        %v6395 = vadd.f32 0.0, %v6394
        %v6396 = vpop.f32.mrb[0].mxu0
        %v6397 = vadd.f32 0.0, %v6396
        %v6398 = vpop.f32.mrb[0].mxu0
        %v6399 = vadd.f32 0.0, %v6398
        %6400 = vmatprep.mubr.bf16.mxu0 %v5899
        %6401 = vmatmul.mubr.bf16.gmra.mrb[0].mxu0 %v5897
        %v6402 = vpop.f32.mrb[0].mxu0
        %v6403 = vadd.f32 0.0, %v6402
        %v6404 = vpop.f32.mrb[0].mxu0
        %v6405 = vadd.f32 0.0, %v6404
        %v6406 = vpop.f32.mrb[0].mxu0
        %v6407 = vadd.f32 0.0, %v6406
        %v6408 = vpop.f32.mrb[0].mxu0
        %v6409 = vadd.f32 0.0, %v6408
        %6410 = vmatprep.mubr.bf16.mxu0 %v5898
        %6411 = vmatmul.mubr.bf16.gmra.mrb[0].mxu0 %v5896
        %v6412 = vpop.f32.mrb[0].mxu0
        %v6413 = vadd.f32 0.0, %v6412
        %v6414 = vpop.f32.mrb[0].mxu0
        %v6415 = vadd.f32 0.0, %v6414
        %v6416 = vpop.f32.mrb[0].mxu0
        %v6417 = vpop.f32.mrb[0].mxu0
        %6418 = vdwg.mxu0
        %6419 = vmatprep.subr.bf16.mxu0 %v6123
        %6420 = vmatpush1.bf16.msra.mxu0 %v6122
        %6421 = vmatprep.subr.bf16.mxu0 %v6127
        %6422 = vmatpush1.bf16.msra.mxu0 %v6126
        %6423 = vmatprep.subr.bf16.mxu0 %v6131
        %6424 = vmatpush1.bf16.msra.mxu0 %v6130
        %6425 = vmatprep.subr.bf16.mxu0 %v6135
        %6426 = vmatpush1.bf16.msra.mxu0 %v6134
        %6427 = vmatprep.subr.bf16.mxu0 %v6139
        %6428 = vmatpush1.bf16.msra.mxu0 %v6138
        %6429 = vmatprep.subr.bf16.mxu0 %v6143
        %6430 = vmatpush1.bf16.msra.mxu0 %v6142
        %6431 = vmatprep.subr.bf16.mxu0 %v6147
        %6432 = vmatpush1.bf16.msra.mxu0 %v6146
        %6433 = vmatprep.subr.bf16.mxu0 %v6151
        %6434 = vmatpush1.bf16.msra.mxu0 %v6150
        %6435 = vmatprep.subr.bf16.mxu0 %v6155
        %6436 = vmatpush1.bf16.msra.mxu0 %v6154
        %6437 = vmatprep.subr.bf16.mxu0 %v6159
        %6438 = vmatpush1.bf16.msra.mxu0 %v6158
        %6439 = vmatprep.subr.bf16.mxu0 %v6163
        %6440 = vmatpush1.bf16.msra.mxu0 %v6162
        %6441 = vmatprep.subr.bf16.mxu0 %v6167
        %6442 = vmatpush1.bf16.msra.mxu0 %v6166
        %6443 = vmatprep.subr.bf16.mxu0 %v6171
        %6444 = vmatpush1.bf16.msra.mxu0 %v6170
        %6445 = vmatprep.subr.bf16.mxu0 %v6175
        %6446 = vmatpush1.bf16.msra.mxu0 %v6174
        %6447 = vmatprep.subr.bf16.mxu0 %v6179
        %6448 = vmatpush1.bf16.msra.mxu0 %v6178
        %6449 = vmatprep.subr.bf16.mxu0 %v6183
        %6450 = vmatpush1.bf16.msra.mxu0 %v6182
        %6451 = vmatprep.mubr.bf16.mxu0 %v5851
        %6452 = vmatmul.mubr.bf16.gmra.mrb[0].mxu0 %v5848
        %v6453 = vpop.f32.mrb[0].mxu0
        %v6454 = vadd.f32 0.0, %v6453
        %v6455 = vpop.f32.mrb[0].mxu0
        %v6456 = vadd.f32 0.0, %v6455
        %v6457 = vpop.f32.mrb[0].mxu0
        %v6458 = vadd.f32 0.0, %v6457
        %v6459 = vpop.f32.mrb[0].mxu0
        %v6460 = vadd.f32 0.0, %v6459
        %6461 = vmatprep.mubr.bf16.mxu0 %v5855
        %6462 = vmatmul.mubr.bf16.gmra.mrb[0].mxu0 %v5853
        %v6463 = vpop.f32.mrb[0].mxu0
        %v6464 = vadd.f32 0.0, %v6463
        %v6465 = vpop.f32.mrb[0].mxu0
        %v6466 = vadd.f32 0.0, %v6465
        %v6467 = vpop.f32.mrb[0].mxu0
        %v6468 = vadd.f32 0.0, %v6467
        %v6469 = vpop.f32.mrb[0].mxu0
        %v6470 = vadd.f32 0.0, %v6469
        %6471 = vmatprep.mubr.bf16.mxu0 %v5859
        %6472 = vmatmul.mubr.bf16.gmra.mrb[0].mxu0 %v5857
        %v6473 = vpop.f32.mrb[0].mxu0
        %v6474 = vadd.f32 0.0, %v6473
        %v6475 = vpop.f32.mrb[0].mxu0
        %v6476 = vadd.f32 0.0, %v6475
        %v6477 = vpop.f32.mrb[0].mxu0
        %v6478 = vadd.f32 0.0, %v6477
        %v6479 = vpop.f32.mrb[0].mxu0
        %v6480 = vadd.f32 0.0, %v6479
        %6481 = vmatprep.mubr.bf16.mxu0 %v5863
        %6482 = vmatmul.mubr.bf16.gmra.mrb[0].mxu0 %v5861
        %v6483 = vpop.f32.mrb[0].mxu0
        %v6484 = vadd.f32 0.0, %v6483
        %v6485 = vpop.f32.mrb[0].mxu0
        %v6486 = vadd.f32 0.0, %v6485
        %v6487 = vpop.f32.mrb[0].mxu0
        %v6488 = vadd.f32 0.0, %v6487
        %v6489 = vpop.f32.mrb[0].mxu0
        %v6490 = vadd.f32 0.0, %v6489
        %6491 = vmatprep.mubr.bf16.mxu0 %v5867
        %6492 = vmatmul.mubr.bf16.gmra.mrb[0].mxu0 %v5865
        %v6493 = vpop.f32.mrb[0].mxu0
        %v6494 = vadd.f32 0.0, %v6493
        %v6495 = vpop.f32.mrb[0].mxu0
        %v6496 = vadd.f32 0.0, %v6495
        %v6497 = vpop.f32.mrb[0].mxu0
        %v6498 = vadd.f32 0.0, %v6497
        %v6499 = vpop.f32.mrb[0].mxu0
        %v6500 = vadd.f32 0.0, %v6499
        %6501 = vmatprep.mubr.bf16.mxu0 %v5871
        %6502 = vmatmul.mubr.bf16.gmra.mrb[0].mxu0 %v5869
        %v6503 = vpop.f32.mrb[0].mxu0
        %v6504 = vadd.f32 0.0, %v6503
        %v6505 = vpop.f32.mrb[0].mxu0
        %v6506 = vadd.f32 0.0, %v6505
        %v6507 = vpop.f32.mrb[0].mxu0
        %v6508 = vadd.f32 0.0, %v6507
        %v6509 = vpop.f32.mrb[0].mxu0
        %v6510 = vadd.f32 0.0, %v6509
        %6511 = vmatprep.mubr.bf16.mxu0 %v5875
        %6512 = vmatmul.mubr.bf16.gmra.mrb[0].mxu0 %v5873
        %v6513 = vpop.f32.mrb[0].mxu0
        %v6514 = vadd.f32 0.0, %v6513
        %v6515 = vpop.f32.mrb[0].mxu0
        %v6516 = vadd.f32 0.0, %v6515
        %v6517 = vpop.f32.mrb[0].mxu0
        %v6518 = vadd.f32 0.0, %v6517
        %v6519 = vpop.f32.mrb[0].mxu0
        %v6520 = vadd.f32 0.0, %v6519
        %6521 = vmatprep.mubr.bf16.mxu0 %v5879
        %6522 = vmatmul.mubr.bf16.gmra.mrb[0].mxu0 %v5877
        %v6523 = vpop.f32.mrb[0].mxu0
        %v6524 = vadd.f32 0.0, %v6523
        %v6525 = vpop.f32.mrb[0].mxu0
        %v6526 = vadd.f32 0.0, %v6525
        %v6527 = vpop.f32.mrb[0].mxu0
        %v6528 = vadd.f32 0.0, %v6527
        %v6529 = vpop.f32.mrb[0].mxu0
        %v6530 = vadd.f32 0.0, %v6529
        %6531 = vmatprep.mubr.bf16.mxu0 %v5883
        %6532 = vmatmul.mubr.bf16.gmra.mrb[0].mxu0 %v5881
        %v6533 = vpop.f32.mrb[0].mxu0
        %v6534 = vadd.f32 0.0, %v6533
        %v6535 = vpop.f32.mrb[0].mxu0
        %v6536 = vadd.f32 0.0, %v6535
        %v6537 = vpop.f32.mrb[0].mxu0
        %v6538 = vadd.f32 0.0, %v6537
        %v6539 = vpop.f32.mrb[0].mxu0
        %v6540 = vadd.f32 0.0, %v6539
        %6541 = vmatprep.mubr.bf16.mxu0 %v5887
        %6542 = vmatmul.mubr.bf16.gmra.mrb[0].mxu0 %v5885
        %v6543 = vpop.f32.mrb[0].mxu0
        %v6544 = vadd.f32 0.0, %v6543
        %v6545 = vpop.f32.mrb[0].mxu0
        %v6546 = vadd.f32 0.0, %v6545
        %v6547 = vpop.f32.mrb[0].mxu0
        %v6548 = vadd.f32 0.0, %v6547
        %v6549 = vpop.f32.mrb[0].mxu0
        %v6550 = vadd.f32 0.0, %v6549
        %6551 = vmatprep.mubr.bf16.mxu0 %v5891
        %6552 = vmatmul.mubr.bf16.gmra.mrb[0].mxu0 %v5889
        %v6553 = vpop.f32.mrb[0].mxu0
        %v6554 = vadd.f32 0.0, %v6553
        %v6555 = vpop.f32.mrb[0].mxu0
        %v6556 = vadd.f32 0.0, %v6555
        %v6557 = vpop.f32.mrb[0].mxu0
        %v6558 = vadd.f32 0.0, %v6557
        %v6559 = vpop.f32.mrb[0].mxu0
        %v6560 = vadd.f32 0.0, %v6559
        %6561 = vmatprep.mubr.bf16.mxu0 %v5895
        %6562 = vmatmul.mubr.bf16.gmra.mrb[0].mxu0 %v5893
        %v6563 = vpop.f32.mrb[0].mxu0
        %v6564 = vadd.f32 0.0, %v6563
        %v6565 = vpop.f32.mrb[0].mxu0
        %v6566 = vadd.f32 0.0, %v6565
        %v6567 = vpop.f32.mrb[0].mxu0
        %v6568 = vadd.f32 0.0, %v6567
        %v6569 = vpop.f32.mrb[0].mxu0
        %v6570 = vadd.f32 0.0, %v6569
        %6571 = vmatprep.mubr.bf16.mxu0 %v5899
        %6572 = vmatmul.mubr.bf16.gmra.mrb[0].mxu0 %v5897
        %v6573 = vpop.f32.mrb[0].mxu0
        %v6574 = vadd.f32 0.0, %v6573
        %v6575 = vpop.f32.mrb[0].mxu0
        %v6576 = vadd.f32 0.0, %v6575
        %v6577 = vpop.f32.mrb[0].mxu0
        %v6578 = vadd.f32 0.0, %v6577
        %v6579 = vpop.f32.mrb[0].mxu0
        %v6580 = vadd.f32 0.0, %v6579
        %6581 = vmatprep.mubr.bf16.mxu0 %v5898
        %6582 = vmatmul.mubr.bf16.gmra.mrb[0].mxu0 %v5896
        %v6583 = vpop.f32.mrb[0].mxu0
        %v6584 = vadd.f32 0.0, %v6583
        %v6585 = vpop.f32.mrb[0].mxu0
        %v6586 = vadd.f32 0.0, %v6585
        %v6587 = vpop.f32.mrb[0].mxu0
        %v6588 = vpop.f32.mrb[0].mxu0
        %6589 = vdwg.mxu0
        %v6590 = vadd.f32 %v5474, %v6283
        %v6591 = vadd.f32 %v5476, %v6285
        %v6592 = vadd.f32 %v5645, %v6454
        %v6593 = vadd.f32 %v5647, %v6456
        %v6594 = vadd.f32 %v5478, %v6287
        %v6595 = vadd.f32 %v5480, %v6289
        %v6596 = vadd.f32 %v5649, %v6458
        %v6597 = vadd.f32 %v5651, %v6460
        %v6598 = vadd.f32 %v5484, %v6293
        %v6599 = vadd.f32 %v5486, %v6295
        %v6600 = vadd.f32 %v5655, %v6464
        %v6601 = vadd.f32 %v5657, %v6466
        %v6602 = vadd.f32 %v5488, %v6297
        %v6603 = vadd.f32 %v5490, %v6299
        %v6604 = vadd.f32 %v5659, %v6468
        %v6605 = vadd.f32 %v5661, %v6470
        %v6606 = vadd.f32 %v5494, %v6303
        %v6607 = vadd.f32 %v5496, %v6305
        %v6608 = vadd.f32 %v5665, %v6474
        %v6609 = vadd.f32 %v5667, %v6476
        %v6610 = vadd.f32 %v5498, %v6307
        %v6611 = vadd.f32 %v5500, %v6309
        %v6612 = vadd.f32 %v5669, %v6478
        %v6613 = vadd.f32 %v5671, %v6480
        %v6614 = vadd.f32 %v5504, %v6313
        %v6615 = vadd.f32 %v5506, %v6315
        %v6616 = vadd.f32 %v5675, %v6484
        %v6617 = vadd.f32 %v5677, %v6486
        %v6618 = vadd.f32 %v5508, %v6317
        %v6619 = vadd.f32 %v5510, %v6319
        %v6620 = vadd.f32 %v5679, %v6488
        %v6621 = vadd.f32 %v5681, %v6490
        %v6622 = vadd.f32 %v5514, %v6323
        %v6623 = vadd.f32 %v5516, %v6325
        %v6624 = vadd.f32 %v5685, %v6494
        %v6625 = vadd.f32 %v5687, %v6496
        %v6626 = vadd.f32 %v5518, %v6327
        %v6627 = vadd.f32 %v5520, %v6329
        %v6628 = vadd.f32 %v5689, %v6498
        %v6629 = vadd.f32 %v5691, %v6500
        %v6630 = vadd.f32 %v5524, %v6333
        %v6631 = vadd.f32 %v5526, %v6335
        %v6632 = vadd.f32 %v5695, %v6504
        %v6633 = vadd.f32 %v5697, %v6506
        %v6634 = vadd.f32 %v5528, %v6337
        %v6635 = vadd.f32 %v5530, %v6339
        %v6636 = vadd.f32 %v5699, %v6508
        %v6637 = vadd.f32 %v5701, %v6510
        %v6638 = vadd.f32 %v5534, %v6343
        %v6639 = vadd.f32 %v5536, %v6345
        %v6640 = vadd.f32 %v5705, %v6514
        %v6641 = vadd.f32 %v5707, %v6516
        %v6642 = vadd.f32 %v5538, %v6347
        %v6643 = vadd.f32 %v5540, %v6349
        %v6644 = vadd.f32 %v5709, %v6518
        %v6645 = vadd.f32 %v5711, %v6520
        %v6646 = vadd.f32 %v5544, %v6353
        %v6647 = vadd.f32 %v5546, %v6355
        %v6648 = vadd.f32 %v5715, %v6524
        %v6649 = vadd.f32 %v5717, %v6526
        %v6650 = vadd.f32 %v5548, %v6357
        %v6651 = vadd.f32 %v5550, %v6359
        %v6652 = vadd.f32 %v5719, %v6528
        %v6653 = vadd.f32 %v5721, %v6530
        %v6654 = vadd.f32 %v5554, %v6363
        %v6655 = vadd.f32 %v5556, %v6365
        %v6656 = vadd.f32 %v5725, %v6534
        %v6657 = vadd.f32 %v5727, %v6536
        %v6658 = vadd.f32 %v5558, %v6367
        %v6659 = vadd.f32 %v5560, %v6369
        %v6660 = vadd.f32 %v5729, %v6538
        %v6661 = vadd.f32 %v5731, %v6540
        %v6662 = vadd.f32 %v5564, %v6373
        %v6663 = vadd.f32 %v5566, %v6375
        %v6664 = vadd.f32 %v5735, %v6544
        %v6665 = vadd.f32 %v5737, %v6546
        %v6666 = vadd.f32 %v5568, %v6377
        %v6667 = vadd.f32 %v5570, %v6379
        %v6668 = vadd.f32 %v5739, %v6548
        %v6669 = vadd.f32 %v5741, %v6550
        %v6670 = vadd.f32 %v5574, %v6383
        %v6671 = vadd.f32 %v5576, %v6385
        %v6672 = vadd.f32 %v5745, %v6554
        %v6673 = vadd.f32 %v5747, %v6556
        %v6674 = vadd.f32 %v5578, %v6387
        %v6675 = vadd.f32 %v5580, %v6389
        %v6676 = vadd.f32 %v5749, %v6558
        %v6677 = vadd.f32 %v5751, %v6560
        %v6678 = vadd.f32 %v5584, %v6393
        %v6679 = vadd.f32 %v5586, %v6395
        %v6680 = vadd.f32 %v5755, %v6564
        %v6681 = vadd.f32 %v5757, %v6566
        %v6682 = vadd.f32 %v5588, %v6397
        %v6683 = vadd.f32 %v5590, %v6399
        %v6684 = vadd.f32 %v5759, %v6568
        %v6685 = vadd.f32 %v5761, %v6570
        %v6686 = vadd.f32 %v5594, %v6403
        %v6687 = vadd.f32 %v5596, %v6405
        %v6688 = vadd.f32 %v5765, %v6574
        %v6689 = vadd.f32 %v5767, %v6576
        %v6690 = vadd.f32 %v5598, %v6407
        %v6691 = vadd.f32 %v5600, %v6409
        %v6692 = vadd.f32 %v5769, %v6578
        %v6693 = vadd.f32 %v5771, %v6580
        %v6694 = vadd.f32 %v5604, %v6413
        %v6695 = vadd.f32 %v5606, %v6415
        %v6696 = vadd.f32 %v5775, %v6584
        %v6697 = vadd.f32 %v5777, %v6586
        %v6698 = vpack.c.bf16 %v4188, %v4186
        %v6699 = vpack.c.bf16 %v4189, %v4187
        %s6700 = scalar_lea.vmem [#allocation8], 1536
        %v6701 = vld [vmem:[%s6700] sm:$0xff]
        %v6702 = vld [vmem:[%s6700 + $0x8] sm:$0xff]
        %v6703 = vld [vmem:[%s6700 + $0x10] sm:$0xff]
        %v6704 = vld [vmem:[%s6700 + $0x18] sm:$0xff]
        %v6705 = vld [vmem:[%s6700 + $0x20] sm:$0xff]
        %v6706 = vld [vmem:[%s6700 + $0x28] sm:$0xff]
        %v6707 = vld [vmem:[%s6700 + $0x30] sm:$0xff]
        %v6708 = vld [vmem:[%s6700 + $0x38] sm:$0xff]
        %v6709 = vld [vmem:[%s6700 + $0x40] sm:$0xff]
        %v6710 = vld [vmem:[%s6700 + $0x48] sm:$0xff]
        %v6711 = vld [vmem:[%s6700 + $0x50] sm:$0xff]
        %v6712 = vld [vmem:[%s6700 + $0x58] sm:$0xff]
        %v6713 = vld [vmem:[%s6700 + $0x60] sm:$0xff]
        %v6714 = vld [vmem:[%s6700 + $0x68] sm:$0xff]
        %v6715 = vld [vmem:[%s6700 + $0x70] sm:$0xff]
        %v6716 = vld [vmem:[%s6700 + $0x78] sm:$0xff]
        %v6717 = vld [vmem:[%s6700 + $0x80] sm:$0xff]
        %v6718 = vld [vmem:[%s6700 + $0x88] sm:$0xff]
        %v6719 = vld [vmem:[%s6700 + $0x90] sm:$0xff]
        %v6720 = vld [vmem:[%s6700 + $0x98] sm:$0xff]
        %v6721 = vld [vmem:[%s6700 + $0xa0] sm:$0xff]
        %v6722 = vld [vmem:[%s6700 + $0xa8] sm:$0xff]
        %v6723 = vld [vmem:[%s6700 + $0xb0] sm:$0xff]
        %v6724 = vld [vmem:[%s6700 + $0xb8] sm:$0xff]
        %v6725 = vld [vmem:[%s6700 + $0xc0] sm:$0xff]
        %v6726 = vld [vmem:[%s6700 + $0xc8] sm:$0xff]
        %v6727 = vld [vmem:[%s6700 + $0xd0] sm:$0xff]
        %v6728 = vld [vmem:[%s6700 + $0xd8] sm:$0xff]
        %v6729 = vld [vmem:[%s6700 + $0xe0] sm:$0xff]
        %v6730 = vld [vmem:[%s6700 + $0xe8] sm:$0xff]
        %v6731 = vld [vmem:[%s6700 + $0xf0] sm:$0xff]
        %v6732 = vld [vmem:[%s6700 + $0xf8] sm:$0xff]
        %v6733 = vld [vmem:[%s6700 + $0x100] sm:$0xff]
        %v6734 = vld [vmem:[%s6700 + $0x108] sm:$0xff]
        %v6735 = vld [vmem:[%s6700 + $0x110] sm:$0xff]
        %v6736 = vld [vmem:[%s6700 + $0x118] sm:$0xff]
        %v6737 = vld [vmem:[%s6700 + $0x120] sm:$0xff]
        %v6738 = vld [vmem:[%s6700 + $0x128] sm:$0xff]
        %v6739 = vld [vmem:[%s6700 + $0x130] sm:$0xff]
        %v6740 = vld [vmem:[%s6700 + $0x138] sm:$0xff]
        %v6741 = vld [vmem:[%s6700 + $0x140] sm:$0xff]
        %v6742 = vld [vmem:[%s6700 + $0x148] sm:$0xff]
        %v6743 = vld [vmem:[%s6700 + $0x150] sm:$0xff]
        %v6744 = vld [vmem:[%s6700 + $0x158] sm:$0xff]
        %v6745 = vld [vmem:[%s6700 + $0x160] sm:$0xff]
        %v6746 = vld [vmem:[%s6700 + $0x168] sm:$0xff]
        %v6747 = vld [vmem:[%s6700 + $0x170] sm:$0xff]
        %v6748 = vld [vmem:[%s6700 + $0x178] sm:$0xff]
        %v6749 = vld [vmem:[%s6700 + $0x180] sm:$0xff]
        %v6750 = vld [vmem:[%s6700 + $0x188] sm:$0xff]
        %v6751 = vld [vmem:[%s6700 + $0x190] sm:$0xff]
        %v6752 = vld [vmem:[%s6700 + $0x198] sm:$0xff]
        %v6753 = vld [vmem:[%s6700 + $0x1a0] sm:$0xff]
        %v6754 = vld [vmem:[%s6700 + $0x1a8] sm:$0xff]
        %v6755 = vld [vmem:[%s6700 + $0x1b0] sm:$0xff]
        %v6756 = vld [vmem:[%s6700 + $0x1b8] sm:$0xff]
        %v6757 = vld [vmem:[%s6700 + $0x1c0] sm:$0xff]
        %v6758 = vld [vmem:[%s6700 + $0x1c8] sm:$0xff]
        %v6759 = vld [vmem:[%s6700 + $0x1d0] sm:$0xff]
        %v6760 = vld [vmem:[%s6700 + $0x1d8] sm:$0xff]
        %v6761 = vld [vmem:[%s6700 + $0x1e0] sm:$0xff]
        %v6762 = vld [vmem:[%s6700 + $0x1e8] sm:$0xff]
        %v6763 = vld [vmem:[%s6700 + $0x1f0] sm:$0xff]
        %v6764 = vld [vmem:[%s6700 + $0x1f8] sm:$0xff]
        %vm6767 = vcmask 1044480
        %v6768 = vrot.slane %v4190, 3
        %v6769 = vrot.slane %v4192, 3
        %v6770 = vsel %vm6767, %v6768, %v6769
        %v6771 = vrot.slane %v4191, 3
        %v6772 = vrot.slane %v4193, 3
        %v6773 = vsel %vm6767, %v6771, %v6772
        %v6774 = vrot.slane %v4194, 3
        %v6775 = vsel %vm6767, %v6769, %v6774
        %v6776 = vrot.slane %v4195, 3
        %v6777 = vsel %vm6767, %v6772, %v6776
        %v6778 = vrot.slane %v4196, 3
        %v6779 = vsel %vm6767, %v6774, %v6778
        %v6780 = vrot.slane %v4197, 3
        %v6781 = vsel %vm6767, %v6776, %v6780
        %v6782 = vrot.slane %v4198, 3
        %v6783 = vsel %vm6767, %v6778, %v6782
        %v6784 = vrot.slane %v4199, 3
        %v6785 = vsel %vm6767, %v6780, %v6784
        %v6786 = vrot.slane %v4200, 3
        %v6787 = vsel %vm6767, %v6782, %v6786
        %v6788 = vrot.slane %v4201, 3
        %v6789 = vsel %vm6767, %v6784, %v6788
        %v6790 = vrot.slane %v4202, 3
        %v6791 = vsel %vm6767, %v6786, %v6790
        %v6792 = vrot.slane %v4203, 3
        %v6793 = vsel %vm6767, %v6788, %v6792
        %v6794 = vrot.slane %v4204, 3
        %v6795 = vsel %vm6767, %v6790, %v6794
        %v6796 = vrot.slane %v4205, 3
        %v6797 = vsel %vm6767, %v6792, %v6796
        %v6798 = vrot.slane %v4206, 3
        %v6799 = vsel %vm6767, %v6794, %v6798
        %v6800 = vrot.slane %v4207, 3
        %v6801 = vsel %vm6767, %v6796, %v6800
        %v6802 = vrot.slane %v4208, 3
        %v6803 = vsel %vm6767, %v6798, %v6802
        %v6804 = vrot.slane %v4209, 3
        %v6805 = vsel %vm6767, %v6800, %v6804
        %v6806 = vrot.slane %v4210, 3
        %v6807 = vsel %vm6767, %v6802, %v6806
        %v6808 = vrot.slane %v4211, 3
        %v6809 = vsel %vm6767, %v6804, %v6808
        %v6810 = vrot.slane %v4212, 3
        %v6811 = vsel %vm6767, %v6806, %v6810
        %v6812 = vrot.slane %v4213, 3
        %v6813 = vsel %vm6767, %v6808, %v6812
        %v6814 = vrot.slane %v4214, 3
        %v6815 = vsel %vm6767, %v6810, %v6814
        %v6816 = vrot.slane %v4215, 3
        %v6817 = vsel %vm6767, %v6812, %v6816
        %v6818 = vrot.slane %v6698, 3
        %v6819 = vsel %vm6767, %v6814, %v6818
        %v6820 = vrot.slane %v6699, 3
        %v6821 = vsel %vm6767, %v6816, %v6820
        %v6914 = vunpack.c.l.b16 %v6701
        %v6915 = vunpack.c.h.b16 %v6701
        %v6916 = vunpack.c.l.b16 %v6702
        %v6917 = vunpack.c.h.b16 %v6702
        %v6918 = vunpack.c.l.b16 %v6703
        %v6919 = vunpack.c.h.b16 %v6703
        %v6920 = vunpack.c.l.b16 %v6704
        %v6921 = vunpack.c.h.b16 %v6704
        %v6922 = vunpack.c.l.b16 %v6705
        %v6923 = vunpack.c.h.b16 %v6705
        %v6924 = vunpack.c.l.b16 %v6706
        %v6925 = vunpack.c.h.b16 %v6706
        %v6926 = vunpack.c.l.b16 %v6707
        %v6927 = vunpack.c.h.b16 %v6707
        %v6928 = vunpack.c.l.b16 %v6708
        %v6929 = vunpack.c.h.b16 %v6708
        %v6930 = vunpack.c.l.b16 %v6709
        %v6931 = vunpack.c.h.b16 %v6709
        %v6932 = vunpack.c.l.b16 %v6710
        %v6933 = vunpack.c.h.b16 %v6710
        %v6934 = vunpack.c.l.b16 %v6711
        %v6935 = vunpack.c.h.b16 %v6711
        %v6936 = vunpack.c.l.b16 %v6712
        %v6937 = vunpack.c.h.b16 %v6712
        %v6938 = vunpack.c.l.b16 %v6713
        %v6939 = vunpack.c.h.b16 %v6713
        %v6940 = vunpack.c.l.b16 %v6714
        %v6941 = vunpack.c.h.b16 %v6714
        %v6942 = vunpack.c.l.b16 %v6715
        %v6943 = vunpack.c.h.b16 %v6715
        %v6944 = vunpack.c.l.b16 %v6716
        %v6945 = vunpack.c.h.b16 %v6716
        %v6946 = vunpack.c.l.b16 %v6717
        %v6947 = vunpack.c.h.b16 %v6717
        %v6948 = vunpack.c.l.b16 %v6718
        %v6949 = vunpack.c.h.b16 %v6718
        %v6950 = vunpack.c.l.b16 %v6719
        %v6951 = vunpack.c.h.b16 %v6719
        %v6952 = vunpack.c.l.b16 %v6720
        %v6953 = vunpack.c.h.b16 %v6720
        %v6954 = vunpack.c.l.b16 %v6721
        %v6955 = vunpack.c.h.b16 %v6721
        %v6956 = vunpack.c.l.b16 %v6722
        %v6957 = vunpack.c.h.b16 %v6722
        %v6958 = vunpack.c.l.b16 %v6723
        %v6959 = vunpack.c.h.b16 %v6723
        %v6960 = vunpack.c.l.b16 %v6724
        %v6961 = vunpack.c.h.b16 %v6724
        %v6962 = vunpack.c.l.b16 %v6725
        %v6963 = vunpack.c.h.b16 %v6725
        %v6964 = vunpack.c.l.b16 %v6726
        %v6965 = vunpack.c.h.b16 %v6726
        %v6966 = vunpack.c.l.b16 %v6727
        %v6967 = vunpack.c.h.b16 %v6727
        %v6968 = vunpack.c.l.b16 %v6728
        %v6969 = vunpack.c.h.b16 %v6728
        %v6970 = vunpack.c.l.b16 %v6729
        %v6971 = vunpack.c.h.b16 %v6729
        %v6972 = vunpack.c.l.b16 %v6730
        %v6973 = vunpack.c.h.b16 %v6730
        %v6974 = vunpack.c.l.b16 %v6731
        %v6975 = vunpack.c.h.b16 %v6731
        %v6976 = vunpack.c.l.b16 %v6732
        %v6977 = vunpack.c.h.b16 %v6732
        %v6978 = vunpack.c.l.b16 %v6733
        %v6979 = vunpack.c.h.b16 %v6733
        %v6980 = vunpack.c.l.b16 %v6734
        %v6981 = vunpack.c.h.b16 %v6734
        %v6982 = vunpack.c.l.b16 %v6735
        %v6983 = vunpack.c.h.b16 %v6735
        %v6984 = vunpack.c.l.b16 %v6736
        %v6985 = vunpack.c.h.b16 %v6736
        %v6986 = vunpack.c.l.b16 %v6737
        %v6987 = vunpack.c.h.b16 %v6737
        %v6988 = vunpack.c.l.b16 %v6738
        %v6989 = vunpack.c.h.b16 %v6738
        %v6990 = vunpack.c.l.b16 %v6739
        %v6991 = vunpack.c.h.b16 %v6739
        %v6992 = vunpack.c.l.b16 %v6740
        %v6993 = vunpack.c.h.b16 %v6740
        %v6994 = vunpack.c.l.b16 %v6741
        %v6995 = vunpack.c.h.b16 %v6741
        %v6996 = vunpack.c.l.b16 %v6742
        %v6997 = vunpack.c.h.b16 %v6742
        %v6998 = vunpack.c.l.b16 %v6743
        %v6999 = vunpack.c.h.b16 %v6743
        %v7000 = vunpack.c.l.b16 %v6744
        %v7001 = vunpack.c.h.b16 %v6744
        %v7002 = vunpack.c.l.b16 %v6745
        %v7003 = vunpack.c.h.b16 %v6745
        %v7004 = vunpack.c.l.b16 %v6746
        %v7005 = vunpack.c.h.b16 %v6746
        %v7006 = vunpack.c.l.b16 %v6747
        %v7007 = vunpack.c.h.b16 %v6747
        %v7008 = vunpack.c.l.b16 %v6748
        %v7009 = vunpack.c.h.b16 %v6748
        %v7010 = vunpack.c.l.b16 %v6749
        %v7011 = vunpack.c.h.b16 %v6749
        %v7012 = vunpack.c.l.b16 %v6750
        %v7013 = vunpack.c.h.b16 %v6750
        %v7014 = vunpack.c.l.b16 %v6751
        %v7015 = vunpack.c.h.b16 %v6751
        %v7016 = vunpack.c.l.b16 %v6752
        %v7017 = vunpack.c.h.b16 %v6752
        %v7018 = vunpack.c.l.b16 %v6753
        %v7019 = vunpack.c.h.b16 %v6753
        %v7020 = vunpack.c.l.b16 %v6754
        %v7021 = vunpack.c.h.b16 %v6754
        %v7022 = vunpack.c.l.b16 %v6755
        %v7023 = vunpack.c.h.b16 %v6755
        %v7024 = vunpack.c.l.b16 %v6756
        %v7025 = vunpack.c.h.b16 %v6756
        %v7026 = vunpack.c.l.b16 %v6757
        %v7027 = vunpack.c.h.b16 %v6757
        %v7028 = vunpack.c.l.b16 %v6758
        %v7029 = vunpack.c.h.b16 %v6758
        %v7030 = vunpack.c.l.b16 %v6759
        %v7031 = vunpack.c.h.b16 %v6759
        %v7032 = vunpack.c.l.b16 %v6760
        %v7033 = vunpack.c.h.b16 %v6760
        %v7034 = vunpack.c.l.b16 %v6761
        %v7035 = vunpack.c.h.b16 %v6761
        %v7036 = vunpack.c.l.b16 %v6762
        %v7037 = vunpack.c.h.b16 %v6762
        %v7038 = vunpack.c.l.b16 %v6763
        %v7039 = vunpack.c.h.b16 %v6763
        %v7040 = vunpack.c.l.b16 %v6764
        %v7041 = vunpack.c.h.b16 %v6764
        %v7042 = vpack.c.b16 %v6918, %v6914
        %v7043 = vpack.c.b16 %v6919, %v6915
        %v7044 = vpack.c.b16 %v6920, %v6916
        %v7045 = vpack.c.b16 %v6921, %v6917
        %v7046 = vpack.c.b16 %v6926, %v6922
        %v7047 = vpack.c.b16 %v6927, %v6923
        %v7048 = vpack.c.b16 %v6928, %v6924
        %v7049 = vpack.c.b16 %v6929, %v6925
        %v7050 = vpack.c.b16 %v6934, %v6930
        %v7051 = vpack.c.b16 %v6935, %v6931
        %v7052 = vpack.c.b16 %v6936, %v6932
        %v7053 = vpack.c.b16 %v6937, %v6933
        %v7054 = vpack.c.b16 %v6942, %v6938
        %v7055 = vpack.c.b16 %v6943, %v6939
        %v7056 = vpack.c.b16 %v6944, %v6940
        %v7057 = vpack.c.b16 %v6945, %v6941
        %v7058 = vpack.c.b16 %v6950, %v6946
        %v7059 = vpack.c.b16 %v6951, %v6947
        %v7060 = vpack.c.b16 %v6952, %v6948
        %v7061 = vpack.c.b16 %v6953, %v6949
        %v7062 = vpack.c.b16 %v6958, %v6954
        %v7063 = vpack.c.b16 %v6959, %v6955
        %v7064 = vpack.c.b16 %v6960, %v6956
        %v7065 = vpack.c.b16 %v6961, %v6957
        %v7066 = vpack.c.b16 %v6966, %v6962
        %v7067 = vpack.c.b16 %v6967, %v6963
        %v7068 = vpack.c.b16 %v6968, %v6964
        %v7069 = vpack.c.b16 %v6969, %v6965
        %v7070 = vpack.c.b16 %v6974, %v6970
        %v7071 = vpack.c.b16 %v6975, %v6971
        %v7072 = vpack.c.b16 %v6976, %v6972
        %v7073 = vpack.c.b16 %v6977, %v6973
        %v7074 = vpack.c.b16 %v6982, %v6978
        %v7075 = vpack.c.b16 %v6983, %v6979
        %v7076 = vpack.c.b16 %v6984, %v6980
        %v7077 = vpack.c.b16 %v6985, %v6981
        %v7078 = vpack.c.b16 %v6990, %v6986
        %v7079 = vpack.c.b16 %v6991, %v6987
        %v7080 = vpack.c.b16 %v6992, %v6988
        %v7081 = vpack.c.b16 %v6993, %v6989
        %v7082 = vpack.c.b16 %v6998, %v6994
        %v7083 = vpack.c.b16 %v6999, %v6995
        %v7084 = vpack.c.b16 %v7000, %v6996
        %v7085 = vpack.c.b16 %v7001, %v6997
        %v7086 = vpack.c.b16 %v7006, %v7002
        %v7087 = vpack.c.b16 %v7007, %v7003
        %v7088 = vpack.c.b16 %v7008, %v7004
        %v7089 = vpack.c.b16 %v7009, %v7005
        %v7090 = vpack.c.b16 %v7014, %v7010
        %v7091 = vpack.c.b16 %v7015, %v7011
        %v7092 = vpack.c.b16 %v7016, %v7012
        %v7093 = vpack.c.b16 %v7017, %v7013
        %v7094 = vpack.c.b16 %v7022, %v7018
        %v7095 = vpack.c.b16 %v7023, %v7019
        %v7096 = vpack.c.b16 %v7024, %v7020
        %v7097 = vpack.c.b16 %v7025, %v7021
        %v7098 = vpack.c.b16 %v7030, %v7026
        %v7099 = vpack.c.b16 %v7031, %v7027
        %v7100 = vpack.c.b16 %v7032, %v7028
        %v7101 = vpack.c.b16 %v7033, %v7029
        %v7102 = vpack.c.b16 %v7038, %v7034
        %v7103 = vpack.c.b16 %v7039, %v7035
        %v7104 = vpack.c.b16 %v7040, %v7036
        %v7105 = vpack.c.b16 %v7041, %v7037
        %7170 = vmatprep.subr.bf16.mxu0 %v7043
        %7171 = vmatpush1.bf16.msra.mxu0 %v7042
        %7172 = vmatprep.subr.bf16.mxu0 %v7047
        %7173 = vmatpush1.bf16.msra.mxu0 %v7046
        %7174 = vmatprep.subr.bf16.mxu0 %v7051
        %7175 = vmatpush1.bf16.msra.mxu0 %v7050
        %7176 = vmatprep.subr.bf16.mxu0 %v7055
        %7177 = vmatpush1.bf16.msra.mxu0 %v7054
        %7178 = vmatprep.subr.bf16.mxu0 %v7059
        %7179 = vmatpush1.bf16.msra.mxu0 %v7058
        %7180 = vmatprep.subr.bf16.mxu0 %v7063
        %7181 = vmatpush1.bf16.msra.mxu0 %v7062
        %7182 = vmatprep.subr.bf16.mxu0 %v7067
        %7183 = vmatpush1.bf16.msra.mxu0 %v7066
        %7184 = vmatprep.subr.bf16.mxu0 %v7071
        %7185 = vmatpush1.bf16.msra.mxu0 %v7070
        %7186 = vmatprep.subr.bf16.mxu0 %v7075
        %7187 = vmatpush1.bf16.msra.mxu0 %v7074
        %7188 = vmatprep.subr.bf16.mxu0 %v7079
        %7189 = vmatpush1.bf16.msra.mxu0 %v7078
        %7190 = vmatprep.subr.bf16.mxu0 %v7083
        %7191 = vmatpush1.bf16.msra.mxu0 %v7082
        %7192 = vmatprep.subr.bf16.mxu0 %v7087
        %7193 = vmatpush1.bf16.msra.mxu0 %v7086
        %7194 = vmatprep.subr.bf16.mxu0 %v7091
        %7195 = vmatpush1.bf16.msra.mxu0 %v7090
        %7196 = vmatprep.subr.bf16.mxu0 %v7095
        %7197 = vmatpush1.bf16.msra.mxu0 %v7094
        %7198 = vmatprep.subr.bf16.mxu0 %v7099
        %7199 = vmatpush1.bf16.msra.mxu0 %v7098
        %7200 = vmatprep.subr.bf16.mxu0 %v7103
        %7201 = vmatpush1.bf16.msra.mxu0 %v7102
        %7202 = vmatprep.mubr.bf16.mxu0 %v6773
        %7203 = vmatmul.mubr.bf16.gmra.mrb[0].mxu0 %v6770
        %v7204 = vpop.f32.mrb[0].mxu0
        %v7205 = vadd.f32 0.0, %v7204
        %v7206 = vpop.f32.mrb[0].mxu0
        %v7207 = vadd.f32 0.0, %v7206
        %v7208 = vpop.f32.mrb[0].mxu0
        %v7209 = vadd.f32 0.0, %v7208
        %v7210 = vpop.f32.mrb[0].mxu0
        %v7211 = vadd.f32 0.0, %v7210
        %7212 = vmatprep.mubr.bf16.mxu0 %v6777
        %7213 = vmatmul.mubr.bf16.gmra.mrb[0].mxu0 %v6775
        %v7214 = vpop.f32.mrb[0].mxu0
        %v7215 = vadd.f32 0.0, %v7214
        %v7216 = vpop.f32.mrb[0].mxu0
        %v7217 = vadd.f32 0.0, %v7216
        %v7218 = vpop.f32.mrb[0].mxu0
        %v7219 = vadd.f32 0.0, %v7218
        %v7220 = vpop.f32.mrb[0].mxu0
        %v7221 = vadd.f32 0.0, %v7220
        %7222 = vmatprep.mubr.bf16.mxu0 %v6781
        %7223 = vmatmul.mubr.bf16.gmra.mrb[0].mxu0 %v6779
        %v7224 = vpop.f32.mrb[0].mxu0
        %v7225 = vadd.f32 0.0, %v7224
        %v7226 = vpop.f32.mrb[0].mxu0
        %v7227 = vadd.f32 0.0, %v7226
        %v7228 = vpop.f32.mrb[0].mxu0
        %v7229 = vadd.f32 0.0, %v7228
        %v7230 = vpop.f32.mrb[0].mxu0
        %v7231 = vadd.f32 0.0, %v7230
        %7232 = vmatprep.mubr.bf16.mxu0 %v6785
        %7233 = vmatmul.mubr.bf16.gmra.mrb[0].mxu0 %v6783
        %v7234 = vpop.f32.mrb[0].mxu0
        %v7235 = vadd.f32 0.0, %v7234
        %v7236 = vpop.f32.mrb[0].mxu0
        %v7237 = vadd.f32 0.0, %v7236
        %v7238 = vpop.f32.mrb[0].mxu0
        %v7239 = vadd.f32 0.0, %v7238
        %v7240 = vpop.f32.mrb[0].mxu0
        %v7241 = vadd.f32 0.0, %v7240
        %7242 = vmatprep.mubr.bf16.mxu0 %v6789
        %7243 = vmatmul.mubr.bf16.gmra.mrb[0].mxu0 %v6787
        %v7244 = vpop.f32.mrb[0].mxu0
        %v7245 = vadd.f32 0.0, %v7244
        %v7246 = vpop.f32.mrb[0].mxu0
        %v7247 = vadd.f32 0.0, %v7246
        %v7248 = vpop.f32.mrb[0].mxu0
        %v7249 = vadd.f32 0.0, %v7248
        %v7250 = vpop.f32.mrb[0].mxu0
        %v7251 = vadd.f32 0.0, %v7250
        %7252 = vmatprep.mubr.bf16.mxu0 %v6793
        %7253 = vmatmul.mubr.bf16.gmra.mrb[0].mxu0 %v6791
        %v7254 = vpop.f32.mrb[0].mxu0
        %v7255 = vadd.f32 0.0, %v7254
        %v7256 = vpop.f32.mrb[0].mxu0
        %v7257 = vadd.f32 0.0, %v7256
        %v7258 = vpop.f32.mrb[0].mxu0
        %v7259 = vadd.f32 0.0, %v7258
        %v7260 = vpop.f32.mrb[0].mxu0
        %v7261 = vadd.f32 0.0, %v7260
        %7262 = vmatprep.mubr.bf16.mxu0 %v6797
        %7263 = vmatmul.mubr.bf16.gmra.mrb[0].mxu0 %v6795
        %v7264 = vpop.f32.mrb[0].mxu0
        %v7265 = vadd.f32 0.0, %v7264
        %v7266 = vpop.f32.mrb[0].mxu0
        %v7267 = vadd.f32 0.0, %v7266
        %v7268 = vpop.f32.mrb[0].mxu0
        %v7269 = vadd.f32 0.0, %v7268
        %v7270 = vpop.f32.mrb[0].mxu0
        %v7271 = vadd.f32 0.0, %v7270
        %7272 = vmatprep.mubr.bf16.mxu0 %v6801
        %7273 = vmatmul.mubr.bf16.gmra.mrb[0].mxu0 %v6799
        %v7274 = vpop.f32.mrb[0].mxu0
        %v7275 = vadd.f32 0.0, %v7274
        %v7276 = vpop.f32.mrb[0].mxu0
        %v7277 = vadd.f32 0.0, %v7276
        %v7278 = vpop.f32.mrb[0].mxu0
        %v7279 = vadd.f32 0.0, %v7278
        %v7280 = vpop.f32.mrb[0].mxu0
        %v7281 = vadd.f32 0.0, %v7280
        %7282 = vmatprep.mubr.bf16.mxu0 %v6805
        %7283 = vmatmul.mubr.bf16.gmra.mrb[0].mxu0 %v6803
        %v7284 = vpop.f32.mrb[0].mxu0
        %v7285 = vadd.f32 0.0, %v7284
        %v7286 = vpop.f32.mrb[0].mxu0
        %v7287 = vadd.f32 0.0, %v7286
        %v7288 = vpop.f32.mrb[0].mxu0
        %v7289 = vadd.f32 0.0, %v7288
        %v7290 = vpop.f32.mrb[0].mxu0
        %v7291 = vadd.f32 0.0, %v7290
        %7292 = vmatprep.mubr.bf16.mxu0 %v6809
        %7293 = vmatmul.mubr.bf16.gmra.mrb[0].mxu0 %v6807
        %v7294 = vpop.f32.mrb[0].mxu0
        %v7295 = vadd.f32 0.0, %v7294
        %v7296 = vpop.f32.mrb[0].mxu0
        %v7297 = vadd.f32 0.0, %v7296
        %v7298 = vpop.f32.mrb[0].mxu0
        %v7299 = vadd.f32 0.0, %v7298
        %v7300 = vpop.f32.mrb[0].mxu0
        %v7301 = vadd.f32 0.0, %v7300
        %7302 = vmatprep.mubr.bf16.mxu0 %v6813
        %7303 = vmatmul.mubr.bf16.gmra.mrb[0].mxu0 %v6811
        %v7304 = vpop.f32.mrb[0].mxu0
        %v7305 = vadd.f32 0.0, %v7304
        %v7306 = vpop.f32.mrb[0].mxu0
        %v7307 = vadd.f32 0.0, %v7306
        %v7308 = vpop.f32.mrb[0].mxu0
        %v7309 = vadd.f32 0.0, %v7308
        %v7310 = vpop.f32.mrb[0].mxu0
        %v7311 = vadd.f32 0.0, %v7310
        %7312 = vmatprep.mubr.bf16.mxu0 %v6817
        %7313 = vmatmul.mubr.bf16.gmra.mrb[0].mxu0 %v6815
        %v7314 = vpop.f32.mrb[0].mxu0
        %v7315 = vadd.f32 0.0, %v7314
        %v7316 = vpop.f32.mrb[0].mxu0
        %v7317 = vadd.f32 0.0, %v7316
        %v7318 = vpop.f32.mrb[0].mxu0
        %v7319 = vadd.f32 0.0, %v7318
        %v7320 = vpop.f32.mrb[0].mxu0
        %v7321 = vadd.f32 0.0, %v7320
        %7322 = vmatprep.mubr.bf16.mxu0 %v6821
        %7323 = vmatmul.mubr.bf16.gmra.mrb[0].mxu0 %v6819
        %v7324 = vpop.f32.mrb[0].mxu0
        %v7325 = vadd.f32 0.0, %v7324
        %v7326 = vpop.f32.mrb[0].mxu0
        %v7327 = vadd.f32 0.0, %v7326
        %v7328 = vpop.f32.mrb[0].mxu0
        %v7329 = vadd.f32 0.0, %v7328
        %v7330 = vpop.f32.mrb[0].mxu0
        %v7331 = vadd.f32 0.0, %v7330
        %7332 = vmatprep.mubr.bf16.mxu0 %v6820
        %7333 = vmatmul.mubr.bf16.gmra.mrb[0].mxu0 %v6818
        %v7334 = vpop.f32.mrb[0].mxu0
        %v7335 = vadd.f32 0.0, %v7334
        %v7336 = vpop.f32.mrb[0].mxu0
        %v7337 = vadd.f32 0.0, %v7336
        %v7338 = vpop.f32.mrb[0].mxu0
        %v7339 = vpop.f32.mrb[0].mxu0
        %7340 = vdwg.mxu0
        %7341 = vmatprep.subr.bf16.mxu0 %v7045
        %7342 = vmatpush1.bf16.msra.mxu0 %v7044
        %7343 = vmatprep.subr.bf16.mxu0 %v7049
        %7344 = vmatpush1.bf16.msra.mxu0 %v7048
        %7345 = vmatprep.subr.bf16.mxu0 %v7053
        %7346 = vmatpush1.bf16.msra.mxu0 %v7052
        %7347 = vmatprep.subr.bf16.mxu0 %v7057
        %7348 = vmatpush1.bf16.msra.mxu0 %v7056
        %7349 = vmatprep.subr.bf16.mxu0 %v7061
        %7350 = vmatpush1.bf16.msra.mxu0 %v7060
        %7351 = vmatprep.subr.bf16.mxu0 %v7065
        %7352 = vmatpush1.bf16.msra.mxu0 %v7064
        %7353 = vmatprep.subr.bf16.mxu0 %v7069
        %7354 = vmatpush1.bf16.msra.mxu0 %v7068
        %7355 = vmatprep.subr.bf16.mxu0 %v7073
        %7356 = vmatpush1.bf16.msra.mxu0 %v7072
        %7357 = vmatprep.subr.bf16.mxu0 %v7077
        %7358 = vmatpush1.bf16.msra.mxu0 %v7076
        %7359 = vmatprep.subr.bf16.mxu0 %v7081
        %7360 = vmatpush1.bf16.msra.mxu0 %v7080
        %7361 = vmatprep.subr.bf16.mxu0 %v7085
        %7362 = vmatpush1.bf16.msra.mxu0 %v7084
        %7363 = vmatprep.subr.bf16.mxu0 %v7089
        %7364 = vmatpush1.bf16.msra.mxu0 %v7088
        %7365 = vmatprep.subr.bf16.mxu0 %v7093
        %7366 = vmatpush1.bf16.msra.mxu0 %v7092
        %7367 = vmatprep.subr.bf16.mxu0 %v7097
        %7368 = vmatpush1.bf16.msra.mxu0 %v7096
        %7369 = vmatprep.subr.bf16.mxu0 %v7101
        %7370 = vmatpush1.bf16.msra.mxu0 %v7100
        %7371 = vmatprep.subr.bf16.mxu0 %v7105
        %7372 = vmatpush1.bf16.msra.mxu0 %v7104
        %7373 = vmatprep.mubr.bf16.mxu0 %v6773
        %7374 = vmatmul.mubr.bf16.gmra.mrb[0].mxu0 %v6770
        %v7375 = vpop.f32.mrb[0].mxu0
        %v7376 = vadd.f32 0.0, %v7375
        %v7377 = vpop.f32.mrb[0].mxu0
        %v7378 = vadd.f32 0.0, %v7377
        %v7379 = vpop.f32.mrb[0].mxu0
        %v7380 = vadd.f32 0.0, %v7379
        %v7381 = vpop.f32.mrb[0].mxu0
        %v7382 = vadd.f32 0.0, %v7381
        %7383 = vmatprep.mubr.bf16.mxu0 %v6777
        %7384 = vmatmul.mubr.bf16.gmra.mrb[0].mxu0 %v6775
        %v7385 = vpop.f32.mrb[0].mxu0
        %v7386 = vadd.f32 0.0, %v7385
        %v7387 = vpop.f32.mrb[0].mxu0
        %v7388 = vadd.f32 0.0, %v7387
        %v7389 = vpop.f32.mrb[0].mxu0
        %v7390 = vadd.f32 0.0, %v7389
        %v7391 = vpop.f32.mrb[0].mxu0
        %v7392 = vadd.f32 0.0, %v7391
        %7393 = vmatprep.mubr.bf16.mxu0 %v6781
        %7394 = vmatmul.mubr.bf16.gmra.mrb[0].mxu0 %v6779
        %v7395 = vpop.f32.mrb[0].mxu0
        %v7396 = vadd.f32 0.0, %v7395
        %v7397 = vpop.f32.mrb[0].mxu0
        %v7398 = vadd.f32 0.0, %v7397
        %v7399 = vpop.f32.mrb[0].mxu0
        %v7400 = vadd.f32 0.0, %v7399
        %v7401 = vpop.f32.mrb[0].mxu0
        %v7402 = vadd.f32 0.0, %v7401
        %7403 = vmatprep.mubr.bf16.mxu0 %v6785
        %7404 = vmatmul.mubr.bf16.gmra.mrb[0].mxu0 %v6783
        %v7405 = vpop.f32.mrb[0].mxu0
        %v7406 = vadd.f32 0.0, %v7405
        %v7407 = vpop.f32.mrb[0].mxu0
        %v7408 = vadd.f32 0.0, %v7407
        %v7409 = vpop.f32.mrb[0].mxu0
        %v7410 = vadd.f32 0.0, %v7409
        %v7411 = vpop.f32.mrb[0].mxu0
        %v7412 = vadd.f32 0.0, %v7411
        %7413 = vmatprep.mubr.bf16.mxu0 %v6789
        %7414 = vmatmul.mubr.bf16.gmra.mrb[0].mxu0 %v6787
        %v7415 = vpop.f32.mrb[0].mxu0
        %v7416 = vadd.f32 0.0, %v7415
        %v7417 = vpop.f32.mrb[0].mxu0
        %v7418 = vadd.f32 0.0, %v7417
        %v7419 = vpop.f32.mrb[0].mxu0
        %v7420 = vadd.f32 0.0, %v7419
        %v7421 = vpop.f32.mrb[0].mxu0
        %v7422 = vadd.f32 0.0, %v7421
        %7423 = vmatprep.mubr.bf16.mxu0 %v6793
        %7424 = vmatmul.mubr.bf16.gmra.mrb[0].mxu0 %v6791
        %v7425 = vpop.f32.mrb[0].mxu0
        %v7426 = vadd.f32 0.0, %v7425
        %v7427 = vpop.f32.mrb[0].mxu0
        %v7428 = vadd.f32 0.0, %v7427
        %v7429 = vpop.f32.mrb[0].mxu0
        %v7430 = vadd.f32 0.0, %v7429
        %v7431 = vpop.f32.mrb[0].mxu0
        %v7432 = vadd.f32 0.0, %v7431
        %7433 = vmatprep.mubr.bf16.mxu0 %v6797
        %7434 = vmatmul.mubr.bf16.gmra.mrb[0].mxu0 %v6795
        %v7435 = vpop.f32.mrb[0].mxu0
        %v7436 = vadd.f32 0.0, %v7435
        %v7437 = vpop.f32.mrb[0].mxu0
        %v7438 = vadd.f32 0.0, %v7437
        %v7439 = vpop.f32.mrb[0].mxu0
        %v7440 = vadd.f32 0.0, %v7439
        %v7441 = vpop.f32.mrb[0].mxu0
        %v7442 = vadd.f32 0.0, %v7441
        %7443 = vmatprep.mubr.bf16.mxu0 %v6801
        %7444 = vmatmul.mubr.bf16.gmra.mrb[0].mxu0 %v6799
        %v7445 = vpop.f32.mrb[0].mxu0
        %v7446 = vadd.f32 0.0, %v7445
        %v7447 = vpop.f32.mrb[0].mxu0
        %v7448 = vadd.f32 0.0, %v7447
        %v7449 = vpop.f32.mrb[0].mxu0
        %v7450 = vadd.f32 0.0, %v7449
        %v7451 = vpop.f32.mrb[0].mxu0
        %v7452 = vadd.f32 0.0, %v7451
        %7453 = vmatprep.mubr.bf16.mxu0 %v6805
        %7454 = vmatmul.mubr.bf16.gmra.mrb[0].mxu0 %v6803
        %v7455 = vpop.f32.mrb[0].mxu0
        %v7456 = vadd.f32 0.0, %v7455
        %v7457 = vpop.f32.mrb[0].mxu0
        %v7458 = vadd.f32 0.0, %v7457
        %v7459 = vpop.f32.mrb[0].mxu0
        %v7460 = vadd.f32 0.0, %v7459
        %v7461 = vpop.f32.mrb[0].mxu0
        %v7462 = vadd.f32 0.0, %v7461
        %7463 = vmatprep.mubr.bf16.mxu0 %v6809
        %7464 = vmatmul.mubr.bf16.gmra.mrb[0].mxu0 %v6807
        %v7465 = vpop.f32.mrb[0].mxu0
        %v7466 = vadd.f32 0.0, %v7465
        %v7467 = vpop.f32.mrb[0].mxu0
        %v7468 = vadd.f32 0.0, %v7467
        %v7469 = vpop.f32.mrb[0].mxu0
        %v7470 = vadd.f32 0.0, %v7469
        %v7471 = vpop.f32.mrb[0].mxu0
        %v7472 = vadd.f32 0.0, %v7471
        %7473 = vmatprep.mubr.bf16.mxu0 %v6813
        %7474 = vmatmul.mubr.bf16.gmra.mrb[0].mxu0 %v6811
        %v7475 = vpop.f32.mrb[0].mxu0
        %v7476 = vadd.f32 0.0, %v7475
        %v7477 = vpop.f32.mrb[0].mxu0
        %v7478 = vadd.f32 0.0, %v7477
        %v7479 = vpop.f32.mrb[0].mxu0
        %v7480 = vadd.f32 0.0, %v7479
        %v7481 = vpop.f32.mrb[0].mxu0
        %v7482 = vadd.f32 0.0, %v7481
        %7483 = vmatprep.mubr.bf16.mxu0 %v6817
        %7484 = vmatmul.mubr.bf16.gmra.mrb[0].mxu0 %v6815
        %v7485 = vpop.f32.mrb[0].mxu0
        %v7486 = vadd.f32 0.0, %v7485
        %v7487 = vpop.f32.mrb[0].mxu0
        %v7488 = vadd.f32 0.0, %v7487
        %v7489 = vpop.f32.mrb[0].mxu0
        %v7490 = vadd.f32 0.0, %v7489
        %v7491 = vpop.f32.mrb[0].mxu0
        %v7492 = vadd.f32 0.0, %v7491
        %7493 = vmatprep.mubr.bf16.mxu0 %v6821
        %7494 = vmatmul.mubr.bf16.gmra.mrb[0].mxu0 %v6819
        %v7495 = vpop.f32.mrb[0].mxu0
        %v7496 = vadd.f32 0.0, %v7495
        %v7497 = vpop.f32.mrb[0].mxu0
        %v7498 = vadd.f32 0.0, %v7497
        %v7499 = vpop.f32.mrb[0].mxu0
        %v7500 = vadd.f32 0.0, %v7499
        %v7501 = vpop.f32.mrb[0].mxu0
        %v7502 = vadd.f32 0.0, %v7501
        %7503 = vmatprep.mubr.bf16.mxu0 %v6820
        %7504 = vmatmul.mubr.bf16.gmra.mrb[0].mxu0 %v6818
        %v7505 = vpop.f32.mrb[0].mxu0
        %v7506 = vadd.f32 0.0, %v7505
        %v7507 = vpop.f32.mrb[0].mxu0
        %v7508 = vadd.f32 0.0, %v7507
        %v7509 = vpop.f32.mrb[0].mxu0
        %v7510 = vpop.f32.mrb[0].mxu0
        %7511 = vdwg.mxu0
        %v7512 = vadd.f32 %v6590, %v7205
        %v7513 = vadd.f32 %v6591, %v7207
        %v7514 = vadd.f32 %v6592, %v7376
        %v7515 = vadd.f32 %v6593, %v7378
        %v7516 = vadd.f32 %v6594, %v7209
        %v7517 = vadd.f32 %v6595, %v7211
        %v7518 = vadd.f32 %v6596, %v7380
        %v7519 = vadd.f32 %v6597, %v7382
        %v7520 = vadd.f32 %v6598, %v7215
        %v7521 = vadd.f32 %v6599, %v7217
        %v7522 = vadd.f32 %v6600, %v7386
        %v7523 = vadd.f32 %v6601, %v7388
        %v7524 = vadd.f32 %v6602, %v7219
        %v7525 = vadd.f32 %v6603, %v7221
        %v7526 = vadd.f32 %v6604, %v7390
        %v7527 = vadd.f32 %v6605, %v7392
        %v7528 = vadd.f32 %v6606, %v7225
        %v7529 = vadd.f32 %v6607, %v7227
        %v7530 = vadd.f32 %v6608, %v7396
        %v7531 = vadd.f32 %v6609, %v7398
        %v7532 = vadd.f32 %v6610, %v7229
        %v7533 = vadd.f32 %v6611, %v7231
        %v7534 = vadd.f32 %v6612, %v7400
        %v7535 = vadd.f32 %v6613, %v7402
        %v7536 = vadd.f32 %v6614, %v7235
        %v7537 = vadd.f32 %v6615, %v7237
        %v7538 = vadd.f32 %v6616, %v7406
        %v7539 = vadd.f32 %v6617, %v7408
        %v7540 = vadd.f32 %v6618, %v7239
        %v7541 = vadd.f32 %v6619, %v7241
        %v7542 = vadd.f32 %v6620, %v7410
        %v7543 = vadd.f32 %v6621, %v7412
        %v7544 = vadd.f32 %v6622, %v7245
        %v7545 = vadd.f32 %v6623, %v7247
        %v7546 = vadd.f32 %v6624, %v7416
        %v7547 = vadd.f32 %v6625, %v7418
        %v7548 = vadd.f32 %v6626, %v7249
        %v7549 = vadd.f32 %v6627, %v7251
        %v7550 = vadd.f32 %v6628, %v7420
        %v7551 = vadd.f32 %v6629, %v7422
        %v7552 = vadd.f32 %v6630, %v7255
        %v7553 = vadd.f32 %v6631, %v7257
        %v7554 = vadd.f32 %v6632, %v7426
        %v7555 = vadd.f32 %v6633, %v7428
        %v7556 = vadd.f32 %v6634, %v7259
        %v7557 = vadd.f32 %v6635, %v7261
        %v7558 = vadd.f32 %v6636, %v7430
        %v7559 = vadd.f32 %v6637, %v7432
        %v7560 = vadd.f32 %v6638, %v7265
        %v7561 = vadd.f32 %v6639, %v7267
        %v7562 = vadd.f32 %v6640, %v7436
        %v7563 = vadd.f32 %v6641, %v7438
        %v7564 = vadd.f32 %v6642, %v7269
        %v7565 = vadd.f32 %v6643, %v7271
        %v7566 = vadd.f32 %v6644, %v7440
        %v7567 = vadd.f32 %v6645, %v7442
        %v7568 = vadd.f32 %v6646, %v7275
        %v7569 = vadd.f32 %v6647, %v7277
        %v7570 = vadd.f32 %v6648, %v7446
        %v7571 = vadd.f32 %v6649, %v7448
        %v7572 = vadd.f32 %v6650, %v7279
        %v7573 = vadd.f32 %v6651, %v7281
        %v7574 = vadd.f32 %v6652, %v7450
        %v7575 = vadd.f32 %v6653, %v7452
        %v7576 = vadd.f32 %v6654, %v7285
        %v7577 = vadd.f32 %v6655, %v7287
        %v7578 = vadd.f32 %v6656, %v7456
        %v7579 = vadd.f32 %v6657, %v7458
        %v7580 = vadd.f32 %v6658, %v7289
        %v7581 = vadd.f32 %v6659, %v7291
        %v7582 = vadd.f32 %v6660, %v7460
        %v7583 = vadd.f32 %v6661, %v7462
        %v7584 = vadd.f32 %v6662, %v7295
        %v7585 = vadd.f32 %v6663, %v7297
        %v7586 = vadd.f32 %v6664, %v7466
        %v7587 = vadd.f32 %v6665, %v7468
        %v7588 = vadd.f32 %v6666, %v7299
        %v7589 = vadd.f32 %v6667, %v7301
        %v7590 = vadd.f32 %v6668, %v7470
        %v7591 = vadd.f32 %v6669, %v7472
        %v7592 = vadd.f32 %v6670, %v7305
        %v7593 = vadd.f32 %v6671, %v7307
        %v7594 = vadd.f32 %v6672, %v7476
        %v7595 = vadd.f32 %v6673, %v7478
        %v7596 = vadd.f32 %v6674, %v7309
        %v7597 = vadd.f32 %v6675, %v7311
        %v7598 = vadd.f32 %v6676, %v7480
        %v7599 = vadd.f32 %v6677, %v7482
        %v7600 = vadd.f32 %v6678, %v7315
        %v7601 = vadd.f32 %v6679, %v7317
        %v7602 = vadd.f32 %v6680, %v7486
        %v7603 = vadd.f32 %v6681, %v7488
        %v7604 = vadd.f32 %v6682, %v7319
        %v7605 = vadd.f32 %v6683, %v7321
        %v7606 = vadd.f32 %v6684, %v7490
        %v7607 = vadd.f32 %v6685, %v7492
        %v7608 = vadd.f32 %v6686, %v7325
        %v7609 = vadd.f32 %v6687, %v7327
        %v7610 = vadd.f32 %v6688, %v7496
        %v7611 = vadd.f32 %v6689, %v7498
        %v7612 = vadd.f32 %v6690, %v7329
        %v7613 = vadd.f32 %v6691, %v7331
        %v7614 = vadd.f32 %v6692, %v7500
        %v7615 = vadd.f32 %v6693, %v7502
        %v7616 = vadd.f32 %v6694, %v7335
        %v7617 = vadd.f32 %v6695, %v7337
        %v7618 = vadd.f32 %v6696, %v7506
        %v7619 = vadd.f32 %v6697, %v7508
        %v7620 = vpack.c.bf16 %v4138, %v4136
        %v7621 = vpack.c.bf16 %v4139, %v4137
        %v7622 = vpack.c.bf16 %v4142, %v4140
        %v7623 = vpack.c.bf16 %v4143, %v4141
        %v7624 = vpack.c.bf16 %v4146, %v4144
        %v7625 = vpack.c.bf16 %v4147, %v4145
        %v7626 = vpack.c.bf16 %v4150, %v4148
        %v7627 = vpack.c.bf16 %v4151, %v4149
        %v7628 = vpack.c.bf16 %v4154, %v4152
        %v7629 = vpack.c.bf16 %v4155, %v4153
        %v7630 = vpack.c.bf16 %v4158, %v4156
        %v7631 = vpack.c.bf16 %v4159, %v4157
        %v7632 = vpack.c.bf16 %v4162, %v4160
        %v7633 = vpack.c.bf16 %v4163, %v4161
        %v7634 = vpack.c.bf16 %v4166, %v4164
        %v7635 = vpack.c.bf16 %v4167, %v4165
        %v7636 = vpack.c.bf16 %v4170, %v4168
        %v7637 = vpack.c.bf16 %v4171, %v4169
        %v7638 = vpack.c.bf16 %v4174, %v4172
        %v7639 = vpack.c.bf16 %v4175, %v4173
        %v7640 = vpack.c.bf16 %v4178, %v4176
        %v7641 = vpack.c.bf16 %v4179, %v4177
        %v7642 = vpack.c.bf16 %v4182, %v4180
        %v7643 = vpack.c.bf16 %v4183, %v4181
        %v7644 = vpack.c.bf16 %v4186, %v4184
        %v7645 = vpack.c.bf16 %v4187, %v4185
        %v7646 = vpack.c.bf16 %v4188, %v4188
        %v7647 = vpack.c.bf16 %v4189, %v4189
        %s7648 = scalar_lea.vmem [#allocation8], 2048
        %v7649 = vld [vmem:[%s7648] sm:$0xff]
        %v7650 = vld [vmem:[%s7648 + $0x8] sm:$0xff]
        %v7651 = vld [vmem:[%s7648 + $0x10] sm:$0xff]
        %v7652 = vld [vmem:[%s7648 + $0x18] sm:$0xff]
        %v7653 = vld [vmem:[%s7648 + $0x20] sm:$0xff]
        %v7654 = vld [vmem:[%s7648 + $0x28] sm:$0xff]
        %v7655 = vld [vmem:[%s7648 + $0x30] sm:$0xff]
        %v7656 = vld [vmem:[%s7648 + $0x38] sm:$0xff]
        %v7657 = vld [vmem:[%s7648 + $0x40] sm:$0xff]
        %v7658 = vld [vmem:[%s7648 + $0x48] sm:$0xff]
        %v7659 = vld [vmem:[%s7648 + $0x50] sm:$0xff]
        %v7660 = vld [vmem:[%s7648 + $0x58] sm:$0xff]
        %v7661 = vld [vmem:[%s7648 + $0x60] sm:$0xff]
        %v7662 = vld [vmem:[%s7648 + $0x68] sm:$0xff]
        %v7663 = vld [vmem:[%s7648 + $0x70] sm:$0xff]
        %v7664 = vld [vmem:[%s7648 + $0x78] sm:$0xff]
        %v7665 = vld [vmem:[%s7648 + $0x80] sm:$0xff]
        %v7666 = vld [vmem:[%s7648 + $0x88] sm:$0xff]
        %v7667 = vld [vmem:[%s7648 + $0x90] sm:$0xff]
        %v7668 = vld [vmem:[%s7648 + $0x98] sm:$0xff]
        %v7669 = vld [vmem:[%s7648 + $0xa0] sm:$0xff]
        %v7670 = vld [vmem:[%s7648 + $0xa8] sm:$0xff]
        %v7671 = vld [vmem:[%s7648 + $0xb0] sm:$0xff]
        %v7672 = vld [vmem:[%s7648 + $0xb8] sm:$0xff]
        %v7673 = vld [vmem:[%s7648 + $0xc0] sm:$0xff]
        %v7674 = vld [vmem:[%s7648 + $0xc8] sm:$0xff]
        %v7675 = vld [vmem:[%s7648 + $0xd0] sm:$0xff]
        %v7676 = vld [vmem:[%s7648 + $0xd8] sm:$0xff]
        %v7677 = vld [vmem:[%s7648 + $0xe0] sm:$0xff]
        %v7678 = vld [vmem:[%s7648 + $0xe8] sm:$0xff]
        %v7679 = vld [vmem:[%s7648 + $0xf0] sm:$0xff]
        %v7680 = vld [vmem:[%s7648 + $0xf8] sm:$0xff]
        %v7681 = vld [vmem:[%s7648 + $0x100] sm:$0xff]
        %v7682 = vld [vmem:[%s7648 + $0x108] sm:$0xff]
        %v7683 = vld [vmem:[%s7648 + $0x110] sm:$0xff]
        %v7684 = vld [vmem:[%s7648 + $0x118] sm:$0xff]
        %v7685 = vld [vmem:[%s7648 + $0x120] sm:$0xff]
        %v7686 = vld [vmem:[%s7648 + $0x128] sm:$0xff]
        %v7687 = vld [vmem:[%s7648 + $0x130] sm:$0xff]
        %v7688 = vld [vmem:[%s7648 + $0x138] sm:$0xff]
        %v7689 = vld [vmem:[%s7648 + $0x140] sm:$0xff]
        %v7690 = vld [vmem:[%s7648 + $0x148] sm:$0xff]
        %v7691 = vld [vmem:[%s7648 + $0x150] sm:$0xff]
        %v7692 = vld [vmem:[%s7648 + $0x158] sm:$0xff]
        %v7693 = vld [vmem:[%s7648 + $0x160] sm:$0xff]
        %v7694 = vld [vmem:[%s7648 + $0x168] sm:$0xff]
        %v7695 = vld [vmem:[%s7648 + $0x170] sm:$0xff]
        %v7696 = vld [vmem:[%s7648 + $0x178] sm:$0xff]
        %v7697 = vld [vmem:[%s7648 + $0x180] sm:$0xff]
        %v7698 = vld [vmem:[%s7648 + $0x188] sm:$0xff]
        %v7699 = vld [vmem:[%s7648 + $0x190] sm:$0xff]
        %v7700 = vld [vmem:[%s7648 + $0x198] sm:$0xff]
        %v7701 = vld [vmem:[%s7648 + $0x1a0] sm:$0xff]
        %v7702 = vld [vmem:[%s7648 + $0x1a8] sm:$0xff]
        %v7703 = vld [vmem:[%s7648 + $0x1b0] sm:$0xff]
        %v7704 = vld [vmem:[%s7648 + $0x1b8] sm:$0xff]
        %v7705 = vld [vmem:[%s7648 + $0x1c0] sm:$0xff]
        %v7706 = vld [vmem:[%s7648 + $0x1c8] sm:$0xff]
        %v7707 = vld [vmem:[%s7648 + $0x1d0] sm:$0xff]
        %v7708 = vld [vmem:[%s7648 + $0x1d8] sm:$0xff]
        %v7709 = vld [vmem:[%s7648 + $0x1e0] sm:$0xff]
        %v7710 = vld [vmem:[%s7648 + $0x1e8] sm:$0xff]
        %v7711 = vld [vmem:[%s7648 + $0x1f0] sm:$0xff]
        %v7712 = vld [vmem:[%s7648 + $0x1f8] sm:$0xff]
        %v7777 = vunpack.c.l.b16 %v7649
        %v7778 = vunpack.c.h.b16 %v7649
        %v7779 = vunpack.c.l.b16 %v7650
        %v7780 = vunpack.c.h.b16 %v7650
        %v7781 = vunpack.c.l.b16 %v7651
        %v7782 = vunpack.c.h.b16 %v7651
        %v7783 = vunpack.c.l.b16 %v7652
        %v7784 = vunpack.c.h.b16 %v7652
        %v7785 = vunpack.c.l.b16 %v7653
        %v7786 = vunpack.c.h.b16 %v7653
        %v7787 = vunpack.c.l.b16 %v7654
        %v7788 = vunpack.c.h.b16 %v7654
        %v7789 = vunpack.c.l.b16 %v7655
        %v7790 = vunpack.c.h.b16 %v7655
        %v7791 = vunpack.c.l.b16 %v7656
        %v7792 = vunpack.c.h.b16 %v7656
        %v7793 = vunpack.c.l.b16 %v7657
        %v7794 = vunpack.c.h.b16 %v7657
        %v7795 = vunpack.c.l.b16 %v7658
        %v7796 = vunpack.c.h.b16 %v7658
        %v7797 = vunpack.c.l.b16 %v7659
        %v7798 = vunpack.c.h.b16 %v7659
        %v7799 = vunpack.c.l.b16 %v7660
        %v7800 = vunpack.c.h.b16 %v7660
        %v7801 = vunpack.c.l.b16 %v7661
        %v7802 = vunpack.c.h.b16 %v7661
        %v7803 = vunpack.c.l.b16 %v7662
        %v7804 = vunpack.c.h.b16 %v7662
        %v7805 = vunpack.c.l.b16 %v7663
        %v7806 = vunpack.c.h.b16 %v7663
        %v7807 = vunpack.c.l.b16 %v7664
        %v7808 = vunpack.c.h.b16 %v7664
        %v7809 = vunpack.c.l.b16 %v7665
        %v7810 = vunpack.c.h.b16 %v7665
        %v7811 = vunpack.c.l.b16 %v7666
        %v7812 = vunpack.c.h.b16 %v7666
        %v7813 = vunpack.c.l.b16 %v7667
        %v7814 = vunpack.c.h.b16 %v7667
        %v7815 = vunpack.c.l.b16 %v7668
        %v7816 = vunpack.c.h.b16 %v7668
        %v7817 = vunpack.c.l.b16 %v7669
        %v7818 = vunpack.c.h.b16 %v7669
        %v7819 = vunpack.c.l.b16 %v7670
        %v7820 = vunpack.c.h.b16 %v7670
        %v7821 = vunpack.c.l.b16 %v7671
        %v7822 = vunpack.c.h.b16 %v7671
        %v7823 = vunpack.c.l.b16 %v7672
        %v7824 = vunpack.c.h.b16 %v7672
        %v7825 = vunpack.c.l.b16 %v7673
        %v7826 = vunpack.c.h.b16 %v7673
        %v7827 = vunpack.c.l.b16 %v7674
        %v7828 = vunpack.c.h.b16 %v7674
        %v7829 = vunpack.c.l.b16 %v7675
        %v7830 = vunpack.c.h.b16 %v7675
        %v7831 = vunpack.c.l.b16 %v7676
        %v7832 = vunpack.c.h.b16 %v7676
        %v7833 = vunpack.c.l.b16 %v7677
        %v7834 = vunpack.c.h.b16 %v7677
        %v7835 = vunpack.c.l.b16 %v7678
        %v7836 = vunpack.c.h.b16 %v7678
        %v7837 = vunpack.c.l.b16 %v7679
        %v7838 = vunpack.c.h.b16 %v7679
        %v7839 = vunpack.c.l.b16 %v7680
        %v7840 = vunpack.c.h.b16 %v7680
        %v7841 = vunpack.c.l.b16 %v7681
        %v7842 = vunpack.c.h.b16 %v7681
        %v7843 = vunpack.c.l.b16 %v7682
        %v7844 = vunpack.c.h.b16 %v7682
        %v7845 = vunpack.c.l.b16 %v7683
        %v7846 = vunpack.c.h.b16 %v7683
        %v7847 = vunpack.c.l.b16 %v7684
        %v7848 = vunpack.c.h.b16 %v7684
        %v7849 = vunpack.c.l.b16 %v7685
        %v7850 = vunpack.c.h.b16 %v7685
        %v7851 = vunpack.c.l.b16 %v7686
        %v7852 = vunpack.c.h.b16 %v7686
        %v7853 = vunpack.c.l.b16 %v7687
        %v7854 = vunpack.c.h.b16 %v7687
        %v7855 = vunpack.c.l.b16 %v7688
        %v7856 = vunpack.c.h.b16 %v7688
        %v7857 = vunpack.c.l.b16 %v7689
        %v7858 = vunpack.c.h.b16 %v7689
        %v7859 = vunpack.c.l.b16 %v7690
        %v7860 = vunpack.c.h.b16 %v7690
        %v7861 = vunpack.c.l.b16 %v7691
        %v7862 = vunpack.c.h.b16 %v7691
        %v7863 = vunpack.c.l.b16 %v7692
        %v7864 = vunpack.c.h.b16 %v7692
        %v7865 = vunpack.c.l.b16 %v7693
        %v7866 = vunpack.c.h.b16 %v7693
        %v7867 = vunpack.c.l.b16 %v7694
        %v7868 = vunpack.c.h.b16 %v7694
        %v7869 = vunpack.c.l.b16 %v7695
        %v7870 = vunpack.c.h.b16 %v7695
        %v7871 = vunpack.c.l.b16 %v7696
        %v7872 = vunpack.c.h.b16 %v7696
        %v7873 = vunpack.c.l.b16 %v7697
        %v7874 = vunpack.c.h.b16 %v7697
        %v7875 = vunpack.c.l.b16 %v7698
        %v7876 = vunpack.c.h.b16 %v7698
        %v7877 = vunpack.c.l.b16 %v7699
        %v7878 = vunpack.c.h.b16 %v7699
        %v7879 = vunpack.c.l.b16 %v7700
        %v7880 = vunpack.c.h.b16 %v7700
        %v7881 = vunpack.c.l.b16 %v7701
        %v7882 = vunpack.c.h.b16 %v7701
        %v7883 = vunpack.c.l.b16 %v7702
        %v7884 = vunpack.c.h.b16 %v7702
        %v7885 = vunpack.c.l.b16 %v7703
        %v7886 = vunpack.c.h.b16 %v7703
        %v7887 = vunpack.c.l.b16 %v7704
        %v7888 = vunpack.c.h.b16 %v7704
        %v7889 = vunpack.c.l.b16 %v7705
        %v7890 = vunpack.c.h.b16 %v7705
        %v7891 = vunpack.c.l.b16 %v7706
        %v7892 = vunpack.c.h.b16 %v7706
        %v7893 = vunpack.c.l.b16 %v7707
        %v7894 = vunpack.c.h.b16 %v7707
        %v7895 = vunpack.c.l.b16 %v7708
        %v7896 = vunpack.c.h.b16 %v7708
        %v7897 = vunpack.c.l.b16 %v7709
        %v7898 = vunpack.c.h.b16 %v7709
        %v7899 = vunpack.c.l.b16 %v7710
        %v7900 = vunpack.c.h.b16 %v7710
        %v7901 = vunpack.c.l.b16 %v7711
        %v7902 = vunpack.c.h.b16 %v7711
        %v7903 = vunpack.c.l.b16 %v7712
        %v7904 = vunpack.c.h.b16 %v7712
        %v7905 = vpack.c.b16 %v7781, %v7777
        %v7906 = vpack.c.b16 %v7782, %v7778
        %v7907 = vpack.c.b16 %v7783, %v7779
        %v7908 = vpack.c.b16 %v7784, %v7780
        %v7909 = vpack.c.b16 %v7789, %v7785
        %v7910 = vpack.c.b16 %v7790, %v7786
        %v7911 = vpack.c.b16 %v7791, %v7787
        %v7912 = vpack.c.b16 %v7792, %v7788
        %v7913 = vpack.c.b16 %v7797, %v7793
        %v7914 = vpack.c.b16 %v7798, %v7794
        %v7915 = vpack.c.b16 %v7799, %v7795
        %v7916 = vpack.c.b16 %v7800, %v7796
        %v7917 = vpack.c.b16 %v7805, %v7801
        %v7918 = vpack.c.b16 %v7806, %v7802
        %v7919 = vpack.c.b16 %v7807, %v7803
        %v7920 = vpack.c.b16 %v7808, %v7804
        %v7921 = vpack.c.b16 %v7813, %v7809
        %v7922 = vpack.c.b16 %v7814, %v7810
        %v7923 = vpack.c.b16 %v7815, %v7811
        %v7924 = vpack.c.b16 %v7816, %v7812
        %v7925 = vpack.c.b16 %v7821, %v7817
        %v7926 = vpack.c.b16 %v7822, %v7818
        %v7927 = vpack.c.b16 %v7823, %v7819
        %v7928 = vpack.c.b16 %v7824, %v7820
        %v7929 = vpack.c.b16 %v7829, %v7825
        %v7930 = vpack.c.b16 %v7830, %v7826
        %v7931 = vpack.c.b16 %v7831, %v7827
        %v7932 = vpack.c.b16 %v7832, %v7828
        %v7933 = vpack.c.b16 %v7837, %v7833
        %v7934 = vpack.c.b16 %v7838, %v7834
        %v7935 = vpack.c.b16 %v7839, %v7835
        %v7936 = vpack.c.b16 %v7840, %v7836
        %v7937 = vpack.c.b16 %v7845, %v7841
        %v7938 = vpack.c.b16 %v7846, %v7842
        %v7939 = vpack.c.b16 %v7847, %v7843
        %v7940 = vpack.c.b16 %v7848, %v7844
        %v7941 = vpack.c.b16 %v7853, %v7849
        %v7942 = vpack.c.b16 %v7854, %v7850
        %v7943 = vpack.c.b16 %v7855, %v7851
        %v7944 = vpack.c.b16 %v7856, %v7852
        %v7945 = vpack.c.b16 %v7861, %v7857
        %v7946 = vpack.c.b16 %v7862, %v7858
        %v7947 = vpack.c.b16 %v7863, %v7859
        %v7948 = vpack.c.b16 %v7864, %v7860
        %v7949 = vpack.c.b16 %v7869, %v7865
        %v7950 = vpack.c.b16 %v7870, %v7866
        %v7951 = vpack.c.b16 %v7871, %v7867
        %v7952 = vpack.c.b16 %v7872, %v7868
        %v7953 = vpack.c.b16 %v7877, %v7873
        %v7954 = vpack.c.b16 %v7878, %v7874
        %v7955 = vpack.c.b16 %v7879, %v7875
        %v7956 = vpack.c.b16 %v7880, %v7876
        %v7957 = vpack.c.b16 %v7885, %v7881
        %v7958 = vpack.c.b16 %v7886, %v7882
        %v7959 = vpack.c.b16 %v7887, %v7883
        %v7960 = vpack.c.b16 %v7888, %v7884
        %v7961 = vpack.c.b16 %v7893, %v7889
        %v7962 = vpack.c.b16 %v7894, %v7890
        %v7963 = vpack.c.b16 %v7895, %v7891
        %v7964 = vpack.c.b16 %v7896, %v7892
        %v7965 = vpack.c.b16 %v7901, %v7897
        %v7966 = vpack.c.b16 %v7902, %v7898
        %v7967 = vpack.c.b16 %v7903, %v7899
        %v7968 = vpack.c.b16 %v7904, %v7900
        %8033 = vmatprep.subr.bf16.mxu0 %v7906
        %8034 = vmatpush1.bf16.msra.mxu0 %v7905
        %8035 = vmatprep.subr.bf16.mxu0 %v7910
        %8036 = vmatpush1.bf16.msra.mxu0 %v7909
        %8037 = vmatprep.subr.bf16.mxu0 %v7914
        %8038 = vmatpush1.bf16.msra.mxu0 %v7913
        %8039 = vmatprep.subr.bf16.mxu0 %v7918
        %8040 = vmatpush1.bf16.msra.mxu0 %v7917
        %8041 = vmatprep.subr.bf16.mxu0 %v7922
        %8042 = vmatpush1.bf16.msra.mxu0 %v7921
        %8043 = vmatprep.subr.bf16.mxu0 %v7926
        %8044 = vmatpush1.bf16.msra.mxu0 %v7925
        %8045 = vmatprep.subr.bf16.mxu0 %v7930
        %8046 = vmatpush1.bf16.msra.mxu0 %v7929
        %8047 = vmatprep.subr.bf16.mxu0 %v7934
        %8048 = vmatpush1.bf16.msra.mxu0 %v7933
        %8049 = vmatprep.subr.bf16.mxu0 %v7938
        %8050 = vmatpush1.bf16.msra.mxu0 %v7937
        %8051 = vmatprep.subr.bf16.mxu0 %v7942
        %8052 = vmatpush1.bf16.msra.mxu0 %v7941
        %8053 = vmatprep.subr.bf16.mxu0 %v7946
        %8054 = vmatpush1.bf16.msra.mxu0 %v7945
        %8055 = vmatprep.subr.bf16.mxu0 %v7950
        %8056 = vmatpush1.bf16.msra.mxu0 %v7949
        %8057 = vmatprep.subr.bf16.mxu0 %v7954
        %8058 = vmatpush1.bf16.msra.mxu0 %v7953
        %8059 = vmatprep.subr.bf16.mxu0 %v7958
        %8060 = vmatpush1.bf16.msra.mxu0 %v7957
        %8061 = vmatprep.subr.bf16.mxu0 %v7962
        %8062 = vmatpush1.bf16.msra.mxu0 %v7961
        %8063 = vmatprep.subr.bf16.mxu0 %v7966
        %8064 = vmatpush1.bf16.msra.mxu0 %v7965
        %8065 = vmatprep.mubr.bf16.mxu0 %v7621
        %8066 = vmatmul.mubr.bf16.gmra.mrb[0].mxu0 %v7620
        %v8067 = vpop.f32.mrb[0].mxu0
        %v8068 = vadd.f32 0.0, %v8067
        %v8069 = vpop.f32.mrb[0].mxu0
        %v8070 = vadd.f32 0.0, %v8069
        %v8071 = vpop.f32.mrb[0].mxu0
        %v8072 = vadd.f32 0.0, %v8071
        %v8073 = vpop.f32.mrb[0].mxu0
        %v8074 = vadd.f32 0.0, %v8073
        %8075 = vmatprep.mubr.bf16.mxu0 %v7623
        %8076 = vmatmul.mubr.bf16.gmra.mrb[0].mxu0 %v7622
        %v8077 = vpop.f32.mrb[0].mxu0
        %v8078 = vadd.f32 0.0, %v8077
        %v8079 = vpop.f32.mrb[0].mxu0
        %v8080 = vadd.f32 0.0, %v8079
        %v8081 = vpop.f32.mrb[0].mxu0
        %v8082 = vadd.f32 0.0, %v8081
        %v8083 = vpop.f32.mrb[0].mxu0
        %v8084 = vadd.f32 0.0, %v8083
        %8085 = vmatprep.mubr.bf16.mxu0 %v7625
        %8086 = vmatmul.mubr.bf16.gmra.mrb[0].mxu0 %v7624
        %v8087 = vpop.f32.mrb[0].mxu0
        %v8088 = vadd.f32 0.0, %v8087
        %v8089 = vpop.f32.mrb[0].mxu0
        %v8090 = vadd.f32 0.0, %v8089
        %v8091 = vpop.f32.mrb[0].mxu0
        %v8092 = vadd.f32 0.0, %v8091
        %v8093 = vpop.f32.mrb[0].mxu0
        %v8094 = vadd.f32 0.0, %v8093
        %8095 = vmatprep.mubr.bf16.mxu0 %v7627
        %8096 = vmatmul.mubr.bf16.gmra.mrb[0].mxu0 %v7626
        %v8097 = vpop.f32.mrb[0].mxu0
        %v8098 = vadd.f32 0.0, %v8097
        %v8099 = vpop.f32.mrb[0].mxu0
        %v8100 = vadd.f32 0.0, %v8099
        %v8101 = vpop.f32.mrb[0].mxu0
        %v8102 = vadd.f32 0.0, %v8101
        %v8103 = vpop.f32.mrb[0].mxu0
        %v8104 = vadd.f32 0.0, %v8103
        %8105 = vmatprep.mubr.bf16.mxu0 %v7629
        %8106 = vmatmul.mubr.bf16.gmra.mrb[0].mxu0 %v7628
        %v8107 = vpop.f32.mrb[0].mxu0
        %v8108 = vadd.f32 0.0, %v8107
        %v8109 = vpop.f32.mrb[0].mxu0
        %v8110 = vadd.f32 0.0, %v8109
        %v8111 = vpop.f32.mrb[0].mxu0
        %v8112 = vadd.f32 0.0, %v8111
        %v8113 = vpop.f32.mrb[0].mxu0
        %v8114 = vadd.f32 0.0, %v8113
        %8115 = vmatprep.mubr.bf16.mxu0 %v7631
        %8116 = vmatmul.mubr.bf16.gmra.mrb[0].mxu0 %v7630
        %v8117 = vpop.f32.mrb[0].mxu0
        %v8118 = vadd.f32 0.0, %v8117
        %v8119 = vpop.f32.mrb[0].mxu0
        %v8120 = vadd.f32 0.0, %v8119
        %v8121 = vpop.f32.mrb[0].mxu0
        %v8122 = vadd.f32 0.0, %v8121
        %v8123 = vpop.f32.mrb[0].mxu0
        %v8124 = vadd.f32 0.0, %v8123
        %8125 = vmatprep.mubr.bf16.mxu0 %v7633
        %8126 = vmatmul.mubr.bf16.gmra.mrb[0].mxu0 %v7632
        %v8127 = vpop.f32.mrb[0].mxu0
        %v8128 = vadd.f32 0.0, %v8127
        %v8129 = vpop.f32.mrb[0].mxu0
        %v8130 = vadd.f32 0.0, %v8129
        %v8131 = vpop.f32.mrb[0].mxu0
        %v8132 = vadd.f32 0.0, %v8131
        %v8133 = vpop.f32.mrb[0].mxu0
        %v8134 = vadd.f32 0.0, %v8133
        %8135 = vmatprep.mubr.bf16.mxu0 %v7635
        %8136 = vmatmul.mubr.bf16.gmra.mrb[0].mxu0 %v7634
        %v8137 = vpop.f32.mrb[0].mxu0
        %v8138 = vadd.f32 0.0, %v8137
        %v8139 = vpop.f32.mrb[0].mxu0
        %v8140 = vadd.f32 0.0, %v8139
        %v8141 = vpop.f32.mrb[0].mxu0
        %v8142 = vadd.f32 0.0, %v8141
        %v8143 = vpop.f32.mrb[0].mxu0
        %v8144 = vadd.f32 0.0, %v8143
        %8145 = vmatprep.mubr.bf16.mxu0 %v7637
        %8146 = vmatmul.mubr.bf16.gmra.mrb[0].mxu0 %v7636
        %v8147 = vpop.f32.mrb[0].mxu0
        %v8148 = vadd.f32 0.0, %v8147
        %v8149 = vpop.f32.mrb[0].mxu0
        %v8150 = vadd.f32 0.0, %v8149
        %v8151 = vpop.f32.mrb[0].mxu0
        %v8152 = vadd.f32 0.0, %v8151
        %v8153 = vpop.f32.mrb[0].mxu0
        %v8154 = vadd.f32 0.0, %v8153
        %8155 = vmatprep.mubr.bf16.mxu0 %v7639
        %8156 = vmatmul.mubr.bf16.gmra.mrb[0].mxu0 %v7638
        %v8157 = vpop.f32.mrb[0].mxu0
        %v8158 = vadd.f32 0.0, %v8157
        %v8159 = vpop.f32.mrb[0].mxu0
        %v8160 = vadd.f32 0.0, %v8159
        %v8161 = vpop.f32.mrb[0].mxu0
        %v8162 = vadd.f32 0.0, %v8161
        %v8163 = vpop.f32.mrb[0].mxu0
        %v8164 = vadd.f32 0.0, %v8163
        %8165 = vmatprep.mubr.bf16.mxu0 %v7641
        %8166 = vmatmul.mubr.bf16.gmra.mrb[0].mxu0 %v7640
        %v8167 = vpop.f32.mrb[0].mxu0
        %v8168 = vadd.f32 0.0, %v8167
        %v8169 = vpop.f32.mrb[0].mxu0
        %v8170 = vadd.f32 0.0, %v8169
        %v8171 = vpop.f32.mrb[0].mxu0
        %v8172 = vadd.f32 0.0, %v8171
        %v8173 = vpop.f32.mrb[0].mxu0
        %v8174 = vadd.f32 0.0, %v8173
        %8175 = vmatprep.mubr.bf16.mxu0 %v7643
        %8176 = vmatmul.mubr.bf16.gmra.mrb[0].mxu0 %v7642
        %v8177 = vpop.f32.mrb[0].mxu0
        %v8178 = vadd.f32 0.0, %v8177
        %v8179 = vpop.f32.mrb[0].mxu0
        %v8180 = vadd.f32 0.0, %v8179
        %v8181 = vpop.f32.mrb[0].mxu0
        %v8182 = vadd.f32 0.0, %v8181
        %v8183 = vpop.f32.mrb[0].mxu0
        %v8184 = vadd.f32 0.0, %v8183
        %8185 = vmatprep.mubr.bf16.mxu0 %v7645
        %8186 = vmatmul.mubr.bf16.gmra.mrb[0].mxu0 %v7644
        %v8187 = vpop.f32.mrb[0].mxu0
        %v8188 = vadd.f32 0.0, %v8187
        %v8189 = vpop.f32.mrb[0].mxu0
        %v8190 = vadd.f32 0.0, %v8189
        %v8191 = vpop.f32.mrb[0].mxu0
        %v8192 = vadd.f32 0.0, %v8191
        %v8193 = vpop.f32.mrb[0].mxu0
        %v8194 = vadd.f32 0.0, %v8193
        %8195 = vmatprep.mubr.bf16.mxu0 %v7647
        %8196 = vmatmul.mubr.bf16.gmra.mrb[0].mxu0 %v7646
        %v8197 = vpop.f32.mrb[0].mxu0
        %v8198 = vadd.f32 0.0, %v8197
        %v8199 = vpop.f32.mrb[0].mxu0
        %v8200 = vadd.f32 0.0, %v8199
        %v8201 = vpop.f32.mrb[0].mxu0
        %v8202 = vpop.f32.mrb[0].mxu0
        %8203 = vdwg.mxu0
        %8204 = vmatprep.subr.bf16.mxu0 %v7908
        %8205 = vmatpush1.bf16.msra.mxu0 %v7907
        %8206 = vmatprep.subr.bf16.mxu0 %v7912
        %8207 = vmatpush1.bf16.msra.mxu0 %v7911
        %8208 = vmatprep.subr.bf16.mxu0 %v7916
        %8209 = vmatpush1.bf16.msra.mxu0 %v7915
        %8210 = vmatprep.subr.bf16.mxu0 %v7920
        %8211 = vmatpush1.bf16.msra.mxu0 %v7919
        %8212 = vmatprep.subr.bf16.mxu0 %v7924
        %8213 = vmatpush1.bf16.msra.mxu0 %v7923
        %8214 = vmatprep.subr.bf16.mxu0 %v7928
        %8215 = vmatpush1.bf16.msra.mxu0 %v7927
        %8216 = vmatprep.subr.bf16.mxu0 %v7932
        %8217 = vmatpush1.bf16.msra.mxu0 %v7931
        %8218 = vmatprep.subr.bf16.mxu0 %v7936
        %8219 = vmatpush1.bf16.msra.mxu0 %v7935
        %8220 = vmatprep.subr.bf16.mxu0 %v7940
        %8221 = vmatpush1.bf16.msra.mxu0 %v7939
        %8222 = vmatprep.subr.bf16.mxu0 %v7944
        %8223 = vmatpush1.bf16.msra.mxu0 %v7943
        %8224 = vmatprep.subr.bf16.mxu0 %v7948
        %8225 = vmatpush1.bf16.msra.mxu0 %v7947
        %8226 = vmatprep.subr.bf16.mxu0 %v7952
        %8227 = vmatpush1.bf16.msra.mxu0 %v7951
        %8228 = vmatprep.subr.bf16.mxu0 %v7956
        %8229 = vmatpush1.bf16.msra.mxu0 %v7955
        %8230 = vmatprep.subr.bf16.mxu0 %v7960
        %8231 = vmatpush1.bf16.msra.mxu0 %v7959
        %8232 = vmatprep.subr.bf16.mxu0 %v7964
        %8233 = vmatpush1.bf16.msra.mxu0 %v7963
        %8234 = vmatprep.subr.bf16.mxu0 %v7968
        %8235 = vmatpush1.bf16.msra.mxu0 %v7967
        %8236 = vmatprep.mubr.bf16.mxu0 %v7621
        %8237 = vmatmul.mubr.bf16.gmra.mrb[0].mxu0 %v7620
        %v8238 = vpop.f32.mrb[0].mxu0
        %v8239 = vadd.f32 0.0, %v8238
        %v8240 = vpop.f32.mrb[0].mxu0
        %v8241 = vadd.f32 0.0, %v8240
        %v8242 = vpop.f32.mrb[0].mxu0
        %v8243 = vadd.f32 0.0, %v8242
        %v8244 = vpop.f32.mrb[0].mxu0
        %v8245 = vadd.f32 0.0, %v8244
        %8246 = vmatprep.mubr.bf16.mxu0 %v7623
        %8247 = vmatmul.mubr.bf16.gmra.mrb[0].mxu0 %v7622
        %v8248 = vpop.f32.mrb[0].mxu0
        %v8249 = vadd.f32 0.0, %v8248
        %v8250 = vpop.f32.mrb[0].mxu0
        %v8251 = vadd.f32 0.0, %v8250
        %v8252 = vpop.f32.mrb[0].mxu0
        %v8253 = vadd.f32 0.0, %v8252
        %v8254 = vpop.f32.mrb[0].mxu0
        %v8255 = vadd.f32 0.0, %v8254
        %8256 = vmatprep.mubr.bf16.mxu0 %v7625
        %8257 = vmatmul.mubr.bf16.gmra.mrb[0].mxu0 %v7624
        %v8258 = vpop.f32.mrb[0].mxu0
        %v8259 = vadd.f32 0.0, %v8258
        %v8260 = vpop.f32.mrb[0].mxu0
        %v8261 = vadd.f32 0.0, %v8260
        %v8262 = vpop.f32.mrb[0].mxu0
        %v8263 = vadd.f32 0.0, %v8262
        %v8264 = vpop.f32.mrb[0].mxu0
        %v8265 = vadd.f32 0.0, %v8264
        %8266 = vmatprep.mubr.bf16.mxu0 %v7627
        %8267 = vmatmul.mubr.bf16.gmra.mrb[0].mxu0 %v7626
        %v8268 = vpop.f32.mrb[0].mxu0
        %v8269 = vadd.f32 0.0, %v8268
        %v8270 = vpop.f32.mrb[0].mxu0
        %v8271 = vadd.f32 0.0, %v8270
        %v8272 = vpop.f32.mrb[0].mxu0
        %v8273 = vadd.f32 0.0, %v8272
        %v8274 = vpop.f32.mrb[0].mxu0
        %v8275 = vadd.f32 0.0, %v8274
        %8276 = vmatprep.mubr.bf16.mxu0 %v7629
        %8277 = vmatmul.mubr.bf16.gmra.mrb[0].mxu0 %v7628
        %v8278 = vpop.f32.mrb[0].mxu0
        %v8279 = vadd.f32 0.0, %v8278
        %v8280 = vpop.f32.mrb[0].mxu0
        %v8281 = vadd.f32 0.0, %v8280
        %v8282 = vpop.f32.mrb[0].mxu0
        %v8283 = vadd.f32 0.0, %v8282
        %v8284 = vpop.f32.mrb[0].mxu0
        %v8285 = vadd.f32 0.0, %v8284
        %8286 = vmatprep.mubr.bf16.mxu0 %v7631
        %8287 = vmatmul.mubr.bf16.gmra.mrb[0].mxu0 %v7630
        %v8288 = vpop.f32.mrb[0].mxu0
        %v8289 = vadd.f32 0.0, %v8288
        %v8290 = vpop.f32.mrb[0].mxu0
        %v8291 = vadd.f32 0.0, %v8290
        %v8292 = vpop.f32.mrb[0].mxu0
        %v8293 = vadd.f32 0.0, %v8292
        %v8294 = vpop.f32.mrb[0].mxu0
        %v8295 = vadd.f32 0.0, %v8294
        %8296 = vmatprep.mubr.bf16.mxu0 %v7633
        %8297 = vmatmul.mubr.bf16.gmra.mrb[0].mxu0 %v7632
        %v8298 = vpop.f32.mrb[0].mxu0
        %v8299 = vadd.f32 0.0, %v8298
        %v8300 = vpop.f32.mrb[0].mxu0
        %v8301 = vadd.f32 0.0, %v8300
        %v8302 = vpop.f32.mrb[0].mxu0
        %v8303 = vadd.f32 0.0, %v8302
        %v8304 = vpop.f32.mrb[0].mxu0
        %v8305 = vadd.f32 0.0, %v8304
        %8306 = vmatprep.mubr.bf16.mxu0 %v7635
        %8307 = vmatmul.mubr.bf16.gmra.mrb[0].mxu0 %v7634
        %v8308 = vpop.f32.mrb[0].mxu0
        %v8309 = vadd.f32 0.0, %v8308
        %v8310 = vpop.f32.mrb[0].mxu0
        %v8311 = vadd.f32 0.0, %v8310
        %v8312 = vpop.f32.mrb[0].mxu0
        %v8313 = vadd.f32 0.0, %v8312
        %v8314 = vpop.f32.mrb[0].mxu0
        %v8315 = vadd.f32 0.0, %v8314
        %8316 = vmatprep.mubr.bf16.mxu0 %v7637
        %8317 = vmatmul.mubr.bf16.gmra.mrb[0].mxu0 %v7636
        %v8318 = vpop.f32.mrb[0].mxu0
        %v8319 = vadd.f32 0.0, %v8318
        %v8320 = vpop.f32.mrb[0].mxu0
        %v8321 = vadd.f32 0.0, %v8320
        %v8322 = vpop.f32.mrb[0].mxu0
        %v8323 = vadd.f32 0.0, %v8322
        %v8324 = vpop.f32.mrb[0].mxu0
        %v8325 = vadd.f32 0.0, %v8324
        %8326 = vmatprep.mubr.bf16.mxu0 %v7639
        %8327 = vmatmul.mubr.bf16.gmra.mrb[0].mxu0 %v7638
        %v8328 = vpop.f32.mrb[0].mxu0
        %v8329 = vadd.f32 0.0, %v8328
        %v8330 = vpop.f32.mrb[0].mxu0
        %v8331 = vadd.f32 0.0, %v8330
        %v8332 = vpop.f32.mrb[0].mxu0
        %v8333 = vadd.f32 0.0, %v8332
        %v8334 = vpop.f32.mrb[0].mxu0
        %v8335 = vadd.f32 0.0, %v8334
        %8336 = vmatprep.mubr.bf16.mxu0 %v7641
        %8337 = vmatmul.mubr.bf16.gmra.mrb[0].mxu0 %v7640
        %v8338 = vpop.f32.mrb[0].mxu0
        %v8339 = vadd.f32 0.0, %v8338
        %v8340 = vpop.f32.mrb[0].mxu0
        %v8341 = vadd.f32 0.0, %v8340
        %v8342 = vpop.f32.mrb[0].mxu0
        %v8343 = vadd.f32 0.0, %v8342
        %v8344 = vpop.f32.mrb[0].mxu0
        %v8345 = vadd.f32 0.0, %v8344
        %8346 = vmatprep.mubr.bf16.mxu0 %v7643
        %8347 = vmatmul.mubr.bf16.gmra.mrb[0].mxu0 %v7642
        %v8348 = vpop.f32.mrb[0].mxu0
        %v8349 = vadd.f32 0.0, %v8348
        %v8350 = vpop.f32.mrb[0].mxu0
        %v8351 = vadd.f32 0.0, %v8350
        %v8352 = vpop.f32.mrb[0].mxu0
        %v8353 = vadd.f32 0.0, %v8352
        %v8354 = vpop.f32.mrb[0].mxu0
        %v8355 = vadd.f32 0.0, %v8354
        %8356 = vmatprep.mubr.bf16.mxu0 %v7645
        %8357 = vmatmul.mubr.bf16.gmra.mrb[0].mxu0 %v7644
        %v8358 = vpop.f32.mrb[0].mxu0
        %v8359 = vadd.f32 0.0, %v8358
        %v8360 = vpop.f32.mrb[0].mxu0
        %v8361 = vadd.f32 0.0, %v8360
        %v8362 = vpop.f32.mrb[0].mxu0
        %v8363 = vadd.f32 0.0, %v8362
        %v8364 = vpop.f32.mrb[0].mxu0
        %v8365 = vadd.f32 0.0, %v8364
        %8366 = vmatprep.mubr.bf16.mxu0 %v7647
        %8367 = vmatmul.mubr.bf16.gmra.mrb[0].mxu0 %v7646
        %v8368 = vpop.f32.mrb[0].mxu0
        %v8369 = vadd.f32 0.0, %v8368
        %v8370 = vpop.f32.mrb[0].mxu0
        %v8371 = vadd.f32 0.0, %v8370
        %v8372 = vpop.f32.mrb[0].mxu0
        %v8373 = vpop.f32.mrb[0].mxu0
        %8374 = vdwg.mxu0
        %v8375 = vadd.f32 %v7512, %v8068
        %v8376 = vadd.f32 %v7513, %v8070
        %v8377 = vadd.f32 %v7514, %v8239
        %v8378 = vadd.f32 %v7515, %v8241
        %v8379 = vadd.f32 %v7516, %v8072
        %v8380 = vadd.f32 %v7517, %v8074
        %v8381 = vadd.f32 %v7518, %v8243
        %v8382 = vadd.f32 %v7519, %v8245
        %v8383 = vadd.f32 %v7520, %v8078
        %v8384 = vadd.f32 %v7521, %v8080
        %v8385 = vadd.f32 %v7522, %v8249
        %v8386 = vadd.f32 %v7523, %v8251
        %v8387 = vadd.f32 %v7524, %v8082
        %v8388 = vadd.f32 %v7525, %v8084
        %v8389 = vadd.f32 %v7526, %v8253
        %v8390 = vadd.f32 %v7527, %v8255
        %v8391 = vadd.f32 %v7528, %v8088
        %v8392 = vadd.f32 %v7529, %v8090
        %v8393 = vadd.f32 %v7530, %v8259
        %v8394 = vadd.f32 %v7531, %v8261
        %v8395 = vadd.f32 %v7532, %v8092
        %v8396 = vadd.f32 %v7533, %v8094
        %v8397 = vadd.f32 %v7534, %v8263
        %v8398 = vadd.f32 %v7535, %v8265
        %v8399 = vadd.f32 %v7536, %v8098
        %v8400 = vadd.f32 %v7537, %v8100
        %v8401 = vadd.f32 %v7538, %v8269
        %v8402 = vadd.f32 %v7539, %v8271
        %v8403 = vadd.f32 %v7540, %v8102
        %v8404 = vadd.f32 %v7541, %v8104
        %v8405 = vadd.f32 %v7542, %v8273
        %v8406 = vadd.f32 %v7543, %v8275
        %v8407 = vadd.f32 %v7544, %v8108
        %v8408 = vadd.f32 %v7545, %v8110
        %v8409 = vadd.f32 %v7546, %v8279
        %v8410 = vadd.f32 %v7547, %v8281
        %v8411 = vadd.f32 %v7548, %v8112
        %v8412 = vadd.f32 %v7549, %v8114
        %v8413 = vadd.f32 %v7550, %v8283
        %v8414 = vadd.f32 %v7551, %v8285
        %v8415 = vadd.f32 %v7552, %v8118
        %v8416 = vadd.f32 %v7553, %v8120
        %v8417 = vadd.f32 %v7554, %v8289
        %v8418 = vadd.f32 %v7555, %v8291
        %v8419 = vadd.f32 %v7556, %v8122
        %v8420 = vadd.f32 %v7557, %v8124
        %v8421 = vadd.f32 %v7558, %v8293
        %v8422 = vadd.f32 %v7559, %v8295
        %v8423 = vadd.f32 %v7560, %v8128
        %v8424 = vadd.f32 %v7561, %v8130
        %v8425 = vadd.f32 %v7562, %v8299
        %v8426 = vadd.f32 %v7563, %v8301
        %v8427 = vadd.f32 %v7564, %v8132
        %v8428 = vadd.f32 %v7565, %v8134
        %v8429 = vadd.f32 %v7566, %v8303
        %v8430 = vadd.f32 %v7567, %v8305
        %v8431 = vadd.f32 %v7568, %v8138
        %v8432 = vadd.f32 %v7569, %v8140
        %v8433 = vadd.f32 %v7570, %v8309
        %v8434 = vadd.f32 %v7571, %v8311
        %v8435 = vadd.f32 %v7572, %v8142
        %v8436 = vadd.f32 %v7573, %v8144
        %v8437 = vadd.f32 %v7574, %v8313
        %v8438 = vadd.f32 %v7575, %v8315
        %v8439 = vadd.f32 %v7576, %v8148
        %v8440 = vadd.f32 %v7577, %v8150
        %v8441 = vadd.f32 %v7578, %v8319
        %v8442 = vadd.f32 %v7579, %v8321
        %v8443 = vadd.f32 %v7580, %v8152
        %v8444 = vadd.f32 %v7581, %v8154
        %v8445 = vadd.f32 %v7582, %v8323
        %v8446 = vadd.f32 %v7583, %v8325
        %v8447 = vadd.f32 %v7584, %v8158
        %v8448 = vadd.f32 %v7585, %v8160
        %v8449 = vadd.f32 %v7586, %v8329
        %v8450 = vadd.f32 %v7587, %v8331
        %v8451 = vadd.f32 %v7588, %v8162
        %v8452 = vadd.f32 %v7589, %v8164
        %v8453 = vadd.f32 %v7590, %v8333
        %v8454 = vadd.f32 %v7591, %v8335
        %v8455 = vadd.f32 %v7592, %v8168
        %v8456 = vadd.f32 %v7593, %v8170
        %v8457 = vadd.f32 %v7594, %v8339
        %v8458 = vadd.f32 %v7595, %v8341
        %v8459 = vadd.f32 %v7596, %v8172
        %v8460 = vadd.f32 %v7597, %v8174
        %v8461 = vadd.f32 %v7598, %v8343
        %v8462 = vadd.f32 %v7599, %v8345
        %v8463 = vadd.f32 %v7600, %v8178
        %v8464 = vadd.f32 %v7601, %v8180
        %v8465 = vadd.f32 %v7602, %v8349
        %v8466 = vadd.f32 %v7603, %v8351
        %v8467 = vadd.f32 %v7604, %v8182
        %v8468 = vadd.f32 %v7605, %v8184
        %v8469 = vadd.f32 %v7606, %v8353
        %v8470 = vadd.f32 %v7607, %v8355
        %v8471 = vadd.f32 %v7608, %v8188
        %v8472 = vadd.f32 %v7609, %v8190
        %v8473 = vadd.f32 %v7610, %v8359
        %v8474 = vadd.f32 %v7611, %v8361
        %v8475 = vadd.f32 %v7612, %v8192
        %v8476 = vadd.f32 %v7613, %v8194
        %v8477 = vadd.f32 %v7614, %v8363
        %v8478 = vadd.f32 %v7615, %v8365
        %v8479 = vadd.f32 %v7616, %v8198
        %v8480 = vadd.f32 %v7617, %v8200
        %v8481 = vadd.f32 %v7618, %v8369
        %v8482 = vadd.f32 %v7619, %v8371
        %v8483 = vld [vmem:[#allocation10] sm:$0xf]
        %v8485 = vlaneseq
        %v8486 = vshrl.u32 %v8485, 7
        %v8487 = vsub.s32 0, %v8486
        %v8488 = vrot.slane %v8483, %v8487
        %v8489 = vlaneseq
        %v8490 = vshrl.u32 %v8489, 7
        %v8491 = vsub.s32 1, %v8490
        %v8492 = vrot.slane %v8483, %v8491
        %v8493 = vlaneseq
        %v8494 = vshrl.u32 %v8493, 7
        %v8495 = vsub.s32 2, %v8494
        %v8496 = vrot.slane %v8483, %v8495
        %v8497 = vlaneseq
        %v8498 = vshrl.u32 %v8497, 7
        %v8499 = vsub.s32 3, %v8498
        %v8500 = vrot.slane %v8483, %v8499
        %v8505 = vadd.f32 %v8375, %v8488
        %v8506 = vadd.f32 %v8376, %v8492
        %v8507 = vadd.f32 %v8377, %v8496
        %v8508 = vadd.f32 %v8378, %v8500
        %v8509 = vadd.f32 %v8379, %v8488
        %v8510 = vadd.f32 %v8380, %v8492
        %v8511 = vadd.f32 %v8381, %v8496
        %v8512 = vadd.f32 %v8382, %v8500
        %v8513 = vadd.f32 %v8383, %v8488
        %v8514 = vadd.f32 %v8384, %v8492
        %v8515 = vadd.f32 %v8385, %v8496
        %v8516 = vadd.f32 %v8386, %v8500
        %v8517 = vadd.f32 %v8387, %v8488
        %v8518 = vadd.f32 %v8388, %v8492
        %v8519 = vadd.f32 %v8389, %v8496
        %v8520 = vadd.f32 %v8390, %v8500
        %v8521 = vadd.f32 %v8391, %v8488
        %v8522 = vadd.f32 %v8392, %v8492
        %v8523 = vadd.f32 %v8393, %v8496
        %v8524 = vadd.f32 %v8394, %v8500
        %v8525 = vadd.f32 %v8395, %v8488
        %v8526 = vadd.f32 %v8396, %v8492
        %v8527 = vadd.f32 %v8397, %v8496
        %v8528 = vadd.f32 %v8398, %v8500
        %v8529 = vadd.f32 %v8399, %v8488
        %v8530 = vadd.f32 %v8400, %v8492
        %v8531 = vadd.f32 %v8401, %v8496
        %v8532 = vadd.f32 %v8402, %v8500
        %v8533 = vadd.f32 %v8403, %v8488
        %v8534 = vadd.f32 %v8404, %v8492
        %v8535 = vadd.f32 %v8405, %v8496
        %v8536 = vadd.f32 %v8406, %v8500
        %v8537 = vadd.f32 %v8407, %v8488
        %v8538 = vadd.f32 %v8408, %v8492
        %v8539 = vadd.f32 %v8409, %v8496
        %v8540 = vadd.f32 %v8410, %v8500
        %v8541 = vadd.f32 %v8411, %v8488
        %v8542 = vadd.f32 %v8412, %v8492
        %v8543 = vadd.f32 %v8413, %v8496
        %v8544 = vadd.f32 %v8414, %v8500
        %v8545 = vadd.f32 %v8415, %v8488
        %v8546 = vadd.f32 %v8416, %v8492
        %v8547 = vadd.f32 %v8417, %v8496
        %v8548 = vadd.f32 %v8418, %v8500
        %v8549 = vadd.f32 %v8419, %v8488
        %v8550 = vadd.f32 %v8420, %v8492
        %v8551 = vadd.f32 %v8421, %v8496
        %v8552 = vadd.f32 %v8422, %v8500
        %v8553 = vadd.f32 %v8423, %v8488
        %v8554 = vadd.f32 %v8424, %v8492
        %v8555 = vadd.f32 %v8425, %v8496
        %v8556 = vadd.f32 %v8426, %v8500
        %v8557 = vadd.f32 %v8427, %v8488
        %v8558 = vadd.f32 %v8428, %v8492
        %v8559 = vadd.f32 %v8429, %v8496
        %v8560 = vadd.f32 %v8430, %v8500
        %v8561 = vadd.f32 %v8431, %v8488
        %v8562 = vadd.f32 %v8432, %v8492
        %v8563 = vadd.f32 %v8433, %v8496
        %v8564 = vadd.f32 %v8434, %v8500
        %v8565 = vadd.f32 %v8435, %v8488
        %v8566 = vadd.f32 %v8436, %v8492
        %v8567 = vadd.f32 %v8437, %v8496
        %v8568 = vadd.f32 %v8438, %v8500
        %v8569 = vadd.f32 %v8439, %v8488
        %v8570 = vadd.f32 %v8440, %v8492
        %v8571 = vadd.f32 %v8441, %v8496
        %v8572 = vadd.f32 %v8442, %v8500
        %v8573 = vadd.f32 %v8443, %v8488
        %v8574 = vadd.f32 %v8444, %v8492
        %v8575 = vadd.f32 %v8445, %v8496
        %v8576 = vadd.f32 %v8446, %v8500
        %v8577 = vadd.f32 %v8447, %v8488
        %v8578 = vadd.f32 %v8448, %v8492
        %v8579 = vadd.f32 %v8449, %v8496
        %v8580 = vadd.f32 %v8450, %v8500
        %v8581 = vadd.f32 %v8451, %v8488
        %v8582 = vadd.f32 %v8452, %v8492
        %v8583 = vadd.f32 %v8453, %v8496
        %v8584 = vadd.f32 %v8454, %v8500
        %v8585 = vadd.f32 %v8455, %v8488
        %v8586 = vadd.f32 %v8456, %v8492
        %v8587 = vadd.f32 %v8457, %v8496
        %v8588 = vadd.f32 %v8458, %v8500
        %v8589 = vadd.f32 %v8459, %v8488
        %v8590 = vadd.f32 %v8460, %v8492
        %v8591 = vadd.f32 %v8461, %v8496
        %v8592 = vadd.f32 %v8462, %v8500
        %v8593 = vadd.f32 %v8463, %v8488
        %v8594 = vadd.f32 %v8464, %v8492
        %v8595 = vadd.f32 %v8465, %v8496
        %v8596 = vadd.f32 %v8466, %v8500
        %v8597 = vadd.f32 %v8467, %v8488
        %v8598 = vadd.f32 %v8468, %v8492
        %v8599 = vadd.f32 %v8469, %v8496
        %v8600 = vadd.f32 %v8470, %v8500
        %v8601 = vadd.f32 %v8471, %v8488
        %v8602 = vadd.f32 %v8472, %v8492
        %v8603 = vadd.f32 %v8473, %v8496
        %v8604 = vadd.f32 %v8474, %v8500
        %v8605 = vadd.f32 %v8475, %v8488
        %v8606 = vadd.f32 %v8476, %v8492
        %v8607 = vadd.f32 %v8477, %v8496
        %v8608 = vadd.f32 %v8478, %v8500
        %v8609 = vadd.f32 %v8479, %v8488
        %v8610 = vadd.f32 %v8480, %v8492
        %v8611 = vadd.f32 %v8481, %v8496
        %v8612 = vadd.f32 %v8482, %v8500
        %v8613 = vmax.f32 %v8505, 0.0
        %v8614 = vmax.f32 %v8506, 0.0
        %v8615 = vmax.f32 %v8507, 0.0
        %v8616 = vmax.f32 %v8508, 0.0
        %v8617 = vmax.f32 %v8509, 0.0
        %v8618 = vmax.f32 %v8510, 0.0
        %v8619 = vmax.f32 %v8511, 0.0
        %v8620 = vmax.f32 %v8512, 0.0
        %v8621 = vmax.f32 %v8513, 0.0
        %v8622 = vmax.f32 %v8514, 0.0
        %v8623 = vmax.f32 %v8515, 0.0
        %v8624 = vmax.f32 %v8516, 0.0
        %v8625 = vmax.f32 %v8517, 0.0
        %v8626 = vmax.f32 %v8518, 0.0
        %v8627 = vmax.f32 %v8519, 0.0
        %v8628 = vmax.f32 %v8520, 0.0
        %v8629 = vmax.f32 %v8521, 0.0
        %v8630 = vmax.f32 %v8522, 0.0
        %v8631 = vmax.f32 %v8523, 0.0
        %v8632 = vmax.f32 %v8524, 0.0
        %v8633 = vmax.f32 %v8525, 0.0
        %v8634 = vmax.f32 %v8526, 0.0
        %v8635 = vmax.f32 %v8527, 0.0
        %v8636 = vmax.f32 %v8528, 0.0
        %v8637 = vmax.f32 %v8529, 0.0
        %v8638 = vmax.f32 %v8530, 0.0
        %v8639 = vmax.f32 %v8531, 0.0
        %v8640 = vmax.f32 %v8532, 0.0
        %v8641 = vmax.f32 %v8533, 0.0
        %v8642 = vmax.f32 %v8534, 0.0
        %v8643 = vmax.f32 %v8535, 0.0
        %v8644 = vmax.f32 %v8536, 0.0
        %v8645 = vmax.f32 %v8537, 0.0
        %v8646 = vmax.f32 %v8538, 0.0
        %v8647 = vmax.f32 %v8539, 0.0
        %v8648 = vmax.f32 %v8540, 0.0
        %v8649 = vmax.f32 %v8541, 0.0
        %v8650 = vmax.f32 %v8542, 0.0
        %v8651 = vmax.f32 %v8543, 0.0
        %v8652 = vmax.f32 %v8544, 0.0
        %v8653 = vmax.f32 %v8545, 0.0
        %v8654 = vmax.f32 %v8546, 0.0
        %v8655 = vmax.f32 %v8547, 0.0
        %v8656 = vmax.f32 %v8548, 0.0
        %v8657 = vmax.f32 %v8549, 0.0
        %v8658 = vmax.f32 %v8550, 0.0
        %v8659 = vmax.f32 %v8551, 0.0
        %v8660 = vmax.f32 %v8552, 0.0
        %v8661 = vmax.f32 %v8553, 0.0
        %v8662 = vmax.f32 %v8554, 0.0
        %v8663 = vmax.f32 %v8555, 0.0
        %v8664 = vmax.f32 %v8556, 0.0
        %v8665 = vmax.f32 %v8557, 0.0
        %v8666 = vmax.f32 %v8558, 0.0
        %v8667 = vmax.f32 %v8559, 0.0
        %v8668 = vmax.f32 %v8560, 0.0
        %v8669 = vmax.f32 %v8561, 0.0
        %v8670 = vmax.f32 %v8562, 0.0
        %v8671 = vmax.f32 %v8563, 0.0
        %v8672 = vmax.f32 %v8564, 0.0
        %v8673 = vmax.f32 %v8565, 0.0
        %v8674 = vmax.f32 %v8566, 0.0
        %v8675 = vmax.f32 %v8567, 0.0
        %v8676 = vmax.f32 %v8568, 0.0
        %v8677 = vmax.f32 %v8569, 0.0
        %v8678 = vmax.f32 %v8570, 0.0
        %v8679 = vmax.f32 %v8571, 0.0
        %v8680 = vmax.f32 %v8572, 0.0
        %v8681 = vmax.f32 %v8573, 0.0
        %v8682 = vmax.f32 %v8574, 0.0
        %v8683 = vmax.f32 %v8575, 0.0
        %v8684 = vmax.f32 %v8576, 0.0
        %v8685 = vmax.f32 %v8577, 0.0
        %v8686 = vmax.f32 %v8578, 0.0
        %v8687 = vmax.f32 %v8579, 0.0
        %v8688 = vmax.f32 %v8580, 0.0
        %v8689 = vmax.f32 %v8581, 0.0
        %v8690 = vmax.f32 %v8582, 0.0
        %v8691 = vmax.f32 %v8583, 0.0
        %v8692 = vmax.f32 %v8584, 0.0
        %v8693 = vmax.f32 %v8585, 0.0
        %v8694 = vmax.f32 %v8586, 0.0
        %v8695 = vmax.f32 %v8587, 0.0
        %v8696 = vmax.f32 %v8588, 0.0
        %v8697 = vmax.f32 %v8589, 0.0
        %v8698 = vmax.f32 %v8590, 0.0
        %v8699 = vmax.f32 %v8591, 0.0
        %v8700 = vmax.f32 %v8592, 0.0
        %v8701 = vmax.f32 %v8593, 0.0
        %v8702 = vmax.f32 %v8594, 0.0
        %v8703 = vmax.f32 %v8595, 0.0
        %v8704 = vmax.f32 %v8596, 0.0
        %v8705 = vmax.f32 %v8597, 0.0
        %v8706 = vmax.f32 %v8598, 0.0
        %v8707 = vmax.f32 %v8599, 0.0
        %v8708 = vmax.f32 %v8600, 0.0
        %v8709 = vmax.f32 %v8601, 0.0
        %v8710 = vmax.f32 %v8602, 0.0
        %v8711 = vmax.f32 %v8603, 0.0
        %v8712 = vmax.f32 %v8604, 0.0
        %v8713 = vmax.f32 %v8605, 0.0
        %v8714 = vmax.f32 %v8606, 0.0
        %v8715 = vmax.f32 %v8607, 0.0
        %v8716 = vmax.f32 %v8608, 0.0
        %v8717 = vmax.f32 %v8609, 0.0
        %v8718 = vmax.f32 %v8610, 0.0
        %v8719 = vmax.f32 %v8611, 0.0
        %v8720 = vmax.f32 %v8612, 0.0
        %v8829 = vrot.slane %v8613, 2
        %v8830 = vrot.slane %v8617, 2
        %v8831 = vsel %vm753, %v8829, %v8830
        %v8832 = vrot.slane %v8614, 2
        %v8833 = vrot.slane %v8618, 2
        %v8834 = vsel %vm753, %v8832, %v8833
        %v8835 = vrot.slane %v8615, 2
        %v8836 = vrot.slane %v8619, 2
        %v8837 = vsel %vm753, %v8835, %v8836
        %v8838 = vrot.slane %v8616, 2
        %v8839 = vrot.slane %v8620, 2
        %v8840 = vsel %vm753, %v8838, %v8839
        %v8841 = vrot.slane %v8621, 2
        %v8842 = vsel %vm753, %v8830, %v8841
        %v8843 = vrot.slane %v8622, 2
        %v8844 = vsel %vm753, %v8833, %v8843
        %v8845 = vrot.slane %v8623, 2
        %v8846 = vsel %vm753, %v8836, %v8845
        %v8847 = vrot.slane %v8624, 2
        %v8848 = vsel %vm753, %v8839, %v8847
        %v8849 = vrot.slane %v8625, 2
        %v8850 = vsel %vm753, %v8841, %v8849
        %v8851 = vrot.slane %v8626, 2
        %v8852 = vsel %vm753, %v8843, %v8851
        %v8853 = vrot.slane %v8627, 2
        %v8854 = vsel %vm753, %v8845, %v8853
        %v8855 = vrot.slane %v8628, 2
        %v8856 = vsel %vm753, %v8847, %v8855
        %v8857 = vrot.slane %v8629, 2
        %v8858 = vsel %vm753, %v8849, %v8857
        %v8859 = vrot.slane %v8630, 2
        %v8860 = vsel %vm753, %v8851, %v8859
        %v8861 = vrot.slane %v8631, 2
        %v8862 = vsel %vm753, %v8853, %v8861
        %v8863 = vrot.slane %v8632, 2
        %v8864 = vsel %vm753, %v8855, %v8863
        %v8865 = vrot.slane %v8633, 2
        %v8866 = vsel %vm753, %v8857, %v8865
        %v8867 = vrot.slane %v8634, 2
        %v8868 = vsel %vm753, %v8859, %v8867
        %v8869 = vrot.slane %v8635, 2
        %v8870 = vsel %vm753, %v8861, %v8869
        %v8871 = vrot.slane %v8636, 2
        %v8872 = vsel %vm753, %v8863, %v8871
        %v8873 = vrot.slane %v8637, 2
        %v8874 = vsel %vm753, %v8865, %v8873
        %v8875 = vrot.slane %v8638, 2
        %v8876 = vsel %vm753, %v8867, %v8875
        %v8877 = vrot.slane %v8639, 2
        %v8878 = vsel %vm753, %v8869, %v8877
        %v8879 = vrot.slane %v8640, 2
        %v8880 = vsel %vm753, %v8871, %v8879
        %v8881 = vrot.slane %v8641, 2
        %v8882 = vsel %vm753, %v8873, %v8881
        %v8883 = vrot.slane %v8642, 2
        %v8884 = vsel %vm753, %v8875, %v8883
        %v8885 = vrot.slane %v8643, 2
        %v8886 = vsel %vm753, %v8877, %v8885
        %v8887 = vrot.slane %v8644, 2
        %v8888 = vsel %vm753, %v8879, %v8887
        %v8889 = vrot.slane %v8645, 2
        %v8890 = vsel %vm753, %v8881, %v8889
        %v8891 = vrot.slane %v8646, 2
        %v8892 = vsel %vm753, %v8883, %v8891
        %v8893 = vrot.slane %v8647, 2
        %v8894 = vsel %vm753, %v8885, %v8893
        %v8895 = vrot.slane %v8648, 2
        %v8896 = vsel %vm753, %v8887, %v8895
        %v8897 = vrot.slane %v8649, 2
        %v8898 = vsel %vm753, %v8889, %v8897
        %v8899 = vrot.slane %v8650, 2
        %v8900 = vsel %vm753, %v8891, %v8899
        %v8901 = vrot.slane %v8651, 2
        %v8902 = vsel %vm753, %v8893, %v8901
        %v8903 = vrot.slane %v8652, 2
        %v8904 = vsel %vm753, %v8895, %v8903
        %v8905 = vrot.slane %v8653, 2
        %v8906 = vsel %vm753, %v8897, %v8905
        %v8907 = vrot.slane %v8654, 2
        %v8908 = vsel %vm753, %v8899, %v8907
        %v8909 = vrot.slane %v8655, 2
        %v8910 = vsel %vm753, %v8901, %v8909
        %v8911 = vrot.slane %v8656, 2
        %v8912 = vsel %vm753, %v8903, %v8911
        %v8913 = vrot.slane %v8657, 2
        %v8914 = vsel %vm753, %v8905, %v8913
        %v8915 = vrot.slane %v8658, 2
        %v8916 = vsel %vm753, %v8907, %v8915
        %v8917 = vrot.slane %v8659, 2
        %v8918 = vsel %vm753, %v8909, %v8917
        %v8919 = vrot.slane %v8660, 2
        %v8920 = vsel %vm753, %v8911, %v8919
        %v8921 = vrot.slane %v8661, 2
        %v8922 = vsel %vm753, %v8913, %v8921
        %v8923 = vrot.slane %v8662, 2
        %v8924 = vsel %vm753, %v8915, %v8923
        %v8925 = vrot.slane %v8663, 2
        %v8926 = vsel %vm753, %v8917, %v8925
        %v8927 = vrot.slane %v8664, 2
        %v8928 = vsel %vm753, %v8919, %v8927
        %v8929 = vrot.slane %v8665, 2
        %v8930 = vsel %vm753, %v8921, %v8929
        %v8931 = vrot.slane %v8666, 2
        %v8932 = vsel %vm753, %v8923, %v8931
        %v8933 = vrot.slane %v8667, 2
        %v8934 = vsel %vm753, %v8925, %v8933
        %v8935 = vrot.slane %v8668, 2
        %v8936 = vsel %vm753, %v8927, %v8935
        %v8937 = vrot.slane %v8669, 2
        %v8938 = vsel %vm753, %v8929, %v8937
        %v8939 = vrot.slane %v8670, 2
        %v8940 = vsel %vm753, %v8931, %v8939
        %v8941 = vrot.slane %v8671, 2
        %v8942 = vsel %vm753, %v8933, %v8941
        %v8943 = vrot.slane %v8672, 2
        %v8944 = vsel %vm753, %v8935, %v8943
        %v8945 = vrot.slane %v8673, 2
        %v8946 = vsel %vm753, %v8937, %v8945
        %v8947 = vrot.slane %v8674, 2
        %v8948 = vsel %vm753, %v8939, %v8947
        %v8949 = vrot.slane %v8675, 2
        %v8950 = vsel %vm753, %v8941, %v8949
        %v8951 = vrot.slane %v8676, 2
        %v8952 = vsel %vm753, %v8943, %v8951
        %v8953 = vrot.slane %v8677, 2
        %v8954 = vsel %vm753, %v8945, %v8953
        %v8955 = vrot.slane %v8678, 2
        %v8956 = vsel %vm753, %v8947, %v8955
        %v8957 = vrot.slane %v8679, 2
        %v8958 = vsel %vm753, %v8949, %v8957
        %v8959 = vrot.slane %v8680, 2
        %v8960 = vsel %vm753, %v8951, %v8959
        %v8961 = vrot.slane %v8681, 2
        %v8962 = vsel %vm753, %v8953, %v8961
        %v8963 = vrot.slane %v8682, 2
        %v8964 = vsel %vm753, %v8955, %v8963
        %v8965 = vrot.slane %v8683, 2
        %v8966 = vsel %vm753, %v8957, %v8965
        %v8967 = vrot.slane %v8684, 2
        %v8968 = vsel %vm753, %v8959, %v8967
        %v8969 = vrot.slane %v8685, 2
        %v8970 = vsel %vm753, %v8961, %v8969
        %v8971 = vrot.slane %v8686, 2
        %v8972 = vsel %vm753, %v8963, %v8971
        %v8973 = vrot.slane %v8687, 2
        %v8974 = vsel %vm753, %v8965, %v8973
        %v8975 = vrot.slane %v8688, 2
        %v8976 = vsel %vm753, %v8967, %v8975
        %v8977 = vrot.slane %v8689, 2
        %v8978 = vsel %vm753, %v8969, %v8977
        %v8979 = vrot.slane %v8690, 2
        %v8980 = vsel %vm753, %v8971, %v8979
        %v8981 = vrot.slane %v8691, 2
        %v8982 = vsel %vm753, %v8973, %v8981
        %v8983 = vrot.slane %v8692, 2
        %v8984 = vsel %vm753, %v8975, %v8983
        %v8985 = vrot.slane %v8693, 2
        %v8986 = vsel %vm753, %v8977, %v8985
        %v8987 = vrot.slane %v8694, 2
        %v8988 = vsel %vm753, %v8979, %v8987
        %v8989 = vrot.slane %v8695, 2
        %v8990 = vsel %vm753, %v8981, %v8989
        %v8991 = vrot.slane %v8696, 2
        %v8992 = vsel %vm753, %v8983, %v8991
        %v8993 = vrot.slane %v8697, 2
        %v8994 = vsel %vm753, %v8985, %v8993
        %v8995 = vrot.slane %v8698, 2
        %v8996 = vsel %vm753, %v8987, %v8995
        %v8997 = vrot.slane %v8699, 2
        %v8998 = vsel %vm753, %v8989, %v8997
        %v8999 = vrot.slane %v8700, 2
        %v9000 = vsel %vm753, %v8991, %v8999
        %v9001 = vrot.slane %v8701, 2
        %v9002 = vsel %vm753, %v8993, %v9001
        %v9003 = vrot.slane %v8702, 2
        %v9004 = vsel %vm753, %v8995, %v9003
        %v9005 = vrot.slane %v8703, 2
        %v9006 = vsel %vm753, %v8997, %v9005
        %v9007 = vrot.slane %v8704, 2
        %v9008 = vsel %vm753, %v8999, %v9007
        %v9009 = vrot.slane %v8705, 2
        %v9010 = vsel %vm753, %v9001, %v9009
        %v9011 = vrot.slane %v8706, 2
        %v9012 = vsel %vm753, %v9003, %v9011
        %v9013 = vrot.slane %v8707, 2
        %v9014 = vsel %vm753, %v9005, %v9013
        %v9015 = vrot.slane %v8708, 2
        %v9016 = vsel %vm753, %v9007, %v9015
        %v9017 = vrot.slane %v8709, 2
        %v9018 = vsel %vm753, %v9009, %v9017
        %v9019 = vrot.slane %v8710, 2
        %v9020 = vsel %vm753, %v9011, %v9019
        %v9021 = vrot.slane %v8711, 2
        %v9022 = vsel %vm753, %v9013, %v9021
        %v9023 = vrot.slane %v8712, 2
        %v9024 = vsel %vm753, %v9015, %v9023
        %v9025 = vrot.slane %v8713, 2
        %v9026 = vsel %vm753, %v9017, %v9025
        %v9027 = vrot.slane %v8714, 2
        %v9028 = vsel %vm753, %v9019, %v9027
        %v9029 = vrot.slane %v8715, 2
        %v9030 = vsel %vm753, %v9021, %v9029
        %v9031 = vrot.slane %v8716, 2
        %v9032 = vsel %vm753, %v9023, %v9031
        %v9033 = vrot.slane %v8717, 2
        %v9034 = vsel %vm753, %v9025, %v9033
        %v9035 = vrot.slane %v8718, 2
        %v9036 = vsel %vm753, %v9027, %v9035
        %v9037 = vrot.slane %v8719, 2
        %v9038 = vsel %vm753, %v9029, %v9037
        %v9039 = vrot.slane %v8720, 2
        %v9040 = vsel %vm753, %v9031, %v9039
        %v9149 = vmax.f32 %v8613, %v8831
        %v9150 = vmax.f32 %v8614, %v8834
        %v9151 = vmax.f32 %v8615, %v8837
        %v9152 = vmax.f32 %v8616, %v8840
        %v9153 = vmax.f32 %v8617, %v8842
        %v9154 = vmax.f32 %v8618, %v8844
        %v9155 = vmax.f32 %v8619, %v8846
        %v9156 = vmax.f32 %v8620, %v8848
        %v9157 = vmax.f32 %v8621, %v8850
        %v9158 = vmax.f32 %v8622, %v8852
        %v9159 = vmax.f32 %v8623, %v8854
        %v9160 = vmax.f32 %v8624, %v8856
        %v9161 = vmax.f32 %v8625, %v8858
        %v9162 = vmax.f32 %v8626, %v8860
        %v9163 = vmax.f32 %v8627, %v8862
        %v9164 = vmax.f32 %v8628, %v8864
        %v9165 = vmax.f32 %v8629, %v8866
        %v9166 = vmax.f32 %v8630, %v8868
        %v9167 = vmax.f32 %v8631, %v8870
        %v9168 = vmax.f32 %v8632, %v8872
        %v9169 = vmax.f32 %v8633, %v8874
        %v9170 = vmax.f32 %v8634, %v8876
        %v9171 = vmax.f32 %v8635, %v8878
        %v9172 = vmax.f32 %v8636, %v8880
        %v9173 = vmax.f32 %v8637, %v8882
        %v9174 = vmax.f32 %v8638, %v8884
        %v9175 = vmax.f32 %v8639, %v8886
        %v9176 = vmax.f32 %v8640, %v8888
        %v9177 = vmax.f32 %v8641, %v8890
        %v9178 = vmax.f32 %v8642, %v8892
        %v9179 = vmax.f32 %v8643, %v8894
        %v9180 = vmax.f32 %v8644, %v8896
        %v9181 = vmax.f32 %v8645, %v8898
        %v9182 = vmax.f32 %v8646, %v8900
        %v9183 = vmax.f32 %v8647, %v8902
        %v9184 = vmax.f32 %v8648, %v8904
        %v9185 = vmax.f32 %v8649, %v8906
        %v9186 = vmax.f32 %v8650, %v8908
        %v9187 = vmax.f32 %v8651, %v8910
        %v9188 = vmax.f32 %v8652, %v8912
        %v9189 = vmax.f32 %v8653, %v8914
        %v9190 = vmax.f32 %v8654, %v8916
        %v9191 = vmax.f32 %v8655, %v8918
        %v9192 = vmax.f32 %v8656, %v8920
        %v9193 = vmax.f32 %v8657, %v8922
        %v9194 = vmax.f32 %v8658, %v8924
        %v9195 = vmax.f32 %v8659, %v8926
        %v9196 = vmax.f32 %v8660, %v8928
        %v9197 = vmax.f32 %v8661, %v8930
        %v9198 = vmax.f32 %v8662, %v8932
        %v9199 = vmax.f32 %v8663, %v8934
        %v9200 = vmax.f32 %v8664, %v8936
        %v9201 = vmax.f32 %v8665, %v8938
        %v9202 = vmax.f32 %v8666, %v8940
        %v9203 = vmax.f32 %v8667, %v8942
        %v9204 = vmax.f32 %v8668, %v8944
        %v9205 = vmax.f32 %v8669, %v8946
        %v9206 = vmax.f32 %v8670, %v8948
        %v9207 = vmax.f32 %v8671, %v8950
        %v9208 = vmax.f32 %v8672, %v8952
        %v9209 = vmax.f32 %v8673, %v8954
        %v9210 = vmax.f32 %v8674, %v8956
        %v9211 = vmax.f32 %v8675, %v8958
        %v9212 = vmax.f32 %v8676, %v8960
        %v9213 = vmax.f32 %v8677, %v8962
        %v9214 = vmax.f32 %v8678, %v8964
        %v9215 = vmax.f32 %v8679, %v8966
        %v9216 = vmax.f32 %v8680, %v8968
        %v9217 = vmax.f32 %v8681, %v8970
        %v9218 = vmax.f32 %v8682, %v8972
        %v9219 = vmax.f32 %v8683, %v8974
        %v9220 = vmax.f32 %v8684, %v8976
        %v9221 = vmax.f32 %v8685, %v8978
        %v9222 = vmax.f32 %v8686, %v8980
        %v9223 = vmax.f32 %v8687, %v8982
        %v9224 = vmax.f32 %v8688, %v8984
        %v9225 = vmax.f32 %v8689, %v8986
        %v9226 = vmax.f32 %v8690, %v8988
        %v9227 = vmax.f32 %v8691, %v8990
        %v9228 = vmax.f32 %v8692, %v8992
        %v9229 = vmax.f32 %v8693, %v8994
        %v9230 = vmax.f32 %v8694, %v8996
        %v9231 = vmax.f32 %v8695, %v8998
        %v9232 = vmax.f32 %v8696, %v9000
        %v9233 = vmax.f32 %v8697, %v9002
        %v9234 = vmax.f32 %v8698, %v9004
        %v9235 = vmax.f32 %v8699, %v9006
        %v9236 = vmax.f32 %v8700, %v9008
        %v9237 = vmax.f32 %v8701, %v9010
        %v9238 = vmax.f32 %v8702, %v9012
        %v9239 = vmax.f32 %v8703, %v9014
        %v9240 = vmax.f32 %v8704, %v9016
        %v9241 = vmax.f32 %v8705, %v9018
        %v9242 = vmax.f32 %v8706, %v9020
        %v9243 = vmax.f32 %v8707, %v9022
        %v9244 = vmax.f32 %v8708, %v9024
        %v9245 = vmax.f32 %v8709, %v9026
        %v9246 = vmax.f32 %v8710, %v9028
        %v9247 = vmax.f32 %v8711, %v9030
        %v9248 = vmax.f32 %v8712, %v9032
        %v9249 = vmax.f32 %v8713, %v9034
        %v9250 = vmax.f32 %v8714, %v9036
        %v9251 = vmax.f32 %v8715, %v9038
        %v9252 = vmax.f32 %v8716, %v9040
        %v9253 = vmax.f32 %v8717, %v9033
        %v9254 = vmax.f32 %v8718, %v9035
        %v9255 = vmax.f32 %v8719, %v9037
        %v9256 = vmax.f32 %v8720, %v9039
        %v9257 = vmax.f32 %v9149, %v9151
        %v9258 = vmax.f32 %v9150, %v9152
        %v9259 = vmax.f32 %v9153, %v9155
        %v9260 = vmax.f32 %v9154, %v9156
        %v9261 = vmax.f32 %v9157, %v9159
        %v9262 = vmax.f32 %v9158, %v9160
        %v9263 = vmax.f32 %v9161, %v9163
        %v9264 = vmax.f32 %v9162, %v9164
        %v9265 = vmax.f32 %v9165, %v9167
        %v9266 = vmax.f32 %v9166, %v9168
        %v9267 = vmax.f32 %v9169, %v9171
        %v9268 = vmax.f32 %v9170, %v9172
        %v9269 = vmax.f32 %v9173, %v9175
        %v9270 = vmax.f32 %v9174, %v9176
        %v9271 = vmax.f32 %v9177, %v9179
        %v9272 = vmax.f32 %v9178, %v9180
        %v9273 = vmax.f32 %v9181, %v9183
        %v9274 = vmax.f32 %v9182, %v9184
        %v9275 = vmax.f32 %v9185, %v9187
        %v9276 = vmax.f32 %v9186, %v9188
        %v9277 = vmax.f32 %v9189, %v9191
        %v9278 = vmax.f32 %v9190, %v9192
        %v9279 = vmax.f32 %v9193, %v9195
        %v9280 = vmax.f32 %v9194, %v9196
        %v9281 = vmax.f32 %v9197, %v9199
        %v9282 = vmax.f32 %v9198, %v9200
        %v9283 = vmax.f32 %v9201, %v9203
        %v9284 = vmax.f32 %v9202, %v9204
        %v9285 = vmax.f32 %v9205, %v9207
        %v9286 = vmax.f32 %v9206, %v9208
        %v9287 = vmax.f32 %v9209, %v9211
        %v9288 = vmax.f32 %v9210, %v9212
        %v9289 = vmax.f32 %v9213, %v9215
        %v9290 = vmax.f32 %v9214, %v9216
        %v9291 = vmax.f32 %v9217, %v9219
        %v9292 = vmax.f32 %v9218, %v9220
        %v9293 = vmax.f32 %v9221, %v9223
        %v9294 = vmax.f32 %v9222, %v9224
        %v9295 = vmax.f32 %v9225, %v9227
        %v9296 = vmax.f32 %v9226, %v9228
        %v9297 = vmax.f32 %v9229, %v9231
        %v9298 = vmax.f32 %v9230, %v9232
        %v9299 = vmax.f32 %v9233, %v9235
        %v9300 = vmax.f32 %v9234, %v9236
        %v9301 = vmax.f32 %v9237, %v9239
        %v9302 = vmax.f32 %v9238, %v9240
        %v9303 = vmax.f32 %v9241, %v9243
        %v9304 = vmax.f32 %v9242, %v9244
        %v9305 = vmax.f32 %v9245, %v9247
        %v9306 = vmax.f32 %v9246, %v9248
        %v9307 = vmax.f32 %v9249, %v9251
        %v9308 = vmax.f32 %v9250, %v9252
        %v9309 = vmax.f32 %v9253, %v9255
        %v9310 = vmax.f32 %v9254, %v9256
        %v9311 = vpack.c.bf16 %v9259, %v9257
        %v9312 = vpack.c.bf16 %v9260, %v9258
        %v9313 = vpack.c.bf16 %v9263, %v9261
        %v9314 = vpack.c.bf16 %v9264, %v9262
        %v9315 = vpack.c.bf16 %v9267, %v9265
        %v9316 = vpack.c.bf16 %v9268, %v9266
        %v9317 = vpack.c.bf16 %v9271, %v9269
        %v9318 = vpack.c.bf16 %v9272, %v9270
        %v9319 = vpack.c.bf16 %v9275, %v9273
        %v9320 = vpack.c.bf16 %v9276, %v9274
        %v9321 = vpack.c.bf16 %v9279, %v9277
        %v9322 = vpack.c.bf16 %v9280, %v9278
        %v9323 = vpack.c.bf16 %v9283, %v9281
        %v9324 = vpack.c.bf16 %v9284, %v9282
        %v9325 = vpack.c.bf16 %v9287, %v9285
        %v9326 = vpack.c.bf16 %v9288, %v9286
        %v9327 = vpack.c.bf16 %v9291, %v9289
        %v9328 = vpack.c.bf16 %v9292, %v9290
        %v9329 = vpack.c.bf16 %v9295, %v9293
        %v9330 = vpack.c.bf16 %v9296, %v9294
        %v9331 = vpack.c.bf16 %v9299, %v9297
        %v9332 = vpack.c.bf16 %v9300, %v9298
        %v9333 = vpack.c.bf16 %v9303, %v9301
        %v9334 = vpack.c.bf16 %v9304, %v9302
        %v9335 = vpack.c.bf16 %v9307, %v9305
        %v9336 = vpack.c.bf16 %v9308, %v9306
        %v9337 = vpack.c.bf16 %v9309, %v9309
        %v9338 = vpack.c.bf16 %v9310, %v9310
        %v9339 = vld [vmem:[#allocation13] sm:$0xf]
        %v9340 = vld [vmem:[#allocation17] sm:$0xff]
        %v9342 = vunpack.c.l.b16 %v9340
        %v9343 = vunpack.c.h.b16 %v9340
        %v9344 = vpack.c.b16 %v9342, %v9342
        %v9345 = vpack.c.b16 %v9343, %v9343
        %vm9347 = vcmask 662528
        %v9349 = vsel %vm9347, %v9345, 0
        %vm9351 = vcmask 1040384
        %v9352 = vsel 0, 4294967295, 65535
        %v9353 = vsel %vm9351, %v9352, 0
        %v9355 = vand.u32 %v9337, %v9353
        %v9358 = vand.u32 %v9338, %v9353
        %9360 = vmatprep.subr.bf16.mxu0 %v9312
        %9361 = vmatpush1.bf16.msra.mxu0 %v9311
        %9362 = vmatprep.subr.bf16.mxu0 %v9314
        %9363 = vmatpush1.bf16.msra.mxu0 %v9313
        %9364 = vmatprep.subr.bf16.mxu0 %v9316
        %9365 = vmatpush1.bf16.msra.mxu0 %v9315
        %9366 = vmatprep.subr.bf16.mxu0 %v9318
        %9367 = vmatpush1.bf16.msra.mxu0 %v9317
        %9368 = vmatprep.subr.bf16.mxu0 %v9320
        %9369 = vmatpush1.bf16.msra.mxu0 %v9319
        %9370 = vmatprep.subr.bf16.mxu0 %v9322
        %9371 = vmatpush1.bf16.msra.mxu0 %v9321
        %9372 = vmatprep.subr.bf16.mxu0 %v9324
        %9373 = vmatpush1.bf16.msra.mxu0 %v9323
        %9374 = vmatprep.subr.bf16.mxu0 %v9326
        %9375 = vmatpush1.bf16.msra.mxu0 %v9325
        %9376 = vmatprep.subr.bf16.mxu0 %v9328
        %9377 = vmatpush1.bf16.msra.mxu0 %v9327
        %9378 = vmatprep.subr.bf16.mxu0 %v9330
        %9379 = vmatpush1.bf16.msra.mxu0 %v9329
        %9380 = vmatprep.subr.bf16.mxu0 %v9332
        %9381 = vmatpush1.bf16.msra.mxu0 %v9331
        %9382 = vmatprep.subr.bf16.mxu0 %v9334
        %9383 = vmatpush1.bf16.msra.mxu0 %v9333
        %9384 = vmatprep.subr.bf16.mxu0 %v9336
        %9385 = vmatpush1.bf16.msra.mxu0 %v9335
        %9386 = vmatprep.subr.bf16.mxu0 %v9358
        %9387 = vmatpush1.bf16.msra.mxu0 %v9355
        %9388 = vmatprep.subr.bf16.mxu0 0
        %9389 = vmatpush1.bf16.msra.mxu0 0
        %9390 = vmatprep.subr.bf16.mxu0 0
        %9391 = vmatpush1.bf16.msra.mxu0 0
        %9392 = vmatprep.mubr.bf16.mxu0 %v9349
        %9393 = vmatmul.mubr.bf16.gmra.mrb[0].mxu0 %v9344
        %v9394 = vpop.f32.mrb[0].mxu0
        %v9395 = vadd.f32 0.0, %v9394
        %v9396 = vpop.f32.mrb[0].mxu0
        %v9397 = vadd.f32 0.0, %v9396
        %v9398 = vpop.f32.mrb[0].mxu0
        %v9399 = vpop.f32.mrb[0].mxu0
        %9400 = vdwg.mxu0
        %v9401 = vpack.c.bf16 %v9395, %v9395
        %v9402 = vpack.c.bf16 %v9397, %v9397
        %v9403 = vld [vmem:[#allocation11] sm:$0xff]
        %v9404 = vld [vmem:[#allocation11 + $0x8] sm:$0xff]
        %v9405 = vld [vmem:[#allocation11 + $0x10] sm:$0xff]
        %v9406 = vld [vmem:[#allocation11 + $0x18] sm:$0xff]
        %v9407 = vld [vmem:[#allocation11 + $0x20] sm:$0xff]
        %v9408 = vld [vmem:[#allocation11 + $0x28] sm:$0xff]
        %v9409 = vld [vmem:[#allocation11 + $0x30] sm:$0xff]
        %v9410 = vld [vmem:[#allocation11 + $0x38] sm:$0xff]
        %v9411 = vld [vmem:[#allocation11 + $0x40] sm:$0xff]
        %v9412 = vld [vmem:[#allocation11 + $0x48] sm:$0xff]
        %v9413 = vld [vmem:[#allocation11 + $0x50] sm:$0xff]
        %v9414 = vld [vmem:[#allocation11 + $0x58] sm:$0xff]
        %v9415 = vld [vmem:[#allocation11 + $0x60] sm:$0xff]
        %v9416 = vld [vmem:[#allocation11 + $0x68] sm:$0xff]
        %v9417 = vld [vmem:[#allocation11 + $0x70] sm:$0xff]
        %v9418 = vld [vmem:[#allocation11 + $0x78] sm:$0xff]
        %v9419 = vld [vmem:[#allocation11 + $0x80] sm:$0xff]
        %v9420 = vld [vmem:[#allocation11 + $0x88] sm:$0xff]
        %v9421 = vld [vmem:[#allocation11 + $0x90] sm:$0xff]
        %v9422 = vld [vmem:[#allocation11 + $0x98] sm:$0xff]
        %v9423 = vld [vmem:[#allocation11 + $0xa0] sm:$0xff]
        %v9424 = vld [vmem:[#allocation11 + $0xa8] sm:$0xff]
        %v9425 = vld [vmem:[#allocation11 + $0xb0] sm:$0xff]
        %v9426 = vld [vmem:[#allocation11 + $0xb8] sm:$0xff]
        %v9427 = vld [vmem:[#allocation11 + $0xc0] sm:$0xff]
        %v9428 = vld [vmem:[#allocation11 + $0xc8] sm:$0xff]
        %v9429 = vld [vmem:[#allocation11 + $0xd0] sm:$0xff]
        %v9430 = vld [vmem:[#allocation11 + $0xd8] sm:$0xff]
        %v9431 = vld [vmem:[#allocation11 + $0xe0] sm:$0xff]
        %v9432 = vld [vmem:[#allocation11 + $0xe8] sm:$0xff]
        %v9433 = vld [vmem:[#allocation11 + $0xf0] sm:$0xff]
        %v9434 = vld [vmem:[#allocation11 + $0xf8] sm:$0xff]
        %v9435 = vld [vmem:[#allocation11 + $0x100] sm:$0xff]
        %v9436 = vld [vmem:[#allocation11 + $0x108] sm:$0xff]
        %v9437 = vld [vmem:[#allocation11 + $0x110] sm:$0xff]
        %v9438 = vld [vmem:[#allocation11 + $0x118] sm:$0xff]
        %v9439 = vld [vmem:[#allocation11 + $0x120] sm:$0xff]
        %v9440 = vld [vmem:[#allocation11 + $0x128] sm:$0xff]
        %v9441 = vld [vmem:[#allocation11 + $0x130] sm:$0xff]
        %v9442 = vld [vmem:[#allocation11 + $0x138] sm:$0xff]
        %v9443 = vld [vmem:[#allocation11 + $0x140] sm:$0xff]
        %v9444 = vld [vmem:[#allocation11 + $0x148] sm:$0xff]
        %v9445 = vld [vmem:[#allocation11 + $0x150] sm:$0xff]
        %v9446 = vld [vmem:[#allocation11 + $0x158] sm:$0xff]
        %v9447 = vld [vmem:[#allocation11 + $0x160] sm:$0xff]
        %v9448 = vld [vmem:[#allocation11 + $0x168] sm:$0xff]
        %v9449 = vld [vmem:[#allocation11 + $0x170] sm:$0xff]
        %v9450 = vld [vmem:[#allocation11 + $0x178] sm:$0xff]
        %v9451 = vld [vmem:[#allocation11 + $0x180] sm:$0xff]
        %v9452 = vld [vmem:[#allocation11 + $0x188] sm:$0xff]
        %v9453 = vld [vmem:[#allocation11 + $0x190] sm:$0xff]
        %v9454 = vld [vmem:[#allocation11 + $0x198] sm:$0xff]
        %v9455 = vld [vmem:[#allocation11 + $0x1a0] sm:$0xff]
        %v9456 = vld [vmem:[#allocation11 + $0x1a8] sm:$0xff]
        %v9457 = vld [vmem:[#allocation11 + $0x1b0] sm:$0xff]
        %v9458 = vld [vmem:[#allocation11 + $0x1b8] sm:$0xff]
        %v9459 = vld [vmem:[#allocation11 + $0x1c0] sm:$0xff]
        %v9460 = vld [vmem:[#allocation11 + $0x1c8] sm:$0xff]
        %v9461 = vld [vmem:[#allocation11 + $0x1d0] sm:$0xff]
        %v9462 = vld [vmem:[#allocation11 + $0x1d8] sm:$0xff]
        %v9463 = vld [vmem:[#allocation11 + $0x1e0] sm:$0xff]
        %v9464 = vld [vmem:[#allocation11 + $0x1e8] sm:$0xff]
        %v9465 = vld [vmem:[#allocation11 + $0x1f0] sm:$0xff]
        %v9466 = vld [vmem:[#allocation11 + $0x1f8] sm:$0xff]
        %v9531 = vunpack.c.l.b16 %v9403
        %v9532 = vunpack.c.h.b16 %v9403
        %v9533 = vunpack.c.l.b16 %v9404
        %v9534 = vunpack.c.h.b16 %v9404
        %v9535 = vunpack.c.l.b16 %v9405
        %v9536 = vunpack.c.h.b16 %v9405
        %v9537 = vunpack.c.l.b16 %v9406
        %v9538 = vunpack.c.h.b16 %v9406
        %v9539 = vunpack.c.l.b16 %v9407
        %v9540 = vunpack.c.h.b16 %v9407
        %v9541 = vunpack.c.l.b16 %v9408
        %v9542 = vunpack.c.h.b16 %v9408
        %v9543 = vunpack.c.l.b16 %v9409
        %v9544 = vunpack.c.h.b16 %v9409
        %v9545 = vunpack.c.l.b16 %v9410
        %v9546 = vunpack.c.h.b16 %v9410
        %v9547 = vunpack.c.l.b16 %v9411
        %v9548 = vunpack.c.h.b16 %v9411
        %v9549 = vunpack.c.l.b16 %v9412
        %v9550 = vunpack.c.h.b16 %v9412
        %v9551 = vunpack.c.l.b16 %v9413
        %v9552 = vunpack.c.h.b16 %v9413
        %v9553 = vunpack.c.l.b16 %v9414
        %v9554 = vunpack.c.h.b16 %v9414
        %v9555 = vunpack.c.l.b16 %v9415
        %v9556 = vunpack.c.h.b16 %v9415
        %v9557 = vunpack.c.l.b16 %v9416
        %v9558 = vunpack.c.h.b16 %v9416
        %v9559 = vunpack.c.l.b16 %v9417
        %v9560 = vunpack.c.h.b16 %v9417
        %v9561 = vunpack.c.l.b16 %v9418
        %v9562 = vunpack.c.h.b16 %v9418
        %v9563 = vunpack.c.l.b16 %v9419
        %v9564 = vunpack.c.h.b16 %v9419
        %v9565 = vunpack.c.l.b16 %v9420
        %v9566 = vunpack.c.h.b16 %v9420
        %v9567 = vunpack.c.l.b16 %v9421
        %v9568 = vunpack.c.h.b16 %v9421
        %v9569 = vunpack.c.l.b16 %v9422
        %v9570 = vunpack.c.h.b16 %v9422
        %v9571 = vunpack.c.l.b16 %v9423
        %v9572 = vunpack.c.h.b16 %v9423
        %v9573 = vunpack.c.l.b16 %v9424
        %v9574 = vunpack.c.h.b16 %v9424
        %v9575 = vunpack.c.l.b16 %v9425
        %v9576 = vunpack.c.h.b16 %v9425
        %v9577 = vunpack.c.l.b16 %v9426
        %v9578 = vunpack.c.h.b16 %v9426
        %v9579 = vunpack.c.l.b16 %v9427
        %v9580 = vunpack.c.h.b16 %v9427
        %v9581 = vunpack.c.l.b16 %v9428
        %v9582 = vunpack.c.h.b16 %v9428
        %v9583 = vunpack.c.l.b16 %v9429
        %v9584 = vunpack.c.h.b16 %v9429
        %v9585 = vunpack.c.l.b16 %v9430
        %v9586 = vunpack.c.h.b16 %v9430
        %v9587 = vunpack.c.l.b16 %v9431
        %v9588 = vunpack.c.h.b16 %v9431
        %v9589 = vunpack.c.l.b16 %v9432
        %v9590 = vunpack.c.h.b16 %v9432
        %v9591 = vunpack.c.l.b16 %v9433
        %v9592 = vunpack.c.h.b16 %v9433
        %v9593 = vunpack.c.l.b16 %v9434
        %v9594 = vunpack.c.h.b16 %v9434
        %v9595 = vunpack.c.l.b16 %v9435
        %v9596 = vunpack.c.h.b16 %v9435
        %v9597 = vunpack.c.l.b16 %v9436
        %v9598 = vunpack.c.h.b16 %v9436
        %v9599 = vunpack.c.l.b16 %v9437
        %v9600 = vunpack.c.h.b16 %v9437
        %v9601 = vunpack.c.l.b16 %v9438
        %v9602 = vunpack.c.h.b16 %v9438
        %v9603 = vunpack.c.l.b16 %v9439
        %v9604 = vunpack.c.h.b16 %v9439
        %v9605 = vunpack.c.l.b16 %v9440
        %v9606 = vunpack.c.h.b16 %v9440
        %v9607 = vunpack.c.l.b16 %v9441
        %v9608 = vunpack.c.h.b16 %v9441
        %v9609 = vunpack.c.l.b16 %v9442
        %v9610 = vunpack.c.h.b16 %v9442
        %v9611 = vunpack.c.l.b16 %v9443
        %v9612 = vunpack.c.h.b16 %v9443
        %v9613 = vunpack.c.l.b16 %v9444
        %v9614 = vunpack.c.h.b16 %v9444
        %v9615 = vunpack.c.l.b16 %v9445
        %v9616 = vunpack.c.h.b16 %v9445
        %v9617 = vunpack.c.l.b16 %v9446
        %v9618 = vunpack.c.h.b16 %v9446
        %v9619 = vunpack.c.l.b16 %v9447
        %v9620 = vunpack.c.h.b16 %v9447
        %v9621 = vunpack.c.l.b16 %v9448
        %v9622 = vunpack.c.h.b16 %v9448
        %v9623 = vunpack.c.l.b16 %v9449
        %v9624 = vunpack.c.h.b16 %v9449
        %v9625 = vunpack.c.l.b16 %v9450
        %v9626 = vunpack.c.h.b16 %v9450
        %v9627 = vunpack.c.l.b16 %v9451
        %v9628 = vunpack.c.h.b16 %v9451
        %v9629 = vunpack.c.l.b16 %v9452
        %v9630 = vunpack.c.h.b16 %v9452
        %v9631 = vunpack.c.l.b16 %v9453
        %v9632 = vunpack.c.h.b16 %v9453
        %v9633 = vunpack.c.l.b16 %v9454
        %v9634 = vunpack.c.h.b16 %v9454
        %v9635 = vunpack.c.l.b16 %v9455
        %v9636 = vunpack.c.h.b16 %v9455
        %v9637 = vunpack.c.l.b16 %v9456
        %v9638 = vunpack.c.h.b16 %v9456
        %v9639 = vunpack.c.l.b16 %v9457
        %v9640 = vunpack.c.h.b16 %v9457
        %v9641 = vunpack.c.l.b16 %v9458
        %v9642 = vunpack.c.h.b16 %v9458
        %v9643 = vunpack.c.l.b16 %v9459
        %v9644 = vunpack.c.h.b16 %v9459
        %v9645 = vunpack.c.l.b16 %v9460
        %v9646 = vunpack.c.h.b16 %v9460
        %v9647 = vunpack.c.l.b16 %v9461
        %v9648 = vunpack.c.h.b16 %v9461
        %v9649 = vunpack.c.l.b16 %v9462
        %v9650 = vunpack.c.h.b16 %v9462
        %v9651 = vunpack.c.l.b16 %v9463
        %v9652 = vunpack.c.h.b16 %v9463
        %v9653 = vunpack.c.l.b16 %v9464
        %v9654 = vunpack.c.h.b16 %v9464
        %v9655 = vunpack.c.l.b16 %v9465
        %v9656 = vunpack.c.h.b16 %v9465
        %v9657 = vunpack.c.l.b16 %v9466
        %v9658 = vunpack.c.h.b16 %v9466
        %v9659 = vpack.c.b16 %v9535, %v9531
        %v9660 = vpack.c.b16 %v9536, %v9532
        %v9661 = vpack.c.b16 %v9537, %v9533
        %v9662 = vpack.c.b16 %v9538, %v9534
        %v9663 = vpack.c.b16 %v9543, %v9539
        %v9664 = vpack.c.b16 %v9544, %v9540
        %v9665 = vpack.c.b16 %v9545, %v9541
        %v9666 = vpack.c.b16 %v9546, %v9542
        %v9667 = vpack.c.b16 %v9551, %v9547
        %v9668 = vpack.c.b16 %v9552, %v9548
        %v9669 = vpack.c.b16 %v9553, %v9549
        %v9670 = vpack.c.b16 %v9554, %v9550
        %v9671 = vpack.c.b16 %v9559, %v9555
        %v9672 = vpack.c.b16 %v9560, %v9556
        %v9673 = vpack.c.b16 %v9561, %v9557
        %v9674 = vpack.c.b16 %v9562, %v9558
        %v9675 = vpack.c.b16 %v9567, %v9563
        %v9676 = vpack.c.b16 %v9568, %v9564
        %v9677 = vpack.c.b16 %v9569, %v9565
        %v9678 = vpack.c.b16 %v9570, %v9566
        %v9679 = vpack.c.b16 %v9575, %v9571
        %v9680 = vpack.c.b16 %v9576, %v9572
        %v9681 = vpack.c.b16 %v9577, %v9573
        %v9682 = vpack.c.b16 %v9578, %v9574
        %v9683 = vpack.c.b16 %v9583, %v9579
        %v9684 = vpack.c.b16 %v9584, %v9580
        %v9685 = vpack.c.b16 %v9585, %v9581
        %v9686 = vpack.c.b16 %v9586, %v9582
        %v9687 = vpack.c.b16 %v9591, %v9587
        %v9688 = vpack.c.b16 %v9592, %v9588
        %v9689 = vpack.c.b16 %v9593, %v9589
        %v9690 = vpack.c.b16 %v9594, %v9590
        %v9691 = vpack.c.b16 %v9599, %v9595
        %v9692 = vpack.c.b16 %v9600, %v9596
        %v9693 = vpack.c.b16 %v9601, %v9597
        %v9694 = vpack.c.b16 %v9602, %v9598
        %v9695 = vpack.c.b16 %v9607, %v9603
        %v9696 = vpack.c.b16 %v9608, %v9604
        %v9697 = vpack.c.b16 %v9609, %v9605
        %v9698 = vpack.c.b16 %v9610, %v9606
        %v9699 = vpack.c.b16 %v9615, %v9611
        %v9700 = vpack.c.b16 %v9616, %v9612
        %v9701 = vpack.c.b16 %v9617, %v9613
        %v9702 = vpack.c.b16 %v9618, %v9614
        %v9703 = vpack.c.b16 %v9623, %v9619
        %v9704 = vpack.c.b16 %v9624, %v9620
        %v9705 = vpack.c.b16 %v9625, %v9621
        %v9706 = vpack.c.b16 %v9626, %v9622
        %v9707 = vpack.c.b16 %v9631, %v9627
        %v9708 = vpack.c.b16 %v9632, %v9628
        %v9709 = vpack.c.b16 %v9633, %v9629
        %v9710 = vpack.c.b16 %v9634, %v9630
        %v9711 = vpack.c.b16 %v9639, %v9635
        %v9712 = vpack.c.b16 %v9640, %v9636
        %v9713 = vpack.c.b16 %v9641, %v9637
        %v9714 = vpack.c.b16 %v9642, %v9638
        %v9715 = vpack.c.b16 %v9647, %v9643
        %v9716 = vpack.c.b16 %v9648, %v9644
        %v9717 = vpack.c.b16 %v9649, %v9645
        %v9718 = vpack.c.b16 %v9650, %v9646
        %v9719 = vpack.c.b16 %v9655, %v9651
        %v9720 = vpack.c.b16 %v9656, %v9652
        %v9721 = vpack.c.b16 %v9657, %v9653
        %v9722 = vpack.c.b16 %v9658, %v9654
        %9787 = vmatprep.subr.bf16.mxu0 %v9660
        %9788 = vmatpush1.bf16.msra.mxu0 %v9659
        %9789 = vmatprep.subr.bf16.mxu0 %v9664
        %9790 = vmatpush1.bf16.msra.mxu0 %v9663
        %9791 = vmatprep.subr.bf16.mxu0 %v9668
        %9792 = vmatpush1.bf16.msra.mxu0 %v9667
        %9793 = vmatprep.subr.bf16.mxu0 %v9672
        %9794 = vmatpush1.bf16.msra.mxu0 %v9671
        %9795 = vmatprep.subr.bf16.mxu0 %v9676
        %9796 = vmatpush1.bf16.msra.mxu0 %v9675
        %9797 = vmatprep.subr.bf16.mxu0 %v9680
        %9798 = vmatpush1.bf16.msra.mxu0 %v9679
        %9799 = vmatprep.subr.bf16.mxu0 %v9684
        %9800 = vmatpush1.bf16.msra.mxu0 %v9683
        %9801 = vmatprep.subr.bf16.mxu0 %v9688
        %9802 = vmatpush1.bf16.msra.mxu0 %v9687
        %9803 = vmatprep.subr.bf16.mxu0 %v9692
        %9804 = vmatpush1.bf16.msra.mxu0 %v9691
        %9805 = vmatprep.subr.bf16.mxu0 %v9696
        %9806 = vmatpush1.bf16.msra.mxu0 %v9695
        %9807 = vmatprep.subr.bf16.mxu0 %v9700
        %9808 = vmatpush1.bf16.msra.mxu0 %v9699
        %9809 = vmatprep.subr.bf16.mxu0 %v9704
        %9810 = vmatpush1.bf16.msra.mxu0 %v9703
        %9811 = vmatprep.subr.bf16.mxu0 %v9708
        %9812 = vmatpush1.bf16.msra.mxu0 %v9707
        %9813 = vmatprep.subr.bf16.mxu0 %v9712
        %9814 = vmatpush1.bf16.msra.mxu0 %v9711
        %9815 = vmatprep.subr.bf16.mxu0 %v9716
        %9816 = vmatpush1.bf16.msra.mxu0 %v9715
        %9817 = vmatprep.subr.bf16.mxu0 %v9720
        %9818 = vmatpush1.bf16.msra.mxu0 %v9719
        %9819 = vmatprep.mubr.bf16.mxu0 %v9402
        %9820 = vmatmul.mubr.bf16.gmra.mrb[0].mxu0 %v9401
        %v9821 = vpop.f32.mrb[0].mxu0
        %v9822 = vadd.f32 0.0, %v9821
        %v9823 = vpop.f32.mrb[0].mxu0
        %v9824 = vadd.f32 0.0, %v9823
        %v9825 = vpop.f32.mrb[0].mxu0
        %v9826 = vpop.f32.mrb[0].mxu0
        %9827 = vdwg.mxu0
        %9828 = vmatprep.subr.bf16.mxu0 %v9662
        %9829 = vmatpush1.bf16.msra.mxu0 %v9661
        %9830 = vmatprep.subr.bf16.mxu0 %v9666
        %9831 = vmatpush1.bf16.msra.mxu0 %v9665
        %9832 = vmatprep.subr.bf16.mxu0 %v9670
        %9833 = vmatpush1.bf16.msra.mxu0 %v9669
        %9834 = vmatprep.subr.bf16.mxu0 %v9674
        %9835 = vmatpush1.bf16.msra.mxu0 %v9673
        %9836 = vmatprep.subr.bf16.mxu0 %v9678
        %9837 = vmatpush1.bf16.msra.mxu0 %v9677
        %9838 = vmatprep.subr.bf16.mxu0 %v9682
        %9839 = vmatpush1.bf16.msra.mxu0 %v9681
        %9840 = vmatprep.subr.bf16.mxu0 %v9686
        %9841 = vmatpush1.bf16.msra.mxu0 %v9685
        %9842 = vmatprep.subr.bf16.mxu0 %v9690
        %9843 = vmatpush1.bf16.msra.mxu0 %v9689
        %9844 = vmatprep.subr.bf16.mxu0 %v9694
        %9845 = vmatpush1.bf16.msra.mxu0 %v9693
        %9846 = vmatprep.subr.bf16.mxu0 %v9698
        %9847 = vmatpush1.bf16.msra.mxu0 %v9697
        %9848 = vmatprep.subr.bf16.mxu0 %v9702
        %9849 = vmatpush1.bf16.msra.mxu0 %v9701
        %9850 = vmatprep.subr.bf16.mxu0 %v9706
        %9851 = vmatpush1.bf16.msra.mxu0 %v9705
        %9852 = vmatprep.subr.bf16.mxu0 %v9710
        %9853 = vmatpush1.bf16.msra.mxu0 %v9709
        %9854 = vmatprep.subr.bf16.mxu0 %v9714
        %9855 = vmatpush1.bf16.msra.mxu0 %v9713
        %9856 = vmatprep.subr.bf16.mxu0 %v9718
        %9857 = vmatpush1.bf16.msra.mxu0 %v9717
        %9858 = vmatprep.subr.bf16.mxu0 %v9722
        %9859 = vmatpush1.bf16.msra.mxu0 %v9721
        %9860 = vmatprep.mubr.bf16.mxu0 %v9402
        %9861 = vmatmul.mubr.bf16.gmra.mrb[0].mxu0 %v9401
        %v9862 = vpop.f32.mrb[0].mxu0
        %v9863 = vadd.f32 0.0, %v9862
        %v9864 = vpop.f32.mrb[0].mxu0
        %v9865 = vadd.f32 0.0, %v9864
        %v9866 = vpop.f32.mrb[0].mxu0
        %v9867 = vpop.f32.mrb[0].mxu0
        %9868 = vdwg.mxu0
        %v9870 = vlaneseq
        %v9871 = vshrl.u32 %v9870, 7
        %v9872 = vsub.s32 0, %v9871
        %v9873 = vrot.slane %v9339, %v9872
        %v9874 = vlaneseq
        %v9875 = vshrl.u32 %v9874, 7
        %v9876 = vsub.s32 1, %v9875
        %v9877 = vrot.slane %v9339, %v9876
        %v9878 = vlaneseq
        %v9879 = vshrl.u32 %v9878, 7
        %v9880 = vsub.s32 2, %v9879
        %v9881 = vrot.slane %v9339, %v9880
        %v9882 = vlaneseq
        %v9883 = vshrl.u32 %v9882, 7
        %v9884 = vsub.s32 3, %v9883
        %v9885 = vrot.slane %v9339, %v9884
        %v9890 = vadd.f32 %v9873, %v9822
        %v9891 = vadd.f32 %v9877, %v9824
        %v9892 = vadd.f32 %v9881, %v9863
        %v9893 = vadd.f32 %v9885, %v9865
        %s9894 = scalar_lea.vmem [#allocation17], 8
        %v9895 = vld [vmem:[%s9894] sm:$0xff]
        %v9897 = vunpack.c.l.b16 %v9895
        %v9898 = vunpack.c.h.b16 %v9895
        %v9899 = vpack.c.b16 %v9897, %v9897
        %v9900 = vpack.c.b16 %v9898, %v9898
        %v9903 = vsel %vm9347, %v9900, 0
        %9905 = vmatprep.subr.bf16.mxu0 %v9312
        %9906 = vmatpush1.bf16.msra.mxu0 %v9311
        %9907 = vmatprep.subr.bf16.mxu0 %v9314
        %9908 = vmatpush1.bf16.msra.mxu0 %v9313
        %9909 = vmatprep.subr.bf16.mxu0 %v9316
        %9910 = vmatpush1.bf16.msra.mxu0 %v9315
        %9911 = vmatprep.subr.bf16.mxu0 %v9318
        %9912 = vmatpush1.bf16.msra.mxu0 %v9317
        %9913 = vmatprep.subr.bf16.mxu0 %v9320
        %9914 = vmatpush1.bf16.msra.mxu0 %v9319
        %9915 = vmatprep.subr.bf16.mxu0 %v9322
        %9916 = vmatpush1.bf16.msra.mxu0 %v9321
        %9917 = vmatprep.subr.bf16.mxu0 %v9324
        %9918 = vmatpush1.bf16.msra.mxu0 %v9323
        %9919 = vmatprep.subr.bf16.mxu0 %v9326
        %9920 = vmatpush1.bf16.msra.mxu0 %v9325
        %9921 = vmatprep.subr.bf16.mxu0 %v9328
        %9922 = vmatpush1.bf16.msra.mxu0 %v9327
        %9923 = vmatprep.subr.bf16.mxu0 %v9330
        %9924 = vmatpush1.bf16.msra.mxu0 %v9329
        %9925 = vmatprep.subr.bf16.mxu0 %v9332
        %9926 = vmatpush1.bf16.msra.mxu0 %v9331
        %9927 = vmatprep.subr.bf16.mxu0 %v9334
        %9928 = vmatpush1.bf16.msra.mxu0 %v9333
        %9929 = vmatprep.subr.bf16.mxu0 %v9336
        %9930 = vmatpush1.bf16.msra.mxu0 %v9335
        %9931 = vmatprep.subr.bf16.mxu0 %v9358
        %9932 = vmatpush1.bf16.msra.mxu0 %v9355
        %9933 = vmatprep.subr.bf16.mxu0 0
        %9934 = vmatpush1.bf16.msra.mxu0 0
        %9935 = vmatprep.subr.bf16.mxu0 0
        %9936 = vmatpush1.bf16.msra.mxu0 0
        %9937 = vmatprep.mubr.bf16.mxu0 %v9903
        %9938 = vmatmul.mubr.bf16.gmra.mrb[0].mxu0 %v9899
        %v9939 = vpop.f32.mrb[0].mxu0
        %v9940 = vadd.f32 0.0, %v9939
        %v9941 = vpop.f32.mrb[0].mxu0
        %v9942 = vadd.f32 0.0, %v9941
        %v9943 = vpop.f32.mrb[0].mxu0
        %v9944 = vpop.f32.mrb[0].mxu0
        %9945 = vdwg.mxu0
        %v9946 = vpack.c.bf16 %v9940, %v9940
        %v9947 = vpack.c.bf16 %v9942, %v9942
        %s9948 = scalar_lea.vmem [#allocation11], 512
        %v9949 = vld [vmem:[%s9948] sm:$0xff]
        %v9950 = vld [vmem:[%s9948 + $0x8] sm:$0xff]
        %v9951 = vld [vmem:[%s9948 + $0x10] sm:$0xff]
        %v9952 = vld [vmem:[%s9948 + $0x18] sm:$0xff]
        %v9953 = vld [vmem:[%s9948 + $0x20] sm:$0xff]
        %v9954 = vld [vmem:[%s9948 + $0x28] sm:$0xff]
        %v9955 = vld [vmem:[%s9948 + $0x30] sm:$0xff]
        %v9956 = vld [vmem:[%s9948 + $0x38] sm:$0xff]
        %v9957 = vld [vmem:[%s9948 + $0x40] sm:$0xff]
        %v9958 = vld [vmem:[%s9948 + $0x48] sm:$0xff]
        %v9959 = vld [vmem:[%s9948 + $0x50] sm:$0xff]
        %v9960 = vld [vmem:[%s9948 + $0x58] sm:$0xff]
        %v9961 = vld [vmem:[%s9948 + $0x60] sm:$0xff]
        %v9962 = vld [vmem:[%s9948 + $0x68] sm:$0xff]
        %v9963 = vld [vmem:[%s9948 + $0x70] sm:$0xff]
        %v9964 = vld [vmem:[%s9948 + $0x78] sm:$0xff]
        %v9965 = vld [vmem:[%s9948 + $0x80] sm:$0xff]
        %v9966 = vld [vmem:[%s9948 + $0x88] sm:$0xff]
        %v9967 = vld [vmem:[%s9948 + $0x90] sm:$0xff]
        %v9968 = vld [vmem:[%s9948 + $0x98] sm:$0xff]
        %v9969 = vld [vmem:[%s9948 + $0xa0] sm:$0xff]
        %v9970 = vld [vmem:[%s9948 + $0xa8] sm:$0xff]
        %v9971 = vld [vmem:[%s9948 + $0xb0] sm:$0xff]
        %v9972 = vld [vmem:[%s9948 + $0xb8] sm:$0xff]
        %v9973 = vld [vmem:[%s9948 + $0xc0] sm:$0xff]
        %v9974 = vld [vmem:[%s9948 + $0xc8] sm:$0xff]
        %v9975 = vld [vmem:[%s9948 + $0xd0] sm:$0xff]
        %v9976 = vld [vmem:[%s9948 + $0xd8] sm:$0xff]
        %v9977 = vld [vmem:[%s9948 + $0xe0] sm:$0xff]
        %v9978 = vld [vmem:[%s9948 + $0xe8] sm:$0xff]
        %v9979 = vld [vmem:[%s9948 + $0xf0] sm:$0xff]
        %v9980 = vld [vmem:[%s9948 + $0xf8] sm:$0xff]
        %v9981 = vld [vmem:[%s9948 + $0x100] sm:$0xff]
        %v9982 = vld [vmem:[%s9948 + $0x108] sm:$0xff]
        %v9983 = vld [vmem:[%s9948 + $0x110] sm:$0xff]
        %v9984 = vld [vmem:[%s9948 + $0x118] sm:$0xff]
        %v9985 = vld [vmem:[%s9948 + $0x120] sm:$0xff]
        %v9986 = vld [vmem:[%s9948 + $0x128] sm:$0xff]
        %v9987 = vld [vmem:[%s9948 + $0x130] sm:$0xff]
        %v9988 = vld [vmem:[%s9948 + $0x138] sm:$0xff]
        %v9989 = vld [vmem:[%s9948 + $0x140] sm:$0xff]
        %v9990 = vld [vmem:[%s9948 + $0x148] sm:$0xff]
        %v9991 = vld [vmem:[%s9948 + $0x150] sm:$0xff]
        %v9992 = vld [vmem:[%s9948 + $0x158] sm:$0xff]
        %v9993 = vld [vmem:[%s9948 + $0x160] sm:$0xff]
        %v9994 = vld [vmem:[%s9948 + $0x168] sm:$0xff]
        %v9995 = vld [vmem:[%s9948 + $0x170] sm:$0xff]
        %v9996 = vld [vmem:[%s9948 + $0x178] sm:$0xff]
        %v9997 = vld [vmem:[%s9948 + $0x180] sm:$0xff]
        %v9998 = vld [vmem:[%s9948 + $0x188] sm:$0xff]
        %v9999 = vld [vmem:[%s9948 + $0x190] sm:$0xff]
        %v10000 = vld [vmem:[%s9948 + $0x198] sm:$0xff]
        %v10001 = vld [vmem:[%s9948 + $0x1a0] sm:$0xff]
        %v10002 = vld [vmem:[%s9948 + $0x1a8] sm:$0xff]
        %v10003 = vld [vmem:[%s9948 + $0x1b0] sm:$0xff]
        %v10004 = vld [vmem:[%s9948 + $0x1b8] sm:$0xff]
        %v10005 = vld [vmem:[%s9948 + $0x1c0] sm:$0xff]
        %v10006 = vld [vmem:[%s9948 + $0x1c8] sm:$0xff]
        %v10007 = vld [vmem:[%s9948 + $0x1d0] sm:$0xff]
        %v10008 = vld [vmem:[%s9948 + $0x1d8] sm:$0xff]
        %v10009 = vld [vmem:[%s9948 + $0x1e0] sm:$0xff]
        %v10010 = vld [vmem:[%s9948 + $0x1e8] sm:$0xff]
        %v10011 = vld [vmem:[%s9948 + $0x1f0] sm:$0xff]
        %v10012 = vld [vmem:[%s9948 + $0x1f8] sm:$0xff]
        %v10077 = vunpack.c.l.b16 %v9949
        %v10078 = vunpack.c.h.b16 %v9949
        %v10079 = vunpack.c.l.b16 %v9950
        %v10080 = vunpack.c.h.b16 %v9950
        %v10081 = vunpack.c.l.b16 %v9951
        %v10082 = vunpack.c.h.b16 %v9951
        %v10083 = vunpack.c.l.b16 %v9952
        %v10084 = vunpack.c.h.b16 %v9952
        %v10085 = vunpack.c.l.b16 %v9953
        %v10086 = vunpack.c.h.b16 %v9953
        %v10087 = vunpack.c.l.b16 %v9954
        %v10088 = vunpack.c.h.b16 %v9954
        %v10089 = vunpack.c.l.b16 %v9955
        %v10090 = vunpack.c.h.b16 %v9955
        %v10091 = vunpack.c.l.b16 %v9956
        %v10092 = vunpack.c.h.b16 %v9956
        %v10093 = vunpack.c.l.b16 %v9957
        %v10094 = vunpack.c.h.b16 %v9957
        %v10095 = vunpack.c.l.b16 %v9958
        %v10096 = vunpack.c.h.b16 %v9958
        %v10097 = vunpack.c.l.b16 %v9959
        %v10098 = vunpack.c.h.b16 %v9959
        %v10099 = vunpack.c.l.b16 %v9960
        %v10100 = vunpack.c.h.b16 %v9960
        %v10101 = vunpack.c.l.b16 %v9961
        %v10102 = vunpack.c.h.b16 %v9961
        %v10103 = vunpack.c.l.b16 %v9962
        %v10104 = vunpack.c.h.b16 %v9962
        %v10105 = vunpack.c.l.b16 %v9963
        %v10106 = vunpack.c.h.b16 %v9963
        %v10107 = vunpack.c.l.b16 %v9964
        %v10108 = vunpack.c.h.b16 %v9964
        %v10109 = vunpack.c.l.b16 %v9965
        %v10110 = vunpack.c.h.b16 %v9965
        %v10111 = vunpack.c.l.b16 %v9966
        %v10112 = vunpack.c.h.b16 %v9966
        %v10113 = vunpack.c.l.b16 %v9967
        %v10114 = vunpack.c.h.b16 %v9967
        %v10115 = vunpack.c.l.b16 %v9968
        %v10116 = vunpack.c.h.b16 %v9968
        %v10117 = vunpack.c.l.b16 %v9969
        %v10118 = vunpack.c.h.b16 %v9969
        %v10119 = vunpack.c.l.b16 %v9970
        %v10120 = vunpack.c.h.b16 %v9970
        %v10121 = vunpack.c.l.b16 %v9971
        %v10122 = vunpack.c.h.b16 %v9971
        %v10123 = vunpack.c.l.b16 %v9972
        %v10124 = vunpack.c.h.b16 %v9972
        %v10125 = vunpack.c.l.b16 %v9973
        %v10126 = vunpack.c.h.b16 %v9973
        %v10127 = vunpack.c.l.b16 %v9974
        %v10128 = vunpack.c.h.b16 %v9974
        %v10129 = vunpack.c.l.b16 %v9975
        %v10130 = vunpack.c.h.b16 %v9975
        %v10131 = vunpack.c.l.b16 %v9976
        %v10132 = vunpack.c.h.b16 %v9976
        %v10133 = vunpack.c.l.b16 %v9977
        %v10134 = vunpack.c.h.b16 %v9977
        %v10135 = vunpack.c.l.b16 %v9978
        %v10136 = vunpack.c.h.b16 %v9978
        %v10137 = vunpack.c.l.b16 %v9979
        %v10138 = vunpack.c.h.b16 %v9979
        %v10139 = vunpack.c.l.b16 %v9980
        %v10140 = vunpack.c.h.b16 %v9980
        %v10141 = vunpack.c.l.b16 %v9981
        %v10142 = vunpack.c.h.b16 %v9981
        %v10143 = vunpack.c.l.b16 %v9982
        %v10144 = vunpack.c.h.b16 %v9982
        %v10145 = vunpack.c.l.b16 %v9983
        %v10146 = vunpack.c.h.b16 %v9983
        %v10147 = vunpack.c.l.b16 %v9984
        %v10148 = vunpack.c.h.b16 %v9984
        %v10149 = vunpack.c.l.b16 %v9985
        %v10150 = vunpack.c.h.b16 %v9985
        %v10151 = vunpack.c.l.b16 %v9986
        %v10152 = vunpack.c.h.b16 %v9986
        %v10153 = vunpack.c.l.b16 %v9987
        %v10154 = vunpack.c.h.b16 %v9987
        %v10155 = vunpack.c.l.b16 %v9988
        %v10156 = vunpack.c.h.b16 %v9988
        %v10157 = vunpack.c.l.b16 %v9989
        %v10158 = vunpack.c.h.b16 %v9989
        %v10159 = vunpack.c.l.b16 %v9990
        %v10160 = vunpack.c.h.b16 %v9990
        %v10161 = vunpack.c.l.b16 %v9991
        %v10162 = vunpack.c.h.b16 %v9991
        %v10163 = vunpack.c.l.b16 %v9992
        %v10164 = vunpack.c.h.b16 %v9992
        %v10165 = vunpack.c.l.b16 %v9993
        %v10166 = vunpack.c.h.b16 %v9993
        %v10167 = vunpack.c.l.b16 %v9994
        %v10168 = vunpack.c.h.b16 %v9994
        %v10169 = vunpack.c.l.b16 %v9995
        %v10170 = vunpack.c.h.b16 %v9995
        %v10171 = vunpack.c.l.b16 %v9996
        %v10172 = vunpack.c.h.b16 %v9996
        %v10173 = vunpack.c.l.b16 %v9997
        %v10174 = vunpack.c.h.b16 %v9997
        %v10175 = vunpack.c.l.b16 %v9998
        %v10176 = vunpack.c.h.b16 %v9998
        %v10177 = vunpack.c.l.b16 %v9999
        %v10178 = vunpack.c.h.b16 %v9999
        %v10179 = vunpack.c.l.b16 %v10000
        %v10180 = vunpack.c.h.b16 %v10000
        %v10181 = vunpack.c.l.b16 %v10001
        %v10182 = vunpack.c.h.b16 %v10001
        %v10183 = vunpack.c.l.b16 %v10002
        %v10184 = vunpack.c.h.b16 %v10002
        %v10185 = vunpack.c.l.b16 %v10003
        %v10186 = vunpack.c.h.b16 %v10003
        %v10187 = vunpack.c.l.b16 %v10004
        %v10188 = vunpack.c.h.b16 %v10004
        %v10189 = vunpack.c.l.b16 %v10005
        %v10190 = vunpack.c.h.b16 %v10005
        %v10191 = vunpack.c.l.b16 %v10006
        %v10192 = vunpack.c.h.b16 %v10006
        %v10193 = vunpack.c.l.b16 %v10007
        %v10194 = vunpack.c.h.b16 %v10007
        %v10195 = vunpack.c.l.b16 %v10008
        %v10196 = vunpack.c.h.b16 %v10008
        %v10197 = vunpack.c.l.b16 %v10009
        %v10198 = vunpack.c.h.b16 %v10009
        %v10199 = vunpack.c.l.b16 %v10010
        %v10200 = vunpack.c.h.b16 %v10010
        %v10201 = vunpack.c.l.b16 %v10011
        %v10202 = vunpack.c.h.b16 %v10011
        %v10203 = vunpack.c.l.b16 %v10012
        %v10204 = vunpack.c.h.b16 %v10012
        %v10205 = vpack.c.b16 %v10081, %v10077
        %v10206 = vpack.c.b16 %v10082, %v10078
        %v10207 = vpack.c.b16 %v10083, %v10079
        %v10208 = vpack.c.b16 %v10084, %v10080
        %v10209 = vpack.c.b16 %v10089, %v10085
        %v10210 = vpack.c.b16 %v10090, %v10086
        %v10211 = vpack.c.b16 %v10091, %v10087
        %v10212 = vpack.c.b16 %v10092, %v10088
        %v10213 = vpack.c.b16 %v10097, %v10093
        %v10214 = vpack.c.b16 %v10098, %v10094
        %v10215 = vpack.c.b16 %v10099, %v10095
        %v10216 = vpack.c.b16 %v10100, %v10096
        %v10217 = vpack.c.b16 %v10105, %v10101
        %v10218 = vpack.c.b16 %v10106, %v10102
        %v10219 = vpack.c.b16 %v10107, %v10103
        %v10220 = vpack.c.b16 %v10108, %v10104
        %v10221 = vpack.c.b16 %v10113, %v10109
        %v10222 = vpack.c.b16 %v10114, %v10110
        %v10223 = vpack.c.b16 %v10115, %v10111
        %v10224 = vpack.c.b16 %v10116, %v10112
        %v10225 = vpack.c.b16 %v10121, %v10117
        %v10226 = vpack.c.b16 %v10122, %v10118
        %v10227 = vpack.c.b16 %v10123, %v10119
        %v10228 = vpack.c.b16 %v10124, %v10120
        %v10229 = vpack.c.b16 %v10129, %v10125
        %v10230 = vpack.c.b16 %v10130, %v10126
        %v10231 = vpack.c.b16 %v10131, %v10127
        %v10232 = vpack.c.b16 %v10132, %v10128
        %v10233 = vpack.c.b16 %v10137, %v10133
        %v10234 = vpack.c.b16 %v10138, %v10134
        %v10235 = vpack.c.b16 %v10139, %v10135
        %v10236 = vpack.c.b16 %v10140, %v10136
        %v10237 = vpack.c.b16 %v10145, %v10141
        %v10238 = vpack.c.b16 %v10146, %v10142
        %v10239 = vpack.c.b16 %v10147, %v10143
        %v10240 = vpack.c.b16 %v10148, %v10144
        %v10241 = vpack.c.b16 %v10153, %v10149
        %v10242 = vpack.c.b16 %v10154, %v10150
        %v10243 = vpack.c.b16 %v10155, %v10151
        %v10244 = vpack.c.b16 %v10156, %v10152
        %v10245 = vpack.c.b16 %v10161, %v10157
        %v10246 = vpack.c.b16 %v10162, %v10158
        %v10247 = vpack.c.b16 %v10163, %v10159
        %v10248 = vpack.c.b16 %v10164, %v10160
        %v10249 = vpack.c.b16 %v10169, %v10165
        %v10250 = vpack.c.b16 %v10170, %v10166
        %v10251 = vpack.c.b16 %v10171, %v10167
        %v10252 = vpack.c.b16 %v10172, %v10168
        %v10253 = vpack.c.b16 %v10177, %v10173
        %v10254 = vpack.c.b16 %v10178, %v10174
        %v10255 = vpack.c.b16 %v10179, %v10175
        %v10256 = vpack.c.b16 %v10180, %v10176
        %v10257 = vpack.c.b16 %v10185, %v10181
        %v10258 = vpack.c.b16 %v10186, %v10182
        %v10259 = vpack.c.b16 %v10187, %v10183
        %v10260 = vpack.c.b16 %v10188, %v10184
        %v10261 = vpack.c.b16 %v10193, %v10189
        %v10262 = vpack.c.b16 %v10194, %v10190
        %v10263 = vpack.c.b16 %v10195, %v10191
        %v10264 = vpack.c.b16 %v10196, %v10192
        %v10265 = vpack.c.b16 %v10201, %v10197
        %v10266 = vpack.c.b16 %v10202, %v10198
        %v10267 = vpack.c.b16 %v10203, %v10199
        %v10268 = vpack.c.b16 %v10204, %v10200
        %10333 = vmatprep.subr.bf16.mxu0 %v10206
        %10334 = vmatpush1.bf16.msra.mxu0 %v10205
        %10335 = vmatprep.subr.bf16.mxu0 %v10210
        %10336 = vmatpush1.bf16.msra.mxu0 %v10209
        %10337 = vmatprep.subr.bf16.mxu0 %v10214
        %10338 = vmatpush1.bf16.msra.mxu0 %v10213
        %10339 = vmatprep.subr.bf16.mxu0 %v10218
        %10340 = vmatpush1.bf16.msra.mxu0 %v10217
        %10341 = vmatprep.subr.bf16.mxu0 %v10222
        %10342 = vmatpush1.bf16.msra.mxu0 %v10221
        %10343 = vmatprep.subr.bf16.mxu0 %v10226
        %10344 = vmatpush1.bf16.msra.mxu0 %v10225
        %10345 = vmatprep.subr.bf16.mxu0 %v10230
        %10346 = vmatpush1.bf16.msra.mxu0 %v10229
        %10347 = vmatprep.subr.bf16.mxu0 %v10234
        %10348 = vmatpush1.bf16.msra.mxu0 %v10233
        %10349 = vmatprep.subr.bf16.mxu0 %v10238
        %10350 = vmatpush1.bf16.msra.mxu0 %v10237
        %10351 = vmatprep.subr.bf16.mxu0 %v10242
        %10352 = vmatpush1.bf16.msra.mxu0 %v10241
        %10353 = vmatprep.subr.bf16.mxu0 %v10246
        %10354 = vmatpush1.bf16.msra.mxu0 %v10245
        %10355 = vmatprep.subr.bf16.mxu0 %v10250
        %10356 = vmatpush1.bf16.msra.mxu0 %v10249
        %10357 = vmatprep.subr.bf16.mxu0 %v10254
        %10358 = vmatpush1.bf16.msra.mxu0 %v10253
        %10359 = vmatprep.subr.bf16.mxu0 %v10258
        %10360 = vmatpush1.bf16.msra.mxu0 %v10257
        %10361 = vmatprep.subr.bf16.mxu0 %v10262
        %10362 = vmatpush1.bf16.msra.mxu0 %v10261
        %10363 = vmatprep.subr.bf16.mxu0 %v10266
        %10364 = vmatpush1.bf16.msra.mxu0 %v10265
        %10365 = vmatprep.mubr.bf16.mxu0 %v9947
        %10366 = vmatmul.mubr.bf16.gmra.mrb[0].mxu0 %v9946
        %v10367 = vpop.f32.mrb[0].mxu0
        %v10368 = vadd.f32 0.0, %v10367
        %v10369 = vpop.f32.mrb[0].mxu0
        %v10370 = vadd.f32 0.0, %v10369
        %v10371 = vpop.f32.mrb[0].mxu0
        %v10372 = vpop.f32.mrb[0].mxu0
        %10373 = vdwg.mxu0
        %10374 = vmatprep.subr.bf16.mxu0 %v10208
        %10375 = vmatpush1.bf16.msra.mxu0 %v10207
        %10376 = vmatprep.subr.bf16.mxu0 %v10212
        %10377 = vmatpush1.bf16.msra.mxu0 %v10211
        %10378 = vmatprep.subr.bf16.mxu0 %v10216
        %10379 = vmatpush1.bf16.msra.mxu0 %v10215
        %10380 = vmatprep.subr.bf16.mxu0 %v10220
        %10381 = vmatpush1.bf16.msra.mxu0 %v10219
        %10382 = vmatprep.subr.bf16.mxu0 %v10224
        %10383 = vmatpush1.bf16.msra.mxu0 %v10223
        %10384 = vmatprep.subr.bf16.mxu0 %v10228
        %10385 = vmatpush1.bf16.msra.mxu0 %v10227
        %10386 = vmatprep.subr.bf16.mxu0 %v10232
        %10387 = vmatpush1.bf16.msra.mxu0 %v10231
        %10388 = vmatprep.subr.bf16.mxu0 %v10236
        %10389 = vmatpush1.bf16.msra.mxu0 %v10235
        %10390 = vmatprep.subr.bf16.mxu0 %v10240
        %10391 = vmatpush1.bf16.msra.mxu0 %v10239
        %10392 = vmatprep.subr.bf16.mxu0 %v10244
        %10393 = vmatpush1.bf16.msra.mxu0 %v10243
        %10394 = vmatprep.subr.bf16.mxu0 %v10248
        %10395 = vmatpush1.bf16.msra.mxu0 %v10247
        %10396 = vmatprep.subr.bf16.mxu0 %v10252
        %10397 = vmatpush1.bf16.msra.mxu0 %v10251
        %10398 = vmatprep.subr.bf16.mxu0 %v10256
        %10399 = vmatpush1.bf16.msra.mxu0 %v10255
        %10400 = vmatprep.subr.bf16.mxu0 %v10260
        %10401 = vmatpush1.bf16.msra.mxu0 %v10259
        %10402 = vmatprep.subr.bf16.mxu0 %v10264
        %10403 = vmatpush1.bf16.msra.mxu0 %v10263
        %10404 = vmatprep.subr.bf16.mxu0 %v10268
        %10405 = vmatpush1.bf16.msra.mxu0 %v10267
        %10406 = vmatprep.mubr.bf16.mxu0 %v9947
        %10407 = vmatmul.mubr.bf16.gmra.mrb[0].mxu0 %v9946
        %v10408 = vpop.f32.mrb[0].mxu0
        %v10409 = vadd.f32 0.0, %v10408
        %v10410 = vpop.f32.mrb[0].mxu0
        %v10411 = vadd.f32 0.0, %v10410
        %v10412 = vpop.f32.mrb[0].mxu0
        %v10413 = vpop.f32.mrb[0].mxu0
        %10414 = vdwg.mxu0
        %v10415 = vadd.f32 %v9890, %v10368
        %v10416 = vadd.f32 %v9891, %v10370
        %v10417 = vadd.f32 %v9892, %v10409
        %v10418 = vadd.f32 %v9893, %v10411
        %s10419 = scalar_lea.vmem [#allocation17], 16
        %v10420 = vld [vmem:[%s10419] sm:$0xff]
        %v10422 = vunpack.c.l.b16 %v10420
        %v10423 = vunpack.c.h.b16 %v10420
        %v10424 = vpack.c.b16 %v10422, %v10422
        %v10425 = vpack.c.b16 %v10423, %v10423
        %v10428 = vsel %vm9347, %v10425, 0
        %10430 = vmatprep.subr.bf16.mxu0 %v9312
        %10431 = vmatpush1.bf16.msra.mxu0 %v9311
        %10432 = vmatprep.subr.bf16.mxu0 %v9314
        %10433 = vmatpush1.bf16.msra.mxu0 %v9313
        %10434 = vmatprep.subr.bf16.mxu0 %v9316
        %10435 = vmatpush1.bf16.msra.mxu0 %v9315
        %10436 = vmatprep.subr.bf16.mxu0 %v9318
        %10437 = vmatpush1.bf16.msra.mxu0 %v9317
        %10438 = vmatprep.subr.bf16.mxu0 %v9320
        %10439 = vmatpush1.bf16.msra.mxu0 %v9319
        %10440 = vmatprep.subr.bf16.mxu0 %v9322
        %10441 = vmatpush1.bf16.msra.mxu0 %v9321
        %10442 = vmatprep.subr.bf16.mxu0 %v9324
        %10443 = vmatpush1.bf16.msra.mxu0 %v9323
        %10444 = vmatprep.subr.bf16.mxu0 %v9326
        %10445 = vmatpush1.bf16.msra.mxu0 %v9325
        %10446 = vmatprep.subr.bf16.mxu0 %v9328
        %10447 = vmatpush1.bf16.msra.mxu0 %v9327
        %10448 = vmatprep.subr.bf16.mxu0 %v9330
        %10449 = vmatpush1.bf16.msra.mxu0 %v9329
        %10450 = vmatprep.subr.bf16.mxu0 %v9332
        %10451 = vmatpush1.bf16.msra.mxu0 %v9331
        %10452 = vmatprep.subr.bf16.mxu0 %v9334
        %10453 = vmatpush1.bf16.msra.mxu0 %v9333
        %10454 = vmatprep.subr.bf16.mxu0 %v9336
        %10455 = vmatpush1.bf16.msra.mxu0 %v9335
        %10456 = vmatprep.subr.bf16.mxu0 %v9358
        %10457 = vmatpush1.bf16.msra.mxu0 %v9355
        %10458 = vmatprep.subr.bf16.mxu0 0
        %10459 = vmatpush1.bf16.msra.mxu0 0
        %10460 = vmatprep.subr.bf16.mxu0 0
        %10461 = vmatpush1.bf16.msra.mxu0 0
        %10462 = vmatprep.mubr.bf16.mxu0 %v10428
        %10463 = vmatmul.mubr.bf16.gmra.mrb[0].mxu0 %v10424
        %v10464 = vpop.f32.mrb[0].mxu0
        %v10465 = vadd.f32 0.0, %v10464
        %v10466 = vpop.f32.mrb[0].mxu0
        %v10467 = vadd.f32 0.0, %v10466
        %v10468 = vpop.f32.mrb[0].mxu0
        %v10469 = vpop.f32.mrb[0].mxu0
        %10470 = vdwg.mxu0
        %v10471 = vpack.c.bf16 %v10465, %v10465
        %v10472 = vpack.c.bf16 %v10467, %v10467
        %s10473 = scalar_lea.vmem [#allocation11], 1024
        %v10474 = vld [vmem:[%s10473] sm:$0xff]
        %v10475 = vld [vmem:[%s10473 + $0x8] sm:$0xff]
        %v10476 = vld [vmem:[%s10473 + $0x10] sm:$0xff]
        %v10477 = vld [vmem:[%s10473 + $0x18] sm:$0xff]
        %v10478 = vld [vmem:[%s10473 + $0x20] sm:$0xff]
        %v10479 = vld [vmem:[%s10473 + $0x28] sm:$0xff]
        %v10480 = vld [vmem:[%s10473 + $0x30] sm:$0xff]
        %v10481 = vld [vmem:[%s10473 + $0x38] sm:$0xff]
        %v10482 = vld [vmem:[%s10473 + $0x40] sm:$0xff]
        %v10483 = vld [vmem:[%s10473 + $0x48] sm:$0xff]
        %v10484 = vld [vmem:[%s10473 + $0x50] sm:$0xff]
        %v10485 = vld [vmem:[%s10473 + $0x58] sm:$0xff]
        %v10486 = vld [vmem:[%s10473 + $0x60] sm:$0xff]
        %v10487 = vld [vmem:[%s10473 + $0x68] sm:$0xff]
        %v10488 = vld [vmem:[%s10473 + $0x70] sm:$0xff]
        %v10489 = vld [vmem:[%s10473 + $0x78] sm:$0xff]
        %v10490 = vld [vmem:[%s10473 + $0x80] sm:$0xff]
        %v10491 = vld [vmem:[%s10473 + $0x88] sm:$0xff]
        %v10492 = vld [vmem:[%s10473 + $0x90] sm:$0xff]
        %v10493 = vld [vmem:[%s10473 + $0x98] sm:$0xff]
        %v10494 = vld [vmem:[%s10473 + $0xa0] sm:$0xff]
        %v10495 = vld [vmem:[%s10473 + $0xa8] sm:$0xff]
        %v10496 = vld [vmem:[%s10473 + $0xb0] sm:$0xff]
        %v10497 = vld [vmem:[%s10473 + $0xb8] sm:$0xff]
        %v10498 = vld [vmem:[%s10473 + $0xc0] sm:$0xff]
        %v10499 = vld [vmem:[%s10473 + $0xc8] sm:$0xff]
        %v10500 = vld [vmem:[%s10473 + $0xd0] sm:$0xff]
        %v10501 = vld [vmem:[%s10473 + $0xd8] sm:$0xff]
        %v10502 = vld [vmem:[%s10473 + $0xe0] sm:$0xff]
        %v10503 = vld [vmem:[%s10473 + $0xe8] sm:$0xff]
        %v10504 = vld [vmem:[%s10473 + $0xf0] sm:$0xff]
        %v10505 = vld [vmem:[%s10473 + $0xf8] sm:$0xff]
        %v10506 = vld [vmem:[%s10473 + $0x100] sm:$0xff]
        %v10507 = vld [vmem:[%s10473 + $0x108] sm:$0xff]
        %v10508 = vld [vmem:[%s10473 + $0x110] sm:$0xff]
        %v10509 = vld [vmem:[%s10473 + $0x118] sm:$0xff]
        %v10510 = vld [vmem:[%s10473 + $0x120] sm:$0xff]
        %v10511 = vld [vmem:[%s10473 + $0x128] sm:$0xff]
        %v10512 = vld [vmem:[%s10473 + $0x130] sm:$0xff]
        %v10513 = vld [vmem:[%s10473 + $0x138] sm:$0xff]
        %v10514 = vld [vmem:[%s10473 + $0x140] sm:$0xff]
        %v10515 = vld [vmem:[%s10473 + $0x148] sm:$0xff]
        %v10516 = vld [vmem:[%s10473 + $0x150] sm:$0xff]
        %v10517 = vld [vmem:[%s10473 + $0x158] sm:$0xff]
        %v10518 = vld [vmem:[%s10473 + $0x160] sm:$0xff]
        %v10519 = vld [vmem:[%s10473 + $0x168] sm:$0xff]
        %v10520 = vld [vmem:[%s10473 + $0x170] sm:$0xff]
        %v10521 = vld [vmem:[%s10473 + $0x178] sm:$0xff]
        %v10522 = vld [vmem:[%s10473 + $0x180] sm:$0xff]
        %v10523 = vld [vmem:[%s10473 + $0x188] sm:$0xff]
        %v10524 = vld [vmem:[%s10473 + $0x190] sm:$0xff]
        %v10525 = vld [vmem:[%s10473 + $0x198] sm:$0xff]
        %v10526 = vld [vmem:[%s10473 + $0x1a0] sm:$0xff]
        %v10527 = vld [vmem:[%s10473 + $0x1a8] sm:$0xff]
        %v10528 = vld [vmem:[%s10473 + $0x1b0] sm:$0xff]
        %v10529 = vld [vmem:[%s10473 + $0x1b8] sm:$0xff]
        %v10530 = vld [vmem:[%s10473 + $0x1c0] sm:$0xff]
        %v10531 = vld [vmem:[%s10473 + $0x1c8] sm:$0xff]
        %v10532 = vld [vmem:[%s10473 + $0x1d0] sm:$0xff]
        %v10533 = vld [vmem:[%s10473 + $0x1d8] sm:$0xff]
        %v10534 = vld [vmem:[%s10473 + $0x1e0] sm:$0xff]
        %v10535 = vld [vmem:[%s10473 + $0x1e8] sm:$0xff]
        %v10536 = vld [vmem:[%s10473 + $0x1f0] sm:$0xff]
        %v10537 = vld [vmem:[%s10473 + $0x1f8] sm:$0xff]
        %v10602 = vunpack.c.l.b16 %v10474
        %v10603 = vunpack.c.h.b16 %v10474
        %v10604 = vunpack.c.l.b16 %v10475
        %v10605 = vunpack.c.h.b16 %v10475
        %v10606 = vunpack.c.l.b16 %v10476
        %v10607 = vunpack.c.h.b16 %v10476
        %v10608 = vunpack.c.l.b16 %v10477
        %v10609 = vunpack.c.h.b16 %v10477
        %v10610 = vunpack.c.l.b16 %v10478
        %v10611 = vunpack.c.h.b16 %v10478
        %v10612 = vunpack.c.l.b16 %v10479
        %v10613 = vunpack.c.h.b16 %v10479
        %v10614 = vunpack.c.l.b16 %v10480
        %v10615 = vunpack.c.h.b16 %v10480
        %v10616 = vunpack.c.l.b16 %v10481
        %v10617 = vunpack.c.h.b16 %v10481
        %v10618 = vunpack.c.l.b16 %v10482
        %v10619 = vunpack.c.h.b16 %v10482
        %v10620 = vunpack.c.l.b16 %v10483
        %v10621 = vunpack.c.h.b16 %v10483
        %v10622 = vunpack.c.l.b16 %v10484
        %v10623 = vunpack.c.h.b16 %v10484
        %v10624 = vunpack.c.l.b16 %v10485
        %v10625 = vunpack.c.h.b16 %v10485
        %v10626 = vunpack.c.l.b16 %v10486
        %v10627 = vunpack.c.h.b16 %v10486
        %v10628 = vunpack.c.l.b16 %v10487
        %v10629 = vunpack.c.h.b16 %v10487
        %v10630 = vunpack.c.l.b16 %v10488
        %v10631 = vunpack.c.h.b16 %v10488
        %v10632 = vunpack.c.l.b16 %v10489
        %v10633 = vunpack.c.h.b16 %v10489
        %v10634 = vunpack.c.l.b16 %v10490
        %v10635 = vunpack.c.h.b16 %v10490
        %v10636 = vunpack.c.l.b16 %v10491
        %v10637 = vunpack.c.h.b16 %v10491
        %v10638 = vunpack.c.l.b16 %v10492
        %v10639 = vunpack.c.h.b16 %v10492
        %v10640 = vunpack.c.l.b16 %v10493
        %v10641 = vunpack.c.h.b16 %v10493
        %v10642 = vunpack.c.l.b16 %v10494
        %v10643 = vunpack.c.h.b16 %v10494
        %v10644 = vunpack.c.l.b16 %v10495
        %v10645 = vunpack.c.h.b16 %v10495
        %v10646 = vunpack.c.l.b16 %v10496
        %v10647 = vunpack.c.h.b16 %v10496
        %v10648 = vunpack.c.l.b16 %v10497
        %v10649 = vunpack.c.h.b16 %v10497
        %v10650 = vunpack.c.l.b16 %v10498
        %v10651 = vunpack.c.h.b16 %v10498
        %v10652 = vunpack.c.l.b16 %v10499
        %v10653 = vunpack.c.h.b16 %v10499
        %v10654 = vunpack.c.l.b16 %v10500
        %v10655 = vunpack.c.h.b16 %v10500
        %v10656 = vunpack.c.l.b16 %v10501
        %v10657 = vunpack.c.h.b16 %v10501
        %v10658 = vunpack.c.l.b16 %v10502
        %v10659 = vunpack.c.h.b16 %v10502
        %v10660 = vunpack.c.l.b16 %v10503
        %v10661 = vunpack.c.h.b16 %v10503
        %v10662 = vunpack.c.l.b16 %v10504
        %v10663 = vunpack.c.h.b16 %v10504
        %v10664 = vunpack.c.l.b16 %v10505
        %v10665 = vunpack.c.h.b16 %v10505
        %v10666 = vunpack.c.l.b16 %v10506
        %v10667 = vunpack.c.h.b16 %v10506
        %v10668 = vunpack.c.l.b16 %v10507
        %v10669 = vunpack.c.h.b16 %v10507
        %v10670 = vunpack.c.l.b16 %v10508
        %v10671 = vunpack.c.h.b16 %v10508
        %v10672 = vunpack.c.l.b16 %v10509
        %v10673 = vunpack.c.h.b16 %v10509
        %v10674 = vunpack.c.l.b16 %v10510
        %v10675 = vunpack.c.h.b16 %v10510
        %v10676 = vunpack.c.l.b16 %v10511
        %v10677 = vunpack.c.h.b16 %v10511
        %v10678 = vunpack.c.l.b16 %v10512
        %v10679 = vunpack.c.h.b16 %v10512
        %v10680 = vunpack.c.l.b16 %v10513
        %v10681 = vunpack.c.h.b16 %v10513
        %v10682 = vunpack.c.l.b16 %v10514
        %v10683 = vunpack.c.h.b16 %v10514
        %v10684 = vunpack.c.l.b16 %v10515
        %v10685 = vunpack.c.h.b16 %v10515
        %v10686 = vunpack.c.l.b16 %v10516
        %v10687 = vunpack.c.h.b16 %v10516
        %v10688 = vunpack.c.l.b16 %v10517
        %v10689 = vunpack.c.h.b16 %v10517
        %v10690 = vunpack.c.l.b16 %v10518
        %v10691 = vunpack.c.h.b16 %v10518
        %v10692 = vunpack.c.l.b16 %v10519
        %v10693 = vunpack.c.h.b16 %v10519
        %v10694 = vunpack.c.l.b16 %v10520
        %v10695 = vunpack.c.h.b16 %v10520
        %v10696 = vunpack.c.l.b16 %v10521
        %v10697 = vunpack.c.h.b16 %v10521
        %v10698 = vunpack.c.l.b16 %v10522
        %v10699 = vunpack.c.h.b16 %v10522
        %v10700 = vunpack.c.l.b16 %v10523
        %v10701 = vunpack.c.h.b16 %v10523
        %v10702 = vunpack.c.l.b16 %v10524
        %v10703 = vunpack.c.h.b16 %v10524
        %v10704 = vunpack.c.l.b16 %v10525
        %v10705 = vunpack.c.h.b16 %v10525
        %v10706 = vunpack.c.l.b16 %v10526
        %v10707 = vunpack.c.h.b16 %v10526
        %v10708 = vunpack.c.l.b16 %v10527
        %v10709 = vunpack.c.h.b16 %v10527
        %v10710 = vunpack.c.l.b16 %v10528
        %v10711 = vunpack.c.h.b16 %v10528
        %v10712 = vunpack.c.l.b16 %v10529
        %v10713 = vunpack.c.h.b16 %v10529
        %v10714 = vunpack.c.l.b16 %v10530
        %v10715 = vunpack.c.h.b16 %v10530
        %v10716 = vunpack.c.l.b16 %v10531
        %v10717 = vunpack.c.h.b16 %v10531
        %v10718 = vunpack.c.l.b16 %v10532
        %v10719 = vunpack.c.h.b16 %v10532
        %v10720 = vunpack.c.l.b16 %v10533
        %v10721 = vunpack.c.h.b16 %v10533
        %v10722 = vunpack.c.l.b16 %v10534
        %v10723 = vunpack.c.h.b16 %v10534
        %v10724 = vunpack.c.l.b16 %v10535
        %v10725 = vunpack.c.h.b16 %v10535
        %v10726 = vunpack.c.l.b16 %v10536
        %v10727 = vunpack.c.h.b16 %v10536
        %v10728 = vunpack.c.l.b16 %v10537
        %v10729 = vunpack.c.h.b16 %v10537
        %v10730 = vpack.c.b16 %v10606, %v10602
        %v10731 = vpack.c.b16 %v10607, %v10603
        %v10732 = vpack.c.b16 %v10608, %v10604
        %v10733 = vpack.c.b16 %v10609, %v10605
        %v10734 = vpack.c.b16 %v10614, %v10610
        %v10735 = vpack.c.b16 %v10615, %v10611
        %v10736 = vpack.c.b16 %v10616, %v10612
        %v10737 = vpack.c.b16 %v10617, %v10613
        %v10738 = vpack.c.b16 %v10622, %v10618
        %v10739 = vpack.c.b16 %v10623, %v10619
        %v10740 = vpack.c.b16 %v10624, %v10620
        %v10741 = vpack.c.b16 %v10625, %v10621
        %v10742 = vpack.c.b16 %v10630, %v10626
        %v10743 = vpack.c.b16 %v10631, %v10627
        %v10744 = vpack.c.b16 %v10632, %v10628
        %v10745 = vpack.c.b16 %v10633, %v10629
        %v10746 = vpack.c.b16 %v10638, %v10634
        %v10747 = vpack.c.b16 %v10639, %v10635
        %v10748 = vpack.c.b16 %v10640, %v10636
        %v10749 = vpack.c.b16 %v10641, %v10637
        %v10750 = vpack.c.b16 %v10646, %v10642
        %v10751 = vpack.c.b16 %v10647, %v10643
        %v10752 = vpack.c.b16 %v10648, %v10644
        %v10753 = vpack.c.b16 %v10649, %v10645
        %v10754 = vpack.c.b16 %v10654, %v10650
        %v10755 = vpack.c.b16 %v10655, %v10651
        %v10756 = vpack.c.b16 %v10656, %v10652
        %v10757 = vpack.c.b16 %v10657, %v10653
        %v10758 = vpack.c.b16 %v10662, %v10658
        %v10759 = vpack.c.b16 %v10663, %v10659
        %v10760 = vpack.c.b16 %v10664, %v10660
        %v10761 = vpack.c.b16 %v10665, %v10661
        %v10762 = vpack.c.b16 %v10670, %v10666
        %v10763 = vpack.c.b16 %v10671, %v10667
        %v10764 = vpack.c.b16 %v10672, %v10668
        %v10765 = vpack.c.b16 %v10673, %v10669
        %v10766 = vpack.c.b16 %v10678, %v10674
        %v10767 = vpack.c.b16 %v10679, %v10675
        %v10768 = vpack.c.b16 %v10680, %v10676
        %v10769 = vpack.c.b16 %v10681, %v10677
        %v10770 = vpack.c.b16 %v10686, %v10682
        %v10771 = vpack.c.b16 %v10687, %v10683
        %v10772 = vpack.c.b16 %v10688, %v10684
        %v10773 = vpack.c.b16 %v10689, %v10685
        %v10774 = vpack.c.b16 %v10694, %v10690
        %v10775 = vpack.c.b16 %v10695, %v10691
        %v10776 = vpack.c.b16 %v10696, %v10692
        %v10777 = vpack.c.b16 %v10697, %v10693
        %v10778 = vpack.c.b16 %v10702, %v10698
        %v10779 = vpack.c.b16 %v10703, %v10699
        %v10780 = vpack.c.b16 %v10704, %v10700
        %v10781 = vpack.c.b16 %v10705, %v10701
        %v10782 = vpack.c.b16 %v10710, %v10706
        %v10783 = vpack.c.b16 %v10711, %v10707
        %v10784 = vpack.c.b16 %v10712, %v10708
        %v10785 = vpack.c.b16 %v10713, %v10709
        %v10786 = vpack.c.b16 %v10718, %v10714
        %v10787 = vpack.c.b16 %v10719, %v10715
        %v10788 = vpack.c.b16 %v10720, %v10716
        %v10789 = vpack.c.b16 %v10721, %v10717
        %v10790 = vpack.c.b16 %v10726, %v10722
        %v10791 = vpack.c.b16 %v10727, %v10723
        %v10792 = vpack.c.b16 %v10728, %v10724
        %v10793 = vpack.c.b16 %v10729, %v10725
        %10858 = vmatprep.subr.bf16.mxu0 %v10731
        %10859 = vmatpush1.bf16.msra.mxu0 %v10730
        %10860 = vmatprep.subr.bf16.mxu0 %v10735
        %10861 = vmatpush1.bf16.msra.mxu0 %v10734
        %10862 = vmatprep.subr.bf16.mxu0 %v10739
        %10863 = vmatpush1.bf16.msra.mxu0 %v10738
        %10864 = vmatprep.subr.bf16.mxu0 %v10743
        %10865 = vmatpush1.bf16.msra.mxu0 %v10742
        %10866 = vmatprep.subr.bf16.mxu0 %v10747
        %10867 = vmatpush1.bf16.msra.mxu0 %v10746
        %10868 = vmatprep.subr.bf16.mxu0 %v10751
        %10869 = vmatpush1.bf16.msra.mxu0 %v10750
        %10870 = vmatprep.subr.bf16.mxu0 %v10755
        %10871 = vmatpush1.bf16.msra.mxu0 %v10754
        %10872 = vmatprep.subr.bf16.mxu0 %v10759
        %10873 = vmatpush1.bf16.msra.mxu0 %v10758
        %10874 = vmatprep.subr.bf16.mxu0 %v10763
        %10875 = vmatpush1.bf16.msra.mxu0 %v10762
        %10876 = vmatprep.subr.bf16.mxu0 %v10767
        %10877 = vmatpush1.bf16.msra.mxu0 %v10766
        %10878 = vmatprep.subr.bf16.mxu0 %v10771
        %10879 = vmatpush1.bf16.msra.mxu0 %v10770
        %10880 = vmatprep.subr.bf16.mxu0 %v10775
        %10881 = vmatpush1.bf16.msra.mxu0 %v10774
        %10882 = vmatprep.subr.bf16.mxu0 %v10779
        %10883 = vmatpush1.bf16.msra.mxu0 %v10778
        %10884 = vmatprep.subr.bf16.mxu0 %v10783
        %10885 = vmatpush1.bf16.msra.mxu0 %v10782
        %10886 = vmatprep.subr.bf16.mxu0 %v10787
        %10887 = vmatpush1.bf16.msra.mxu0 %v10786
        %10888 = vmatprep.subr.bf16.mxu0 %v10791
        %10889 = vmatpush1.bf16.msra.mxu0 %v10790
        %10890 = vmatprep.mubr.bf16.mxu0 %v10472
        %10891 = vmatmul.mubr.bf16.gmra.mrb[0].mxu0 %v10471
        %v10892 = vpop.f32.mrb[0].mxu0
        %v10893 = vadd.f32 0.0, %v10892
        %v10894 = vpop.f32.mrb[0].mxu0
        %v10895 = vadd.f32 0.0, %v10894
        %v10896 = vpop.f32.mrb[0].mxu0
        %v10897 = vpop.f32.mrb[0].mxu0
        %10898 = vdwg.mxu0
        %10899 = vmatprep.subr.bf16.mxu0 %v10733
        %10900 = vmatpush1.bf16.msra.mxu0 %v10732
        %10901 = vmatprep.subr.bf16.mxu0 %v10737
        %10902 = vmatpush1.bf16.msra.mxu0 %v10736
        %10903 = vmatprep.subr.bf16.mxu0 %v10741
        %10904 = vmatpush1.bf16.msra.mxu0 %v10740
        %10905 = vmatprep.subr.bf16.mxu0 %v10745
        %10906 = vmatpush1.bf16.msra.mxu0 %v10744
        %10907 = vmatprep.subr.bf16.mxu0 %v10749
        %10908 = vmatpush1.bf16.msra.mxu0 %v10748
        %10909 = vmatprep.subr.bf16.mxu0 %v10753
        %10910 = vmatpush1.bf16.msra.mxu0 %v10752
        %10911 = vmatprep.subr.bf16.mxu0 %v10757
        %10912 = vmatpush1.bf16.msra.mxu0 %v10756
        %10913 = vmatprep.subr.bf16.mxu0 %v10761
        %10914 = vmatpush1.bf16.msra.mxu0 %v10760
        %10915 = vmatprep.subr.bf16.mxu0 %v10765
        %10916 = vmatpush1.bf16.msra.mxu0 %v10764
        %10917 = vmatprep.subr.bf16.mxu0 %v10769
        %10918 = vmatpush1.bf16.msra.mxu0 %v10768
        %10919 = vmatprep.subr.bf16.mxu0 %v10773
        %10920 = vmatpush1.bf16.msra.mxu0 %v10772
        %10921 = vmatprep.subr.bf16.mxu0 %v10777
        %10922 = vmatpush1.bf16.msra.mxu0 %v10776
        %10923 = vmatprep.subr.bf16.mxu0 %v10781
        %10924 = vmatpush1.bf16.msra.mxu0 %v10780
        %10925 = vmatprep.subr.bf16.mxu0 %v10785
        %10926 = vmatpush1.bf16.msra.mxu0 %v10784
        %10927 = vmatprep.subr.bf16.mxu0 %v10789
        %10928 = vmatpush1.bf16.msra.mxu0 %v10788
        %10929 = vmatprep.subr.bf16.mxu0 %v10793
        %10930 = vmatpush1.bf16.msra.mxu0 %v10792
        %10931 = vmatprep.mubr.bf16.mxu0 %v10472
        %10932 = vmatmul.mubr.bf16.gmra.mrb[0].mxu0 %v10471
        %v10933 = vpop.f32.mrb[0].mxu0
        %v10934 = vadd.f32 0.0, %v10933
        %v10935 = vpop.f32.mrb[0].mxu0
        %v10936 = vadd.f32 0.0, %v10935
        %v10937 = vpop.f32.mrb[0].mxu0
        %v10938 = vpop.f32.mrb[0].mxu0
        %10939 = vdwg.mxu0
        %v10940 = vadd.f32 %v10415, %v10893
        %v10941 = vadd.f32 %v10416, %v10895
        %v10942 = vadd.f32 %v10417, %v10934
        %v10943 = vadd.f32 %v10418, %v10936
        %s10944 = scalar_lea.vmem [#allocation17], 24
        %v10945 = vld [vmem:[%s10944] sm:$0xff]
        %v10947 = vunpack.c.l.b16 %v10945
        %v10948 = vunpack.c.h.b16 %v10945
        %v10949 = vpack.c.b16 %v10947, %v10947
        %v10950 = vpack.c.b16 %v10948, %v10948
        %v10953 = vsel %vm9347, %v10950, 0
        %10955 = vmatprep.subr.bf16.mxu0 %v9312
        %10956 = vmatpush1.bf16.msra.mxu0 %v9311
        %10957 = vmatprep.subr.bf16.mxu0 %v9314
        %10958 = vmatpush1.bf16.msra.mxu0 %v9313
        %10959 = vmatprep.subr.bf16.mxu0 %v9316
        %10960 = vmatpush1.bf16.msra.mxu0 %v9315
        %10961 = vmatprep.subr.bf16.mxu0 %v9318
        %10962 = vmatpush1.bf16.msra.mxu0 %v9317
        %10963 = vmatprep.subr.bf16.mxu0 %v9320
        %10964 = vmatpush1.bf16.msra.mxu0 %v9319
        %10965 = vmatprep.subr.bf16.mxu0 %v9322
        %10966 = vmatpush1.bf16.msra.mxu0 %v9321
        %10967 = vmatprep.subr.bf16.mxu0 %v9324
        %10968 = vmatpush1.bf16.msra.mxu0 %v9323
        %10969 = vmatprep.subr.bf16.mxu0 %v9326
        %10970 = vmatpush1.bf16.msra.mxu0 %v9325
        %10971 = vmatprep.subr.bf16.mxu0 %v9328
        %10972 = vmatpush1.bf16.msra.mxu0 %v9327
        %10973 = vmatprep.subr.bf16.mxu0 %v9330
        %10974 = vmatpush1.bf16.msra.mxu0 %v9329
        %10975 = vmatprep.subr.bf16.mxu0 %v9332
        %10976 = vmatpush1.bf16.msra.mxu0 %v9331
        %10977 = vmatprep.subr.bf16.mxu0 %v9334
        %10978 = vmatpush1.bf16.msra.mxu0 %v9333
        %10979 = vmatprep.subr.bf16.mxu0 %v9336
        %10980 = vmatpush1.bf16.msra.mxu0 %v9335
        %10981 = vmatprep.subr.bf16.mxu0 %v9358
        %10982 = vmatpush1.bf16.msra.mxu0 %v9355
        %10983 = vmatprep.subr.bf16.mxu0 0
        %10984 = vmatpush1.bf16.msra.mxu0 0
        %10985 = vmatprep.subr.bf16.mxu0 0
        %10986 = vmatpush1.bf16.msra.mxu0 0
        %10987 = vmatprep.mubr.bf16.mxu0 %v10953
        %10988 = vmatmul.mubr.bf16.gmra.mrb[0].mxu0 %v10949
        %v10989 = vpop.f32.mrb[0].mxu0
        %v10990 = vadd.f32 0.0, %v10989
        %v10991 = vpop.f32.mrb[0].mxu0
        %v10992 = vadd.f32 0.0, %v10991
        %v10993 = vpop.f32.mrb[0].mxu0
        %v10994 = vpop.f32.mrb[0].mxu0
        %10995 = vdwg.mxu0
        %v10996 = vpack.c.bf16 %v10990, %v10990
        %v10997 = vpack.c.bf16 %v10992, %v10992
        %s10998 = scalar_lea.vmem [#allocation11], 1536
        %v10999 = vld [vmem:[%s10998] sm:$0xff]
        %v11000 = vld [vmem:[%s10998 + $0x8] sm:$0xff]
        %v11001 = vld [vmem:[%s10998 + $0x10] sm:$0xff]
        %v11002 = vld [vmem:[%s10998 + $0x18] sm:$0xff]
        %v11003 = vld [vmem:[%s10998 + $0x20] sm:$0xff]
        %v11004 = vld [vmem:[%s10998 + $0x28] sm:$0xff]
        %v11005 = vld [vmem:[%s10998 + $0x30] sm:$0xff]
        %v11006 = vld [vmem:[%s10998 + $0x38] sm:$0xff]
        %v11007 = vld [vmem:[%s10998 + $0x40] sm:$0xff]
        %v11008 = vld [vmem:[%s10998 + $0x48] sm:$0xff]
        %v11009 = vld [vmem:[%s10998 + $0x50] sm:$0xff]
        %v11010 = vld [vmem:[%s10998 + $0x58] sm:$0xff]
        %v11011 = vld [vmem:[%s10998 + $0x60] sm:$0xff]
        %v11012 = vld [vmem:[%s10998 + $0x68] sm:$0xff]
        %v11013 = vld [vmem:[%s10998 + $0x70] sm:$0xff]
        %v11014 = vld [vmem:[%s10998 + $0x78] sm:$0xff]
        %v11015 = vld [vmem:[%s10998 + $0x80] sm:$0xff]
        %v11016 = vld [vmem:[%s10998 + $0x88] sm:$0xff]
        %v11017 = vld [vmem:[%s10998 + $0x90] sm:$0xff]
        %v11018 = vld [vmem:[%s10998 + $0x98] sm:$0xff]
        %v11019 = vld [vmem:[%s10998 + $0xa0] sm:$0xff]
        %v11020 = vld [vmem:[%s10998 + $0xa8] sm:$0xff]
        %v11021 = vld [vmem:[%s10998 + $0xb0] sm:$0xff]
        %v11022 = vld [vmem:[%s10998 + $0xb8] sm:$0xff]
        %v11023 = vld [vmem:[%s10998 + $0xc0] sm:$0xff]
        %v11024 = vld [vmem:[%s10998 + $0xc8] sm:$0xff]
        %v11025 = vld [vmem:[%s10998 + $0xd0] sm:$0xff]
        %v11026 = vld [vmem:[%s10998 + $0xd8] sm:$0xff]
        %v11027 = vld [vmem:[%s10998 + $0xe0] sm:$0xff]
        %v11028 = vld [vmem:[%s10998 + $0xe8] sm:$0xff]
        %v11029 = vld [vmem:[%s10998 + $0xf0] sm:$0xff]
        %v11030 = vld [vmem:[%s10998 + $0xf8] sm:$0xff]
        %v11031 = vld [vmem:[%s10998 + $0x100] sm:$0xff]
        %v11032 = vld [vmem:[%s10998 + $0x108] sm:$0xff]
        %v11033 = vld [vmem:[%s10998 + $0x110] sm:$0xff]
        %v11034 = vld [vmem:[%s10998 + $0x118] sm:$0xff]
        %v11035 = vld [vmem:[%s10998 + $0x120] sm:$0xff]
        %v11036 = vld [vmem:[%s10998 + $0x128] sm:$0xff]
        %v11037 = vld [vmem:[%s10998 + $0x130] sm:$0xff]
        %v11038 = vld [vmem:[%s10998 + $0x138] sm:$0xff]
        %v11039 = vld [vmem:[%s10998 + $0x140] sm:$0xff]
        %v11040 = vld [vmem:[%s10998 + $0x148] sm:$0xff]
        %v11041 = vld [vmem:[%s10998 + $0x150] sm:$0xff]
        %v11042 = vld [vmem:[%s10998 + $0x158] sm:$0xff]
        %v11043 = vld [vmem:[%s10998 + $0x160] sm:$0xff]
        %v11044 = vld [vmem:[%s10998 + $0x168] sm:$0xff]
        %v11045 = vld [vmem:[%s10998 + $0x170] sm:$0xff]
        %v11046 = vld [vmem:[%s10998 + $0x178] sm:$0xff]
        %v11047 = vld [vmem:[%s10998 + $0x180] sm:$0xff]
        %v11048 = vld [vmem:[%s10998 + $0x188] sm:$0xff]
        %v11049 = vld [vmem:[%s10998 + $0x190] sm:$0xff]
        %v11050 = vld [vmem:[%s10998 + $0x198] sm:$0xff]
        %v11051 = vld [vmem:[%s10998 + $0x1a0] sm:$0xff]
        %v11052 = vld [vmem:[%s10998 + $0x1a8] sm:$0xff]
        %v11053 = vld [vmem:[%s10998 + $0x1b0] sm:$0xff]
        %v11054 = vld [vmem:[%s10998 + $0x1b8] sm:$0xff]
        %v11055 = vld [vmem:[%s10998 + $0x1c0] sm:$0xff]
        %v11056 = vld [vmem:[%s10998 + $0x1c8] sm:$0xff]
        %v11057 = vld [vmem:[%s10998 + $0x1d0] sm:$0xff]
        %v11058 = vld [vmem:[%s10998 + $0x1d8] sm:$0xff]
        %v11059 = vld [vmem:[%s10998 + $0x1e0] sm:$0xff]
        %v11060 = vld [vmem:[%s10998 + $0x1e8] sm:$0xff]
        %v11061 = vld [vmem:[%s10998 + $0x1f0] sm:$0xff]
        %v11062 = vld [vmem:[%s10998 + $0x1f8] sm:$0xff]
        %v11127 = vunpack.c.l.b16 %v10999
        %v11128 = vunpack.c.h.b16 %v10999
        %v11129 = vunpack.c.l.b16 %v11000
        %v11130 = vunpack.c.h.b16 %v11000
        %v11131 = vunpack.c.l.b16 %v11001
        %v11132 = vunpack.c.h.b16 %v11001
        %v11133 = vunpack.c.l.b16 %v11002
        %v11134 = vunpack.c.h.b16 %v11002
        %v11135 = vunpack.c.l.b16 %v11003
        %v11136 = vunpack.c.h.b16 %v11003
        %v11137 = vunpack.c.l.b16 %v11004
        %v11138 = vunpack.c.h.b16 %v11004
        %v11139 = vunpack.c.l.b16 %v11005
        %v11140 = vunpack.c.h.b16 %v11005
        %v11141 = vunpack.c.l.b16 %v11006
        %v11142 = vunpack.c.h.b16 %v11006
        %v11143 = vunpack.c.l.b16 %v11007
        %v11144 = vunpack.c.h.b16 %v11007
        %v11145 = vunpack.c.l.b16 %v11008
        %v11146 = vunpack.c.h.b16 %v11008
        %v11147 = vunpack.c.l.b16 %v11009
        %v11148 = vunpack.c.h.b16 %v11009
        %v11149 = vunpack.c.l.b16 %v11010
        %v11150 = vunpack.c.h.b16 %v11010
        %v11151 = vunpack.c.l.b16 %v11011
        %v11152 = vunpack.c.h.b16 %v11011
        %v11153 = vunpack.c.l.b16 %v11012
        %v11154 = vunpack.c.h.b16 %v11012
        %v11155 = vunpack.c.l.b16 %v11013
        %v11156 = vunpack.c.h.b16 %v11013
        %v11157 = vunpack.c.l.b16 %v11014
        %v11158 = vunpack.c.h.b16 %v11014
        %v11159 = vunpack.c.l.b16 %v11015
        %v11160 = vunpack.c.h.b16 %v11015
        %v11161 = vunpack.c.l.b16 %v11016
        %v11162 = vunpack.c.h.b16 %v11016
        %v11163 = vunpack.c.l.b16 %v11017
        %v11164 = vunpack.c.h.b16 %v11017
        %v11165 = vunpack.c.l.b16 %v11018
        %v11166 = vunpack.c.h.b16 %v11018
        %v11167 = vunpack.c.l.b16 %v11019
        %v11168 = vunpack.c.h.b16 %v11019
        %v11169 = vunpack.c.l.b16 %v11020
        %v11170 = vunpack.c.h.b16 %v11020
        %v11171 = vunpack.c.l.b16 %v11021
        %v11172 = vunpack.c.h.b16 %v11021
        %v11173 = vunpack.c.l.b16 %v11022
        %v11174 = vunpack.c.h.b16 %v11022
        %v11175 = vunpack.c.l.b16 %v11023
        %v11176 = vunpack.c.h.b16 %v11023
        %v11177 = vunpack.c.l.b16 %v11024
        %v11178 = vunpack.c.h.b16 %v11024
        %v11179 = vunpack.c.l.b16 %v11025
        %v11180 = vunpack.c.h.b16 %v11025
        %v11181 = vunpack.c.l.b16 %v11026
        %v11182 = vunpack.c.h.b16 %v11026
        %v11183 = vunpack.c.l.b16 %v11027
        %v11184 = vunpack.c.h.b16 %v11027
        %v11185 = vunpack.c.l.b16 %v11028
        %v11186 = vunpack.c.h.b16 %v11028
        %v11187 = vunpack.c.l.b16 %v11029
        %v11188 = vunpack.c.h.b16 %v11029
        %v11189 = vunpack.c.l.b16 %v11030
        %v11190 = vunpack.c.h.b16 %v11030
        %v11191 = vunpack.c.l.b16 %v11031
        %v11192 = vunpack.c.h.b16 %v11031
        %v11193 = vunpack.c.l.b16 %v11032
        %v11194 = vunpack.c.h.b16 %v11032
        %v11195 = vunpack.c.l.b16 %v11033
        %v11196 = vunpack.c.h.b16 %v11033
        %v11197 = vunpack.c.l.b16 %v11034
        %v11198 = vunpack.c.h.b16 %v11034
        %v11199 = vunpack.c.l.b16 %v11035
        %v11200 = vunpack.c.h.b16 %v11035
        %v11201 = vunpack.c.l.b16 %v11036
        %v11202 = vunpack.c.h.b16 %v11036
        %v11203 = vunpack.c.l.b16 %v11037
        %v11204 = vunpack.c.h.b16 %v11037
        %v11205 = vunpack.c.l.b16 %v11038
        %v11206 = vunpack.c.h.b16 %v11038
        %v11207 = vunpack.c.l.b16 %v11039
        %v11208 = vunpack.c.h.b16 %v11039
        %v11209 = vunpack.c.l.b16 %v11040
        %v11210 = vunpack.c.h.b16 %v11040
        %v11211 = vunpack.c.l.b16 %v11041
        %v11212 = vunpack.c.h.b16 %v11041
        %v11213 = vunpack.c.l.b16 %v11042
        %v11214 = vunpack.c.h.b16 %v11042
        %v11215 = vunpack.c.l.b16 %v11043
        %v11216 = vunpack.c.h.b16 %v11043
        %v11217 = vunpack.c.l.b16 %v11044
        %v11218 = vunpack.c.h.b16 %v11044
        %v11219 = vunpack.c.l.b16 %v11045
        %v11220 = vunpack.c.h.b16 %v11045
        %v11221 = vunpack.c.l.b16 %v11046
        %v11222 = vunpack.c.h.b16 %v11046
        %v11223 = vunpack.c.l.b16 %v11047
        %v11224 = vunpack.c.h.b16 %v11047
        %v11225 = vunpack.c.l.b16 %v11048
        %v11226 = vunpack.c.h.b16 %v11048
        %v11227 = vunpack.c.l.b16 %v11049
        %v11228 = vunpack.c.h.b16 %v11049
        %v11229 = vunpack.c.l.b16 %v11050
        %v11230 = vunpack.c.h.b16 %v11050
        %v11231 = vunpack.c.l.b16 %v11051
        %v11232 = vunpack.c.h.b16 %v11051
        %v11233 = vunpack.c.l.b16 %v11052
        %v11234 = vunpack.c.h.b16 %v11052
        %v11235 = vunpack.c.l.b16 %v11053
        %v11236 = vunpack.c.h.b16 %v11053
        %v11237 = vunpack.c.l.b16 %v11054
        %v11238 = vunpack.c.h.b16 %v11054
        %v11239 = vunpack.c.l.b16 %v11055
        %v11240 = vunpack.c.h.b16 %v11055
        %v11241 = vunpack.c.l.b16 %v11056
        %v11242 = vunpack.c.h.b16 %v11056
        %v11243 = vunpack.c.l.b16 %v11057
        %v11244 = vunpack.c.h.b16 %v11057
        %v11245 = vunpack.c.l.b16 %v11058
        %v11246 = vunpack.c.h.b16 %v11058
        %v11247 = vunpack.c.l.b16 %v11059
        %v11248 = vunpack.c.h.b16 %v11059
        %v11249 = vunpack.c.l.b16 %v11060
        %v11250 = vunpack.c.h.b16 %v11060
        %v11251 = vunpack.c.l.b16 %v11061
        %v11252 = vunpack.c.h.b16 %v11061
        %v11253 = vunpack.c.l.b16 %v11062
        %v11254 = vunpack.c.h.b16 %v11062
        %v11255 = vpack.c.b16 %v11131, %v11127
        %v11256 = vpack.c.b16 %v11132, %v11128
        %v11257 = vpack.c.b16 %v11133, %v11129
        %v11258 = vpack.c.b16 %v11134, %v11130
        %v11259 = vpack.c.b16 %v11139, %v11135
        %v11260 = vpack.c.b16 %v11140, %v11136
        %v11261 = vpack.c.b16 %v11141, %v11137
        %v11262 = vpack.c.b16 %v11142, %v11138
        %v11263 = vpack.c.b16 %v11147, %v11143
        %v11264 = vpack.c.b16 %v11148, %v11144
        %v11265 = vpack.c.b16 %v11149, %v11145
        %v11266 = vpack.c.b16 %v11150, %v11146
        %v11267 = vpack.c.b16 %v11155, %v11151
        %v11268 = vpack.c.b16 %v11156, %v11152
        %v11269 = vpack.c.b16 %v11157, %v11153
        %v11270 = vpack.c.b16 %v11158, %v11154
        %v11271 = vpack.c.b16 %v11163, %v11159
        %v11272 = vpack.c.b16 %v11164, %v11160
        %v11273 = vpack.c.b16 %v11165, %v11161
        %v11274 = vpack.c.b16 %v11166, %v11162
        %v11275 = vpack.c.b16 %v11171, %v11167
        %v11276 = vpack.c.b16 %v11172, %v11168
        %v11277 = vpack.c.b16 %v11173, %v11169
        %v11278 = vpack.c.b16 %v11174, %v11170
        %v11279 = vpack.c.b16 %v11179, %v11175
        %v11280 = vpack.c.b16 %v11180, %v11176
        %v11281 = vpack.c.b16 %v11181, %v11177
        %v11282 = vpack.c.b16 %v11182, %v11178
        %v11283 = vpack.c.b16 %v11187, %v11183
        %v11284 = vpack.c.b16 %v11188, %v11184
        %v11285 = vpack.c.b16 %v11189, %v11185
        %v11286 = vpack.c.b16 %v11190, %v11186
        %v11287 = vpack.c.b16 %v11195, %v11191
        %v11288 = vpack.c.b16 %v11196, %v11192
        %v11289 = vpack.c.b16 %v11197, %v11193
        %v11290 = vpack.c.b16 %v11198, %v11194
        %v11291 = vpack.c.b16 %v11203, %v11199
        %v11292 = vpack.c.b16 %v11204, %v11200
        %v11293 = vpack.c.b16 %v11205, %v11201
        %v11294 = vpack.c.b16 %v11206, %v11202
        %v11295 = vpack.c.b16 %v11211, %v11207
        %v11296 = vpack.c.b16 %v11212, %v11208
        %v11297 = vpack.c.b16 %v11213, %v11209
        %v11298 = vpack.c.b16 %v11214, %v11210
        %v11299 = vpack.c.b16 %v11219, %v11215
        %v11300 = vpack.c.b16 %v11220, %v11216
        %v11301 = vpack.c.b16 %v11221, %v11217
        %v11302 = vpack.c.b16 %v11222, %v11218
        %v11303 = vpack.c.b16 %v11227, %v11223
        %v11304 = vpack.c.b16 %v11228, %v11224
        %v11305 = vpack.c.b16 %v11229, %v11225
        %v11306 = vpack.c.b16 %v11230, %v11226
        %v11307 = vpack.c.b16 %v11235, %v11231
        %v11308 = vpack.c.b16 %v11236, %v11232
        %v11309 = vpack.c.b16 %v11237, %v11233
        %v11310 = vpack.c.b16 %v11238, %v11234
        %v11311 = vpack.c.b16 %v11243, %v11239
        %v11312 = vpack.c.b16 %v11244, %v11240
        %v11313 = vpack.c.b16 %v11245, %v11241
        %v11314 = vpack.c.b16 %v11246, %v11242
        %v11315 = vpack.c.b16 %v11251, %v11247
        %v11316 = vpack.c.b16 %v11252, %v11248
        %v11317 = vpack.c.b16 %v11253, %v11249
        %v11318 = vpack.c.b16 %v11254, %v11250
        %11383 = vmatprep.subr.bf16.mxu0 %v11256
        %11384 = vmatpush1.bf16.msra.mxu0 %v11255
        %11385 = vmatprep.subr.bf16.mxu0 %v11260
        %11386 = vmatpush1.bf16.msra.mxu0 %v11259
        %11387 = vmatprep.subr.bf16.mxu0 %v11264
        %11388 = vmatpush1.bf16.msra.mxu0 %v11263
        %11389 = vmatprep.subr.bf16.mxu0 %v11268
        %11390 = vmatpush1.bf16.msra.mxu0 %v11267
        %11391 = vmatprep.subr.bf16.mxu0 %v11272
        %11392 = vmatpush1.bf16.msra.mxu0 %v11271
        %11393 = vmatprep.subr.bf16.mxu0 %v11276
        %11394 = vmatpush1.bf16.msra.mxu0 %v11275
        %11395 = vmatprep.subr.bf16.mxu0 %v11280
        %11396 = vmatpush1.bf16.msra.mxu0 %v11279
        %11397 = vmatprep.subr.bf16.mxu0 %v11284
        %11398 = vmatpush1.bf16.msra.mxu0 %v11283
        %11399 = vmatprep.subr.bf16.mxu0 %v11288
        %11400 = vmatpush1.bf16.msra.mxu0 %v11287
        %11401 = vmatprep.subr.bf16.mxu0 %v11292
        %11402 = vmatpush1.bf16.msra.mxu0 %v11291
        %11403 = vmatprep.subr.bf16.mxu0 %v11296
        %11404 = vmatpush1.bf16.msra.mxu0 %v11295
        %11405 = vmatprep.subr.bf16.mxu0 %v11300
        %11406 = vmatpush1.bf16.msra.mxu0 %v11299
        %11407 = vmatprep.subr.bf16.mxu0 %v11304
        %11408 = vmatpush1.bf16.msra.mxu0 %v11303
        %11409 = vmatprep.subr.bf16.mxu0 %v11308
        %11410 = vmatpush1.bf16.msra.mxu0 %v11307
        %11411 = vmatprep.subr.bf16.mxu0 %v11312
        %11412 = vmatpush1.bf16.msra.mxu0 %v11311
        %11413 = vmatprep.subr.bf16.mxu0 %v11316
        %11414 = vmatpush1.bf16.msra.mxu0 %v11315
        %11415 = vmatprep.mubr.bf16.mxu0 %v10997
        %11416 = vmatmul.mubr.bf16.gmra.mrb[0].mxu0 %v10996
        %v11417 = vpop.f32.mrb[0].mxu0
        %v11418 = vadd.f32 0.0, %v11417
        %v11419 = vpop.f32.mrb[0].mxu0
        %v11420 = vadd.f32 0.0, %v11419
        %v11421 = vpop.f32.mrb[0].mxu0
        %v11422 = vpop.f32.mrb[0].mxu0
        %11423 = vdwg.mxu0
        %11424 = vmatprep.subr.bf16.mxu0 %v11258
        %11425 = vmatpush1.bf16.msra.mxu0 %v11257
        %11426 = vmatprep.subr.bf16.mxu0 %v11262
        %11427 = vmatpush1.bf16.msra.mxu0 %v11261
        %11428 = vmatprep.subr.bf16.mxu0 %v11266
        %11429 = vmatpush1.bf16.msra.mxu0 %v11265
        %11430 = vmatprep.subr.bf16.mxu0 %v11270
        %11431 = vmatpush1.bf16.msra.mxu0 %v11269
        %11432 = vmatprep.subr.bf16.mxu0 %v11274
        %11433 = vmatpush1.bf16.msra.mxu0 %v11273
        %11434 = vmatprep.subr.bf16.mxu0 %v11278
        %11435 = vmatpush1.bf16.msra.mxu0 %v11277
        %11436 = vmatprep.subr.bf16.mxu0 %v11282
        %11437 = vmatpush1.bf16.msra.mxu0 %v11281
        %11438 = vmatprep.subr.bf16.mxu0 %v11286
        %11439 = vmatpush1.bf16.msra.mxu0 %v11285
        %11440 = vmatprep.subr.bf16.mxu0 %v11290
        %11441 = vmatpush1.bf16.msra.mxu0 %v11289
        %11442 = vmatprep.subr.bf16.mxu0 %v11294
        %11443 = vmatpush1.bf16.msra.mxu0 %v11293
        %11444 = vmatprep.subr.bf16.mxu0 %v11298
        %11445 = vmatpush1.bf16.msra.mxu0 %v11297
        %11446 = vmatprep.subr.bf16.mxu0 %v11302
        %11447 = vmatpush1.bf16.msra.mxu0 %v11301
        %11448 = vmatprep.subr.bf16.mxu0 %v11306
        %11449 = vmatpush1.bf16.msra.mxu0 %v11305
        %11450 = vmatprep.subr.bf16.mxu0 %v11310
        %11451 = vmatpush1.bf16.msra.mxu0 %v11309
        %11452 = vmatprep.subr.bf16.mxu0 %v11314
        %11453 = vmatpush1.bf16.msra.mxu0 %v11313
        %11454 = vmatprep.subr.bf16.mxu0 %v11318
        %11455 = vmatpush1.bf16.msra.mxu0 %v11317
        %11456 = vmatprep.mubr.bf16.mxu0 %v10997
        %11457 = vmatmul.mubr.bf16.gmra.mrb[0].mxu0 %v10996
        %v11458 = vpop.f32.mrb[0].mxu0
        %v11459 = vadd.f32 0.0, %v11458
        %v11460 = vpop.f32.mrb[0].mxu0
        %v11461 = vadd.f32 0.0, %v11460
        %v11462 = vpop.f32.mrb[0].mxu0
        %v11463 = vpop.f32.mrb[0].mxu0
        %11464 = vdwg.mxu0
        %v11465 = vadd.f32 %v10940, %v11418
        %v11466 = vadd.f32 %v10941, %v11420
        %v11467 = vadd.f32 %v10942, %v11459
        %v11468 = vadd.f32 %v10943, %v11461
        %v11469 = vmax.f32 %v11465, 0.0
        %v11470 = vmax.f32 %v11466, 0.0
        %v11471 = vmax.f32 %v11467, 0.0
        %v11472 = vmax.f32 %v11468, 0.0
        %v11473 = vpack.c.bf16 %v11469, %v11469
        %v11474 = vpack.c.bf16 %v11470, %v11470
        %v11475 = vpack.c.bf16 %v11471, %v11471
        %v11476 = vpack.c.bf16 %v11472, %v11472
        %v11477 = vld [vmem:[#allocation14] sm:$0xf]
        %v11478 = vld [vmem:[#allocation14 + $0x4] sm:$0xf]
        %v11479 = vld [vmem:[#allocation14 + $0x8] sm:$0xf]
        %v11480 = vld [vmem:[#allocation14 + $0xc] sm:$0xf]
        %v11481 = vld [vmem:[#allocation14 + $0x10] sm:$0xf]
        %v11482 = vld [vmem:[#allocation14 + $0x14] sm:$0xf]
        %v11483 = vld [vmem:[#allocation14 + $0x18] sm:$0xf]
        %v11484 = vld [vmem:[#allocation14 + $0x1c] sm:$0xf]
        %v11485 = vld [vmem:[#allocation14 + $0x20] sm:$0xf]
        %v11486 = vld [vmem:[#allocation14 + $0x24] sm:$0xf]
        %v11487 = vld [vmem:[#allocation14 + $0x28] sm:$0xf]
        %v11488 = vld [vmem:[#allocation14 + $0x2c] sm:$0xf]
        %v11489 = vld [vmem:[#allocation14 + $0x30] sm:$0xf]
        %v11490 = vld [vmem:[#allocation14 + $0x34] sm:$0xf]
        %v11491 = vld [vmem:[#allocation14 + $0x38] sm:$0xf]
        %v11492 = vld [vmem:[#allocation14 + $0x3c] sm:$0xf]
        %v11493 = vld [vmem:[#allocation14 + $0x40] sm:$0xf]
        %v11494 = vld [vmem:[#allocation14 + $0x44] sm:$0xf]
        %v11495 = vld [vmem:[#allocation14 + $0x48] sm:$0xf]
        %v11496 = vld [vmem:[#allocation14 + $0x4c] sm:$0xf]
        %v11497 = vld [vmem:[#allocation14 + $0x50] sm:$0xf]
        %v11498 = vld [vmem:[#allocation14 + $0x54] sm:$0xf]
        %v11499 = vld [vmem:[#allocation14 + $0x58] sm:$0xf]
        %v11500 = vld [vmem:[#allocation14 + $0x5c] sm:$0xf]
        %v11501 = vld [vmem:[#allocation14 + $0x60] sm:$0xf]
        %v11502 = vld [vmem:[#allocation14 + $0x64] sm:$0xf]
        %v11503 = vld [vmem:[#allocation14 + $0x68] sm:$0xf]
        %v11504 = vld [vmem:[#allocation14 + $0x6c] sm:$0xf]
        %v11505 = vld [vmem:[#allocation14 + $0x70] sm:$0xf]
        %v11506 = vld [vmem:[#allocation14 + $0x74] sm:$0xf]
        %v11507 = vld [vmem:[#allocation14 + $0x78] sm:$0xf]
        %v11508 = vld [vmem:[#allocation14 + $0x7c] sm:$0xf]
        %v11509 = vld [vmem:[#allocation14 + $0x80] sm:$0xf]
        %v11510 = vld [vmem:[#allocation14 + $0x84] sm:$0xf]
        %v11511 = vld [vmem:[#allocation14 + $0x88] sm:$0xf]
        %v11512 = vld [vmem:[#allocation14 + $0x8c] sm:$0xf]
        %v11513 = vld [vmem:[#allocation14 + $0x90] sm:$0xf]
        %v11514 = vld [vmem:[#allocation14 + $0x94] sm:$0xf]
        %v11515 = vld [vmem:[#allocation14 + $0x98] sm:$0xf]
        %v11516 = vld [vmem:[#allocation14 + $0x9c] sm:$0xf]
        %v11517 = vld [vmem:[#allocation14 + $0xa0] sm:$0xf]
        %v11518 = vld [vmem:[#allocation14 + $0xa4] sm:$0xf]
        %v11519 = vld [vmem:[#allocation14 + $0xa8] sm:$0xf]
        %v11520 = vld [vmem:[#allocation14 + $0xac] sm:$0xf]
        %v11521 = vld [vmem:[#allocation14 + $0xb0] sm:$0xf]
        %v11522 = vld [vmem:[#allocation14 + $0xb4] sm:$0xf]
        %v11523 = vld [vmem:[#allocation14 + $0xb8] sm:$0xf]
        %v11524 = vld [vmem:[#allocation14 + $0xbc] sm:$0xf]
        %v11525 = vld [vmem:[#allocation14 + $0xc0] sm:$0xf]
        %v11526 = vld [vmem:[#allocation14 + $0xc4] sm:$0xf]
        %v11527 = vld [vmem:[#allocation14 + $0xc8] sm:$0xf]
        %v11528 = vld [vmem:[#allocation14 + $0xcc] sm:$0xf]
        %v11529 = vld [vmem:[#allocation14 + $0xd0] sm:$0xf]
        %v11530 = vld [vmem:[#allocation14 + $0xd4] sm:$0xf]
        %v11531 = vld [vmem:[#allocation14 + $0xd8] sm:$0xf]
        %v11532 = vld [vmem:[#allocation14 + $0xdc] sm:$0xf]
        %v11533 = vld [vmem:[#allocation14 + $0xe0] sm:$0xf]
        %v11534 = vld [vmem:[#allocation14 + $0xe4] sm:$0xf]
        %v11535 = vld [vmem:[#allocation14 + $0xe8] sm:$0xf]
        %v11536 = vld [vmem:[#allocation14 + $0xec] sm:$0xf]
        %v11537 = vld [vmem:[#allocation14 + $0xf0] sm:$0xf]
        %v11538 = vld [vmem:[#allocation14 + $0xf4] sm:$0xf]
        %v11539 = vld [vmem:[#allocation14 + $0xf8] sm:$0xf]
        %v11540 = vld [vmem:[#allocation14 + $0xfc] sm:$0xf]
        %v11541 = vld [vmem:[#allocation16] sm:$0x1]
        %v11543 = vlaneseq
        %v11544 = vshrl.u32 %v11543, 7
        %v11545 = vsub.s32 0, %v11544
        %v11546 = vrot.slane %v11541, %v11545
        %v11612 = vunpack.c.l.b16 %v11477
        %v11613 = vunpack.c.l.b16 %v11478
        %v11614 = vunpack.c.l.b16 %v11479
        %v11615 = vunpack.c.l.b16 %v11480
        %v11616 = vunpack.c.l.b16 %v11481
        %v11617 = vunpack.c.l.b16 %v11482
        %v11618 = vunpack.c.l.b16 %v11483
        %v11619 = vunpack.c.l.b16 %v11484
        %v11620 = vunpack.c.l.b16 %v11485
        %v11621 = vunpack.c.l.b16 %v11486
        %v11622 = vunpack.c.l.b16 %v11487
        %v11623 = vunpack.c.l.b16 %v11488
        %v11624 = vunpack.c.l.b16 %v11489
        %v11625 = vunpack.c.l.b16 %v11490
        %v11626 = vunpack.c.l.b16 %v11491
        %v11627 = vunpack.c.l.b16 %v11492
        %v11628 = vunpack.c.l.b16 %v11493
        %v11629 = vunpack.c.l.b16 %v11494
        %v11630 = vunpack.c.l.b16 %v11495
        %v11631 = vunpack.c.l.b16 %v11496
        %v11632 = vunpack.c.l.b16 %v11497
        %v11633 = vunpack.c.l.b16 %v11498
        %v11634 = vunpack.c.l.b16 %v11499
        %v11635 = vunpack.c.l.b16 %v11500
        %v11636 = vunpack.c.l.b16 %v11501
        %v11637 = vunpack.c.l.b16 %v11502
        %v11638 = vunpack.c.l.b16 %v11503
        %v11639 = vunpack.c.l.b16 %v11504
        %v11640 = vunpack.c.l.b16 %v11505
        %v11641 = vunpack.c.l.b16 %v11506
        %v11642 = vunpack.c.l.b16 %v11507
        %v11643 = vunpack.c.l.b16 %v11508
        %v11644 = vunpack.c.l.b16 %v11509
        %v11645 = vunpack.c.l.b16 %v11510
        %v11646 = vunpack.c.l.b16 %v11511
        %v11647 = vunpack.c.l.b16 %v11512
        %v11648 = vunpack.c.l.b16 %v11513
        %v11649 = vunpack.c.l.b16 %v11514
        %v11650 = vunpack.c.l.b16 %v11515
        %v11651 = vunpack.c.l.b16 %v11516
        %v11652 = vunpack.c.l.b16 %v11517
        %v11653 = vunpack.c.l.b16 %v11518
        %v11654 = vunpack.c.l.b16 %v11519
        %v11655 = vunpack.c.l.b16 %v11520
        %v11656 = vunpack.c.l.b16 %v11521
        %v11657 = vunpack.c.l.b16 %v11522
        %v11658 = vunpack.c.l.b16 %v11523
        %v11659 = vunpack.c.l.b16 %v11524
        %v11660 = vunpack.c.l.b16 %v11525
        %v11661 = vunpack.c.l.b16 %v11526
        %v11662 = vunpack.c.l.b16 %v11527
        %v11663 = vunpack.c.l.b16 %v11528
        %v11664 = vunpack.c.l.b16 %v11529
        %v11665 = vunpack.c.l.b16 %v11530
        %v11666 = vunpack.c.l.b16 %v11531
        %v11667 = vunpack.c.l.b16 %v11532
        %v11668 = vunpack.c.l.b16 %v11533
        %v11669 = vunpack.c.l.b16 %v11534
        %v11670 = vunpack.c.l.b16 %v11535
        %v11671 = vunpack.c.l.b16 %v11536
        %v11672 = vunpack.c.l.b16 %v11537
        %v11673 = vunpack.c.l.b16 %v11538
        %v11674 = vunpack.c.l.b16 %v11539
        %v11675 = vunpack.c.l.b16 %v11540
        %v11676 = vpack.c.b16 %v11613, %v11612
        %v11677 = vpack.c.b16 %v11615, %v11614
        %v11678 = vpack.c.b16 %v11617, %v11616
        %v11679 = vpack.c.b16 %v11619, %v11618
        %v11680 = vpack.c.b16 %v11621, %v11620
        %v11681 = vpack.c.b16 %v11623, %v11622
        %v11682 = vpack.c.b16 %v11625, %v11624
        %v11683 = vpack.c.b16 %v11627, %v11626
        %v11684 = vpack.c.b16 %v11629, %v11628
        %v11685 = vpack.c.b16 %v11631, %v11630
        %v11686 = vpack.c.b16 %v11633, %v11632
        %v11687 = vpack.c.b16 %v11635, %v11634
        %v11688 = vpack.c.b16 %v11637, %v11636
        %v11689 = vpack.c.b16 %v11639, %v11638
        %v11690 = vpack.c.b16 %v11641, %v11640
        %v11691 = vpack.c.b16 %v11643, %v11642
        %v11692 = vpack.c.b16 %v11645, %v11644
        %v11693 = vpack.c.b16 %v11647, %v11646
        %v11694 = vpack.c.b16 %v11649, %v11648
        %v11695 = vpack.c.b16 %v11651, %v11650
        %v11696 = vpack.c.b16 %v11653, %v11652
        %v11697 = vpack.c.b16 %v11655, %v11654
        %v11698 = vpack.c.b16 %v11657, %v11656
        %v11699 = vpack.c.b16 %v11659, %v11658
        %v11700 = vpack.c.b16 %v11661, %v11660
        %v11701 = vpack.c.b16 %v11663, %v11662
        %v11702 = vpack.c.b16 %v11665, %v11664
        %v11703 = vpack.c.b16 %v11667, %v11666
        %v11704 = vpack.c.b16 %v11669, %v11668
        %v11705 = vpack.c.b16 %v11671, %v11670
        %v11706 = vpack.c.b16 %v11673, %v11672
        %v11707 = vpack.c.b16 %v11675, %v11674
        %11740 = vmatprep.subr.bf16.mxu0 0
        %11741 = vmatpush1.bf16.msra.mxu0 %v11676
        %11742 = vmatprep.subr.bf16.mxu0 0
        %11743 = vmatpush1.bf16.msra.mxu0 %v11677
        %11744 = vmatprep.subr.bf16.mxu0 0
        %11745 = vmatpush1.bf16.msra.mxu0 %v11678
        %11746 = vmatprep.subr.bf16.mxu0 0
        %11747 = vmatpush1.bf16.msra.mxu0 %v11679
        %11748 = vmatprep.subr.bf16.mxu0 0
        %11749 = vmatpush1.bf16.msra.mxu0 %v11680
        %11750 = vmatprep.subr.bf16.mxu0 0
        %11751 = vmatpush1.bf16.msra.mxu0 %v11681
        %11752 = vmatprep.subr.bf16.mxu0 0
        %11753 = vmatpush1.bf16.msra.mxu0 %v11682
        %11754 = vmatprep.subr.bf16.mxu0 0
        %11755 = vmatpush1.bf16.msra.mxu0 %v11683
        %11756 = vmatprep.subr.bf16.mxu0 0
        %11757 = vmatpush1.bf16.msra.mxu0 %v11684
        %11758 = vmatprep.subr.bf16.mxu0 0
        %11759 = vmatpush1.bf16.msra.mxu0 %v11685
        %11760 = vmatprep.subr.bf16.mxu0 0
        %11761 = vmatpush1.bf16.msra.mxu0 %v11686
        %11762 = vmatprep.subr.bf16.mxu0 0
        %11763 = vmatpush1.bf16.msra.mxu0 %v11687
        %11764 = vmatprep.subr.bf16.mxu0 0
        %11765 = vmatpush1.bf16.msra.mxu0 %v11688
        %11766 = vmatprep.subr.bf16.mxu0 0
        %11767 = vmatpush1.bf16.msra.mxu0 %v11689
        %11768 = vmatprep.subr.bf16.mxu0 0
        %11769 = vmatpush1.bf16.msra.mxu0 %v11690
        %11770 = vmatprep.subr.bf16.mxu0 0
        %11771 = vmatpush1.bf16.msra.mxu0 %v11691
        %11772 = vmatprep.mubr.bf16.mxu0 %v11474
        %11773 = vmatmul.mubr.bf16.gmra.mrb[0].mxu0 %v11473
        %v11774 = vpop.f32.mrb[0].mxu0
        %v11775 = vadd.f32 %v11546, %v11774
        %v11776 = vpop.f32.mrb[0].mxu0
        %v11777 = vpop.f32.mrb[0].mxu0
        %v11778 = vpop.f32.mrb[0].mxu0
        %11779 = vdwg.mxu0
        %11780 = vmatprep.subr.bf16.mxu0 0
        %11781 = vmatpush1.bf16.msra.mxu0 %v11692
        %11782 = vmatprep.subr.bf16.mxu0 0
        %11783 = vmatpush1.bf16.msra.mxu0 %v11693
        %11784 = vmatprep.subr.bf16.mxu0 0
        %11785 = vmatpush1.bf16.msra.mxu0 %v11694
        %11786 = vmatprep.subr.bf16.mxu0 0
        %11787 = vmatpush1.bf16.msra.mxu0 %v11695
        %11788 = vmatprep.subr.bf16.mxu0 0
        %11789 = vmatpush1.bf16.msra.mxu0 %v11696
        %11790 = vmatprep.subr.bf16.mxu0 0
        %11791 = vmatpush1.bf16.msra.mxu0 %v11697
        %11792 = vmatprep.subr.bf16.mxu0 0
        %11793 = vmatpush1.bf16.msra.mxu0 %v11698
        %11794 = vmatprep.subr.bf16.mxu0 0
        %11795 = vmatpush1.bf16.msra.mxu0 %v11699
        %11796 = vmatprep.subr.bf16.mxu0 0
        %11797 = vmatpush1.bf16.msra.mxu0 %v11700
        %11798 = vmatprep.subr.bf16.mxu0 0
        %11799 = vmatpush1.bf16.msra.mxu0 %v11701
        %11800 = vmatprep.subr.bf16.mxu0 0
        %11801 = vmatpush1.bf16.msra.mxu0 %v11702
        %11802 = vmatprep.subr.bf16.mxu0 0
        %11803 = vmatpush1.bf16.msra.mxu0 %v11703
        %11804 = vmatprep.subr.bf16.mxu0 0
        %11805 = vmatpush1.bf16.msra.mxu0 %v11704
        %11806 = vmatprep.subr.bf16.mxu0 0
        %11807 = vmatpush1.bf16.msra.mxu0 %v11705
        %11808 = vmatprep.subr.bf16.mxu0 0
        %11809 = vmatpush1.bf16.msra.mxu0 %v11706
        %11810 = vmatprep.subr.bf16.mxu0 0
        %11811 = vmatpush1.bf16.msra.mxu0 %v11707
        %11812 = vmatprep.mubr.bf16.mxu0 %v11476
        %11813 = vmatmul.mubr.bf16.gmra.mrb[0].mxu0 %v11475
        %v11814 = vpop.f32.mrb[0].mxu0
        %v11815 = vadd.f32 %v11775, %v11814
        %v11816 = vpop.f32.mrb[0].mxu0
        %v11817 = vpop.f32.mrb[0].mxu0
        %v11818 = vpop.f32.mrb[0].mxu0
        %11819 = vdwg.mxu0
        %11820 = vst [vmem:[%s500] sm:$0xff] %v11815
        %s11821 = sand.u32 %s255, 1
        %s11822 = scalar_lea.sflag [#allocation4], %s11821
        %s11823 = sand.u32 %s255, 1
        %s11824 = smul.addr %s11823, 8
        %s11825 = scalar_lea.vmem [#allocation19], %s11824
        // Predicated region
        $region101: #{net_forward.1} parent=59 // pred_check
          %p11826 = pneg %p265
        $region102: #{net_forward.1} parent=59 // pred_check_branch
          %11828 = sbr.rel (%p11826) target = $region104
        $region103: #{net_forward.1} parent=59 // pred_region
          %s11830 = ssub.s32 128, 128
          %11831 = vsyncadd %s11822, %s11830
          %s11832 = smul.addr %s32, 128
          %s11833 = scalar_lea.hbm %s10, %s11832
          %s11835 = sshll.u32 %s11825, 4
          %s11836 = int_to_ptr.vmem [resolvable:$true] %s11835
          %11838 = dma.vmem_to_hbm [thread:$0]  %s11836, 128, %s11833, %s11822
        $region104: #{net_forward.1} parent=59 // pred_fallthru
          _
      $region60: #{net_forward.1} parent=5 // pred_fallthru
        _
      %p11839 = scmp.le.s32.totalorder 2, %s27
      // Predicated region
      $region105: #{net_forward.1} parent=5 // pred_check
        %p11840 = pneg %p11839
      $region106: #{net_forward.1} parent=5 // pred_check_branch
        %11842 = sbr.rel (%p11840) target = $region108
      $region107: #{net_forward.1} parent=5 // pred_region
        %s11843 = ssub.s32 %s27, 2
        // Predicated region
        $region109: #{net_forward.1} parent=107 // pred_check
          %p11844 = pneg %p271
        $region110: #{net_forward.1} parent=107 // pred_check_branch
          %11846 = sbr.rel (%p11844) target = $region112
        $region111: #{net_forward.1} parent=107 // pred_region
          %s11847 = sand.u32 %s256, 1
          %s11848 = scalar_lea.sflag [#allocation4], %s11847
          %s11849 = sand.u32 %s256, 1
          %s11850 = smul.addr %s11849, 8
          %s11851 = scalar_lea.vmem [#allocation19], %s11850
          %11852 = dma.done %s11848, 128
        $region112: #{net_forward.1} parent=107 // pred_fallthru
          _
      $region108: #{net_forward.1} parent=5 // pred_fallthru
        _
    $region6: #{net_forward.1} parent=1 // loop_footer
      %s31 = sadd.s32 1, %s27
    $region7: #{net_forward.1} parent=1 // loop_footer_branch
      %26 = sbr.rel target = $region3
    $region8: #{net_forward.1} parent=1 // loop_exit
      _
    %11853 = vsyncpa [#allocation3], 1
    %s11854 = scalar_lea.sflag [#allocation3], 1
    %11855 = vsyncpa %s11854, 1
    %11856 = vsyncpa [#allocation6], 1
    %11857 = vsyncpa [#allocation9], 1
    %11858 = vsyncpa [#allocation12], 1
    %11859 = vsyncpa [#allocation15], 1
    %11860 = vsyncpa [#allocation18], 1
    %11861 = vsyncpa [#allocation4], 1
    %s11862 = scalar_lea.sflag [#allocation4], 1
    %11863 = vsyncpa %s11862, 1

</llo_original>
